<compile_context>
chip_gen: v7x
topology: tpu7x:2x2x1
jax: 0.10.0
libtpu: 0.0.40
codegen_flags: <defaults>
</compile_context>

<pallas_src>
import functools

import jax
import jax.numpy as jnp
from jax.experimental import pallas as pl
from jax.experimental.pallas import tpu as pltpu


def _sigmoid(v):
    # Exact sigmoid via a single EUP transcendental; robust for large |v|.
    return 0.5 * jnp.tanh(0.5 * v) + 0.5


def _silu(v):
    return v * _sigmoid(v)


# ----------------------------------------------------------------------------
# The fused per-image kernel.
# ----------------------------------------------------------------------------
def _fused_kernel(gb_ref, x_ref, w1_ref, b1_ref, w2_ref, b2_ref,
                  mhw_ref, mcw_ref, mhc_ref, cmask_ref, o_ref, *, add, h, w):
    hw_pix = h * w
    c_hidden = w1_ref.shape[1]
    c2 = b2_ref.shape[1]

    x_bf = x_ref[0]                                        # (H*W, C1) bf16

    # ---- cv1: 1x1 conv + BN + SiLU (bf16 MXU operands, f32 accumulate) ----
    y1 = jnp.dot(x_bf, w1_ref[...], preferred_element_type=jnp.float32)
    y1 = _silu(y1 + b1_ref[...])                           # (H*W, c_) f32

    # ---- cv2: 3x3 conv + BN + SiLU as ONE im2col matmul (K = 9*c_) ----
    # Row-padded flat activation: tap (kh, kw) is the contiguous sublane slice
    # starting at kh*W + kw; the column wrap-around at w==0 / w==W-1 is removed
    # with per-pixel 0/1 masks (cmask), kw==1 needs no mask.
    y1_bf = y1.astype(jnp.bfloat16)
    zpad = jnp.zeros((w + 1, c_hidden), jnp.bfloat16)
    y1row = jnp.concatenate([zpad, y1_bf, zpad], axis=0)   # (H*W + 2W + 2, c_)
    mask_l = cmask_ref[:, 0:1]                             # 0 where w == 0
    mask_r = cmask_ref[:, 1:2]                             # 0 where w == W-1
    taps = []
    for kh in range(3):
        for kw in range(3):
            start = kh * w + kw
            tap = y1row[start:start + hw_pix, :]
            if kw == 0:
                tap = tap * mask_l
            elif kw == 2:
                tap = tap * mask_r
            taps.append(tap)
    im2col = jnp.concatenate(taps, axis=1)                 # (H*W, 9c_) bf16
    y2f = jnp.dot(im2col, w2_ref[...], preferred_element_type=jnp.float32)
    y2f = _silu(y2f + b2_ref[...])                         # (H*W, C2) f32
    y2 = y2f.reshape(h, w, c2)                             # (H, W, C2)

    # ---- TripletAttention gates: 7x7 conv on a ZPool'ed 2-channel map ----
    # Lane (dq) part of the conv = one (P,2Q)@(2Q,7Q) MXU matmul; sublane (dr)
    # part = 7 shifted adds of padded column blocks (exact f32, no R matmuls).
    def gate(mx, mn, m_ref, bias):
        p_dim, q_dim = mx.shape
        pooled = jnp.concatenate([mx, mn], axis=1).astype(jnp.bfloat16)   # (P,2Q)
        t = jnp.dot(pooled, m_ref[...], preferred_element_type=jnp.float32)  # (P,7Q)
        zrow = jnp.zeros((3, 7 * q_dim), jnp.float32)
        tpad = jnp.concatenate([zrow, t, zrow], axis=0)    # (P+6, 7Q)
        conv = jnp.zeros((p_dim, q_dim), jnp.float32) + bias
        for dr in range(7):
            conv = conv + tpad[dr:dr + p_dim, dr * q_dim:(dr + 1) * q_dim]
        return _sigmoid(conv)

    # hw gate: ZPool over channels -> (H, W) scale
    s_hw = gate(jnp.max(y2, axis=2), jnp.mean(y2, axis=2), mhw_ref, gb_ref[0])
    # cw gate: ZPool over H -> (W, C2) scale
    s_cw = gate(jnp.max(y2, axis=0), jnp.mean(y2, axis=0), mcw_ref, gb_ref[1])
    # hc gate: ZPool over W -> (H, C2) scale
    s_hc = gate(jnp.max(y2, axis=1), jnp.mean(y2, axis=1), mhc_ref, gb_ref[2])

    # ---- rescale + 1/3 average + residual: pure broadcasts ----
    scale3 = (s_hc[:, None, :] + s_cw[None, :, :] + s_hw[:, :, None]) * (1.0 / 3.0)
    out = (y2 * scale3).reshape(hw_pix, c2)
    if add:
        out = out + x_bf.astype(jnp.float32)
    o_ref[0] = out.astype(o_ref.dtype)


# ----------------------------------------------------------------------------
# Host-side constant matrices for the banded 7x7-conv decomposition.
# ----------------------------------------------------------------------------
def _gate_matrix(wk, q_dim):
    # wk: (2, 7, 7) arranged (channel[max,mean], row-offset dr, col-offset dq).
    # Returns (2Q, 7Q) bf16: rows [0:Q] act on the max map, [Q:2Q] on the mean
    # map; column block dr is the banded lane-conv matrix for row-offset dr.
    q = jnp.arange(q_dim)
    diff = q[:, None] - q[None, :] + 3          # [q', q] = dq
    valid = (diff >= 0) & (diff < 7)
    idx = jnp.clip(diff, 0, 6)

    def band(ch, dr):
        return jnp.where(valid, wk[ch, dr][idx], 0.0)

    m_mx = jnp.concatenate([band(0, dr) for dr in range(7)], axis=1)   # (Q, 7Q)
    m_mn = jnp.concatenate([band(1, dr) for dr in range(7)], axis=1)   # (Q, 7Q)
    return jnp.concatenate([m_mx, m_mn], axis=0).astype(jnp.bfloat16)  # (2Q, 7Q)


def _vmem_limit_bytes():
    # Per-generation budget (v5e/v6e: 128 MiB physical, v7x: 64 MiB); leave
    # ~25% headroom, cap at 100 MiB.
    try:
        cap = int(pltpu.get_tpu_info().vmem_capacity_bytes)
    except Exception:
        cap = 64 * 1024 * 1024
    return int(min(cap * 3 // 4, 100 * 1024 * 1024))


# ----------------------------------------------------------------------------
# Full forward pass (public NCHW API).
# ----------------------------------------------------------------------------
def triplet_bottleneck_forward(x, params, shortcut=True):
    B, C1, H, W = x.shape
    w1, b1, w2, b2 = params["w1"], params["b1"], params["w2"], params["b2"]
    c_ = w1.shape[0]
    C2 = w2.shape[0]
    add = bool(shortcut) and (C1 == C2)

    # conv weights as (bf16) matmul operands, BN already folded.
    w1m = w1[:, :, 0, 0].T.astype(jnp.bfloat16)                        # (C1, c_)
    b1r = b1.reshape(1, c_).astype(jnp.float32)
    # im2col weight: row block (kh*3 + kw) is w2[:, :, kh, kw].T
    w2cat = jnp.transpose(w2, (2, 3, 1, 0)).reshape(9 * c_, C2).astype(jnp.bfloat16)
    b2r = b2.reshape(1, C2).astype(jnp.float32)

    (wcw, bcw), (whc, bhc), (whw, bhw) = params["gates"]
    # Gate kernels oriented for each pooled-map layout:
    #   hw map (H, W):  rows=H (ki), cols=W (kj) -> whw as-is
    #   cw map (W, C2): rows=W (kj), cols=C (ki) -> spatially transposed wcw
    #   hc map (H, C2): rows=H (ki), cols=C (kj) -> whc as-is
    mhw = _gate_matrix(whw, W)
    mcw = _gate_matrix(jnp.transpose(wcw, (0, 2, 1)), C2)
    mhc = _gate_matrix(whc, C2)
    gb = jnp.concatenate([bhw, bcw, bhc]).astype(jnp.float32)          # (3,)

    # per-pixel column-edge masks for the flat 3x3 taps
    wid = jnp.arange(H * W, dtype=jnp.int32) % W
    cmask = jnp.stack([wid >= 1, wid <= W - 2], axis=1).astype(jnp.bfloat16)

    # channels-last flat pixel layout; bf16 halves the input DMA bytes.
    x_flat = jnp.transpose(x, (0, 2, 3, 1)).reshape(B, H * W, C1).astype(jnp.bfloat16)

    kernel = functools.partial(_fused_kernel, add=add, h=H, w=W)

    def _const(shape, single):
        nd = len(shape)
        imap = lambda b: (0,) * nd
        if single:
            return pl.BlockSpec(shape, imap, pipeline_mode=pl.Buffered(1))
        return pl.BlockSpec(shape, imap)

    def _call(single_buffer):
        in_specs = [
            pl.BlockSpec(memory_space=pltpu.MemorySpace.SMEM),         # gate biases
            pl.BlockSpec((1, H * W, C1), lambda b: (b, 0, 0)),         # x (flat NHWC)
            _const((C1, c_), single_buffer),                           # w1
            _const((1, c_), single_buffer),                            # b1
            _const((9 * c_, C2), single_buffer),                       # w2 (im2col)
            _const((1, C2), single_buffer),                            # b2
            _const((2 * W, 7 * W), single_buffer),                     # hw gate matrix
            _const((2 * C2, 7 * C2), single_buffer),                   # cw gate matrix
            _const((2 * C2, 7 * C2), single_buffer),                   # hc gate matrix
            _const((H * W, 2), single_buffer),                         # column masks
        ]
        return pl.pallas_call(
            kernel,
            out_shape=jax.ShapeDtypeStruct((B, H * W, C2), x.dtype),
            grid=(B,),
            in_specs=in_specs,
            out_specs=pl.BlockSpec((1, H * W, C2), lambda b: (b, 0, 0)),
            compiler_params=pltpu.CompilerParams(
                dimension_semantics=("parallel",),
                vmem_limit_bytes=_vmem_limit_bytes(),
            ),
        )(gb, x_flat, w1m, b1r, w2cat, b2r, mhw, mcw, mhc, cmask)

    try:
        # single-buffer the grid-invariant operands (halves their VMEM)
        out_flat = _call(True)
    except Exception:
        # fallback if this JAX build rejects pl.Buffered(1)
        out_flat = _call(False)

    out_nhwc = out_flat.reshape(B, H, W, C2)
    return jnp.transpose(out_nhwc, (0, 3, 1, 2))            # back to public NCHW


# ----------------------------------------------------------------------------
# Parameter construction (deterministic, BN folded in eval mode).
# ----------------------------------------------------------------------------
def make_params(key, c1, c2, e=0.5):
    c_ = int(c2 * e)
    ks = jax.random.split(key, 12)

    def bn_params(k, c):
        k1, k2, k3, k4 = jax.random.split(k, 4)
        gamma = 1.0 + 0.1 * jax.random.normal(k1, (c,), jnp.float32)
        beta = 0.1 * jax.random.normal(k2, (c,), jnp.float32)
        mean = 0.1 * jax.random.normal(k3, (c,), jnp.float32)
        var = 0.5 + 0.5 * jax.random.uniform(k4, (c,), jnp.float32)
        return gamma, beta, mean, var

    def fold(w, bnp, eps=1e-5):
        gamma, beta, mean, var = bnp
        a = gamma / jnp.sqrt(var + eps)
        w_eff = w * a.reshape(-1, 1, 1, 1)
        b_eff = beta - a * mean
        return w_eff, b_eff

    w1 = 0.3 * jax.random.normal(ks[0], (c_, c1, 1, 1), jnp.float32)
    w2 = 0.3 * jax.random.normal(ks[1], (c2, c_, 3, 3), jnp.float32)
    wg_cw = 0.3 * jax.random.normal(ks[2], (1, 2, 7, 7), jnp.float32)
    wg_hc = 0.3 * jax.random.normal(ks[3], (1, 2, 7, 7), jnp.float32)
    wg_hw = 0.3 * jax.random.normal(ks[4], (1, 2, 7, 7), jnp.float32)

    w1e, b1 = fold(w1, bn_params(ks[5], c_))
    w2e, b2 = fold(w2, bn_params(ks[6], c2))
    gates = []
    for wg, kk in ((wg_cw, ks[7]), (wg_hc, ks[8]), (wg_hw, ks[9])):
        we, be = fold(wg, bn_params(kk, 1))
        gates.append((we[0], be))                          # (2,7,7), (1,)
    return dict(w1=w1e, b1=b1, w2=w2e, b2=b2, gates=gates)


# ----------------------------------------------------------------------------
# Pure-JAX f32 reference (same folded params) for a correctness check.
# ----------------------------------------------------------------------------
def _conv2d_nchw(x, w, pad):
    return jax.lax.conv_general_dilated(
        x, w, window_strides=(1, 1), padding=((pad, pad), (pad, pad)),
        dimension_numbers=("NCHW", "OIHW", "NCHW"))


def reference_forward(x, params, shortcut=True):
    w1, b1, w2, b2 = params["w1"], params["b1"], params["w2"], params["b2"]
    y = _conv2d_nchw(x, w1, 0) + b1.reshape(1, -1, 1, 1)
    y = y * jax.nn.sigmoid(y)
    y = _conv2d_nchw(y, w2, 1) + b2.reshape(1, -1, 1, 1)
    y = y * jax.nn.sigmoid(y)

    def gate(z, wg, bg):
        mx = jnp.max(z, axis=1, keepdims=True)
        mn = jnp.mean(z, axis=1, keepdims=True)
        comp = jnp.concatenate([mx, mn], axis=1)
        s = _conv2d_nchw(comp, wg.reshape(1, 2, 7, 7), 3) + bg[0]
        return z * jax.nn.sigmoid(s)

    (wcw, bcw), (whc, bhc), (whw, bhw) = params["gates"]
    g_hw = gate(y, whw, bhw)
    g_cw = jnp.transpose(gate(jnp.transpose(y, (0, 2, 1, 3)), wcw, bcw), (0, 2, 1, 3))
    g_hc = jnp.transpose(gate(jnp.transpose(y, (0, 3, 2, 1)), whc, bhc), (0, 3, 2, 1))
    out = (g_hw + g_cw + g_hc) / 3.0
    if shortcut and x.shape[1] == y.shape[1]:
        out = x + out
    return out


if __name__ == "__main__":
    key = jax.random.PRNGKey(0)
    kx, kp = jax.random.split(key)
    B, C, H, W = 2, 8, 16, 16                    # c1 = c2 = 8 -> shortcut add
    x = jax.random.normal(kx, (B, C, H, W), dtype=jnp.float32)
    params = make_params(kp, C, C, e=0.5)

    out = jax.block_until_ready(triplet_bottleneck_forward(x, params, shortcut=True))
    ref = reference_forward(x, params, shortcut=True)

    assert out.shape == ref.shape == (B, C, H, W)
    err = float(jnp.max(jnp.abs(out - ref)))
    rng = float(jnp.max(jnp.abs(ref))) + 1e-6
    # bf16 MXU operands + bf16 input cast -> expect <~1% of the output range.
    assert err / rng < 3e-2, f"max abs err {err} (output range {rng})"
    print("KERNEL_OK")
</pallas_src>

<mosaic_0001>
module attributes {stable_mosaic.version = 11 : i64} {
  func.func @_fused_kernel(%arg0: i32, %arg1: memref<3xf32, #tpu.memory_space<smem>>, %arg2: memref<1x256x8xbf16, #tpu.memory_space<vmem>>, %arg3: memref<8x4xbf16, #tpu.memory_space<vmem>>, %arg4: memref<1x4xf32, #tpu.memory_space<vmem>>, %arg5: memref<36x8xbf16, #tpu.memory_space<vmem>>, %arg6: memref<1x8xf32, #tpu.memory_space<vmem>>, %arg7: memref<32x112xbf16, #tpu.memory_space<vmem>>, %arg8: memref<16x56xbf16, #tpu.memory_space<vmem>>, %arg9: memref<16x56xbf16, #tpu.memory_space<vmem>>, %arg10: memref<256x2xbf16, #tpu.memory_space<vmem>>, %arg11: memref<1x256x8xf32, #tpu.memory_space<vmem>>) attributes {dimension_semantics = [#tpu.dimension_semantics<parallel>], iteration_bounds = array<i64: 2>, scalar_prefetch = 0 : i64, scratch_operands = 0 : i64, tpu.core_type = #tpu.core_type<tc>, window_params = [{transform_indices = @transform_0, window_bounds = array<i64: 3>}, {transform_indices = @transform_1, window_bounds = array<i64: 1, 256, 8>}, {pipeline_mode = #tpu.pipeline_mode<synchronous>, transform_indices = @transform_2, window_bounds = array<i64: 8, 4>}, {pipeline_mode = #tpu.pipeline_mode<synchronous>, transform_indices = @transform_3, window_bounds = array<i64: 1, 4>}, {pipeline_mode = #tpu.pipeline_mode<synchronous>, transform_indices = @transform_4, window_bounds = array<i64: 36, 8>}, {pipeline_mode = #tpu.pipeline_mode<synchronous>, transform_indices = @transform_5, window_bounds = array<i64: 1, 8>}, {pipeline_mode = #tpu.pipeline_mode<synchronous>, transform_indices = @transform_6, window_bounds = array<i64: 32, 112>}, {pipeline_mode = #tpu.pipeline_mode<synchronous>, transform_indices = @transform_7, window_bounds = array<i64: 16, 56>}, {pipeline_mode = #tpu.pipeline_mode<synchronous>, transform_indices = @transform_8, window_bounds = array<i64: 16, 56>}, {pipeline_mode = #tpu.pipeline_mode<synchronous>, transform_indices = @transform_9, window_bounds = array<i64: 256, 2>}, {transform_indices = @transform_10, window_bounds = array<i64: 1, 256, 8>}]} {
    %c0 = arith.constant 0 : index
    %c0_0 = arith.constant 0 : index
    %c0_1 = arith.constant 0 : index
    %0 = vector.load %arg2[%c0, %c0_0, %c0_1] : memref<1x256x8xbf16, #tpu.memory_space<vmem>>, vector<1x256x8xbf16>
    %1 = vector.shape_cast %0 : vector<1x256x8xbf16> to vector<256x8xbf16>
    %c0_2 = arith.constant 0 : index
    %c0_3 = arith.constant 0 : index
    %2 = vector.load %arg3[%c0_2, %c0_3] : memref<8x4xbf16, #tpu.memory_space<vmem>>, vector<8x4xbf16>
    %cst = arith.constant dense<0.000000e+00> : vector<256x4xf32>
    %3 = tpu.matmul %1, %2, %cst {dimension_numbers = #tpu.dot_dimension_numbers<[1], [0], [0], [1], [0, 0, 1, 1], [], []>} : vector<256x8xbf16>, vector<8x4xbf16>, vector<256x4xf32> -> vector<256x4xf32>
    %c0_4 = arith.constant 0 : index
    %c0_5 = arith.constant 0 : index
    %4 = vector.load %arg4[%c0_4, %c0_5] : memref<1x4xf32, #tpu.memory_space<vmem>>, vector<1x4xf32>
    %5 = vector.broadcast %4 : vector<1x4xf32> to vector<256x4xf32>
    %6 = arith.addf %3, %5 : vector<256x4xf32>
    %cst_6 = arith.constant 5.000000e-01 : f32
    %7 = vector.broadcast %cst_6 : f32 to vector<256x4xf32>
    %8 = arith.mulf %7, %6 : vector<256x4xf32>
    %9 = math.tanh %8 : vector<256x4xf32>
    %cst_7 = arith.constant 5.000000e-01 : f32
    %10 = vector.broadcast %cst_7 : f32 to vector<256x4xf32>
    %11 = arith.mulf %10, %9 : vector<256x4xf32>
    %cst_8 = arith.constant 5.000000e-01 : f32
    %12 = vector.broadcast %cst_8 : f32 to vector<256x4xf32>
    %13 = arith.addf %11, %12 : vector<256x4xf32>
    %14 = arith.mulf %6, %13 : vector<256x4xf32>
    %15 = arith.truncf %14 : vector<256x4xf32> to vector<256x4xbf16>
    %cst_9 = arith.constant 0.000000e+00 : bf16
    %16 = vector.broadcast %cst_9 : bf16 to vector<17x4xbf16>
    %17 = tpu.concatenate %16, %15, %16 in 0 : vector<17x4xbf16>, vector<256x4xbf16>, vector<17x4xbf16> -> vector<290x4xbf16>
    %c0_10 = arith.constant 0 : index
    %c0_11 = arith.constant 0 : index
    %18 = vector.load %arg10[%c0_10, %c0_11] : memref<256x2xbf16, #tpu.memory_space<vmem>>, vector<256x1xbf16>
    %c0_12 = arith.constant 0 : index
    %c1 = arith.constant 1 : index
    %19 = vector.load %arg10[%c0_12, %c1] : memref<256x2xbf16, #tpu.memory_space<vmem>>, vector<256x1xbf16>
    %20 = vector.extract_strided_slice %17 {offsets = [0, 0], sizes = [256, 4], strides = [1, 1]} : vector<290x4xbf16> to vector<256x4xbf16>
    %21 = vector.broadcast %18 : vector<256x1xbf16> to vector<256x4xbf16>
    %22 = arith.mulf %20, %21 : vector<256x4xbf16>
    %23 = vector.extract_strided_slice %17 {offsets = [1, 0], sizes = [256, 4], strides = [1, 1]} : vector<290x4xbf16> to vector<256x4xbf16>
    %24 = vector.extract_strided_slice %17 {offsets = [2, 0], sizes = [256, 4], strides = [1, 1]} : vector<290x4xbf16> to vector<256x4xbf16>
    %25 = vector.broadcast %19 : vector<256x1xbf16> to vector<256x4xbf16>
    %26 = arith.mulf %24, %25 : vector<256x4xbf16>
    %27 = vector.extract_strided_slice %17 {offsets = [16, 0], sizes = [256, 4], strides = [1, 1]} : vector<290x4xbf16> to vector<256x4xbf16>
    %28 = vector.broadcast %18 : vector<256x1xbf16> to vector<256x4xbf16>
    %29 = arith.mulf %27, %28 : vector<256x4xbf16>
    %30 = vector.extract_strided_slice %17 {offsets = [17, 0], sizes = [256, 4], strides = [1, 1]} : vector<290x4xbf16> to vector<256x4xbf16>
    %31 = vector.extract_strided_slice %17 {offsets = [18, 0], sizes = [256, 4], strides = [1, 1]} : vector<290x4xbf16> to vector<256x4xbf16>
    %32 = vector.broadcast %19 : vector<256x1xbf16> to vector<256x4xbf16>
    %33 = arith.mulf %31, %32 : vector<256x4xbf16>
    %34 = vector.extract_strided_slice %17 {offsets = [32, 0], sizes = [256, 4], strides = [1, 1]} : vector<290x4xbf16> to vector<256x4xbf16>
    %35 = vector.broadcast %18 : vector<256x1xbf16> to vector<256x4xbf16>
    %36 = arith.mulf %34, %35 : vector<256x4xbf16>
    %37 = vector.extract_strided_slice %17 {offsets = [33, 0], sizes = [256, 4], strides = [1, 1]} : vector<290x4xbf16> to vector<256x4xbf16>
    %38 = vector.extract_strided_slice %17 {offsets = [34, 0], sizes = [256, 4], strides = [1, 1]} : vector<290x4xbf16> to vector<256x4xbf16>
    %39 = vector.broadcast %19 : vector<256x1xbf16> to vector<256x4xbf16>
    %40 = arith.mulf %38, %39 : vector<256x4xbf16>
    %41 = tpu.concatenate %22, %23, %26, %29, %30, %33, %36, %37, %40 in 1 : vector<256x4xbf16>, vector<256x4xbf16>, vector<256x4xbf16>, vector<256x4xbf16>, vector<256x4xbf16>, vector<256x4xbf16>, vector<256x4xbf16>, vector<256x4xbf16>, vector<256x4xbf16> -> vector<256x36xbf16>
    %c0_13 = arith.constant 0 : index
    %c0_14 = arith.constant 0 : index
    %42 = vector.load %arg5[%c0_13, %c0_14] : memref<36x8xbf16, #tpu.memory_space<vmem>>, vector<36x8xbf16>
    %cst_15 = arith.constant dense<0.000000e+00> : vector<256x8xf32>
    %43 = tpu.matmul %41, %42, %cst_15 {dimension_numbers = #tpu.dot_dimension_numbers<[1], [0], [0], [1], [0, 0, 1, 1], [], []>} : vector<256x36xbf16>, vector<36x8xbf16>, vector<256x8xf32> -> vector<256x8xf32>
    %c0_16 = arith.constant 0 : index
    %c0_17 = arith.constant 0 : index
    %44 = vector.load %arg6[%c0_16, %c0_17] : memref<1x8xf32, #tpu.memory_space<vmem>>, vector<1x8xf32>
    %45 = vector.broadcast %44 : vector<1x8xf32> to vector<256x8xf32>
    %46 = arith.addf %43, %45 : vector<256x8xf32>
    %cst_18 = arith.constant 5.000000e-01 : f32
    %47 = vector.broadcast %cst_18 : f32 to vector<256x8xf32>
    %48 = arith.mulf %47, %46 : vector<256x8xf32>
    %49 = math.tanh %48 : vector<256x8xf32>
    %cst_19 = arith.constant 5.000000e-01 : f32
    %50 = vector.broadcast %cst_19 : f32 to vector<256x8xf32>
    %51 = arith.mulf %50, %49 : vector<256x8xf32>
    %cst_20 = arith.constant 5.000000e-01 : f32
    %52 = vector.broadcast %cst_20 : f32 to vector<256x8xf32>
    %53 = arith.addf %51, %52 : vector<256x8xf32>
    %54 = arith.mulf %46, %53 : vector<256x8xf32>
    %55 = vector.shape_cast %54 : vector<256x8xf32> to vector<16x16x8xf32>
    %cst_21 = arith.constant dense<0xFF800000> : vector<16x16xf32>
    %56 = vector.multi_reduction <maximumf>, %55, %cst_21 [2] : vector<16x16x8xf32> to vector<16x16xf32>
    %cst_22 = arith.constant dense<0.000000e+00> : vector<16x16xf32>
    %57 = vector.multi_reduction <add>, %55, %cst_22 [2] : vector<16x16x8xf32> to vector<16x16xf32>
    %cst_23 = arith.constant 8.000000e+00 : f32
    %58 = vector.broadcast %cst_23 : f32 to vector<16x16xf32>
    %59 = arith.divf %57, %58 : vector<16x16xf32>
    %c0_24 = arith.constant 0 : index
    %60 = memref.load %arg1[%c0_24] : memref<3xf32, #tpu.memory_space<smem>>
    %61 = tpu.concatenate %56, %59 in 1 : vector<16x16xf32>, vector<16x16xf32> -> vector<16x32xf32>
    %62 = arith.truncf %61 : vector<16x32xf32> to vector<16x32xbf16>
    %c0_25 = arith.constant 0 : index
    %c0_26 = arith.constant 0 : index
    %63 = vector.load %arg7[%c0_25, %c0_26] : memref<32x112xbf16, #tpu.memory_space<vmem>>, vector<32x112xbf16>
    %cst_27 = arith.constant dense<0.000000e+00> : vector<16x112xf32>
    %64 = tpu.matmul %62, %63, %cst_27 {dimension_numbers = #tpu.dot_dimension_numbers<[1], [0], [0], [1], [0, 0, 1, 1], [], []>} : vector<16x32xbf16>, vector<32x112xbf16>, vector<16x112xf32> -> vector<16x112xf32>
    %cst_28 = arith.constant 0.000000e+00 : f32
    %65 = vector.broadcast %cst_28 : f32 to vector<3x112xf32>
    %66 = tpu.concatenate %65, %64, %65 in 0 : vector<3x112xf32>, vector<16x112xf32>, vector<3x112xf32> -> vector<22x112xf32>
    %cst_29 = arith.constant 0.000000e+00 : f32
    %67 = vector.broadcast %cst_29 : f32 to vector<16x16xf32>
    %68 = vector.broadcast %60 : f32 to vector<16x16xf32>
    %69 = arith.addf %67, %68 : vector<16x16xf32>
    %70 = vector.extract_strided_slice %66 {offsets = [0, 0], sizes = [16, 16], strides = [1, 1]} : vector<22x112xf32> to vector<16x16xf32>
    %71 = arith.addf %69, %70 : vector<16x16xf32>
    %72 = vector.extract_strided_slice %66 {offsets = [1, 16], sizes = [16, 16], strides = [1, 1]} : vector<22x112xf32> to vector<16x16xf32>
    %73 = arith.addf %71, %72 : vector<16x16xf32>
    %74 = vector.extract_strided_slice %66 {offsets = [2, 32], sizes = [16, 16], strides = [1, 1]} : vector<22x112xf32> to vector<16x16xf32>
    %75 = arith.addf %73, %74 : vector<16x16xf32>
    %76 = vector.extract_strided_slice %66 {offsets = [3, 48], sizes = [16, 16], strides = [1, 1]} : vector<22x112xf32> to vector<16x16xf32>
    %77 = arith.addf %75, %76 : vector<16x16xf32>
    %78 = vector.extract_strided_slice %66 {offsets = [4, 64], sizes = [16, 16], strides = [1, 1]} : vector<22x112xf32> to vector<16x16xf32>
    %79 = arith.addf %77, %78 : vector<16x16xf32>
    %80 = vector.extract_strided_slice %66 {offsets = [5, 80], sizes = [16, 16], strides = [1, 1]} : vector<22x112xf32> to vector<16x16xf32>
    %81 = arith.addf %79, %80 : vector<16x16xf32>
    %82 = vector.extract_strided_slice %66 {offsets = [6, 96], sizes = [16, 16], strides = [1, 1]} : vector<22x112xf32> to vector<16x16xf32>
    %83 = arith.addf %81, %82 : vector<16x16xf32>
    %cst_30 = arith.constant 5.000000e-01 : f32
    %84 = vector.broadcast %cst_30 : f32 to vector<16x16xf32>
    %85 = arith.mulf %84, %83 : vector<16x16xf32>
    %86 = math.tanh %85 : vector<16x16xf32>
    %cst_31 = arith.constant 5.000000e-01 : f32
    %87 = vector.broadcast %cst_31 : f32 to vector<16x16xf32>
    %88 = arith.mulf %87, %86 : vector<16x16xf32>
    %cst_32 = arith.constant 5.000000e-01 : f32
    %89 = vector.broadcast %cst_32 : f32 to vector<16x16xf32>
    %90 = arith.addf %88, %89 : vector<16x16xf32>
    %cst_33 = arith.constant dense<0xFF800000> : vector<16x8xf32>
    %91 = vector.multi_reduction <maximumf>, %55, %cst_33 [0] : vector<16x16x8xf32> to vector<16x8xf32>
    %cst_34 = arith.constant dense<0.000000e+00> : vector<16x8xf32>
    %92 = vector.multi_reduction <add>, %55, %cst_34 [0] : vector<16x16x8xf32> to vector<16x8xf32>
    %cst_35 = arith.constant 1.600000e+01 : f32
    %93 = vector.broadcast %cst_35 : f32 to vector<16x8xf32>
    %94 = arith.divf %92, %93 : vector<16x8xf32>
    %c1_36 = arith.constant 1 : index
    %95 = memref.load %arg1[%c1_36] : memref<3xf32, #tpu.memory_space<smem>>
    %96 = tpu.concatenate %91, %94 in 1 : vector<16x8xf32>, vector<16x8xf32> -> vector<16x16xf32>
    %97 = arith.truncf %96 : vector<16x16xf32> to vector<16x16xbf16>
    %c0_37 = arith.constant 0 : index
    %c0_38 = arith.constant 0 : index
    %98 = vector.load %arg8[%c0_37, %c0_38] : memref<16x56xbf16, #tpu.memory_space<vmem>>, vector<16x56xbf16>
    %cst_39 = arith.constant dense<0.000000e+00> : vector<16x56xf32>
    %99 = tpu.matmul %97, %98, %cst_39 {dimension_numbers = #tpu.dot_dimension_numbers<[1], [0], [0], [1], [0, 0, 1, 1], [], []>} : vector<16x16xbf16>, vector<16x56xbf16>, vector<16x56xf32> -> vector<16x56xf32>
    %cst_40 = arith.constant 0.000000e+00 : f32
    %100 = vector.broadcast %cst_40 : f32 to vector<3x56xf32>
    %101 = tpu.concatenate %100, %99, %100 in 0 : vector<3x56xf32>, vector<16x56xf32>, vector<3x56xf32> -> vector<22x56xf32>
    %cst_41 = arith.constant 0.000000e+00 : f32
    %102 = vector.broadcast %cst_41 : f32 to vector<16x8xf32>
    %103 = vector.broadcast %95 : f32 to vector<16x8xf32>
    %104 = arith.addf %102, %103 : vector<16x8xf32>
    %105 = vector.extract_strided_slice %101 {offsets = [0, 0], sizes = [16, 8], strides = [1, 1]} : vector<22x56xf32> to vector<16x8xf32>
    %106 = arith.addf %104, %105 : vector<16x8xf32>
    %107 = vector.extract_strided_slice %101 {offsets = [1, 8], sizes = [16, 8], strides = [1, 1]} : vector<22x56xf32> to vector<16x8xf32>
    %108 = arith.addf %106, %107 : vector<16x8xf32>
    %109 = vector.extract_strided_slice %101 {offsets = [2, 16], sizes = [16, 8], strides = [1, 1]} : vector<22x56xf32> to vector<16x8xf32>
    %110 = arith.addf %108, %109 : vector<16x8xf32>
    %111 = vector.extract_strided_slice %101 {offsets = [3, 24], sizes = [16, 8], strides = [1, 1]} : vector<22x56xf32> to vector<16x8xf32>
    %112 = arith.addf %110, %111 : vector<16x8xf32>
    %113 = vector.extract_strided_slice %101 {offsets = [4, 32], sizes = [16, 8], strides = [1, 1]} : vector<22x56xf32> to vector<16x8xf32>
    %114 = arith.addf %112, %113 : vector<16x8xf32>
    %115 = vector.extract_strided_slice %101 {offsets = [5, 40], sizes = [16, 8], strides = [1, 1]} : vector<22x56xf32> to vector<16x8xf32>
    %116 = arith.addf %114, %115 : vector<16x8xf32>
    %117 = vector.extract_strided_slice %101 {offsets = [6, 48], sizes = [16, 8], strides = [1, 1]} : vector<22x56xf32> to vector<16x8xf32>
    %118 = arith.addf %116, %117 : vector<16x8xf32>
    %cst_42 = arith.constant 5.000000e-01 : f32
    %119 = vector.broadcast %cst_42 : f32 to vector<16x8xf32>
    %120 = arith.mulf %119, %118 : vector<16x8xf32>
    %121 = math.tanh %120 : vector<16x8xf32>
    %cst_43 = arith.constant 5.000000e-01 : f32
    %122 = vector.broadcast %cst_43 : f32 to vector<16x8xf32>
    %123 = arith.mulf %122, %121 : vector<16x8xf32>
    %cst_44 = arith.constant 5.000000e-01 : f32
    %124 = vector.broadcast %cst_44 : f32 to vector<16x8xf32>
    %125 = arith.addf %123, %124 : vector<16x8xf32>
    %cst_45 = arith.constant dense<0xFF800000> : vector<16x8xf32>
    %126 = vector.multi_reduction <maximumf>, %55, %cst_45 [1] : vector<16x16x8xf32> to vector<16x8xf32>
    %cst_46 = arith.constant dense<0.000000e+00> : vector<16x8xf32>
    %127 = vector.multi_reduction <add>, %55, %cst_46 [1] : vector<16x16x8xf32> to vector<16x8xf32>
    %cst_47 = arith.constant 1.600000e+01 : f32
    %128 = vector.broadcast %cst_47 : f32 to vector<16x8xf32>
    %129 = arith.divf %127, %128 : vector<16x8xf32>
    %c2 = arith.constant 2 : index
    %130 = memref.load %arg1[%c2] : memref<3xf32, #tpu.memory_space<smem>>
    %131 = tpu.concatenate %126, %129 in 1 : vector<16x8xf32>, vector<16x8xf32> -> vector<16x16xf32>
    %132 = arith.truncf %131 : vector<16x16xf32> to vector<16x16xbf16>
    %c0_48 = arith.constant 0 : index
    %c0_49 = arith.constant 0 : index
    %133 = vector.load %arg9[%c0_48, %c0_49] : memref<16x56xbf16, #tpu.memory_space<vmem>>, vector<16x56xbf16>
    %cst_50 = arith.constant dense<0.000000e+00> : vector<16x56xf32>
    %134 = tpu.matmul %132, %133, %cst_50 {dimension_numbers = #tpu.dot_dimension_numbers<[1], [0], [0], [1], [0, 0, 1, 1], [], []>} : vector<16x16xbf16>, vector<16x56xbf16>, vector<16x56xf32> -> vector<16x56xf32>
    %cst_51 = arith.constant 0.000000e+00 : f32
    %135 = vector.broadcast %cst_51 : f32 to vector<3x56xf32>
    %136 = tpu.concatenate %135, %134, %135 in 0 : vector<3x56xf32>, vector<16x56xf32>, vector<3x56xf32> -> vector<22x56xf32>
    %cst_52 = arith.constant 0.000000e+00 : f32
    %137 = vector.broadcast %cst_52 : f32 to vector<16x8xf32>
    %138 = vector.broadcast %130 : f32 to vector<16x8xf32>
    %139 = arith.addf %137, %138 : vector<16x8xf32>
    %140 = vector.extract_strided_slice %136 {offsets = [0, 0], sizes = [16, 8], strides = [1, 1]} : vector<22x56xf32> to vector<16x8xf32>
    %141 = arith.addf %139, %140 : vector<16x8xf32>
    %142 = vector.extract_strided_slice %136 {offsets = [1, 8], sizes = [16, 8], strides = [1, 1]} : vector<22x56xf32> to vector<16x8xf32>
    %143 = arith.addf %141, %142 : vector<16x8xf32>
    %144 = vector.extract_strided_slice %136 {offsets = [2, 16], sizes = [16, 8], strides = [1, 1]} : vector<22x56xf32> to vector<16x8xf32>
    %145 = arith.addf %143, %144 : vector<16x8xf32>
    %146 = vector.extract_strided_slice %136 {offsets = [3, 24], sizes = [16, 8], strides = [1, 1]} : vector<22x56xf32> to vector<16x8xf32>
    %147 = arith.addf %145, %146 : vector<16x8xf32>
    %148 = vector.extract_strided_slice %136 {offsets = [4, 32], sizes = [16, 8], strides = [1, 1]} : vector<22x56xf32> to vector<16x8xf32>
    %149 = arith.addf %147, %148 : vector<16x8xf32>
    %150 = vector.extract_strided_slice %136 {offsets = [5, 40], sizes = [16, 8], strides = [1, 1]} : vector<22x56xf32> to vector<16x8xf32>
    %151 = arith.addf %149, %150 : vector<16x8xf32>
    %152 = vector.extract_strided_slice %136 {offsets = [6, 48], sizes = [16, 8], strides = [1, 1]} : vector<22x56xf32> to vector<16x8xf32>
    %153 = arith.addf %151, %152 : vector<16x8xf32>
    %cst_53 = arith.constant 5.000000e-01 : f32
    %154 = vector.broadcast %cst_53 : f32 to vector<16x8xf32>
    %155 = arith.mulf %154, %153 : vector<16x8xf32>
    %156 = math.tanh %155 : vector<16x8xf32>
    %cst_54 = arith.constant 5.000000e-01 : f32
    %157 = vector.broadcast %cst_54 : f32 to vector<16x8xf32>
    %158 = arith.mulf %157, %156 : vector<16x8xf32>
    %cst_55 = arith.constant 5.000000e-01 : f32
    %159 = vector.broadcast %cst_55 : f32 to vector<16x8xf32>
    %160 = arith.addf %158, %159 : vector<16x8xf32>
    %161 = vector.shape_cast %160 : vector<16x8xf32> to vector<16x1x8xf32>
    %162 = vector.shape_cast %125 : vector<16x8xf32> to vector<1x16x8xf32>
    %163 = vector.broadcast %161 : vector<16x1x8xf32> to vector<16x16x8xf32>
    %164 = vector.broadcast %162 : vector<1x16x8xf32> to vector<16x16x8xf32>
    %165 = arith.addf %163, %164 : vector<16x16x8xf32>
    %166 = vector.shape_cast %90 : vector<16x16xf32> to vector<16x16x1xf32>
    %167 = vector.broadcast %166 : vector<16x16x1xf32> to vector<16x16x8xf32>
    %168 = arith.addf %165, %167 : vector<16x16x8xf32>
    %cst_56 = arith.constant 0.333333343 : f32
    %169 = vector.broadcast %cst_56 : f32 to vector<16x16x8xf32>
    %170 = arith.mulf %168, %169 : vector<16x16x8xf32>
    %171 = arith.mulf %55, %170 : vector<16x16x8xf32>
    %172 = vector.shape_cast %171 : vector<16x16x8xf32> to vector<256x8xf32>
    %173 = arith.extf %1 : vector<256x8xbf16> to vector<256x8xf32>
    %174 = arith.addf %172, %173 : vector<256x8xf32>
    %c0_57 = arith.constant 0 : index
    %c0_58 = arith.constant 0 : index
    %c0_59 = arith.constant 0 : index
    %175 = vector.load %arg11[%c0_57, %c0_58, %c0_59] : memref<1x256x8xf32, #tpu.memory_space<vmem>>, vector<1x256x8xf32>
    %176 = vector.shape_cast %175 : vector<1x256x8xf32> to vector<256x8xf32>
    %177 = vector.shape_cast %174 : vector<256x8xf32> to vector<1x256x8xf32>
    tpu.vector_store %arg11[%c0_57, %c0_58, %c0_59], %177 {strides = array<i32>} : memref<1x256x8xf32, #tpu.memory_space<vmem>>, vector<1x256x8xf32>,
    return
  }
  func.func @transform_0(%arg0: i32) -> i32 {
    %c0_i32 = arith.constant 0 : i32
    %c0_i32_0 = arith.constant 0 : i32
    return %c0_i32 : i32
  }
  func.func @transform_1(%arg0: i32) -> (i32, i32, i32) {
    %c0_i32 = arith.constant 0 : i32
    %c0_i32_0 = arith.constant 0 : i32
    %c0_i32_1 = arith.constant 0 : i32
    return %arg0, %c0_i32, %c0_i32_0 : i32, i32, i32
  }
  func.func @transform_2(%arg0: i32) -> (i32, i32) {
    %c0_i32 = arith.constant 0 : i32
    %c0_i32_0 = arith.constant 0 : i32
    %c0_i32_1 = arith.constant 0 : i32
    return %c0_i32, %c0_i32_0 : i32, i32
  }
  func.func @transform_3(%arg0: i32) -> (i32, i32) {
    %c0_i32 = arith.constant 0 : i32
    %c0_i32_0 = arith.constant 0 : i32
    %c0_i32_1 = arith.constant 0 : i32
    return %c0_i32, %c0_i32_0 : i32, i32
  }
  func.func @transform_4(%arg0: i32) -> (i32, i32) {
    %c0_i32 = arith.constant 0 : i32
    %c0_i32_0 = arith.constant 0 : i32
    %c0_i32_1 = arith.constant 0 : i32
    return %c0_i32, %c0_i32_0 : i32, i32
  }
  func.func @transform_5(%arg0: i32) -> (i32, i32) {
    %c0_i32 = arith.constant 0 : i32
    %c0_i32_0 = arith.constant 0 : i32
    %c0_i32_1 = arith.constant 0 : i32
    return %c0_i32, %c0_i32_0 : i32, i32
  }
  func.func @transform_6(%arg0: i32) -> (i32, i32) {
    %c0_i32 = arith.constant 0 : i32
    %c0_i32_0 = arith.constant 0 : i32
    %c0_i32_1 = arith.constant 0 : i32
    return %c0_i32, %c0_i32_0 : i32, i32
  }
  func.func @transform_7(%arg0: i32) -> (i32, i32) {
    %c0_i32 = arith.constant 0 : i32
    %c0_i32_0 = arith.constant 0 : i32
    %c0_i32_1 = arith.constant 0 : i32
    return %c0_i32, %c0_i32_0 : i32, i32
  }
  func.func @transform_8(%arg0: i32) -> (i32, i32) {
    %c0_i32 = arith.constant 0 : i32
    %c0_i32_0 = arith.constant 0 : i32
    %c0_i32_1 = arith.constant 0 : i32
    return %c0_i32, %c0_i32_0 : i32, i32
  }
  func.func @transform_9(%arg0: i32) -> (i32, i32) {
    %c0_i32 = arith.constant 0 : i32
    %c0_i32_0 = arith.constant 0 : i32
    %c0_i32_1 = arith.constant 0 : i32
    return %c0_i32, %c0_i32_0 : i32, i32
  }
  func.func @transform_10(%arg0: i32) -> (i32, i32, i32) {
    %c0_i32 = arith.constant 0 : i32
    %c0_i32_0 = arith.constant 0 : i32
    %c0_i32_1 = arith.constant 0 : i32
    return %arg0, %c0_i32, %c0_i32_0 : i32, i32, i32
  }
}

module attributes {stable_mosaic.version = 11 : i64} {
  func.func @_fused_kernel(%arg0: i32, %arg1: memref<3xf32, #tpu.memory_space<smem>>, %arg2: memref<1x256x8xbf16, #tpu.memory_space<vmem>>, %arg3: memref<8x4xbf16, #tpu.memory_space<vmem>>, %arg4: memref<1x4xf32, #tpu.memory_space<vmem>>, %arg5: memref<36x8xbf16, #tpu.memory_space<vmem>>, %arg6: memref<1x8xf32, #tpu.memory_space<vmem>>, %arg7: memref<32x112xbf16, #tpu.memory_space<vmem>>, %arg8: memref<16x56xbf16, #tpu.memory_space<vmem>>, %arg9: memref<16x56xbf16, #tpu.memory_space<vmem>>, %arg10: memref<256x2xbf16, #tpu.memory_space<vmem>>, %arg11: memref<1x256x8xf32, #tpu.memory_space<vmem>>) attributes {dimension_semantics = [#tpu.dimension_semantics<parallel>], iteration_bounds = array<i64: 2>, scalar_prefetch = 0 : i64, scratch_operands = 0 : i64, tpu.core_type = #tpu.core_type<tc>, window_params = [{transform_indices = @transform_0, window_bounds = array<i64: 3>}, {transform_indices = @transform_1, window_bounds = array<i64: 1, 256, 8>}, {pipeline_mode = #tpu.pipeline_mode<synchronous>, transform_indices = @transform_2, window_bounds = array<i64: 8, 4>}, {pipeline_mode = #tpu.pipeline_mode<synchronous>, transform_indices = @transform_3, window_bounds = array<i64: 1, 4>}, {pipeline_mode = #tpu.pipeline_mode<synchronous>, transform_indices = @transform_4, window_bounds = array<i64: 36, 8>}, {pipeline_mode = #tpu.pipeline_mode<synchronous>, transform_indices = @transform_5, window_bounds = array<i64: 1, 8>}, {pipeline_mode = #tpu.pipeline_mode<synchronous>, transform_indices = @transform_6, window_bounds = array<i64: 32, 112>}, {pipeline_mode = #tpu.pipeline_mode<synchronous>, transform_indices = @transform_7, window_bounds = array<i64: 16, 56>}, {pipeline_mode = #tpu.pipeline_mode<synchronous>, transform_indices = @transform_8, window_bounds = array<i64: 16, 56>}, {pipeline_mode = #tpu.pipeline_mode<synchronous>, transform_indices = @transform_9, window_bounds = array<i64: 256, 2>}, {transform_indices = @transform_10, window_bounds = array<i64: 1, 256, 8>}]} {
    %c0 = arith.constant 0 : index
    %c0_0 = arith.constant 0 : index
    %c0_1 = arith.constant 0 : index
    %0 = vector.load %arg2[%c0, %c0_0, %c0_1] : memref<1x256x8xbf16, #tpu.memory_space<vmem>>, vector<1x256x8xbf16>
    %1 = vector.shape_cast %0 : vector<1x256x8xbf16> to vector<256x8xbf16>
    %c0_2 = arith.constant 0 : index
    %c0_3 = arith.constant 0 : index
    %2 = vector.load %arg3[%c0_2, %c0_3] : memref<8x4xbf16, #tpu.memory_space<vmem>>, vector<8x4xbf16>
    %cst = arith.constant dense<0.000000e+00> : vector<256x4xf32>
    %3 = tpu.matmul %1, %2, %cst {dimension_numbers = #tpu.dot_dimension_numbers<[1], [0], [0], [1], [0, 0, 1, 1], [], []>} : vector<256x8xbf16>, vector<8x4xbf16>, vector<256x4xf32> -> vector<256x4xf32>
    %c0_4 = arith.constant 0 : index
    %c0_5 = arith.constant 0 : index
    %4 = vector.load %arg4[%c0_4, %c0_5] : memref<1x4xf32, #tpu.memory_space<vmem>>, vector<1x4xf32>
    %5 = vector.broadcast %4 : vector<1x4xf32> to vector<256x4xf32>
    %6 = arith.addf %3, %5 : vector<256x4xf32>
    %cst_6 = arith.constant 5.000000e-01 : f32
    %7 = vector.broadcast %cst_6 : f32 to vector<256x4xf32>
    %8 = arith.mulf %7, %6 : vector<256x4xf32>
    %9 = math.tanh %8 : vector<256x4xf32>
    %cst_7 = arith.constant 5.000000e-01 : f32
    %10 = vector.broadcast %cst_7 : f32 to vector<256x4xf32>
    %11 = arith.mulf %10, %9 : vector<256x4xf32>
    %cst_8 = arith.constant 5.000000e-01 : f32
    %12 = vector.broadcast %cst_8 : f32 to vector<256x4xf32>
    %13 = arith.addf %11, %12 : vector<256x4xf32>
    %14 = arith.mulf %6, %13 : vector<256x4xf32>
    %15 = arith.truncf %14 : vector<256x4xf32> to vector<256x4xbf16>
    %cst_9 = arith.constant 0.000000e+00 : bf16
    %16 = vector.broadcast %cst_9 : bf16 to vector<17x4xbf16>
    %17 = tpu.concatenate %16, %15, %16 in 0 : vector<17x4xbf16>, vector<256x4xbf16>, vector<17x4xbf16> -> vector<290x4xbf16>
    %c0_10 = arith.constant 0 : index
    %c0_11 = arith.constant 0 : index
    %18 = vector.load %arg10[%c0_10, %c0_11] : memref<256x2xbf16, #tpu.memory_space<vmem>>, vector<256x1xbf16>
    %c0_12 = arith.constant 0 : index
    %c1 = arith.constant 1 : index
    %19 = vector.load %arg10[%c0_12, %c1] : memref<256x2xbf16, #tpu.memory_space<vmem>>, vector<256x1xbf16>
    %20 = vector.extract_strided_slice %17 {offsets = [0, 0], sizes = [256, 4], strides = [1, 1]} : vector<290x4xbf16> to vector<256x4xbf16>
    %21 = vector.broadcast %18 : vector<256x1xbf16> to vector<256x4xbf16>
    %22 = arith.mulf %20, %21 : vector<256x4xbf16>
    %23 = vector.extract_strided_slice %17 {offsets = [1, 0], sizes = [256, 4], strides = [1, 1]} : vector<290x4xbf16> to vector<256x4xbf16>
    %24 = vector.extract_strided_slice %17 {offsets = [2, 0], sizes = [256, 4], strides = [1, 1]} : vector<290x4xbf16> to vector<256x4xbf16>
    %25 = vector.broadcast %19 : vector<256x1xbf16> to vector<256x4xbf16>
    %26 = arith.mulf %24, %25 : vector<256x4xbf16>
    %27 = vector.extract_strided_slice %17 {offsets = [16, 0], sizes = [256, 4], strides = [1, 1]} : vector<290x4xbf16> to vector<256x4xbf16>
    %28 = vector.broadcast %18 : vector<256x1xbf16> to vector<256x4xbf16>
    %29 = arith.mulf %27, %28 : vector<256x4xbf16>
    %30 = vector.extract_strided_slice %17 {offsets = [17, 0], sizes = [256, 4], strides = [1, 1]} : vector<290x4xbf16> to vector<256x4xbf16>
    %31 = vector.extract_strided_slice %17 {offsets = [18, 0], sizes = [256, 4], strides = [1, 1]} : vector<290x4xbf16> to vector<256x4xbf16>
    %32 = vector.broadcast %19 : vector<256x1xbf16> to vector<256x4xbf16>
    %33 = arith.mulf %31, %32 : vector<256x4xbf16>
    %34 = vector.extract_strided_slice %17 {offsets = [32, 0], sizes = [256, 4], strides = [1, 1]} : vector<290x4xbf16> to vector<256x4xbf16>
    %35 = vector.broadcast %18 : vector<256x1xbf16> to vector<256x4xbf16>
    %36 = arith.mulf %34, %35 : vector<256x4xbf16>
    %37 = vector.extract_strided_slice %17 {offsets = [33, 0], sizes = [256, 4], strides = [1, 1]} : vector<290x4xbf16> to vector<256x4xbf16>
    %38 = vector.extract_strided_slice %17 {offsets = [34, 0], sizes = [256, 4], strides = [1, 1]} : vector<290x4xbf16> to vector<256x4xbf16>
    %39 = vector.broadcast %19 : vector<256x1xbf16> to vector<256x4xbf16>
    %40 = arith.mulf %38, %39 : vector<256x4xbf16>
    %41 = tpu.concatenate %22, %23, %26, %29, %30, %33, %36, %37, %40 in 1 : vector<256x4xbf16>, vector<256x4xbf16>, vector<256x4xbf16>, vector<256x4xbf16>, vector<256x4xbf16>, vector<256x4xbf16>, vector<256x4xbf16>, vector<256x4xbf16>, vector<256x4xbf16> -> vector<256x36xbf16>
    %c0_13 = arith.constant 0 : index
    %c0_14 = arith.constant 0 : index
    %42 = vector.load %arg5[%c0_13, %c0_14] : memref<36x8xbf16, #tpu.memory_space<vmem>>, vector<36x8xbf16>
    %cst_15 = arith.constant dense<0.000000e+00> : vector<256x8xf32>
    %43 = tpu.matmul %41, %42, %cst_15 {dimension_numbers = #tpu.dot_dimension_numbers<[1], [0], [0], [1], [0, 0, 1, 1], [], []>} : vector<256x36xbf16>, vector<36x8xbf16>, vector<256x8xf32> -> vector<256x8xf32>
    %c0_16 = arith.constant 0 : index
    %c0_17 = arith.constant 0 : index
    %44 = vector.load %arg6[%c0_16, %c0_17] : memref<1x8xf32, #tpu.memory_space<vmem>>, vector<1x8xf32>
    %45 = vector.broadcast %44 : vector<1x8xf32> to vector<256x8xf32>
    %46 = arith.addf %43, %45 : vector<256x8xf32>
    %cst_18 = arith.constant 5.000000e-01 : f32
    %47 = vector.broadcast %cst_18 : f32 to vector<256x8xf32>
    %48 = arith.mulf %47, %46 : vector<256x8xf32>
    %49 = math.tanh %48 : vector<256x8xf32>
    %cst_19 = arith.constant 5.000000e-01 : f32
    %50 = vector.broadcast %cst_19 : f32 to vector<256x8xf32>
    %51 = arith.mulf %50, %49 : vector<256x8xf32>
    %cst_20 = arith.constant 5.000000e-01 : f32
    %52 = vector.broadcast %cst_20 : f32 to vector<256x8xf32>
    %53 = arith.addf %51, %52 : vector<256x8xf32>
    %54 = arith.mulf %46, %53 : vector<256x8xf32>
    %55 = vector.shape_cast %54 : vector<256x8xf32> to vector<16x16x8xf32>
    %cst_21 = arith.constant dense<0xFF800000> : vector<16x16xf32>
    %56 = vector.multi_reduction <maximumf>, %55, %cst_21 [2] : vector<16x16x8xf32> to vector<16x16xf32>
    %cst_22 = arith.constant dense<0.000000e+00> : vector<16x16xf32>
    %57 = vector.multi_reduction <add>, %55, %cst_22 [2] : vector<16x16x8xf32> to vector<16x16xf32>
    %cst_23 = arith.constant 8.000000e+00 : f32
    %58 = vector.broadcast %cst_23 : f32 to vector<16x16xf32>
    %59 = arith.divf %57, %58 : vector<16x16xf32>
    %c0_24 = arith.constant 0 : index
    %60 = memref.load %arg1[%c0_24] : memref<3xf32, #tpu.memory_space<smem>>
    %61 = tpu.concatenate %56, %59 in 1 : vector<16x16xf32>, vector<16x16xf32> -> vector<16x32xf32>
    %62 = arith.truncf %61 : vector<16x32xf32> to vector<16x32xbf16>
    %c0_25 = arith.constant 0 : index
    %c0_26 = arith.constant 0 : index
    %63 = vector.load %arg7[%c0_25, %c0_26] : memref<32x112xbf16, #tpu.memory_space<vmem>>, vector<32x112xbf16>
    %cst_27 = arith.constant dense<0.000000e+00> : vector<16x112xf32>
    %64 = tpu.matmul %62, %63, %cst_27 {dimension_numbers = #tpu.dot_dimension_numbers<[1], [0], [0], [1], [0, 0, 1, 1], [], []>} : vector<16x32xbf16>, vector<32x112xbf16>, vector<16x112xf32> -> vector<16x112xf32>
    %cst_28 = arith.constant 0.000000e+00 : f32
    %65 = vector.broadcast %cst_28 : f32 to vector<3x112xf32>
    %66 = tpu.concatenate %65, %64, %65 in 0 : vector<3x112xf32>, vector<16x112xf32>, vector<3x112xf32> -> vector<22x112xf32>
    %cst_29 = arith.constant 0.000000e+00 : f32
    %67 = vector.broadcast %cst_29 : f32 to vector<16x16xf32>
    %68 = vector.broadcast %60 : f32 to vector<16x16xf32>
    %69 = arith.addf %67, %68 : vector<16x16xf32>
    %70 = vector.extract_strided_slice %66 {offsets = [0, 0], sizes = [16, 16], strides = [1, 1]} : vector<22x112xf32> to vector<16x16xf32>
    %71 = arith.addf %69, %70 : vector<16x16xf32>
    %72 = vector.extract_strided_slice %66 {offsets = [1, 16], sizes = [16, 16], strides = [1, 1]} : vector<22x112xf32> to vector<16x16xf32>
    %73 = arith.addf %71, %72 : vector<16x16xf32>
    %74 = vector.extract_strided_slice %66 {offsets = [2, 32], sizes = [16, 16], strides = [1, 1]} : vector<22x112xf32> to vector<16x16xf32>
    %75 = arith.addf %73, %74 : vector<16x16xf32>
    %76 = vector.extract_strided_slice %66 {offsets = [3, 48], sizes = [16, 16], strides = [1, 1]} : vector<22x112xf32> to vector<16x16xf32>
    %77 = arith.addf %75, %76 : vector<16x16xf32>
    %78 = vector.extract_strided_slice %66 {offsets = [4, 64], sizes = [16, 16], strides = [1, 1]} : vector<22x112xf32> to vector<16x16xf32>
    %79 = arith.addf %77, %78 : vector<16x16xf32>
    %80 = vector.extract_strided_slice %66 {offsets = [5, 80], sizes = [16, 16], strides = [1, 1]} : vector<22x112xf32> to vector<16x16xf32>
    %81 = arith.addf %79, %80 : vector<16x16xf32>
    %82 = vector.extract_strided_slice %66 {offsets = [6, 96], sizes = [16, 16], strides = [1, 1]} : vector<22x112xf32> to vector<16x16xf32>
    %83 = arith.addf %81, %82 : vector<16x16xf32>
    %cst_30 = arith.constant 5.000000e-01 : f32
    %84 = vector.broadcast %cst_30 : f32 to vector<16x16xf32>
    %85 = arith.mulf %84, %83 : vector<16x16xf32>
    %86 = math.tanh %85 : vector<16x16xf32>
    %cst_31 = arith.constant 5.000000e-01 : f32
    %87 = vector.broadcast %cst_31 : f32 to vector<16x16xf32>
    %88 = arith.mulf %87, %86 : vector<16x16xf32>
    %cst_32 = arith.constant 5.000000e-01 : f32
    %89 = vector.broadcast %cst_32 : f32 to vector<16x16xf32>
    %90 = arith.addf %88, %89 : vector<16x16xf32>
    %cst_33 = arith.constant dense<0xFF800000> : vector<16x8xf32>
    %91 = vector.multi_reduction <maximumf>, %55, %cst_33 [0] : vector<16x16x8xf32> to vector<16x8xf32>
    %cst_34 = arith.constant dense<0.000000e+00> : vector<16x8xf32>
    %92 = vector.multi_reduction <add>, %55, %cst_34 [0] : vector<16x16x8xf32> to vector<16x8xf32>
    %cst_35 = arith.constant 1.600000e+01 : f32
    %93 = vector.broadcast %cst_35 : f32 to vector<16x8xf32>
    %94 = arith.divf %92, %93 : vector<16x8xf32>
    %c1_36 = arith.constant 1 : index
    %95 = memref.load %arg1[%c1_36] : memref<3xf32, #tpu.memory_space<smem>>
    %96 = tpu.concatenate %91, %94 in 1 : vector<16x8xf32>, vector<16x8xf32> -> vector<16x16xf32>
    %97 = arith.truncf %96 : vector<16x16xf32> to vector<16x16xbf16>
    %c0_37 = arith.constant 0 : index
    %c0_38 = arith.constant 0 : index
    %98 = vector.load %arg8[%c0_37, %c0_38] : memref<16x56xbf16, #tpu.memory_space<vmem>>, vector<16x56xbf16>
    %cst_39 = arith.constant dense<0.000000e+00> : vector<16x56xf32>
    %99 = tpu.matmul %97, %98, %cst_39 {dimension_numbers = #tpu.dot_dimension_numbers<[1], [0], [0], [1], [0, 0, 1, 1], [], []>} : vector<16x16xbf16>, vector<16x56xbf16>, vector<16x56xf32> -> vector<16x56xf32>
    %cst_40 = arith.constant 0.000000e+00 : f32
    %100 = vector.broadcast %cst_40 : f32 to vector<3x56xf32>
    %101 = tpu.concatenate %100, %99, %100 in 0 : vector<3x56xf32>, vector<16x56xf32>, vector<3x56xf32> -> vector<22x56xf32>
    %cst_41 = arith.constant 0.000000e+00 : f32
    %102 = vector.broadcast %cst_41 : f32 to vector<16x8xf32>
    %103 = vector.broadcast %95 : f32 to vector<16x8xf32>
    %104 = arith.addf %102, %103 : vector<16x8xf32>
    %105 = vector.extract_strided_slice %101 {offsets = [0, 0], sizes = [16, 8], strides = [1, 1]} : vector<22x56xf32> to vector<16x8xf32>
    %106 = arith.addf %104, %105 : vector<16x8xf32>
    %107 = vector.extract_strided_slice %101 {offsets = [1, 8], sizes = [16, 8], strides = [1, 1]} : vector<22x56xf32> to vector<16x8xf32>
    %108 = arith.addf %106, %107 : vector<16x8xf32>
    %109 = vector.extract_strided_slice %101 {offsets = [2, 16], sizes = [16, 8], strides = [1, 1]} : vector<22x56xf32> to vector<16x8xf32>
    %110 = arith.addf %108, %109 : vector<16x8xf32>
    %111 = vector.extract_strided_slice %101 {offsets = [3, 24], sizes = [16, 8], strides = [1, 1]} : vector<22x56xf32> to vector<16x8xf32>
    %112 = arith.addf %110, %111 : vector<16x8xf32>
    %113 = vector.extract_strided_slice %101 {offsets = [4, 32], sizes = [16, 8], strides = [1, 1]} : vector<22x56xf32> to vector<16x8xf32>
    %114 = arith.addf %112, %113 : vector<16x8xf32>
    %115 = vector.extract_strided_slice %101 {offsets = [5, 40], sizes = [16, 8], strides = [1, 1]} : vector<22x56xf32> to vector<16x8xf32>
    %116 = arith.addf %114, %115 : vector<16x8xf32>
    %117 = vector.extract_strided_slice %101 {offsets = [6, 48], sizes = [16, 8], strides = [1, 1]} : vector<22x56xf32> to vector<16x8xf32>
    %118 = arith.addf %116, %117 : vector<16x8xf32>
    %cst_42 = arith.constant 5.000000e-01 : f32
    %119 = vector.broadcast %cst_42 : f32 to vector<16x8xf32>
    %120 = arith.mulf %119, %118 : vector<16x8xf32>
    %121 = math.tanh %120 : vector<16x8xf32>
    %cst_43 = arith.constant 5.000000e-01 : f32
    %122 = vector.broadcast %cst_43 : f32 to vector<16x8xf32>
    %123 = arith.mulf %122, %121 : vector<16x8xf32>
    %cst_44 = arith.constant 5.000000e-01 : f32
    %124 = vector.broadcast %cst_44 : f32 to vector<16x8xf32>
    %125 = arith.addf %123, %124 : vector<16x8xf32>
    %cst_45 = arith.constant dense<0xFF800000> : vector<16x8xf32>
    %126 = vector.multi_reduction <maximumf>, %55, %cst_45 [1] : vector<16x16x8xf32> to vector<16x8xf32>
    %cst_46 = arith.constant dense<0.000000e+00> : vector<16x8xf32>
    %127 = vector.multi_reduction <add>, %55, %cst_46 [1] : vector<16x16x8xf32> to vector<16x8xf32>
    %cst_47 = arith.constant 1.600000e+01 : f32
    %128 = vector.broadcast %cst_47 : f32 to vector<16x8xf32>
    %129 = arith.divf %127, %128 : vector<16x8xf32>
    %c2 = arith.constant 2 : index
    %130 = memref.load %arg1[%c2] : memref<3xf32, #tpu.memory_space<smem>>
    %131 = tpu.concatenate %126, %129 in 1 : vector<16x8xf32>, vector<16x8xf32> -> vector<16x16xf32>
    %132 = arith.truncf %131 : vector<16x16xf32> to vector<16x16xbf16>
    %c0_48 = arith.constant 0 : index
    %c0_49 = arith.constant 0 : index
    %133 = vector.load %arg9[%c0_48, %c0_49] : memref<16x56xbf16, #tpu.memory_space<vmem>>, vector<16x56xbf16>
    %cst_50 = arith.constant dense<0.000000e+00> : vector<16x56xf32>
    %134 = tpu.matmul %132, %133, %cst_50 {dimension_numbers = #tpu.dot_dimension_numbers<[1], [0], [0], [1], [0, 0, 1, 1], [], []>} : vector<16x16xbf16>, vector<16x56xbf16>, vector<16x56xf32> -> vector<16x56xf32>
    %cst_51 = arith.constant 0.000000e+00 : f32
    %135 = vector.broadcast %cst_51 : f32 to vector<3x56xf32>
    %136 = tpu.concatenate %135, %134, %135 in 0 : vector<3x56xf32>, vector<16x56xf32>, vector<3x56xf32> -> vector<22x56xf32>
    %cst_52 = arith.constant 0.000000e+00 : f32
    %137 = vector.broadcast %cst_52 : f32 to vector<16x8xf32>
    %138 = vector.broadcast %130 : f32 to vector<16x8xf32>
    %139 = arith.addf %137, %138 : vector<16x8xf32>
    %140 = vector.extract_strided_slice %136 {offsets = [0, 0], sizes = [16, 8], strides = [1, 1]} : vector<22x56xf32> to vector<16x8xf32>
    %141 = arith.addf %139, %140 : vector<16x8xf32>
    %142 = vector.extract_strided_slice %136 {offsets = [1, 8], sizes = [16, 8], strides = [1, 1]} : vector<22x56xf32> to vector<16x8xf32>
    %143 = arith.addf %141, %142 : vector<16x8xf32>
    %144 = vector.extract_strided_slice %136 {offsets = [2, 16], sizes = [16, 8], strides = [1, 1]} : vector<22x56xf32> to vector<16x8xf32>
    %145 = arith.addf %143, %144 : vector<16x8xf32>
    %146 = vector.extract_strided_slice %136 {offsets = [3, 24], sizes = [16, 8], strides = [1, 1]} : vector<22x56xf32> to vector<16x8xf32>
    %147 = arith.addf %145, %146 : vector<16x8xf32>
    %148 = vector.extract_strided_slice %136 {offsets = [4, 32], sizes = [16, 8], strides = [1, 1]} : vector<22x56xf32> to vector<16x8xf32>
    %149 = arith.addf %147, %148 : vector<16x8xf32>
    %150 = vector.extract_strided_slice %136 {offsets = [5, 40], sizes = [16, 8], strides = [1, 1]} : vector<22x56xf32> to vector<16x8xf32>
    %151 = arith.addf %149, %150 : vector<16x8xf32>
    %152 = vector.extract_strided_slice %136 {offsets = [6, 48], sizes = [16, 8], strides = [1, 1]} : vector<22x56xf32> to vector<16x8xf32>
    %153 = arith.addf %151, %152 : vector<16x8xf32>
    %cst_53 = arith.constant 5.000000e-01 : f32
    %154 = vector.broadcast %cst_53 : f32 to vector<16x8xf32>
    %155 = arith.mulf %154, %153 : vector<16x8xf32>
    %156 = math.tanh %155 : vector<16x8xf32>
    %cst_54 = arith.constant 5.000000e-01 : f32
    %157 = vector.broadcast %cst_54 : f32 to vector<16x8xf32>
    %158 = arith.mulf %157, %156 : vector<16x8xf32>
    %cst_55 = arith.constant 5.000000e-01 : f32
    %159 = vector.broadcast %cst_55 : f32 to vector<16x8xf32>
    %160 = arith.addf %158, %159 : vector<16x8xf32>
    %161 = vector.shape_cast %160 : vector<16x8xf32> to vector<16x1x8xf32>
    %162 = vector.shape_cast %125 : vector<16x8xf32> to vector<1x16x8xf32>
    %163 = vector.broadcast %161 : vector<16x1x8xf32> to vector<16x16x8xf32>
    %164 = vector.broadcast %162 : vector<1x16x8xf32> to vector<16x16x8xf32>
    %165 = arith.addf %163, %164 : vector<16x16x8xf32>
    %166 = vector.shape_cast %90 : vector<16x16xf32> to vector<16x16x1xf32>
    %167 = vector.broadcast %166 : vector<16x16x1xf32> to vector<16x16x8xf32>
    %168 = arith.addf %165, %167 : vector<16x16x8xf32>
    %cst_56 = arith.constant 0.333333343 : f32
    %169 = vector.broadcast %cst_56 : f32 to vector<16x16x8xf32>
    %170 = arith.mulf %168, %169 : vector<16x16x8xf32>
    %171 = arith.mulf %55, %170 : vector<16x16x8xf32>
    %172 = vector.shape_cast %171 : vector<16x16x8xf32> to vector<256x8xf32>
    %173 = arith.extf %1 : vector<256x8xbf16> to vector<256x8xf32>
    %174 = arith.addf %172, %173 : vector<256x8xf32>
    %c0_57 = arith.constant 0 : index
    %c0_58 = arith.constant 0 : index
    %c0_59 = arith.constant 0 : index
    %175 = vector.load %arg11[%c0_57, %c0_58, %c0_59] : memref<1x256x8xf32, #tpu.memory_space<vmem>>, vector<1x256x8xf32>
    %176 = vector.shape_cast %175 : vector<1x256x8xf32> to vector<256x8xf32>
    %177 = vector.shape_cast %174 : vector<256x8xf32> to vector<1x256x8xf32>
    tpu.vector_store %arg11[%c0_57, %c0_58, %c0_59], %177 {strides = array<i32>} : memref<1x256x8xf32, #tpu.memory_space<vmem>>, vector<1x256x8xf32>,
    return
  }
  func.func @transform_0(%arg0: i32) -> i32 {
    %c0_i32 = arith.constant 0 : i32
    %c0_i32_0 = arith.constant 0 : i32
    return %c0_i32 : i32
  }
  func.func @transform_1(%arg0: i32) -> (i32, i32, i32) {
    %c0_i32 = arith.constant 0 : i32
    %c0_i32_0 = arith.constant 0 : i32
    %c0_i32_1 = arith.constant 0 : i32
    return %arg0, %c0_i32, %c0_i32_0 : i32, i32, i32
  }
  func.func @transform_2(%arg0: i32) -> (i32, i32) {
    %c0_i32 = arith.constant 0 : i32
    %c0_i32_0 = arith.constant 0 : i32
    %c0_i32_1 = arith.constant 0 : i32
    return %c0_i32, %c0_i32_0 : i32, i32
  }
  func.func @transform_3(%arg0: i32) -> (i32, i32) {
    %c0_i32 = arith.constant 0 : i32
    %c0_i32_0 = arith.constant 0 : i32
    %c0_i32_1 = arith.constant 0 : i32
    return %c0_i32, %c0_i32_0 : i32, i32
  }
  func.func @transform_4(%arg0: i32) -> (i32, i32) {
    %c0_i32 = arith.constant 0 : i32
    %c0_i32_0 = arith.constant 0 : i32
    %c0_i32_1 = arith.constant 0 : i32
    return %c0_i32, %c0_i32_0 : i32, i32
  }
  func.func @transform_5(%arg0: i32) -> (i32, i32) {
    %c0_i32 = arith.constant 0 : i32
    %c0_i32_0 = arith.constant 0 : i32
    %c0_i32_1 = arith.constant 0 : i32
    return %c0_i32, %c0_i32_0 : i32, i32
  }
  func.func @transform_6(%arg0: i32) -> (i32, i32) {
    %c0_i32 = arith.constant 0 : i32
    %c0_i32_0 = arith.constant 0 : i32
    %c0_i32_1 = arith.constant 0 : i32
    return %c0_i32, %c0_i32_0 : i32, i32
  }
  func.func @transform_7(%arg0: i32) -> (i32, i32) {
    %c0_i32 = arith.constant 0 : i32
    %c0_i32_0 = arith.constant 0 : i32
    %c0_i32_1 = arith.constant 0 : i32
    return %c0_i32, %c0_i32_0 : i32, i32
  }
  func.func @transform_8(%arg0: i32) -> (i32, i32) {
    %c0_i32 = arith.constant 0 : i32
    %c0_i32_0 = arith.constant 0 : i32
    %c0_i32_1 = arith.constant 0 : i32
    return %c0_i32, %c0_i32_0 : i32, i32
  }
  func.func @transform_9(%arg0: i32) -> (i32, i32) {
    %c0_i32 = arith.constant 0 : i32
    %c0_i32_0 = arith.constant 0 : i32
    %c0_i32_1 = arith.constant 0 : i32
    return %c0_i32, %c0_i32_0 : i32, i32
  }
  func.func @transform_10(%arg0: i32) -> (i32, i32, i32) {
    %c0_i32 = arith.constant 0 : i32
    %c0_i32_0 = arith.constant 0 : i32
    %c0_i32_1 = arith.constant 0 : i32
    return %arg0, %c0_i32, %c0_i32_0 : i32, i32, i32
  }
}

</mosaic_0001>

<llo_original>
// kernel: tpu_custom_call.1
$region0: #{tpu_custom_call.1}
  #allocation0 [shape = 'u32[]', space=smem, size = 0x4, offset = 0x4, fixed_abs, tag = 'smem constant byte address 0x4 - core index']
  #allocation1 [shape = 'u32[144,128]{1,0:T(1,128)}', space=vmem, size = 0x12000, scoped, tag = 'internal scratch']
  %s0 = inlined_call_operand.vmem [shape: f32[3], index: 0, kind: input, shape index: {}]
  %s1 = inlined_call_operand.vmem [shape: bf16[2,256,8], index: 1, kind: input, shape index: {}]
  %s2 = inlined_call_operand.vmem [shape: bf16[8,4], index: 2, kind: input, shape index: {}]
  %s3 = inlined_call_operand.vmem [shape: f32[1,4], index: 3, kind: input, shape index: {}]
  %s4 = inlined_call_operand.vmem [shape: bf16[36,8], index: 4, kind: input, shape index: {}]
  %s5 = inlined_call_operand.vmem [shape: f32[1,8], index: 5, kind: input, shape index: {}]
  %s6 = inlined_call_operand.vmem [shape: bf16[32,112], index: 6, kind: input, shape index: {}]
  %s7 = inlined_call_operand.vmem [shape: bf16[16,56], index: 7, kind: input, shape index: {}]
  %s8 = inlined_call_operand.vmem [shape: bf16[16,56], index: 8, kind: input, shape index: {}]
  %s9 = inlined_call_operand.vmem [shape: bf16[256,2], index: 9, kind: input, shape index: {}]
  %s10 = inlined_call_operand.vmem [shape: f32[2,256,8], index: 10, kind: output, shape index: {}]
  %s11 = sld [smem:[#allocation0]]
  $region77: #{tpu_custom_call.1} parent=0
    _
  %s13 = ssub.s32 1, %s11
  %s14 = scalar_select 0, %s13, %s11
  $region1: #{tpu_custom_call.1} parent=0
    #allocation2 [shape = 'u8[512]{0}', space=smem, size = 0x200, scoped, tag = 'input window, operand 0, single buffered']
    #allocation3 [shape = 's32[2]{0}', space=sflag, size = 0x8, scoped, tag = 'scoped memory for tpu_custom_call.1']
    %15 = vsyncpa [#allocation3], 0
    loop: start=0, step=1, limit=4
    $region2: #{tpu_custom_call.1} parent=1 // loop_pre_header
      _
    $region3: #{tpu_custom_call.1} parent=1 // loop_header
      %s17 = sphi 0, %s21
      %p18 = scmp.ge.s32.totalorder %s17, 4
      %s25 = sphi 0, %s25
      %s27 = sphi 0, %s25
      %s28 = sphi 0, %s27
      %s42 = sphi 0, %s28
      %s48 = sphi 0, %s50
      %s51 = sphi 0, %s48
      %s52 = sphi 0, %s51
      %s68 = sphi 0, %s52
      %s72 = sphi 0, %s72
      %s74 = sphi 0, %s72
      %s75 = sphi 0, %s74
      %s89 = sphi 0, %s75
      %s93 = sphi 0, %s93
      %s95 = sphi 0, %s93
      %s96 = sphi 0, %s95
      %s110 = sphi 0, %s96
      %s114 = sphi 0, %s114
      %s116 = sphi 0, %s114
      %s117 = sphi 0, %s116
      %s131 = sphi 0, %s117
      %s135 = sphi 0, %s135
      %s137 = sphi 0, %s135
      %s138 = sphi 0, %s137
      %s152 = sphi 0, %s138
      %s156 = sphi 0, %s156
      %s158 = sphi 0, %s156
      %s159 = sphi 0, %s158
      %s173 = sphi 0, %s159
      %s177 = sphi 0, %s177
      %s179 = sphi 0, %s177
      %s180 = sphi 0, %s179
      %s194 = sphi 0, %s180
      %s198 = sphi 0, %s198
      %s200 = sphi 0, %s198
      %s201 = sphi 0, %s200
      %s215 = sphi 0, %s201
      %s219 = sphi 0, %s219
      %s221 = sphi 0, %s219
      %s222 = sphi 0, %s221
      %s236 = sphi 0, %s222
      %s242 = sphi 0, %s244
      %s245 = sphi 0, %s242
      %s246 = sphi 0, %s245
      %s262 = sphi 0, %s246
    $region4: #{tpu_custom_call.1} parent=1 // loop_header_branch
      %20 = sbr.rel (%p18) target = $region8
    $region5: #{tpu_custom_call.1} parent=1 // loop_body
      %s22 = ssub.s32 %s17, 1
      %s23 = ssub.s32 %s17, 2
      %s24 = sadd.s32 %s17, 1
      %s26 = sadd.s32 %s25, 1
      %p29 = scmp.eq.s32.totalorder %s17, 1
      %p30 = scmp.ne.s32.totalorder %s25, %s27
      %p31 = scmp.eq.s32.totalorder %s17, 0
      %p32 = por %p30, %p31
      %p33 = scmp.ne.s32.totalorder %s25, %s27
      %p34 = scmp.eq.s32.totalorder %s22, 1
      %p35 = por %p33, %p34
      %p36 = scmp.ne.s32.totalorder %s27, %s28
      %p37 = scmp.eq.s32.totalorder %s22, 0
      %p38 = por %p36, %p37
      %p39 = scmp.ne.s32.totalorder %s27, %s28
      %p40 = scmp.eq.s32.totalorder %s23, 1
      %p41 = por %p39, %p40
      %p43 = scmp.ne.s32.totalorder %s28, %s42
      %p44 = scmp.eq.s32.totalorder %s23, 0
      %p45 = por %p43, %p44
      %s46 = ssub.s32 %s17, %s24
      %p47 = scmp.eq.s32.totalorder %s46, 0
      %s49 = sadd.s32 %s48, 1
      %s50 = scalar_select %p47, %s48, %s49
      %p53 = pneg %p47
      %p54 = scmp.eq.s32.totalorder %s17, 1
      %p55 = por %p53, %p54
      %p56 = scmp.ne.s32.totalorder %s48, %s51
      %p57 = scmp.eq.s32.totalorder %s17, 0
      %p58 = por %p56, %p57
      %p59 = scmp.ne.s32.totalorder %s48, %s51
      %p60 = scmp.eq.s32.totalorder %s22, 1
      %p61 = por %p59, %p60
      %p62 = scmp.ne.s32.totalorder %s51, %s52
      %p63 = scmp.eq.s32.totalorder %s22, 0
      %p64 = por %p62, %p63
      %p65 = scmp.ne.s32.totalorder %s51, %s52
      %p66 = scmp.eq.s32.totalorder %s23, 1
      %p67 = por %p65, %p66
      %p69 = scmp.ne.s32.totalorder %s52, %s68
      %p70 = scmp.eq.s32.totalorder %s23, 0
      %p71 = por %p69, %p70
      %s73 = sadd.s32 %s72, 1
      %p76 = scmp.eq.s32.totalorder %s17, 1
      %p77 = scmp.ne.s32.totalorder %s72, %s74
      %p78 = scmp.eq.s32.totalorder %s17, 0
      %p79 = por %p77, %p78
      %p80 = scmp.ne.s32.totalorder %s72, %s74
      %p81 = scmp.eq.s32.totalorder %s22, 1
      %p82 = por %p80, %p81
      %p83 = scmp.ne.s32.totalorder %s74, %s75
      %p84 = scmp.eq.s32.totalorder %s22, 0
      %p85 = por %p83, %p84
      %p86 = scmp.ne.s32.totalorder %s74, %s75
      %p87 = scmp.eq.s32.totalorder %s23, 1
      %p88 = por %p86, %p87
      %p90 = scmp.ne.s32.totalorder %s75, %s89
      %p91 = scmp.eq.s32.totalorder %s23, 0
      %p92 = por %p90, %p91
      %s94 = sadd.s32 %s93, 1
      %p97 = scmp.eq.s32.totalorder %s17, 1
      %p98 = scmp.ne.s32.totalorder %s93, %s95
      %p99 = scmp.eq.s32.totalorder %s17, 0
      %p100 = por %p98, %p99
      %p101 = scmp.ne.s32.totalorder %s93, %s95
      %p102 = scmp.eq.s32.totalorder %s22, 1
      %p103 = por %p101, %p102
      %p104 = scmp.ne.s32.totalorder %s95, %s96
      %p105 = scmp.eq.s32.totalorder %s22, 0
      %p106 = por %p104, %p105
      %p107 = scmp.ne.s32.totalorder %s95, %s96
      %p108 = scmp.eq.s32.totalorder %s23, 1
      %p109 = por %p107, %p108
      %p111 = scmp.ne.s32.totalorder %s96, %s110
      %p112 = scmp.eq.s32.totalorder %s23, 0
      %p113 = por %p111, %p112
      %s115 = sadd.s32 %s114, 1
      %p118 = scmp.eq.s32.totalorder %s17, 1
      %p119 = scmp.ne.s32.totalorder %s114, %s116
      %p120 = scmp.eq.s32.totalorder %s17, 0
      %p121 = por %p119, %p120
      %p122 = scmp.ne.s32.totalorder %s114, %s116
      %p123 = scmp.eq.s32.totalorder %s22, 1
      %p124 = por %p122, %p123
      %p125 = scmp.ne.s32.totalorder %s116, %s117
      %p126 = scmp.eq.s32.totalorder %s22, 0
      %p127 = por %p125, %p126
      %p128 = scmp.ne.s32.totalorder %s116, %s117
      %p129 = scmp.eq.s32.totalorder %s23, 1
      %p130 = por %p128, %p129
      %p132 = scmp.ne.s32.totalorder %s117, %s131
      %p133 = scmp.eq.s32.totalorder %s23, 0
      %p134 = por %p132, %p133
      %s136 = sadd.s32 %s135, 1
      %p139 = scmp.eq.s32.totalorder %s17, 1
      %p140 = scmp.ne.s32.totalorder %s135, %s137
      %p141 = scmp.eq.s32.totalorder %s17, 0
      %p142 = por %p140, %p141
      %p143 = scmp.ne.s32.totalorder %s135, %s137
      %p144 = scmp.eq.s32.totalorder %s22, 1
      %p145 = por %p143, %p144
      %p146 = scmp.ne.s32.totalorder %s137, %s138
      %p147 = scmp.eq.s32.totalorder %s22, 0
      %p148 = por %p146, %p147
      %p149 = scmp.ne.s32.totalorder %s137, %s138
      %p150 = scmp.eq.s32.totalorder %s23, 1
      %p151 = por %p149, %p150
      %p153 = scmp.ne.s32.totalorder %s138, %s152
      %p154 = scmp.eq.s32.totalorder %s23, 0
      %p155 = por %p153, %p154
      %s157 = sadd.s32 %s156, 1
      %p160 = scmp.eq.s32.totalorder %s17, 1
      %p161 = scmp.ne.s32.totalorder %s156, %s158
      %p162 = scmp.eq.s32.totalorder %s17, 0
      %p163 = por %p161, %p162
      %p164 = scmp.ne.s32.totalorder %s156, %s158
      %p165 = scmp.eq.s32.totalorder %s22, 1
      %p166 = por %p164, %p165
      %p167 = scmp.ne.s32.totalorder %s158, %s159
      %p168 = scmp.eq.s32.totalorder %s22, 0
      %p169 = por %p167, %p168
      %p170 = scmp.ne.s32.totalorder %s158, %s159
      %p171 = scmp.eq.s32.totalorder %s23, 1
      %p172 = por %p170, %p171
      %p174 = scmp.ne.s32.totalorder %s159, %s173
      %p175 = scmp.eq.s32.totalorder %s23, 0
      %p176 = por %p174, %p175
      %s178 = sadd.s32 %s177, 1
      %p181 = scmp.eq.s32.totalorder %s17, 1
      %p182 = scmp.ne.s32.totalorder %s177, %s179
      %p183 = scmp.eq.s32.totalorder %s17, 0
      %p184 = por %p182, %p183
      %p185 = scmp.ne.s32.totalorder %s177, %s179
      %p186 = scmp.eq.s32.totalorder %s22, 1
      %p187 = por %p185, %p186
      %p188 = scmp.ne.s32.totalorder %s179, %s180
      %p189 = scmp.eq.s32.totalorder %s22, 0
      %p190 = por %p188, %p189
      %p191 = scmp.ne.s32.totalorder %s179, %s180
      %p192 = scmp.eq.s32.totalorder %s23, 1
      %p193 = por %p191, %p192
      %p195 = scmp.ne.s32.totalorder %s180, %s194
      %p196 = scmp.eq.s32.totalorder %s23, 0
      %p197 = por %p195, %p196
      %s199 = sadd.s32 %s198, 1
      %p202 = scmp.eq.s32.totalorder %s17, 1
      %p203 = scmp.ne.s32.totalorder %s198, %s200
      %p204 = scmp.eq.s32.totalorder %s17, 0
      %p205 = por %p203, %p204
      %p206 = scmp.ne.s32.totalorder %s198, %s200
      %p207 = scmp.eq.s32.totalorder %s22, 1
      %p208 = por %p206, %p207
      %p209 = scmp.ne.s32.totalorder %s200, %s201
      %p210 = scmp.eq.s32.totalorder %s22, 0
      %p211 = por %p209, %p210
      %p212 = scmp.ne.s32.totalorder %s200, %s201
      %p213 = scmp.eq.s32.totalorder %s23, 1
      %p214 = por %p212, %p213
      %p216 = scmp.ne.s32.totalorder %s201, %s215
      %p217 = scmp.eq.s32.totalorder %s23, 0
      %p218 = por %p216, %p217
      %s220 = sadd.s32 %s219, 1
      %p223 = scmp.eq.s32.totalorder %s17, 1
      %p224 = scmp.ne.s32.totalorder %s219, %s221
      %p225 = scmp.eq.s32.totalorder %s17, 0
      %p226 = por %p224, %p225
      %p227 = scmp.ne.s32.totalorder %s219, %s221
      %p228 = scmp.eq.s32.totalorder %s22, 1
      %p229 = por %p227, %p228
      %p230 = scmp.ne.s32.totalorder %s221, %s222
      %p231 = scmp.eq.s32.totalorder %s22, 0
      %p232 = por %p230, %p231
      %p233 = scmp.ne.s32.totalorder %s221, %s222
      %p234 = scmp.eq.s32.totalorder %s23, 1
      %p235 = por %p233, %p234
      %p237 = scmp.ne.s32.totalorder %s222, %s236
      %p238 = scmp.eq.s32.totalorder %s23, 0
      %p239 = por %p237, %p238
      %s240 = ssub.s32 %s17, %s24
      %p241 = scmp.eq.s32.totalorder %s240, 0
      %s243 = sadd.s32 %s242, 1
      %s244 = scalar_select %p241, %s242, %s243
      %p247 = pneg %p241
      %p248 = scmp.eq.s32.totalorder %s17, 1
      %p249 = por %p247, %p248
      %p250 = scmp.ne.s32.totalorder %s242, %s245
      %p251 = scmp.eq.s32.totalorder %s17, 0
      %p252 = por %p250, %p251
      %p253 = scmp.ne.s32.totalorder %s242, %s245
      %p254 = scmp.eq.s32.totalorder %s22, 1
      %p255 = por %p253, %p254
      %p256 = scmp.ne.s32.totalorder %s245, %s246
      %p257 = scmp.eq.s32.totalorder %s22, 0
      %p258 = por %p256, %p257
      %p259 = scmp.ne.s32.totalorder %s245, %s246
      %p260 = scmp.eq.s32.totalorder %s23, 1
      %p261 = por %p259, %p260
      %p263 = scmp.ne.s32.totalorder %s246, %s262
      %p264 = scmp.eq.s32.totalorder %s23, 0
      %p265 = por %p263, %p264
      %p266 = scmp.le.s32.totalorder 1, %s17
      %p267 = scmp.lt.s32.totalorder %s17, 3
      %p268 = pnand %p266, %p267
      %p269 = pneg %p268
      // Predicated region
      $region9: #{tpu_custom_call.1} parent=5 // pred_check
        _
      $region10: #{tpu_custom_call.1} parent=5 // pred_check_branch
        %271 = sbr.rel (%p268) target = $region12
      $region11: #{tpu_custom_call.1} parent=5 // pred_region
        %s272 = ssub.s32 %s17, 1
        // Predicated region
        $region13: #{tpu_custom_call.1} parent=11 // pred_check
          %p273 = pneg %p38
        $region14: #{tpu_custom_call.1} parent=11 // pred_check_branch
          %275 = sbr.rel (%p273) target = $region16
        $region15: #{tpu_custom_call.1} parent=11 // pred_region
          %s277 = ssub.s32 16, 16
          %278 = vsyncadd [#allocation3], %s277
          %s280 = sshll.u32 %s0, 4
          %s281 = int_to_ptr.vmem [resolvable:$true] %s280
          %283 = dma.vmem_to_smem %s281, 16, [#allocation2], [#allocation3]
        $region16: #{tpu_custom_call.1} parent=11 // pred_fallthru
          _
        // Predicated region
        $region17: #{tpu_custom_call.1} parent=11 // pred_check
          %p284 = pneg %p85
        $region18: #{tpu_custom_call.1} parent=11 // pred_check_branch
          %286 = sbr.rel (%p284) target = $region20
        $region19: #{tpu_custom_call.1} parent=11 // pred_region
          _
        $region20: #{tpu_custom_call.1} parent=11 // pred_fallthru
          _
        // Predicated region
        $region21: #{tpu_custom_call.1} parent=11 // pred_check
          %p287 = pneg %p106
        $region22: #{tpu_custom_call.1} parent=11 // pred_check_branch
          %289 = sbr.rel (%p287) target = $region24
        $region23: #{tpu_custom_call.1} parent=11 // pred_region
          _
        $region24: #{tpu_custom_call.1} parent=11 // pred_fallthru
          _
        // Predicated region
        $region25: #{tpu_custom_call.1} parent=11 // pred_check
          %p290 = pneg %p127
        $region26: #{tpu_custom_call.1} parent=11 // pred_check_branch
          %292 = sbr.rel (%p290) target = $region28
        $region27: #{tpu_custom_call.1} parent=11 // pred_region
          _
        $region28: #{tpu_custom_call.1} parent=11 // pred_fallthru
          _
        // Predicated region
        $region29: #{tpu_custom_call.1} parent=11 // pred_check
          %p293 = pneg %p148
        $region30: #{tpu_custom_call.1} parent=11 // pred_check_branch
          %295 = sbr.rel (%p293) target = $region32
        $region31: #{tpu_custom_call.1} parent=11 // pred_region
          _
        $region32: #{tpu_custom_call.1} parent=11 // pred_fallthru
          _
        // Predicated region
        $region33: #{tpu_custom_call.1} parent=11 // pred_check
          %p296 = pneg %p169
        $region34: #{tpu_custom_call.1} parent=11 // pred_check_branch
          %298 = sbr.rel (%p296) target = $region36
        $region35: #{tpu_custom_call.1} parent=11 // pred_region
          _
        $region36: #{tpu_custom_call.1} parent=11 // pred_fallthru
          _
        // Predicated region
        $region37: #{tpu_custom_call.1} parent=11 // pred_check
          %p299 = pneg %p190
        $region38: #{tpu_custom_call.1} parent=11 // pred_check_branch
          %301 = sbr.rel (%p299) target = $region40
        $region39: #{tpu_custom_call.1} parent=11 // pred_region
          _
        $region40: #{tpu_custom_call.1} parent=11 // pred_fallthru
          _
        // Predicated region
        $region41: #{tpu_custom_call.1} parent=11 // pred_check
          %p302 = pneg %p211
        $region42: #{tpu_custom_call.1} parent=11 // pred_check_branch
          %304 = sbr.rel (%p302) target = $region44
        $region43: #{tpu_custom_call.1} parent=11 // pred_region
          _
        $region44: #{tpu_custom_call.1} parent=11 // pred_fallthru
          _
        // Predicated region
        $region45: #{tpu_custom_call.1} parent=11 // pred_check
          %p305 = pneg %p232
        $region46: #{tpu_custom_call.1} parent=11 // pred_check_branch
          %307 = sbr.rel (%p305) target = $region48
        $region47: #{tpu_custom_call.1} parent=11 // pred_region
          _
        $region48: #{tpu_custom_call.1} parent=11 // pred_fallthru
          _
      $region12: #{tpu_custom_call.1} parent=5 // pred_fallthru
        _
      %p308 = scmp.lt.s32.totalorder %s17, 2
      // Predicated region
      $region49: #{tpu_custom_call.1} parent=5 // pred_check
        %p309 = pneg %p308
      $region50: #{tpu_custom_call.1} parent=5 // pred_check_branch
        %311 = sbr.rel (%p309) target = $region52
      $region51: #{tpu_custom_call.1} parent=5 // pred_region
        // Predicated region
        $region53: #{tpu_custom_call.1} parent=51 // pred_check
          %p312 = pneg %p58
        $region54: #{tpu_custom_call.1} parent=51 // pred_check_branch
          %314 = sbr.rel (%p312) target = $region56
        $region55: #{tpu_custom_call.1} parent=51 // pred_region
          %p315 = scmp.lt.s32.totalorder %s17, 1
          %s316 = scalar_select %p315, %s17, 1
          %s317 = smul.addr %s316, 32
          %s318 = smul.addr %s317, 4
          %s319 = scalar_lea.vmem %s1, %s318
        $region56: #{tpu_custom_call.1} parent=51 // pred_fallthru
          _
      $region52: #{tpu_custom_call.1} parent=5 // pred_fallthru
        _
      %p320 = scmp.le.s32.totalorder 1, %s17
      %p321 = scmp.lt.s32.totalorder %s17, 3
      %p322 = pnand %p320, %p321
      %p323 = pneg %p322
      // Predicated region
      $region57: #{tpu_custom_call.1} parent=5 // pred_check
        _
      $region58: #{tpu_custom_call.1} parent=5 // pred_check_branch
        %325 = sbr.rel (%p322) target = $region60
      $region59: #{tpu_custom_call.1} parent=5 // pred_region
        %s326 = ssub.s32 %s17, 1
        // Predicated region
        $region61: #{tpu_custom_call.1} parent=59 // pred_check
          %p327 = pneg %p38
        $region62: #{tpu_custom_call.1} parent=59 // pred_check_branch
          %329 = sbr.rel (%p327) target = $region64
        $region63: #{tpu_custom_call.1} parent=59 // pred_region
          %330 = dma.done [#allocation3], 16
        $region64: #{tpu_custom_call.1} parent=59 // pred_fallthru
          _
        %331 = sfence
        %p332 = pneg %p38
        %p333 = pneg %p35
        %p334 = scmp.lt.s32.totalorder %s22, 1
        %s335 = scalar_select %p334, %s22, 1
        %s336 = smul.addr %s335, 32
        %s337 = smul.addr %s336, 4
        %s338 = scalar_lea.vmem %s1, %s337
        %p339 = pneg %p64
        %p340 = pneg %p61
        %p341 = pneg %p85
        %p342 = pneg %p82
        %p343 = pneg %p106
        %p344 = pneg %p103
        %p345 = pneg %p127
        %p346 = pneg %p124
        %p347 = pneg %p148
        %p348 = pneg %p145
        %p349 = pneg %p169
        %p350 = pneg %p166
        %p351 = pneg %p190
        %p352 = pneg %p187
        %p353 = pneg %p211
        %p354 = pneg %p208
        %p355 = pneg %p232
        %p356 = pneg %p229
        %p357 = pneg %p258
        %p358 = pneg %p255
        %p359 = scmp.lt.s32.totalorder %s22, 1
        %s360 = scalar_select %p359, %s22, 1
        %s361 = smul.addr %s360, 32
        %s362 = smul.addr %s361, 8
        %s363 = scalar_lea.vmem %s10, %s362
        %p364 = scmp.lt.s32.totalorder %s22, 1
        %s365 = scalar_select %p364, %s22, 1
        %s366 = smul.addr %s365, 32
        %s367 = smul.addr %s366, 4
        %s368 = scalar_lea.vmem %s1, %s367
        %p369 = scmp.lt.s32.totalorder %s22, 1
        %s370 = scalar_select %p369, %s22, 1
        %s371 = smul.addr %s370, 32
        %s372 = smul.addr %s371, 8
        %s373 = scalar_lea.vmem %s10, %s372
        %v375 = vld [vmem:[%s368] sm:$0xf]
        %v376 = vld [vmem:[%s368 + $0x4] sm:$0xf]
        %v377 = vld [vmem:[%s368 + $0x8] sm:$0xf]
        %v378 = vld [vmem:[%s368 + $0xc] sm:$0xf]
        %v379 = vld [vmem:[%s368 + $0x10] sm:$0xf]
        %v380 = vld [vmem:[%s368 + $0x14] sm:$0xf]
        %v381 = vld [vmem:[%s368 + $0x18] sm:$0xf]
        %v382 = vld [vmem:[%s368 + $0x1c] sm:$0xf]
        %v383 = vld [vmem:[%s368 + $0x20] sm:$0xf]
        %v384 = vld [vmem:[%s368 + $0x24] sm:$0xf]
        %v385 = vld [vmem:[%s368 + $0x28] sm:$0xf]
        %v386 = vld [vmem:[%s368 + $0x2c] sm:$0xf]
        %v387 = vld [vmem:[%s368 + $0x30] sm:$0xf]
        %v388 = vld [vmem:[%s368 + $0x34] sm:$0xf]
        %v389 = vld [vmem:[%s368 + $0x38] sm:$0xf]
        %v390 = vld [vmem:[%s368 + $0x3c] sm:$0xf]
        %v391 = vld [vmem:[%s368 + $0x40] sm:$0xf]
        %v392 = vld [vmem:[%s368 + $0x44] sm:$0xf]
        %v393 = vld [vmem:[%s368 + $0x48] sm:$0xf]
        %v394 = vld [vmem:[%s368 + $0x4c] sm:$0xf]
        %v395 = vld [vmem:[%s368 + $0x50] sm:$0xf]
        %v396 = vld [vmem:[%s368 + $0x54] sm:$0xf]
        %v397 = vld [vmem:[%s368 + $0x58] sm:$0xf]
        %v398 = vld [vmem:[%s368 + $0x5c] sm:$0xf]
        %v399 = vld [vmem:[%s368 + $0x60] sm:$0xf]
        %v400 = vld [vmem:[%s368 + $0x64] sm:$0xf]
        %v401 = vld [vmem:[%s368 + $0x68] sm:$0xf]
        %v402 = vld [vmem:[%s368 + $0x6c] sm:$0xf]
        %v403 = vld [vmem:[%s368 + $0x70] sm:$0xf]
        %v404 = vld [vmem:[%s368 + $0x74] sm:$0xf]
        %v405 = vld [vmem:[%s368 + $0x78] sm:$0xf]
        %v406 = vld [vmem:[%s368 + $0x7c] sm:$0xf]
        %v407 = vld [vmem:[%s2] sm:$0xf]
        %v408 = vld [vmem:[%s3] sm:$0x1]
        %v410 = vlaneseq
        %v411 = vshrl.u32 %v410, 7
        %v412 = vsub.s32 0, %v411
        %v413 = vrot.slane %v408, %v412
        %v447 = vunpack.c.l.b16 %v375
        %v448 = vunpack.c.l.b16 %v376
        %v449 = vunpack.c.l.b16 %v377
        %v450 = vunpack.c.l.b16 %v378
        %v451 = vunpack.c.l.b16 %v379
        %v452 = vunpack.c.l.b16 %v380
        %v453 = vunpack.c.l.b16 %v381
        %v454 = vunpack.c.l.b16 %v382
        %v455 = vunpack.c.l.b16 %v383
        %v456 = vunpack.c.l.b16 %v384
        %v457 = vunpack.c.l.b16 %v385
        %v458 = vunpack.c.l.b16 %v386
        %v459 = vunpack.c.l.b16 %v387
        %v460 = vunpack.c.l.b16 %v388
        %v461 = vunpack.c.l.b16 %v389
        %v462 = vunpack.c.l.b16 %v390
        %v463 = vunpack.c.l.b16 %v391
        %v464 = vunpack.c.l.b16 %v392
        %v465 = vunpack.c.l.b16 %v393
        %v466 = vunpack.c.l.b16 %v394
        %v467 = vunpack.c.l.b16 %v395
        %v468 = vunpack.c.l.b16 %v396
        %v469 = vunpack.c.l.b16 %v397
        %v470 = vunpack.c.l.b16 %v398
        %v471 = vunpack.c.l.b16 %v399
        %v472 = vunpack.c.l.b16 %v400
        %v473 = vunpack.c.l.b16 %v401
        %v474 = vunpack.c.l.b16 %v402
        %v475 = vunpack.c.l.b16 %v403
        %v476 = vunpack.c.l.b16 %v404
        %v477 = vunpack.c.l.b16 %v405
        %v478 = vunpack.c.l.b16 %v406
        %v479 = vpack.c.b16 %v448, %v447
        %v480 = vpack.c.b16 %v450, %v449
        %v481 = vpack.c.b16 %v452, %v451
        %v482 = vpack.c.b16 %v454, %v453
        %v483 = vpack.c.b16 %v456, %v455
        %v484 = vpack.c.b16 %v458, %v457
        %v485 = vpack.c.b16 %v460, %v459
        %v486 = vpack.c.b16 %v462, %v461
        %v487 = vpack.c.b16 %v464, %v463
        %v488 = vpack.c.b16 %v466, %v465
        %v489 = vpack.c.b16 %v468, %v467
        %v490 = vpack.c.b16 %v470, %v469
        %v491 = vpack.c.b16 %v472, %v471
        %v492 = vpack.c.b16 %v474, %v473
        %v493 = vpack.c.b16 %v476, %v475
        %v494 = vpack.c.b16 %v478, %v477
        %vm495 = vcmask 64512
        %v497 = vsel %vm495, %v479, 0
        %v500 = vsel %vm495, %v480, 0
        %v503 = vsel %vm495, %v481, 0
        %v506 = vsel %vm495, %v482, 0
        %v509 = vsel %vm495, %v483, 0
        %v512 = vsel %vm495, %v484, 0
        %v515 = vsel %vm495, %v485, 0
        %v518 = vsel %vm495, %v486, 0
        %v521 = vsel %vm495, %v487, 0
        %v524 = vsel %vm495, %v488, 0
        %v527 = vsel %vm495, %v489, 0
        %v530 = vsel %vm495, %v490, 0
        %v533 = vsel %vm495, %v491, 0
        %v536 = vsel %vm495, %v492, 0
        %v539 = vsel %vm495, %v493, 0
        %v542 = vsel %vm495, %v494, 0
        %vm544 = vcmask 1043456
        %v546 = vsel %vm544, %v407, 0
        %548 = vmatprep.subr.bf16.mxu0 0
        %549 = vmatpush1.bf16.msra.mxu0 %v546
        %550 = vmatprep.subr.bf16.mxu0 0
        %551 = vmatpush1.bf16.msra.mxu0 0
        %552 = vmatprep.subr.bf16.mxu0 0
        %553 = vmatpush1.bf16.msra.mxu0 0
        %554 = vmatprep.subr.bf16.mxu0 0
        %555 = vmatpush1.bf16.msra.mxu0 0
        %556 = vmatprep.subr.bf16.mxu0 0
        %557 = vmatpush1.bf16.msra.mxu0 0
        %558 = vmatprep.subr.bf16.mxu0 0
        %559 = vmatpush1.bf16.msra.mxu0 0
        %560 = vmatprep.subr.bf16.mxu0 0
        %561 = vmatpush1.bf16.msra.mxu0 0
        %562 = vmatprep.subr.bf16.mxu0 0
        %563 = vmatpush1.bf16.msra.mxu0 0
        %564 = vmatprep.subr.bf16.mxu0 0
        %565 = vmatpush1.bf16.msra.mxu0 0
        %566 = vmatprep.subr.bf16.mxu0 0
        %567 = vmatpush1.bf16.msra.mxu0 0
        %568 = vmatprep.subr.bf16.mxu0 0
        %569 = vmatpush1.bf16.msra.mxu0 0
        %570 = vmatprep.subr.bf16.mxu0 0
        %571 = vmatpush1.bf16.msra.mxu0 0
        %572 = vmatprep.subr.bf16.mxu0 0
        %573 = vmatpush1.bf16.msra.mxu0 0
        %574 = vmatprep.subr.bf16.mxu0 0
        %575 = vmatpush1.bf16.msra.mxu0 0
        %576 = vmatprep.subr.bf16.mxu0 0
        %577 = vmatpush1.bf16.msra.mxu0 0
        %578 = vmatprep.subr.bf16.mxu0 0
        %579 = vmatpush1.bf16.msra.mxu0 0
        %580 = vmatprep.mubr.bf16.mxu0 0
        %581 = vmatmul.mubr.bf16.gmra.mrb[0].mxu0 %v497
        %v582 = vpop.f32.mrb[0].mxu0
        %v583 = vadd.f32 %v413, %v582
        %v584 = vpop.f32.mrb[0].mxu0
        %v585 = vpop.f32.mrb[0].mxu0
        %v586 = vadd.f32 %v413, %v585
        %v587 = vpop.f32.mrb[0].mxu0
        %588 = vmatprep.mubr.bf16.mxu0 0
        %589 = vmatmul.mubr.bf16.gmra.mrb[0].mxu0 %v500
        %v590 = vpop.f32.mrb[0].mxu0
        %v591 = vadd.f32 %v413, %v590
        %v592 = vpop.f32.mrb[0].mxu0
        %v593 = vpop.f32.mrb[0].mxu0
        %v594 = vadd.f32 %v413, %v593
        %v595 = vpop.f32.mrb[0].mxu0
        %596 = vmatprep.mubr.bf16.mxu0 0
        %597 = vmatmul.mubr.bf16.gmra.mrb[0].mxu0 %v503
        %v598 = vpop.f32.mrb[0].mxu0
        %v599 = vadd.f32 %v413, %v598
        %v600 = vpop.f32.mrb[0].mxu0
        %v601 = vpop.f32.mrb[0].mxu0
        %v602 = vadd.f32 %v413, %v601
        %v603 = vpop.f32.mrb[0].mxu0
        %604 = vmatprep.mubr.bf16.mxu0 0
        %605 = vmatmul.mubr.bf16.gmra.mrb[0].mxu0 %v506
        %v606 = vpop.f32.mrb[0].mxu0
        %v607 = vadd.f32 %v413, %v606
        %v608 = vpop.f32.mrb[0].mxu0
        %v609 = vpop.f32.mrb[0].mxu0
        %v610 = vadd.f32 %v413, %v609
        %v611 = vpop.f32.mrb[0].mxu0
        %612 = vmatprep.mubr.bf16.mxu0 0
        %613 = vmatmul.mubr.bf16.gmra.mrb[0].mxu0 %v509
        %v614 = vpop.f32.mrb[0].mxu0
        %v615 = vadd.f32 %v413, %v614
        %v616 = vpop.f32.mrb[0].mxu0
        %v617 = vpop.f32.mrb[0].mxu0
        %v618 = vadd.f32 %v413, %v617
        %v619 = vpop.f32.mrb[0].mxu0
        %620 = vmatprep.mubr.bf16.mxu0 0
        %621 = vmatmul.mubr.bf16.gmra.mrb[0].mxu0 %v512
        %v622 = vpop.f32.mrb[0].mxu0
        %v623 = vadd.f32 %v413, %v622
        %v624 = vpop.f32.mrb[0].mxu0
        %v625 = vpop.f32.mrb[0].mxu0
        %v626 = vadd.f32 %v413, %v625
        %v627 = vpop.f32.mrb[0].mxu0
        %628 = vmatprep.mubr.bf16.mxu0 0
        %629 = vmatmul.mubr.bf16.gmra.mrb[0].mxu0 %v515
        %v630 = vpop.f32.mrb[0].mxu0
        %v631 = vadd.f32 %v413, %v630
        %v632 = vpop.f32.mrb[0].mxu0
        %v633 = vpop.f32.mrb[0].mxu0
        %v634 = vadd.f32 %v413, %v633
        %v635 = vpop.f32.mrb[0].mxu0
        %636 = vmatprep.mubr.bf16.mxu0 0
        %637 = vmatmul.mubr.bf16.gmra.mrb[0].mxu0 %v518
        %v638 = vpop.f32.mrb[0].mxu0
        %v639 = vadd.f32 %v413, %v638
        %v640 = vpop.f32.mrb[0].mxu0
        %v641 = vpop.f32.mrb[0].mxu0
        %v642 = vadd.f32 %v413, %v641
        %v643 = vpop.f32.mrb[0].mxu0
        %644 = vmatprep.mubr.bf16.mxu0 0
        %645 = vmatmul.mubr.bf16.gmra.mrb[0].mxu0 %v521
        %v646 = vpop.f32.mrb[0].mxu0
        %v647 = vadd.f32 %v413, %v646
        %v648 = vpop.f32.mrb[0].mxu0
        %v649 = vpop.f32.mrb[0].mxu0
        %v650 = vadd.f32 %v413, %v649
        %v651 = vpop.f32.mrb[0].mxu0
        %652 = vmatprep.mubr.bf16.mxu0 0
        %653 = vmatmul.mubr.bf16.gmra.mrb[0].mxu0 %v524
        %v654 = vpop.f32.mrb[0].mxu0
        %v655 = vadd.f32 %v413, %v654
        %v656 = vpop.f32.mrb[0].mxu0
        %v657 = vpop.f32.mrb[0].mxu0
        %v658 = vadd.f32 %v413, %v657
        %v659 = vpop.f32.mrb[0].mxu0
        %660 = vmatprep.mubr.bf16.mxu0 0
        %661 = vmatmul.mubr.bf16.gmra.mrb[0].mxu0 %v527
        %v662 = vpop.f32.mrb[0].mxu0
        %v663 = vadd.f32 %v413, %v662
        %v664 = vpop.f32.mrb[0].mxu0
        %v665 = vpop.f32.mrb[0].mxu0
        %v666 = vadd.f32 %v413, %v665
        %v667 = vpop.f32.mrb[0].mxu0
        %668 = vmatprep.mubr.bf16.mxu0 0
        %669 = vmatmul.mubr.bf16.gmra.mrb[0].mxu0 %v530
        %v670 = vpop.f32.mrb[0].mxu0
        %v671 = vadd.f32 %v413, %v670
        %v672 = vpop.f32.mrb[0].mxu0
        %v673 = vpop.f32.mrb[0].mxu0
        %v674 = vadd.f32 %v413, %v673
        %v675 = vpop.f32.mrb[0].mxu0
        %676 = vmatprep.mubr.bf16.mxu0 0
        %677 = vmatmul.mubr.bf16.gmra.mrb[0].mxu0 %v533
        %v678 = vpop.f32.mrb[0].mxu0
        %v679 = vadd.f32 %v413, %v678
        %v680 = vpop.f32.mrb[0].mxu0
        %v681 = vpop.f32.mrb[0].mxu0
        %v682 = vadd.f32 %v413, %v681
        %v683 = vpop.f32.mrb[0].mxu0
        %684 = vmatprep.mubr.bf16.mxu0 0
        %685 = vmatmul.mubr.bf16.gmra.mrb[0].mxu0 %v536
        %v686 = vpop.f32.mrb[0].mxu0
        %v687 = vadd.f32 %v413, %v686
        %v688 = vpop.f32.mrb[0].mxu0
        %v689 = vpop.f32.mrb[0].mxu0
        %v690 = vadd.f32 %v413, %v689
        %v691 = vpop.f32.mrb[0].mxu0
        %692 = vmatprep.mubr.bf16.mxu0 0
        %693 = vmatmul.mubr.bf16.gmra.mrb[0].mxu0 %v539
        %v694 = vpop.f32.mrb[0].mxu0
        %v695 = vadd.f32 %v413, %v694
        %v696 = vpop.f32.mrb[0].mxu0
        %v697 = vpop.f32.mrb[0].mxu0
        %v698 = vadd.f32 %v413, %v697
        %v699 = vpop.f32.mrb[0].mxu0
        %700 = vmatprep.mubr.bf16.mxu0 0
        %701 = vmatmul.mubr.bf16.gmra.mrb[0].mxu0 %v542
        %v702 = vpop.f32.mrb[0].mxu0
        %v703 = vadd.f32 %v413, %v702
        %v704 = vpop.f32.mrb[0].mxu0
        %v705 = vpop.f32.mrb[0].mxu0
        %v706 = vadd.f32 %v413, %v705
        %v707 = vpop.f32.mrb[0].mxu0
        %708 = vdwg.mxu0
        %v709 = vmul.f32 %v583, 0.5
        %v710 = vmul.f32 %v586, 0.5
        %v711 = vmul.f32 %v591, 0.5
        %v712 = vmul.f32 %v594, 0.5
        %v713 = vmul.f32 %v599, 0.5
        %v714 = vmul.f32 %v602, 0.5
        %v715 = vmul.f32 %v607, 0.5
        %v716 = vmul.f32 %v610, 0.5
        %v717 = vmul.f32 %v615, 0.5
        %v718 = vmul.f32 %v618, 0.5
        %v719 = vmul.f32 %v623, 0.5
        %v720 = vmul.f32 %v626, 0.5
        %v721 = vmul.f32 %v631, 0.5
        %v722 = vmul.f32 %v634, 0.5
        %v723 = vmul.f32 %v639, 0.5
        %v724 = vmul.f32 %v642, 0.5
        %v725 = vmul.f32 %v647, 0.5
        %v726 = vmul.f32 %v650, 0.5
        %v727 = vmul.f32 %v655, 0.5
        %v728 = vmul.f32 %v658, 0.5
        %v729 = vmul.f32 %v663, 0.5
        %v730 = vmul.f32 %v666, 0.5
        %v731 = vmul.f32 %v671, 0.5
        %v732 = vmul.f32 %v674, 0.5
        %v733 = vmul.f32 %v679, 0.5
        %v734 = vmul.f32 %v682, 0.5
        %v735 = vmul.f32 %v687, 0.5
        %v736 = vmul.f32 %v690, 0.5
        %v737 = vmul.f32 %v695, 0.5
        %v738 = vmul.f32 %v698, 0.5
        %v739 = vmul.f32 %v703, 0.5
        %v740 = vmul.f32 %v706, 0.5
        %v741 = vtanh.pop %v709
        %v742 = vtanh.pop %v710
        %v743 = vtanh.pop %v711
        %v744 = vtanh.pop %v712
        %v745 = vtanh.pop %v713
        %v746 = vtanh.pop %v714
        %v747 = vtanh.pop %v715
        %v748 = vtanh.pop %v716
        %v749 = vtanh.pop %v717
        %v750 = vtanh.pop %v718
        %v751 = vtanh.pop %v719
        %v752 = vtanh.pop %v720
        %v753 = vtanh.pop %v721
        %v754 = vtanh.pop %v722
        %v755 = vtanh.pop %v723
        %v756 = vtanh.pop %v724
        %v757 = vtanh.pop %v725
        %v758 = vtanh.pop %v726
        %v759 = vtanh.pop %v727
        %v760 = vtanh.pop %v728
        %v761 = vtanh.pop %v729
        %v762 = vtanh.pop %v730
        %v763 = vtanh.pop %v731
        %v764 = vtanh.pop %v732
        %v765 = vtanh.pop %v733
        %v766 = vtanh.pop %v734
        %v767 = vtanh.pop %v735
        %v768 = vtanh.pop %v736
        %v769 = vtanh.pop %v737
        %v770 = vtanh.pop %v738
        %v771 = vtanh.pop %v739
        %v772 = vtanh.pop %v740
        %v773 = vmul.f32 %v741, 0.5
        %v774 = vmul.f32 %v742, 0.5
        %v775 = vmul.f32 %v743, 0.5
        %v776 = vmul.f32 %v744, 0.5
        %v777 = vmul.f32 %v745, 0.5
        %v778 = vmul.f32 %v746, 0.5
        %v779 = vmul.f32 %v747, 0.5
        %v780 = vmul.f32 %v748, 0.5
        %v781 = vmul.f32 %v749, 0.5
        %v782 = vmul.f32 %v750, 0.5
        %v783 = vmul.f32 %v751, 0.5
        %v784 = vmul.f32 %v752, 0.5
        %v785 = vmul.f32 %v753, 0.5
        %v786 = vmul.f32 %v754, 0.5
        %v787 = vmul.f32 %v755, 0.5
        %v788 = vmul.f32 %v756, 0.5
        %v789 = vmul.f32 %v757, 0.5
        %v790 = vmul.f32 %v758, 0.5
        %v791 = vmul.f32 %v759, 0.5
        %v792 = vmul.f32 %v760, 0.5
        %v793 = vmul.f32 %v761, 0.5
        %v794 = vmul.f32 %v762, 0.5
        %v795 = vmul.f32 %v763, 0.5
        %v796 = vmul.f32 %v764, 0.5
        %v797 = vmul.f32 %v765, 0.5
        %v798 = vmul.f32 %v766, 0.5
        %v799 = vmul.f32 %v767, 0.5
        %v800 = vmul.f32 %v768, 0.5
        %v801 = vmul.f32 %v769, 0.5
        %v802 = vmul.f32 %v770, 0.5
        %v803 = vmul.f32 %v771, 0.5
        %v804 = vmul.f32 %v772, 0.5
        %v805 = vadd.f32 %v773, 0.5
        %v806 = vadd.f32 %v774, 0.5
        %v807 = vadd.f32 %v775, 0.5
        %v808 = vadd.f32 %v776, 0.5
        %v809 = vadd.f32 %v777, 0.5
        %v810 = vadd.f32 %v778, 0.5
        %v811 = vadd.f32 %v779, 0.5
        %v812 = vadd.f32 %v780, 0.5
        %v813 = vadd.f32 %v781, 0.5
        %v814 = vadd.f32 %v782, 0.5
        %v815 = vadd.f32 %v783, 0.5
        %v816 = vadd.f32 %v784, 0.5
        %v817 = vadd.f32 %v785, 0.5
        %v818 = vadd.f32 %v786, 0.5
        %v819 = vadd.f32 %v787, 0.5
        %v820 = vadd.f32 %v788, 0.5
        %v821 = vadd.f32 %v789, 0.5
        %v822 = vadd.f32 %v790, 0.5
        %v823 = vadd.f32 %v791, 0.5
        %v824 = vadd.f32 %v792, 0.5
        %v825 = vadd.f32 %v793, 0.5
        %v826 = vadd.f32 %v794, 0.5
        %v827 = vadd.f32 %v795, 0.5
        %v828 = vadd.f32 %v796, 0.5
        %v829 = vadd.f32 %v797, 0.5
        %v830 = vadd.f32 %v798, 0.5
        %v831 = vadd.f32 %v799, 0.5
        %v832 = vadd.f32 %v800, 0.5
        %v833 = vadd.f32 %v801, 0.5
        %v834 = vadd.f32 %v802, 0.5
        %v835 = vadd.f32 %v803, 0.5
        %v836 = vadd.f32 %v804, 0.5
        %v837 = vmul.f32 %v583, %v805
        %v838 = vmul.f32 %v586, %v806
        %v839 = vmul.f32 %v591, %v807
        %v840 = vmul.f32 %v594, %v808
        %v841 = vmul.f32 %v599, %v809
        %v842 = vmul.f32 %v602, %v810
        %v843 = vmul.f32 %v607, %v811
        %v844 = vmul.f32 %v610, %v812
        %v845 = vmul.f32 %v615, %v813
        %v846 = vmul.f32 %v618, %v814
        %v847 = vmul.f32 %v623, %v815
        %v848 = vmul.f32 %v626, %v816
        %v849 = vmul.f32 %v631, %v817
        %v850 = vmul.f32 %v634, %v818
        %v851 = vmul.f32 %v639, %v819
        %v852 = vmul.f32 %v642, %v820
        %v853 = vmul.f32 %v647, %v821
        %v854 = vmul.f32 %v650, %v822
        %v855 = vmul.f32 %v655, %v823
        %v856 = vmul.f32 %v658, %v824
        %v857 = vmul.f32 %v663, %v825
        %v858 = vmul.f32 %v666, %v826
        %v859 = vmul.f32 %v671, %v827
        %v860 = vmul.f32 %v674, %v828
        %v861 = vmul.f32 %v679, %v829
        %v862 = vmul.f32 %v682, %v830
        %v863 = vmul.f32 %v687, %v831
        %v864 = vmul.f32 %v690, %v832
        %v865 = vmul.f32 %v695, %v833
        %v866 = vmul.f32 %v698, %v834
        %v867 = vmul.f32 %v703, %v835
        %v868 = vmul.f32 %v706, %v836
        %v869 = vpack.c.bf16 %v838, %v837
        %v870 = vpack.c.bf16 %v840, %v839
        %v871 = vpack.c.bf16 %v842, %v841
        %v872 = vpack.c.bf16 %v844, %v843
        %v873 = vpack.c.bf16 %v846, %v845
        %v874 = vpack.c.bf16 %v848, %v847
        %v875 = vpack.c.bf16 %v850, %v849
        %v876 = vpack.c.bf16 %v852, %v851
        %v877 = vpack.c.bf16 %v854, %v853
        %v878 = vpack.c.bf16 %v856, %v855
        %v879 = vpack.c.bf16 %v858, %v857
        %v880 = vpack.c.bf16 %v860, %v859
        %v881 = vpack.c.bf16 %v862, %v861
        %v882 = vpack.c.bf16 %v864, %v863
        %v883 = vpack.c.bf16 %v866, %v865
        %v884 = vpack.c.bf16 %v868, %v867
        %vm885 = vsmask.f32 256
        %v887 = vshrl.u32 %v869, 16
        %v889 = vrot.slane %v887, 7
        %v890 = vshll.u32 %v869, 16
        %v892 = vor.u32 %v889, %v890
        %v894 = vshrl.u32 %v870, 16
        %v896 = vrot.slane %v894, 7
        %v897 = vshll.u32 %v870, 16
        %v899 = vor.u32 %v896, %v897
        %v900 = vsel %vm885, %v889, %v899
        %v902 = vshrl.u32 %v871, 16
        %v904 = vrot.slane %v902, 7
        %v905 = vshll.u32 %v871, 16
        %v907 = vor.u32 %v904, %v905
        %v908 = vsel %vm885, %v896, %v907
        %v910 = vshrl.u32 %v872, 16
        %v912 = vrot.slane %v910, 7
        %v913 = vshll.u32 %v872, 16
        %v915 = vor.u32 %v912, %v913
        %v916 = vsel %vm885, %v904, %v915
        %v918 = vshrl.u32 %v873, 16
        %v920 = vrot.slane %v918, 7
        %v921 = vshll.u32 %v873, 16
        %v923 = vor.u32 %v920, %v921
        %v924 = vsel %vm885, %v912, %v923
        %v926 = vshrl.u32 %v874, 16
        %v928 = vrot.slane %v926, 7
        %v929 = vshll.u32 %v874, 16
        %v931 = vor.u32 %v928, %v929
        %v932 = vsel %vm885, %v920, %v931
        %v934 = vshrl.u32 %v875, 16
        %v936 = vrot.slane %v934, 7
        %v937 = vshll.u32 %v875, 16
        %v939 = vor.u32 %v936, %v937
        %v940 = vsel %vm885, %v928, %v939
        %v942 = vshrl.u32 %v876, 16
        %v944 = vrot.slane %v942, 7
        %v945 = vshll.u32 %v876, 16
        %v947 = vor.u32 %v944, %v945
        %v948 = vsel %vm885, %v936, %v947
        %v950 = vshrl.u32 %v877, 16
        %v952 = vrot.slane %v950, 7
        %v953 = vshll.u32 %v877, 16
        %v955 = vor.u32 %v952, %v953
        %v956 = vsel %vm885, %v944, %v955
        %v958 = vshrl.u32 %v878, 16
        %v960 = vrot.slane %v958, 7
        %v961 = vshll.u32 %v878, 16
        %v963 = vor.u32 %v960, %v961
        %v964 = vsel %vm885, %v952, %v963
        %v966 = vshrl.u32 %v879, 16
        %v968 = vrot.slane %v966, 7
        %v969 = vshll.u32 %v879, 16
        %v971 = vor.u32 %v968, %v969
        %v972 = vsel %vm885, %v960, %v971
        %v974 = vshrl.u32 %v880, 16
        %v976 = vrot.slane %v974, 7
        %v977 = vshll.u32 %v880, 16
        %v979 = vor.u32 %v976, %v977
        %v980 = vsel %vm885, %v968, %v979
        %v982 = vshrl.u32 %v881, 16
        %v984 = vrot.slane %v982, 7
        %v985 = vshll.u32 %v881, 16
        %v987 = vor.u32 %v984, %v985
        %v988 = vsel %vm885, %v976, %v987
        %v990 = vshrl.u32 %v882, 16
        %v992 = vrot.slane %v990, 7
        %v993 = vshll.u32 %v882, 16
        %v995 = vor.u32 %v992, %v993
        %v996 = vsel %vm885, %v984, %v995
        %v998 = vshrl.u32 %v883, 16
        %v1000 = vrot.slane %v998, 7
        %v1001 = vshll.u32 %v883, 16
        %v1003 = vor.u32 %v1000, %v1001
        %v1004 = vsel %vm885, %v992, %v1003
        %v1006 = vshrl.u32 %v884, 16
        %v1008 = vrot.slane %v1006, 7
        %v1009 = vshll.u32 %v884, 16
        %v1011 = vor.u32 %v1008, %v1009
        %v1012 = vsel %vm885, %v1000, %v1011
        %vm1030 = vcmask 1040384
        %vm1031 = vmand %vm1030, %vm885
        %v1032 = vsel %vm1031, 0, %v892
        %v1033 = vsel %vm1031, %v1008, 0
        %v1034 = vld [vmem:[%s9] sm:$0xf]
        %v1035 = vld [vmem:[%s9 + $0x4] sm:$0xf]
        %v1036 = vld [vmem:[%s9 + $0x8] sm:$0xf]
        %v1037 = vld [vmem:[%s9 + $0xc] sm:$0xf]
        %v1038 = vld [vmem:[%s9 + $0x10] sm:$0xf]
        %v1039 = vld [vmem:[%s9 + $0x14] sm:$0xf]
        %v1040 = vld [vmem:[%s9 + $0x18] sm:$0xf]
        %v1041 = vld [vmem:[%s9 + $0x1c] sm:$0xf]
        %v1042 = vld [vmem:[%s9 + $0x20] sm:$0xf]
        %v1043 = vld [vmem:[%s9 + $0x24] sm:$0xf]
        %v1044 = vld [vmem:[%s9 + $0x28] sm:$0xf]
        %v1045 = vld [vmem:[%s9 + $0x2c] sm:$0xf]
        %v1046 = vld [vmem:[%s9 + $0x30] sm:$0xf]
        %v1047 = vld [vmem:[%s9 + $0x34] sm:$0xf]
        %v1048 = vld [vmem:[%s9 + $0x38] sm:$0xf]
        %v1049 = vld [vmem:[%s9 + $0x3c] sm:$0xf]
        %v1050 = vld [vmem:[%s9 + $0x40] sm:$0xf]
        %v1051 = vld [vmem:[%s9 + $0x44] sm:$0xf]
        %v1052 = vld [vmem:[%s9 + $0x48] sm:$0xf]
        %v1053 = vld [vmem:[%s9 + $0x4c] sm:$0xf]
        %v1054 = vld [vmem:[%s9 + $0x50] sm:$0xf]
        %v1055 = vld [vmem:[%s9 + $0x54] sm:$0xf]
        %v1056 = vld [vmem:[%s9 + $0x58] sm:$0xf]
        %v1057 = vld [vmem:[%s9 + $0x5c] sm:$0xf]
        %v1058 = vld [vmem:[%s9 + $0x60] sm:$0xf]
        %v1059 = vld [vmem:[%s9 + $0x64] sm:$0xf]
        %v1060 = vld [vmem:[%s9 + $0x68] sm:$0xf]
        %v1061 = vld [vmem:[%s9 + $0x6c] sm:$0xf]
        %v1062 = vld [vmem:[%s9 + $0x70] sm:$0xf]
        %v1063 = vld [vmem:[%s9 + $0x74] sm:$0xf]
        %v1064 = vld [vmem:[%s9 + $0x78] sm:$0xf]
        %v1065 = vld [vmem:[%s9 + $0x7c] sm:$0xf]
        %1067 = vset.pattern.permute.xlu0 0
        %1068 = vperm.xlu0 %1067, %v1034
        %v1069 = vpop.permute.xlu0 %1068
        %v1072 = vunpack.c.l.s4 839922192
        %v1073 = vunpack.c.0.s8 %v1072
        %v1074 = vlaneseq
        %v1075 = vshrl.u32 %v1074, 7
        %v1076 = vsub.s32 %v1073, %v1075
        %v1077 = vrot.slane %v1069, %v1076
        %1079 = vset.pattern.permute.xlu0 0
        %1080 = vperm.xlu0 %1079, %v1035
        %v1081 = vpop.permute.xlu0 %1080
        %v1084 = vunpack.c.l.s4 839922192
        %v1085 = vunpack.c.0.s8 %v1084
        %v1086 = vlaneseq
        %v1087 = vshrl.u32 %v1086, 7
        %v1088 = vsub.s32 %v1085, %v1087
        %v1089 = vrot.slane %v1081, %v1088
        %1091 = vset.pattern.permute.xlu0 0
        %1092 = vperm.xlu0 %1091, %v1036
        %v1093 = vpop.permute.xlu0 %1092
        %v1096 = vunpack.c.l.s4 839922192
        %v1097 = vunpack.c.0.s8 %v1096
        %v1098 = vlaneseq
        %v1099 = vshrl.u32 %v1098, 7
        %v1100 = vsub.s32 %v1097, %v1099
        %v1101 = vrot.slane %v1093, %v1100
        %1103 = vset.pattern.permute.xlu0 0
        %1104 = vperm.xlu0 %1103, %v1037
        %v1105 = vpop.permute.xlu0 %1104
        %v1108 = vunpack.c.l.s4 839922192
        %v1109 = vunpack.c.0.s8 %v1108
        %v1110 = vlaneseq
        %v1111 = vshrl.u32 %v1110, 7
        %v1112 = vsub.s32 %v1109, %v1111
        %v1113 = vrot.slane %v1105, %v1112
        %1115 = vset.pattern.permute.xlu0 0
        %1116 = vperm.xlu0 %1115, %v1038
        %v1117 = vpop.permute.xlu0 %1116
        %v1120 = vunpack.c.l.s4 839922192
        %v1121 = vunpack.c.0.s8 %v1120
        %v1122 = vlaneseq
        %v1123 = vshrl.u32 %v1122, 7
        %v1124 = vsub.s32 %v1121, %v1123
        %v1125 = vrot.slane %v1117, %v1124
        %1127 = vset.pattern.permute.xlu0 0
        %1128 = vperm.xlu0 %1127, %v1039
        %v1129 = vpop.permute.xlu0 %1128
        %v1132 = vunpack.c.l.s4 839922192
        %v1133 = vunpack.c.0.s8 %v1132
        %v1134 = vlaneseq
        %v1135 = vshrl.u32 %v1134, 7
        %v1136 = vsub.s32 %v1133, %v1135
        %v1137 = vrot.slane %v1129, %v1136
        %1139 = vset.pattern.permute.xlu0 0
        %1140 = vperm.xlu0 %1139, %v1040
        %v1141 = vpop.permute.xlu0 %1140
        %v1144 = vunpack.c.l.s4 839922192
        %v1145 = vunpack.c.0.s8 %v1144
        %v1146 = vlaneseq
        %v1147 = vshrl.u32 %v1146, 7
        %v1148 = vsub.s32 %v1145, %v1147
        %v1149 = vrot.slane %v1141, %v1148
        %1151 = vset.pattern.permute.xlu0 0
        %1152 = vperm.xlu0 %1151, %v1041
        %v1153 = vpop.permute.xlu0 %1152
        %v1156 = vunpack.c.l.s4 839922192
        %v1157 = vunpack.c.0.s8 %v1156
        %v1158 = vlaneseq
        %v1159 = vshrl.u32 %v1158, 7
        %v1160 = vsub.s32 %v1157, %v1159
        %v1161 = vrot.slane %v1153, %v1160
        %1163 = vset.pattern.permute.xlu0 0
        %1164 = vperm.xlu0 %1163, %v1042
        %v1165 = vpop.permute.xlu0 %1164
        %v1168 = vunpack.c.l.s4 839922192
        %v1169 = vunpack.c.0.s8 %v1168
        %v1170 = vlaneseq
        %v1171 = vshrl.u32 %v1170, 7
        %v1172 = vsub.s32 %v1169, %v1171
        %v1173 = vrot.slane %v1165, %v1172
        %1175 = vset.pattern.permute.xlu0 0
        %1176 = vperm.xlu0 %1175, %v1043
        %v1177 = vpop.permute.xlu0 %1176
        %v1180 = vunpack.c.l.s4 839922192
        %v1181 = vunpack.c.0.s8 %v1180
        %v1182 = vlaneseq
        %v1183 = vshrl.u32 %v1182, 7
        %v1184 = vsub.s32 %v1181, %v1183
        %v1185 = vrot.slane %v1177, %v1184
        %1187 = vset.pattern.permute.xlu0 0
        %1188 = vperm.xlu0 %1187, %v1044
        %v1189 = vpop.permute.xlu0 %1188
        %v1192 = vunpack.c.l.s4 839922192
        %v1193 = vunpack.c.0.s8 %v1192
        %v1194 = vlaneseq
        %v1195 = vshrl.u32 %v1194, 7
        %v1196 = vsub.s32 %v1193, %v1195
        %v1197 = vrot.slane %v1189, %v1196
        %1199 = vset.pattern.permute.xlu0 0
        %1200 = vperm.xlu0 %1199, %v1045
        %v1201 = vpop.permute.xlu0 %1200
        %v1204 = vunpack.c.l.s4 839922192
        %v1205 = vunpack.c.0.s8 %v1204
        %v1206 = vlaneseq
        %v1207 = vshrl.u32 %v1206, 7
        %v1208 = vsub.s32 %v1205, %v1207
        %v1209 = vrot.slane %v1201, %v1208
        %1211 = vset.pattern.permute.xlu0 0
        %1212 = vperm.xlu0 %1211, %v1046
        %v1213 = vpop.permute.xlu0 %1212
        %v1216 = vunpack.c.l.s4 839922192
        %v1217 = vunpack.c.0.s8 %v1216
        %v1218 = vlaneseq
        %v1219 = vshrl.u32 %v1218, 7
        %v1220 = vsub.s32 %v1217, %v1219
        %v1221 = vrot.slane %v1213, %v1220
        %1223 = vset.pattern.permute.xlu0 0
        %1224 = vperm.xlu0 %1223, %v1047
        %v1225 = vpop.permute.xlu0 %1224
        %v1228 = vunpack.c.l.s4 839922192
        %v1229 = vunpack.c.0.s8 %v1228
        %v1230 = vlaneseq
        %v1231 = vshrl.u32 %v1230, 7
        %v1232 = vsub.s32 %v1229, %v1231
        %v1233 = vrot.slane %v1225, %v1232
        %1235 = vset.pattern.permute.xlu0 0
        %1236 = vperm.xlu0 %1235, %v1048
        %v1237 = vpop.permute.xlu0 %1236
        %v1240 = vunpack.c.l.s4 839922192
        %v1241 = vunpack.c.0.s8 %v1240
        %v1242 = vlaneseq
        %v1243 = vshrl.u32 %v1242, 7
        %v1244 = vsub.s32 %v1241, %v1243
        %v1245 = vrot.slane %v1237, %v1244
        %1247 = vset.pattern.permute.xlu0 0
        %1248 = vperm.xlu0 %1247, %v1049
        %v1249 = vpop.permute.xlu0 %1248
        %v1252 = vunpack.c.l.s4 839922192
        %v1253 = vunpack.c.0.s8 %v1252
        %v1254 = vlaneseq
        %v1255 = vshrl.u32 %v1254, 7
        %v1256 = vsub.s32 %v1253, %v1255
        %v1257 = vrot.slane %v1249, %v1256
        %1259 = vset.pattern.permute.xlu0 0
        %1260 = vperm.xlu0 %1259, %v1050
        %v1261 = vpop.permute.xlu0 %1260
        %v1264 = vunpack.c.l.s4 839922192
        %v1265 = vunpack.c.0.s8 %v1264
        %v1266 = vlaneseq
        %v1267 = vshrl.u32 %v1266, 7
        %v1268 = vsub.s32 %v1265, %v1267
        %v1269 = vrot.slane %v1261, %v1268
        %1271 = vset.pattern.permute.xlu0 0
        %1272 = vperm.xlu0 %1271, %v1051
        %v1273 = vpop.permute.xlu0 %1272
        %v1276 = vunpack.c.l.s4 839922192
        %v1277 = vunpack.c.0.s8 %v1276
        %v1278 = vlaneseq
        %v1279 = vshrl.u32 %v1278, 7
        %v1280 = vsub.s32 %v1277, %v1279
        %v1281 = vrot.slane %v1273, %v1280
        %1283 = vset.pattern.permute.xlu0 0
        %1284 = vperm.xlu0 %1283, %v1052
        %v1285 = vpop.permute.xlu0 %1284
        %v1288 = vunpack.c.l.s4 839922192
        %v1289 = vunpack.c.0.s8 %v1288
        %v1290 = vlaneseq
        %v1291 = vshrl.u32 %v1290, 7
        %v1292 = vsub.s32 %v1289, %v1291
        %v1293 = vrot.slane %v1285, %v1292
        %1295 = vset.pattern.permute.xlu0 0
        %1296 = vperm.xlu0 %1295, %v1053
        %v1297 = vpop.permute.xlu0 %1296
        %v1300 = vunpack.c.l.s4 839922192
        %v1301 = vunpack.c.0.s8 %v1300
        %v1302 = vlaneseq
        %v1303 = vshrl.u32 %v1302, 7
        %v1304 = vsub.s32 %v1301, %v1303
        %v1305 = vrot.slane %v1297, %v1304
        %1307 = vset.pattern.permute.xlu0 0
        %1308 = vperm.xlu0 %1307, %v1054
        %v1309 = vpop.permute.xlu0 %1308
        %v1312 = vunpack.c.l.s4 839922192
        %v1313 = vunpack.c.0.s8 %v1312
        %v1314 = vlaneseq
        %v1315 = vshrl.u32 %v1314, 7
        %v1316 = vsub.s32 %v1313, %v1315
        %v1317 = vrot.slane %v1309, %v1316
        %1319 = vset.pattern.permute.xlu0 0
        %1320 = vperm.xlu0 %1319, %v1055
        %v1321 = vpop.permute.xlu0 %1320
        %v1324 = vunpack.c.l.s4 839922192
        %v1325 = vunpack.c.0.s8 %v1324
        %v1326 = vlaneseq
        %v1327 = vshrl.u32 %v1326, 7
        %v1328 = vsub.s32 %v1325, %v1327
        %v1329 = vrot.slane %v1321, %v1328
        %1331 = vset.pattern.permute.xlu0 0
        %1332 = vperm.xlu0 %1331, %v1056
        %v1333 = vpop.permute.xlu0 %1332
        %v1336 = vunpack.c.l.s4 839922192
        %v1337 = vunpack.c.0.s8 %v1336
        %v1338 = vlaneseq
        %v1339 = vshrl.u32 %v1338, 7
        %v1340 = vsub.s32 %v1337, %v1339
        %v1341 = vrot.slane %v1333, %v1340
        %1343 = vset.pattern.permute.xlu0 0
        %1344 = vperm.xlu0 %1343, %v1057
        %v1345 = vpop.permute.xlu0 %1344
        %v1348 = vunpack.c.l.s4 839922192
        %v1349 = vunpack.c.0.s8 %v1348
        %v1350 = vlaneseq
        %v1351 = vshrl.u32 %v1350, 7
        %v1352 = vsub.s32 %v1349, %v1351
        %v1353 = vrot.slane %v1345, %v1352
        %1355 = vset.pattern.permute.xlu0 0
        %1356 = vperm.xlu0 %1355, %v1058
        %v1357 = vpop.permute.xlu0 %1356
        %v1360 = vunpack.c.l.s4 839922192
        %v1361 = vunpack.c.0.s8 %v1360
        %v1362 = vlaneseq
        %v1363 = vshrl.u32 %v1362, 7
        %v1364 = vsub.s32 %v1361, %v1363
        %v1365 = vrot.slane %v1357, %v1364
        %1367 = vset.pattern.permute.xlu0 0
        %1368 = vperm.xlu0 %1367, %v1059
        %v1369 = vpop.permute.xlu0 %1368
        %v1372 = vunpack.c.l.s4 839922192
        %v1373 = vunpack.c.0.s8 %v1372
        %v1374 = vlaneseq
        %v1375 = vshrl.u32 %v1374, 7
        %v1376 = vsub.s32 %v1373, %v1375
        %v1377 = vrot.slane %v1369, %v1376
        %1379 = vset.pattern.permute.xlu0 0
        %1380 = vperm.xlu0 %1379, %v1060
        %v1381 = vpop.permute.xlu0 %1380
        %v1384 = vunpack.c.l.s4 839922192
        %v1385 = vunpack.c.0.s8 %v1384
        %v1386 = vlaneseq
        %v1387 = vshrl.u32 %v1386, 7
        %v1388 = vsub.s32 %v1385, %v1387
        %v1389 = vrot.slane %v1381, %v1388
        %1391 = vset.pattern.permute.xlu0 0
        %1392 = vperm.xlu0 %1391, %v1061
        %v1393 = vpop.permute.xlu0 %1392
        %v1396 = vunpack.c.l.s4 839922192
        %v1397 = vunpack.c.0.s8 %v1396
        %v1398 = vlaneseq
        %v1399 = vshrl.u32 %v1398, 7
        %v1400 = vsub.s32 %v1397, %v1399
        %v1401 = vrot.slane %v1393, %v1400
        %1403 = vset.pattern.permute.xlu0 0
        %1404 = vperm.xlu0 %1403, %v1062
        %v1405 = vpop.permute.xlu0 %1404
        %v1408 = vunpack.c.l.s4 839922192
        %v1409 = vunpack.c.0.s8 %v1408
        %v1410 = vlaneseq
        %v1411 = vshrl.u32 %v1410, 7
        %v1412 = vsub.s32 %v1409, %v1411
        %v1413 = vrot.slane %v1405, %v1412
        %1415 = vset.pattern.permute.xlu0 0
        %1416 = vperm.xlu0 %1415, %v1063
        %v1417 = vpop.permute.xlu0 %1416
        %v1420 = vunpack.c.l.s4 839922192
        %v1421 = vunpack.c.0.s8 %v1420
        %v1422 = vlaneseq
        %v1423 = vshrl.u32 %v1422, 7
        %v1424 = vsub.s32 %v1421, %v1423
        %v1425 = vrot.slane %v1417, %v1424
        %1427 = vset.pattern.permute.xlu0 0
        %1428 = vperm.xlu0 %1427, %v1064
        %v1429 = vpop.permute.xlu0 %1428
        %v1432 = vunpack.c.l.s4 839922192
        %v1433 = vunpack.c.0.s8 %v1432
        %v1434 = vlaneseq
        %v1435 = vshrl.u32 %v1434, 7
        %v1436 = vsub.s32 %v1433, %v1435
        %v1437 = vrot.slane %v1429, %v1436
        %1439 = vset.pattern.permute.xlu0 0
        %1440 = vperm.xlu0 %1439, %v1065
        %v1441 = vpop.permute.xlu0 %1440
        %v1444 = vunpack.c.l.s4 839922192
        %v1445 = vunpack.c.0.s8 %v1444
        %v1446 = vlaneseq
        %v1447 = vshrl.u32 %v1446, 7
        %v1448 = vsub.s32 %v1445, %v1447
        %v1449 = vrot.slane %v1441, %v1448
        %v1482 = vunpack.c.l.b16 %v1077
        %v1483 = vunpack.c.l.b16 %v1089
        %v1484 = vunpack.c.l.b16 %v1101
        %v1485 = vunpack.c.l.b16 %v1113
        %v1486 = vunpack.c.l.b16 %v1125
        %v1487 = vunpack.c.l.b16 %v1137
        %v1488 = vunpack.c.l.b16 %v1149
        %v1489 = vunpack.c.l.b16 %v1161
        %v1490 = vunpack.c.l.b16 %v1173
        %v1491 = vunpack.c.l.b16 %v1185
        %v1492 = vunpack.c.l.b16 %v1197
        %v1493 = vunpack.c.l.b16 %v1209
        %v1494 = vunpack.c.l.b16 %v1221
        %v1495 = vunpack.c.l.b16 %v1233
        %v1496 = vunpack.c.l.b16 %v1245
        %v1497 = vunpack.c.l.b16 %v1257
        %v1498 = vunpack.c.l.b16 %v1269
        %v1499 = vunpack.c.l.b16 %v1281
        %v1500 = vunpack.c.l.b16 %v1293
        %v1501 = vunpack.c.l.b16 %v1305
        %v1502 = vunpack.c.l.b16 %v1317
        %v1503 = vunpack.c.l.b16 %v1329
        %v1504 = vunpack.c.l.b16 %v1341
        %v1505 = vunpack.c.l.b16 %v1353
        %v1506 = vunpack.c.l.b16 %v1365
        %v1507 = vunpack.c.l.b16 %v1377
        %v1508 = vunpack.c.l.b16 %v1389
        %v1509 = vunpack.c.l.b16 %v1401
        %v1510 = vunpack.c.l.b16 %v1413
        %v1511 = vunpack.c.l.b16 %v1425
        %v1512 = vunpack.c.l.b16 %v1437
        %v1513 = vunpack.c.l.b16 %v1449
        %v1514 = vpack.c.b16 %v1483, %v1482
        %v1515 = vpack.c.b16 %v1485, %v1484
        %v1516 = vpack.c.b16 %v1487, %v1486
        %v1517 = vpack.c.b16 %v1489, %v1488
        %v1518 = vpack.c.b16 %v1491, %v1490
        %v1519 = vpack.c.b16 %v1493, %v1492
        %v1520 = vpack.c.b16 %v1495, %v1494
        %v1521 = vpack.c.b16 %v1497, %v1496
        %v1522 = vpack.c.b16 %v1499, %v1498
        %v1523 = vpack.c.b16 %v1501, %v1500
        %v1524 = vpack.c.b16 %v1503, %v1502
        %v1525 = vpack.c.b16 %v1505, %v1504
        %v1526 = vpack.c.b16 %v1507, %v1506
        %v1527 = vpack.c.b16 %v1509, %v1508
        %v1528 = vpack.c.b16 %v1511, %v1510
        %v1529 = vpack.c.b16 %v1513, %v1512
        %v1546 = vmul.bf16 %v1514, 0
        %v1547 = vmul.bf16 %v1032, %v1515
        %v1548 = vmul.bf16 %v900, %v1516
        %v1549 = vmul.bf16 %v908, %v1517
        %v1550 = vmul.bf16 %v916, %v1518
        %v1551 = vmul.bf16 %v924, %v1519
        %v1552 = vmul.bf16 %v932, %v1520
        %v1553 = vmul.bf16 %v940, %v1521
        %v1554 = vmul.bf16 %v948, %v1522
        %v1555 = vmul.bf16 %v956, %v1523
        %v1556 = vmul.bf16 %v964, %v1524
        %v1557 = vmul.bf16 %v972, %v1525
        %v1558 = vmul.bf16 %v980, %v1526
        %v1559 = vmul.bf16 %v988, %v1527
        %v1560 = vmul.bf16 %v996, %v1528
        %v1561 = vmul.bf16 %v1004, %v1529
        %1562 = vset.pattern.permute.xlu0 1
        %1563 = vperm.xlu0 %1562, %v1034
        %v1564 = vpop.permute.xlu0 %1563
        %v1567 = vunpack.c.l.s4 839922192
        %v1568 = vunpack.c.0.s8 %v1567
        %v1569 = vlaneseq
        %v1570 = vshrl.u32 %v1569, 7
        %v1571 = vsub.s32 %v1568, %v1570
        %v1572 = vrot.slane %v1564, %v1571
        %1573 = vset.pattern.permute.xlu0 1
        %1574 = vperm.xlu0 %1573, %v1035
        %v1575 = vpop.permute.xlu0 %1574
        %v1578 = vunpack.c.l.s4 839922192
        %v1579 = vunpack.c.0.s8 %v1578
        %v1580 = vlaneseq
        %v1581 = vshrl.u32 %v1580, 7
        %v1582 = vsub.s32 %v1579, %v1581
        %v1583 = vrot.slane %v1575, %v1582
        %1584 = vset.pattern.permute.xlu0 1
        %1585 = vperm.xlu0 %1584, %v1036
        %v1586 = vpop.permute.xlu0 %1585
        %v1589 = vunpack.c.l.s4 839922192
        %v1590 = vunpack.c.0.s8 %v1589
        %v1591 = vlaneseq
        %v1592 = vshrl.u32 %v1591, 7
        %v1593 = vsub.s32 %v1590, %v1592
        %v1594 = vrot.slane %v1586, %v1593
        %1595 = vset.pattern.permute.xlu0 1
        %1596 = vperm.xlu0 %1595, %v1037
        %v1597 = vpop.permute.xlu0 %1596
        %v1600 = vunpack.c.l.s4 839922192
        %v1601 = vunpack.c.0.s8 %v1600
        %v1602 = vlaneseq
        %v1603 = vshrl.u32 %v1602, 7
        %v1604 = vsub.s32 %v1601, %v1603
        %v1605 = vrot.slane %v1597, %v1604
        %1606 = vset.pattern.permute.xlu0 1
        %1607 = vperm.xlu0 %1606, %v1038
        %v1608 = vpop.permute.xlu0 %1607
        %v1611 = vunpack.c.l.s4 839922192
        %v1612 = vunpack.c.0.s8 %v1611
        %v1613 = vlaneseq
        %v1614 = vshrl.u32 %v1613, 7
        %v1615 = vsub.s32 %v1612, %v1614
        %v1616 = vrot.slane %v1608, %v1615
        %1617 = vset.pattern.permute.xlu0 1
        %1618 = vperm.xlu0 %1617, %v1039
        %v1619 = vpop.permute.xlu0 %1618
        %v1622 = vunpack.c.l.s4 839922192
        %v1623 = vunpack.c.0.s8 %v1622
        %v1624 = vlaneseq
        %v1625 = vshrl.u32 %v1624, 7
        %v1626 = vsub.s32 %v1623, %v1625
        %v1627 = vrot.slane %v1619, %v1626
        %1628 = vset.pattern.permute.xlu0 1
        %1629 = vperm.xlu0 %1628, %v1040
        %v1630 = vpop.permute.xlu0 %1629
        %v1633 = vunpack.c.l.s4 839922192
        %v1634 = vunpack.c.0.s8 %v1633
        %v1635 = vlaneseq
        %v1636 = vshrl.u32 %v1635, 7
        %v1637 = vsub.s32 %v1634, %v1636
        %v1638 = vrot.slane %v1630, %v1637
        %1639 = vset.pattern.permute.xlu0 1
        %1640 = vperm.xlu0 %1639, %v1041
        %v1641 = vpop.permute.xlu0 %1640
        %v1644 = vunpack.c.l.s4 839922192
        %v1645 = vunpack.c.0.s8 %v1644
        %v1646 = vlaneseq
        %v1647 = vshrl.u32 %v1646, 7
        %v1648 = vsub.s32 %v1645, %v1647
        %v1649 = vrot.slane %v1641, %v1648
        %1650 = vset.pattern.permute.xlu0 1
        %1651 = vperm.xlu0 %1650, %v1042
        %v1652 = vpop.permute.xlu0 %1651
        %v1655 = vunpack.c.l.s4 839922192
        %v1656 = vunpack.c.0.s8 %v1655
        %v1657 = vlaneseq
        %v1658 = vshrl.u32 %v1657, 7
        %v1659 = vsub.s32 %v1656, %v1658
        %v1660 = vrot.slane %v1652, %v1659
        %1661 = vset.pattern.permute.xlu0 1
        %1662 = vperm.xlu0 %1661, %v1043
        %v1663 = vpop.permute.xlu0 %1662
        %v1666 = vunpack.c.l.s4 839922192
        %v1667 = vunpack.c.0.s8 %v1666
        %v1668 = vlaneseq
        %v1669 = vshrl.u32 %v1668, 7
        %v1670 = vsub.s32 %v1667, %v1669
        %v1671 = vrot.slane %v1663, %v1670
        %1672 = vset.pattern.permute.xlu0 1
        %1673 = vperm.xlu0 %1672, %v1044
        %v1674 = vpop.permute.xlu0 %1673
        %v1677 = vunpack.c.l.s4 839922192
        %v1678 = vunpack.c.0.s8 %v1677
        %v1679 = vlaneseq
        %v1680 = vshrl.u32 %v1679, 7
        %v1681 = vsub.s32 %v1678, %v1680
        %v1682 = vrot.slane %v1674, %v1681
        %1683 = vset.pattern.permute.xlu0 1
        %1684 = vperm.xlu0 %1683, %v1045
        %v1685 = vpop.permute.xlu0 %1684
        %v1688 = vunpack.c.l.s4 839922192
        %v1689 = vunpack.c.0.s8 %v1688
        %v1690 = vlaneseq
        %v1691 = vshrl.u32 %v1690, 7
        %v1692 = vsub.s32 %v1689, %v1691
        %v1693 = vrot.slane %v1685, %v1692
        %1694 = vset.pattern.permute.xlu0 1
        %1695 = vperm.xlu0 %1694, %v1046
        %v1696 = vpop.permute.xlu0 %1695
        %v1699 = vunpack.c.l.s4 839922192
        %v1700 = vunpack.c.0.s8 %v1699
        %v1701 = vlaneseq
        %v1702 = vshrl.u32 %v1701, 7
        %v1703 = vsub.s32 %v1700, %v1702
        %v1704 = vrot.slane %v1696, %v1703
        %1705 = vset.pattern.permute.xlu0 1
        %1706 = vperm.xlu0 %1705, %v1047
        %v1707 = vpop.permute.xlu0 %1706
        %v1710 = vunpack.c.l.s4 839922192
        %v1711 = vunpack.c.0.s8 %v1710
        %v1712 = vlaneseq
        %v1713 = vshrl.u32 %v1712, 7
        %v1714 = vsub.s32 %v1711, %v1713
        %v1715 = vrot.slane %v1707, %v1714
        %1716 = vset.pattern.permute.xlu0 1
        %1717 = vperm.xlu0 %1716, %v1048
        %v1718 = vpop.permute.xlu0 %1717
        %v1721 = vunpack.c.l.s4 839922192
        %v1722 = vunpack.c.0.s8 %v1721
        %v1723 = vlaneseq
        %v1724 = vshrl.u32 %v1723, 7
        %v1725 = vsub.s32 %v1722, %v1724
        %v1726 = vrot.slane %v1718, %v1725
        %1727 = vset.pattern.permute.xlu0 1
        %1728 = vperm.xlu0 %1727, %v1049
        %v1729 = vpop.permute.xlu0 %1728
        %v1732 = vunpack.c.l.s4 839922192
        %v1733 = vunpack.c.0.s8 %v1732
        %v1734 = vlaneseq
        %v1735 = vshrl.u32 %v1734, 7
        %v1736 = vsub.s32 %v1733, %v1735
        %v1737 = vrot.slane %v1729, %v1736
        %1738 = vset.pattern.permute.xlu0 1
        %1739 = vperm.xlu0 %1738, %v1050
        %v1740 = vpop.permute.xlu0 %1739
        %v1743 = vunpack.c.l.s4 839922192
        %v1744 = vunpack.c.0.s8 %v1743
        %v1745 = vlaneseq
        %v1746 = vshrl.u32 %v1745, 7
        %v1747 = vsub.s32 %v1744, %v1746
        %v1748 = vrot.slane %v1740, %v1747
        %1749 = vset.pattern.permute.xlu0 1
        %1750 = vperm.xlu0 %1749, %v1051
        %v1751 = vpop.permute.xlu0 %1750
        %v1754 = vunpack.c.l.s4 839922192
        %v1755 = vunpack.c.0.s8 %v1754
        %v1756 = vlaneseq
        %v1757 = vshrl.u32 %v1756, 7
        %v1758 = vsub.s32 %v1755, %v1757
        %v1759 = vrot.slane %v1751, %v1758
        %1760 = vset.pattern.permute.xlu0 1
        %1761 = vperm.xlu0 %1760, %v1052
        %v1762 = vpop.permute.xlu0 %1761
        %v1765 = vunpack.c.l.s4 839922192
        %v1766 = vunpack.c.0.s8 %v1765
        %v1767 = vlaneseq
        %v1768 = vshrl.u32 %v1767, 7
        %v1769 = vsub.s32 %v1766, %v1768
        %v1770 = vrot.slane %v1762, %v1769
        %1771 = vset.pattern.permute.xlu0 1
        %1772 = vperm.xlu0 %1771, %v1053
        %v1773 = vpop.permute.xlu0 %1772
        %v1776 = vunpack.c.l.s4 839922192
        %v1777 = vunpack.c.0.s8 %v1776
        %v1778 = vlaneseq
        %v1779 = vshrl.u32 %v1778, 7
        %v1780 = vsub.s32 %v1777, %v1779
        %v1781 = vrot.slane %v1773, %v1780
        %1782 = vset.pattern.permute.xlu0 1
        %1783 = vperm.xlu0 %1782, %v1054
        %v1784 = vpop.permute.xlu0 %1783
        %v1787 = vunpack.c.l.s4 839922192
        %v1788 = vunpack.c.0.s8 %v1787
        %v1789 = vlaneseq
        %v1790 = vshrl.u32 %v1789, 7
        %v1791 = vsub.s32 %v1788, %v1790
        %v1792 = vrot.slane %v1784, %v1791
        %1793 = vset.pattern.permute.xlu0 1
        %1794 = vperm.xlu0 %1793, %v1055
        %v1795 = vpop.permute.xlu0 %1794
        %v1798 = vunpack.c.l.s4 839922192
        %v1799 = vunpack.c.0.s8 %v1798
        %v1800 = vlaneseq
        %v1801 = vshrl.u32 %v1800, 7
        %v1802 = vsub.s32 %v1799, %v1801
        %v1803 = vrot.slane %v1795, %v1802
        %1804 = vset.pattern.permute.xlu0 1
        %1805 = vperm.xlu0 %1804, %v1056
        %v1806 = vpop.permute.xlu0 %1805
        %v1809 = vunpack.c.l.s4 839922192
        %v1810 = vunpack.c.0.s8 %v1809
        %v1811 = vlaneseq
        %v1812 = vshrl.u32 %v1811, 7
        %v1813 = vsub.s32 %v1810, %v1812
        %v1814 = vrot.slane %v1806, %v1813
        %1815 = vset.pattern.permute.xlu0 1
        %1816 = vperm.xlu0 %1815, %v1057
        %v1817 = vpop.permute.xlu0 %1816
        %v1820 = vunpack.c.l.s4 839922192
        %v1821 = vunpack.c.0.s8 %v1820
        %v1822 = vlaneseq
        %v1823 = vshrl.u32 %v1822, 7
        %v1824 = vsub.s32 %v1821, %v1823
        %v1825 = vrot.slane %v1817, %v1824
        %1826 = vset.pattern.permute.xlu0 1
        %1827 = vperm.xlu0 %1826, %v1058
        %v1828 = vpop.permute.xlu0 %1827
        %v1831 = vunpack.c.l.s4 839922192
        %v1832 = vunpack.c.0.s8 %v1831
        %v1833 = vlaneseq
        %v1834 = vshrl.u32 %v1833, 7
        %v1835 = vsub.s32 %v1832, %v1834
        %v1836 = vrot.slane %v1828, %v1835
        %1837 = vset.pattern.permute.xlu0 1
        %1838 = vperm.xlu0 %1837, %v1059
        %v1839 = vpop.permute.xlu0 %1838
        %v1842 = vunpack.c.l.s4 839922192
        %v1843 = vunpack.c.0.s8 %v1842
        %v1844 = vlaneseq
        %v1845 = vshrl.u32 %v1844, 7
        %v1846 = vsub.s32 %v1843, %v1845
        %v1847 = vrot.slane %v1839, %v1846
        %1848 = vset.pattern.permute.xlu0 1
        %1849 = vperm.xlu0 %1848, %v1060
        %v1850 = vpop.permute.xlu0 %1849
        %v1853 = vunpack.c.l.s4 839922192
        %v1854 = vunpack.c.0.s8 %v1853
        %v1855 = vlaneseq
        %v1856 = vshrl.u32 %v1855, 7
        %v1857 = vsub.s32 %v1854, %v1856
        %v1858 = vrot.slane %v1850, %v1857
        %1859 = vset.pattern.permute.xlu0 1
        %1860 = vperm.xlu0 %1859, %v1061
        %v1861 = vpop.permute.xlu0 %1860
        %v1864 = vunpack.c.l.s4 839922192
        %v1865 = vunpack.c.0.s8 %v1864
        %v1866 = vlaneseq
        %v1867 = vshrl.u32 %v1866, 7
        %v1868 = vsub.s32 %v1865, %v1867
        %v1869 = vrot.slane %v1861, %v1868
        %1870 = vset.pattern.permute.xlu0 1
        %1871 = vperm.xlu0 %1870, %v1062
        %v1872 = vpop.permute.xlu0 %1871
        %v1875 = vunpack.c.l.s4 839922192
        %v1876 = vunpack.c.0.s8 %v1875
        %v1877 = vlaneseq
        %v1878 = vshrl.u32 %v1877, 7
        %v1879 = vsub.s32 %v1876, %v1878
        %v1880 = vrot.slane %v1872, %v1879
        %1881 = vset.pattern.permute.xlu0 1
        %1882 = vperm.xlu0 %1881, %v1063
        %v1883 = vpop.permute.xlu0 %1882
        %v1886 = vunpack.c.l.s4 839922192
        %v1887 = vunpack.c.0.s8 %v1886
        %v1888 = vlaneseq
        %v1889 = vshrl.u32 %v1888, 7
        %v1890 = vsub.s32 %v1887, %v1889
        %v1891 = vrot.slane %v1883, %v1890
        %1892 = vset.pattern.permute.xlu0 1
        %1893 = vperm.xlu0 %1892, %v1064
        %v1894 = vpop.permute.xlu0 %1893
        %v1897 = vunpack.c.l.s4 839922192
        %v1898 = vunpack.c.0.s8 %v1897
        %v1899 = vlaneseq
        %v1900 = vshrl.u32 %v1899, 7
        %v1901 = vsub.s32 %v1898, %v1900
        %v1902 = vrot.slane %v1894, %v1901
        %1903 = vset.pattern.permute.xlu0 1
        %1904 = vperm.xlu0 %1903, %v1065
        %v1905 = vpop.permute.xlu0 %1904
        %v1908 = vunpack.c.l.s4 839922192
        %v1909 = vunpack.c.0.s8 %v1908
        %v1910 = vlaneseq
        %v1911 = vshrl.u32 %v1910, 7
        %v1912 = vsub.s32 %v1909, %v1911
        %v1913 = vrot.slane %v1905, %v1912
        %v1946 = vunpack.c.l.b16 %v1572
        %v1947 = vunpack.c.l.b16 %v1583
        %v1948 = vunpack.c.l.b16 %v1594
        %v1949 = vunpack.c.l.b16 %v1605
        %v1950 = vunpack.c.l.b16 %v1616
        %v1951 = vunpack.c.l.b16 %v1627
        %v1952 = vunpack.c.l.b16 %v1638
        %v1953 = vunpack.c.l.b16 %v1649
        %v1954 = vunpack.c.l.b16 %v1660
        %v1955 = vunpack.c.l.b16 %v1671
        %v1956 = vunpack.c.l.b16 %v1682
        %v1957 = vunpack.c.l.b16 %v1693
        %v1958 = vunpack.c.l.b16 %v1704
        %v1959 = vunpack.c.l.b16 %v1715
        %v1960 = vunpack.c.l.b16 %v1726
        %v1961 = vunpack.c.l.b16 %v1737
        %v1962 = vunpack.c.l.b16 %v1748
        %v1963 = vunpack.c.l.b16 %v1759
        %v1964 = vunpack.c.l.b16 %v1770
        %v1965 = vunpack.c.l.b16 %v1781
        %v1966 = vunpack.c.l.b16 %v1792
        %v1967 = vunpack.c.l.b16 %v1803
        %v1968 = vunpack.c.l.b16 %v1814
        %v1969 = vunpack.c.l.b16 %v1825
        %v1970 = vunpack.c.l.b16 %v1836
        %v1971 = vunpack.c.l.b16 %v1847
        %v1972 = vunpack.c.l.b16 %v1858
        %v1973 = vunpack.c.l.b16 %v1869
        %v1974 = vunpack.c.l.b16 %v1880
        %v1975 = vunpack.c.l.b16 %v1891
        %v1976 = vunpack.c.l.b16 %v1902
        %v1977 = vunpack.c.l.b16 %v1913
        %v1978 = vpack.c.b16 %v1947, %v1946
        %v1979 = vpack.c.b16 %v1949, %v1948
        %v1980 = vpack.c.b16 %v1951, %v1950
        %v1981 = vpack.c.b16 %v1953, %v1952
        %v1982 = vpack.c.b16 %v1955, %v1954
        %v1983 = vpack.c.b16 %v1957, %v1956
        %v1984 = vpack.c.b16 %v1959, %v1958
        %v1985 = vpack.c.b16 %v1961, %v1960
        %v1986 = vpack.c.b16 %v1963, %v1962
        %v1987 = vpack.c.b16 %v1965, %v1964
        %v1988 = vpack.c.b16 %v1967, %v1966
        %v1989 = vpack.c.b16 %v1969, %v1968
        %v1990 = vpack.c.b16 %v1971, %v1970
        %v1991 = vpack.c.b16 %v1973, %v1972
        %v1992 = vpack.c.b16 %v1975, %v1974
        %v1993 = vpack.c.b16 %v1977, %v1976
        %v1994 = vrot.slane %v1978, 7
        %v1995 = vrot.slane %v1979, 7
        %v1996 = vsel %vm1030, %v1994, %v1995
        %v1997 = vrot.slane %v1980, 7
        %v1998 = vsel %vm1030, %v1995, %v1997
        %v1999 = vrot.slane %v1981, 7
        %v2000 = vsel %vm1030, %v1997, %v1999
        %v2001 = vrot.slane %v1982, 7
        %v2002 = vsel %vm1030, %v1999, %v2001
        %v2003 = vrot.slane %v1983, 7
        %v2004 = vsel %vm1030, %v2001, %v2003
        %v2005 = vrot.slane %v1984, 7
        %v2006 = vsel %vm1030, %v2003, %v2005
        %v2007 = vrot.slane %v1985, 7
        %v2008 = vsel %vm1030, %v2005, %v2007
        %v2009 = vrot.slane %v1986, 7
        %v2010 = vsel %vm1030, %v2007, %v2009
        %v2011 = vrot.slane %v1987, 7
        %v2012 = vsel %vm1030, %v2009, %v2011
        %v2013 = vrot.slane %v1988, 7
        %v2014 = vsel %vm1030, %v2011, %v2013
        %v2015 = vrot.slane %v1989, 7
        %v2016 = vsel %vm1030, %v2013, %v2015
        %v2017 = vrot.slane %v1990, 7
        %v2018 = vsel %vm1030, %v2015, %v2017
        %v2019 = vrot.slane %v1991, 7
        %v2020 = vsel %vm1030, %v2017, %v2019
        %v2021 = vrot.slane %v1992, 7
        %v2022 = vsel %vm1030, %v2019, %v2021
        %v2023 = vrot.slane %v1993, 7
        %v2024 = vsel %vm1030, %v2021, %v2023
        %v2042 = vmul.bf16 %v1994, 0
        %v2043 = vmul.bf16 %v1032, %v1996
        %v2044 = vmul.bf16 %v900, %v1998
        %v2045 = vmul.bf16 %v908, %v2000
        %v2046 = vmul.bf16 %v916, %v2002
        %v2047 = vmul.bf16 %v924, %v2004
        %v2048 = vmul.bf16 %v932, %v2006
        %v2049 = vmul.bf16 %v940, %v2008
        %v2050 = vmul.bf16 %v948, %v2010
        %v2051 = vmul.bf16 %v956, %v2012
        %v2052 = vmul.bf16 %v964, %v2014
        %v2053 = vmul.bf16 %v972, %v2016
        %v2054 = vmul.bf16 %v980, %v2018
        %v2055 = vmul.bf16 %v988, %v2020
        %v2056 = vmul.bf16 %v996, %v2022
        %v2057 = vmul.bf16 %v1004, %v2024
        %v2058 = vmul.bf16 %v1012, %v2023
        %v2059 = vmul.bf16 %v1032, %v1514
        %v2060 = vmul.bf16 %v900, %v1515
        %v2061 = vmul.bf16 %v908, %v1516
        %v2062 = vmul.bf16 %v916, %v1517
        %v2063 = vmul.bf16 %v924, %v1518
        %v2064 = vmul.bf16 %v932, %v1519
        %v2065 = vmul.bf16 %v940, %v1520
        %v2066 = vmul.bf16 %v948, %v1521
        %v2067 = vmul.bf16 %v956, %v1522
        %v2068 = vmul.bf16 %v964, %v1523
        %v2069 = vmul.bf16 %v972, %v1524
        %v2070 = vmul.bf16 %v980, %v1525
        %v2071 = vmul.bf16 %v988, %v1526
        %v2072 = vmul.bf16 %v996, %v1527
        %v2073 = vmul.bf16 %v1004, %v1528
        %v2074 = vmul.bf16 %v1012, %v1529
        %v2075 = vmul.bf16 %v1032, %v1994
        %v2076 = vmul.bf16 %v900, %v1996
        %v2077 = vmul.bf16 %v908, %v1998
        %v2078 = vmul.bf16 %v916, %v2000
        %v2079 = vmul.bf16 %v924, %v2002
        %v2080 = vmul.bf16 %v932, %v2004
        %v2081 = vmul.bf16 %v940, %v2006
        %v2082 = vmul.bf16 %v948, %v2008
        %v2083 = vmul.bf16 %v956, %v2010
        %v2084 = vmul.bf16 %v964, %v2012
        %v2085 = vmul.bf16 %v972, %v2014
        %v2086 = vmul.bf16 %v980, %v2016
        %v2087 = vmul.bf16 %v988, %v2018
        %v2088 = vmul.bf16 %v996, %v2020
        %v2089 = vmul.bf16 %v1004, %v2022
        %v2090 = vmul.bf16 %v1012, %v2024
        %v2091 = vmul.bf16 %v1033, %v2023
        %v2092 = vmul.bf16 %v900, %v1514
        %v2093 = vmul.bf16 %v908, %v1515
        %v2094 = vmul.bf16 %v916, %v1516
        %v2095 = vmul.bf16 %v924, %v1517
        %v2096 = vmul.bf16 %v932, %v1518
        %v2097 = vmul.bf16 %v940, %v1519
        %v2098 = vmul.bf16 %v948, %v1520
        %v2099 = vmul.bf16 %v956, %v1521
        %v2100 = vmul.bf16 %v964, %v1522
        %v2101 = vmul.bf16 %v972, %v1523
        %v2102 = vmul.bf16 %v980, %v1524
        %v2103 = vmul.bf16 %v988, %v1525
        %v2104 = vmul.bf16 %v996, %v1526
        %v2105 = vmul.bf16 %v1004, %v1527
        %v2106 = vmul.bf16 %v1012, %v1528
        %v2107 = vmul.bf16 %v1033, %v1529
        %v2108 = vmul.bf16 %v900, %v1994
        %v2109 = vmul.bf16 %v908, %v1996
        %v2110 = vmul.bf16 %v916, %v1998
        %v2111 = vmul.bf16 %v924, %v2000
        %v2112 = vmul.bf16 %v932, %v2002
        %v2113 = vmul.bf16 %v940, %v2004
        %v2114 = vmul.bf16 %v948, %v2006
        %v2115 = vmul.bf16 %v956, %v2008
        %v2116 = vmul.bf16 %v964, %v2010
        %v2117 = vmul.bf16 %v972, %v2012
        %v2118 = vmul.bf16 %v980, %v2014
        %v2119 = vmul.bf16 %v988, %v2016
        %v2120 = vmul.bf16 %v996, %v2018
        %v2121 = vmul.bf16 %v1004, %v2020
        %v2122 = vmul.bf16 %v1012, %v2022
        %v2123 = vmul.bf16 %v1033, %v2024
        %v2124 = vmul.bf16 %v2023, 0
        %vm2125 = vsmask.f32 7424
        %v2127 = vshrl.u32 0, 16
        %v2129 = vshll.u32 0, 16
        %v2131 = vrot.slane %v2129, 1
        %v2132 = vor.u32 %v2127, %v2131
        %v2134 = vshll.u32 %v1032, 16
        %v2136 = vrot.slane %v2134, 1
        %v2137 = vsel %vm2125, %v2132, %v2136
        %v2138 = vshrl.u32 %v1032, 16
        %v2140 = vor.u32 %v2138, %v2136
        %v2142 = vshll.u32 %v900, 16
        %v2144 = vrot.slane %v2142, 1
        %v2145 = vsel %vm2125, %v2140, %v2144
        %v2146 = vshrl.u32 %v900, 16
        %v2148 = vor.u32 %v2146, %v2144
        %v2150 = vshll.u32 %v908, 16
        %v2152 = vrot.slane %v2150, 1
        %v2153 = vsel %vm2125, %v2148, %v2152
        %v2154 = vshrl.u32 %v908, 16
        %v2156 = vor.u32 %v2154, %v2152
        %v2158 = vshll.u32 %v916, 16
        %v2160 = vrot.slane %v2158, 1
        %v2161 = vsel %vm2125, %v2156, %v2160
        %v2162 = vshrl.u32 %v916, 16
        %v2164 = vor.u32 %v2162, %v2160
        %v2166 = vshll.u32 %v924, 16
        %v2168 = vrot.slane %v2166, 1
        %v2169 = vsel %vm2125, %v2164, %v2168
        %v2170 = vshrl.u32 %v924, 16
        %v2172 = vor.u32 %v2170, %v2168
        %v2174 = vshll.u32 %v932, 16
        %v2176 = vrot.slane %v2174, 1
        %v2177 = vsel %vm2125, %v2172, %v2176
        %v2178 = vshrl.u32 %v932, 16
        %v2180 = vor.u32 %v2178, %v2176
        %v2182 = vshll.u32 %v940, 16
        %v2184 = vrot.slane %v2182, 1
        %v2185 = vsel %vm2125, %v2180, %v2184
        %v2186 = vshrl.u32 %v940, 16
        %v2188 = vor.u32 %v2186, %v2184
        %v2190 = vshll.u32 %v948, 16
        %v2192 = vrot.slane %v2190, 1
        %v2193 = vsel %vm2125, %v2188, %v2192
        %v2194 = vshrl.u32 %v948, 16
        %v2196 = vor.u32 %v2194, %v2192
        %v2198 = vshll.u32 %v956, 16
        %v2200 = vrot.slane %v2198, 1
        %v2201 = vsel %vm2125, %v2196, %v2200
        %v2202 = vshrl.u32 %v956, 16
        %v2204 = vor.u32 %v2202, %v2200
        %v2206 = vshll.u32 %v964, 16
        %v2208 = vrot.slane %v2206, 1
        %v2209 = vsel %vm2125, %v2204, %v2208
        %v2210 = vshrl.u32 %v964, 16
        %v2212 = vor.u32 %v2210, %v2208
        %v2214 = vshll.u32 %v972, 16
        %v2216 = vrot.slane %v2214, 1
        %v2217 = vsel %vm2125, %v2212, %v2216
        %v2218 = vshrl.u32 %v972, 16
        %v2220 = vor.u32 %v2218, %v2216
        %v2222 = vshll.u32 %v980, 16
        %v2224 = vrot.slane %v2222, 1
        %v2225 = vsel %vm2125, %v2220, %v2224
        %v2226 = vshrl.u32 %v980, 16
        %v2228 = vor.u32 %v2226, %v2224
        %v2230 = vshll.u32 %v988, 16
        %v2232 = vrot.slane %v2230, 1
        %v2233 = vsel %vm2125, %v2228, %v2232
        %v2234 = vshrl.u32 %v988, 16
        %v2236 = vor.u32 %v2234, %v2232
        %v2238 = vshll.u32 %v996, 16
        %v2240 = vrot.slane %v2238, 1
        %v2241 = vsel %vm2125, %v2236, %v2240
        %v2242 = vshrl.u32 %v996, 16
        %v2244 = vor.u32 %v2242, %v2240
        %v2246 = vshll.u32 %v1004, 16
        %v2248 = vrot.slane %v2246, 1
        %v2249 = vsel %vm2125, %v2244, %v2248
        %v2250 = vshrl.u32 %v1004, 16
        %v2252 = vor.u32 %v2250, %v2248
        %v2254 = vshll.u32 %v1012, 16
        %v2256 = vrot.slane %v2254, 1
        %v2257 = vsel %vm2125, %v2252, %v2256
        %2258 = vrot.lane.b32.xlu0 %v2137, 4
        %v2259 = vpop.permute.xlu0 %2258
        %2260 = vrot.lane.b32.xlu0 %v2145, 4
        %v2261 = vpop.permute.xlu0 %2260
        %2262 = vrot.lane.b32.xlu0 %v2153, 4
        %v2263 = vpop.permute.xlu0 %2262
        %2264 = vrot.lane.b32.xlu0 %v2161, 4
        %v2265 = vpop.permute.xlu0 %2264
        %2266 = vrot.lane.b32.xlu0 %v2169, 4
        %v2267 = vpop.permute.xlu0 %2266
        %2268 = vrot.lane.b32.xlu0 %v2177, 4
        %v2269 = vpop.permute.xlu0 %2268
        %2270 = vrot.lane.b32.xlu0 %v2185, 4
        %v2271 = vpop.permute.xlu0 %2270
        %2272 = vrot.lane.b32.xlu0 %v2193, 4
        %v2273 = vpop.permute.xlu0 %2272
        %2274 = vrot.lane.b32.xlu0 %v2201, 4
        %v2275 = vpop.permute.xlu0 %2274
        %2276 = vrot.lane.b32.xlu0 %v2209, 4
        %v2277 = vpop.permute.xlu0 %2276
        %2278 = vrot.lane.b32.xlu0 %v2217, 4
        %v2279 = vpop.permute.xlu0 %2278
        %2280 = vrot.lane.b32.xlu0 %v2225, 4
        %v2281 = vpop.permute.xlu0 %2280
        %2282 = vrot.lane.b32.xlu0 %v2233, 4
        %v2283 = vpop.permute.xlu0 %2282
        %2284 = vrot.lane.b32.xlu0 %v2241, 4
        %v2285 = vpop.permute.xlu0 %2284
        %2286 = vrot.lane.b32.xlu0 %v2249, 4
        %v2287 = vpop.permute.xlu0 %2286
        %2288 = vrot.lane.b32.xlu0 %v2257, 4
        %v2289 = vpop.permute.xlu0 %2288
        %vm2307 = vcmask 1046528
        %v2308 = vrot.slane %v2042, 1
        %v2309 = vrot.slane %v2043, 1
        %v2310 = vsel %vm2307, %v2308, %v2309
        %v2311 = vrot.slane %v2044, 1
        %v2312 = vsel %vm2307, %v2309, %v2311
        %v2313 = vrot.slane %v2045, 1
        %v2314 = vsel %vm2307, %v2311, %v2313
        %v2315 = vrot.slane %v2046, 1
        %v2316 = vsel %vm2307, %v2313, %v2315
        %v2317 = vrot.slane %v2047, 1
        %v2318 = vsel %vm2307, %v2315, %v2317
        %v2319 = vrot.slane %v2048, 1
        %v2320 = vsel %vm2307, %v2317, %v2319
        %v2321 = vrot.slane %v2049, 1
        %v2322 = vsel %vm2307, %v2319, %v2321
        %v2323 = vrot.slane %v2050, 1
        %v2324 = vsel %vm2307, %v2321, %v2323
        %v2325 = vrot.slane %v2051, 1
        %v2326 = vsel %vm2307, %v2323, %v2325
        %v2327 = vrot.slane %v2052, 1
        %v2328 = vsel %vm2307, %v2325, %v2327
        %v2329 = vrot.slane %v2053, 1
        %v2330 = vsel %vm2307, %v2327, %v2329
        %v2331 = vrot.slane %v2054, 1
        %v2332 = vsel %vm2307, %v2329, %v2331
        %v2333 = vrot.slane %v2055, 1
        %v2334 = vsel %vm2307, %v2331, %v2333
        %v2335 = vrot.slane %v2056, 1
        %v2336 = vsel %vm2307, %v2333, %v2335
        %v2337 = vrot.slane %v2057, 1
        %v2338 = vsel %vm2307, %v2335, %v2337
        %v2339 = vrot.slane %v2058, 1
        %v2340 = vsel %vm2307, %v2337, %v2339
        %2341 = vrot.lane.b32.xlu0 %v2310, 8
        %v2342 = vpop.permute.xlu0 %2341
        %2343 = vrot.lane.b32.xlu0 %v2312, 8
        %v2344 = vpop.permute.xlu0 %2343
        %2345 = vrot.lane.b32.xlu0 %v2314, 8
        %v2346 = vpop.permute.xlu0 %2345
        %2347 = vrot.lane.b32.xlu0 %v2316, 8
        %v2348 = vpop.permute.xlu0 %2347
        %2349 = vrot.lane.b32.xlu0 %v2318, 8
        %v2350 = vpop.permute.xlu0 %2349
        %2351 = vrot.lane.b32.xlu0 %v2320, 8
        %v2352 = vpop.permute.xlu0 %2351
        %2353 = vrot.lane.b32.xlu0 %v2322, 8
        %v2354 = vpop.permute.xlu0 %2353
        %2355 = vrot.lane.b32.xlu0 %v2324, 8
        %v2356 = vpop.permute.xlu0 %2355
        %2357 = vrot.lane.b32.xlu0 %v2326, 8
        %v2358 = vpop.permute.xlu0 %2357
        %2359 = vrot.lane.b32.xlu0 %v2328, 8
        %v2360 = vpop.permute.xlu0 %2359
        %2361 = vrot.lane.b32.xlu0 %v2330, 8
        %v2362 = vpop.permute.xlu0 %2361
        %2363 = vrot.lane.b32.xlu0 %v2332, 8
        %v2364 = vpop.permute.xlu0 %2363
        %2365 = vrot.lane.b32.xlu0 %v2334, 8
        %v2366 = vpop.permute.xlu0 %2365
        %2367 = vrot.lane.b32.xlu0 %v2336, 8
        %v2368 = vpop.permute.xlu0 %2367
        %2369 = vrot.lane.b32.xlu0 %v2338, 8
        %v2370 = vpop.permute.xlu0 %2369
        %2371 = vrot.lane.b32.xlu0 %v2340, 8
        %v2372 = vpop.permute.xlu0 %2371
        %2389 = vrot.lane.b32.xlu0 %v2059, 12
        %v2390 = vpop.permute.xlu0 %2389
        %2391 = vrot.lane.b32.xlu0 %v2060, 12
        %v2392 = vpop.permute.xlu0 %2391
        %2393 = vrot.lane.b32.xlu0 %v2061, 12
        %v2394 = vpop.permute.xlu0 %2393
        %2395 = vrot.lane.b32.xlu0 %v2062, 12
        %v2396 = vpop.permute.xlu0 %2395
        %2397 = vrot.lane.b32.xlu0 %v2063, 12
        %v2398 = vpop.permute.xlu0 %2397
        %2399 = vrot.lane.b32.xlu0 %v2064, 12
        %v2400 = vpop.permute.xlu0 %2399
        %2401 = vrot.lane.b32.xlu0 %v2065, 12
        %v2402 = vpop.permute.xlu0 %2401
        %2403 = vrot.lane.b32.xlu0 %v2066, 12
        %v2404 = vpop.permute.xlu0 %2403
        %2405 = vrot.lane.b32.xlu0 %v2067, 12
        %v2406 = vpop.permute.xlu0 %2405
        %2407 = vrot.lane.b32.xlu0 %v2068, 12
        %v2408 = vpop.permute.xlu0 %2407
        %2409 = vrot.lane.b32.xlu0 %v2069, 12
        %v2410 = vpop.permute.xlu0 %2409
        %2411 = vrot.lane.b32.xlu0 %v2070, 12
        %v2412 = vpop.permute.xlu0 %2411
        %2413 = vrot.lane.b32.xlu0 %v2071, 12
        %v2414 = vpop.permute.xlu0 %2413
        %2415 = vrot.lane.b32.xlu0 %v2072, 12
        %v2416 = vpop.permute.xlu0 %2415
        %2417 = vrot.lane.b32.xlu0 %v2073, 12
        %v2418 = vpop.permute.xlu0 %2417
        %2419 = vrot.lane.b32.xlu0 %v2074, 12
        %v2420 = vpop.permute.xlu0 %2419
        %v2421 = vshrl.u32 %v1012, 16
        %v2423 = vor.u32 %v2421, %v2256
        %v2425 = vshll.u32 %v1033, 16
        %v2427 = vrot.slane %v2425, 1
        %v2428 = vsel %vm2125, %v2423, %v2427
        %2429 = vrot.lane.b32.xlu0 %v2145, 16
        %v2430 = vpop.permute.xlu0 %2429
        %2431 = vrot.lane.b32.xlu0 %v2153, 16
        %v2432 = vpop.permute.xlu0 %2431
        %2433 = vrot.lane.b32.xlu0 %v2161, 16
        %v2434 = vpop.permute.xlu0 %2433
        %2435 = vrot.lane.b32.xlu0 %v2169, 16
        %v2436 = vpop.permute.xlu0 %2435
        %2437 = vrot.lane.b32.xlu0 %v2177, 16
        %v2438 = vpop.permute.xlu0 %2437
        %2439 = vrot.lane.b32.xlu0 %v2185, 16
        %v2440 = vpop.permute.xlu0 %2439
        %2441 = vrot.lane.b32.xlu0 %v2193, 16
        %v2442 = vpop.permute.xlu0 %2441
        %2443 = vrot.lane.b32.xlu0 %v2201, 16
        %v2444 = vpop.permute.xlu0 %2443
        %2445 = vrot.lane.b32.xlu0 %v2209, 16
        %v2446 = vpop.permute.xlu0 %2445
        %2447 = vrot.lane.b32.xlu0 %v2217, 16
        %v2448 = vpop.permute.xlu0 %2447
        %2449 = vrot.lane.b32.xlu0 %v2225, 16
        %v2450 = vpop.permute.xlu0 %2449
        %2451 = vrot.lane.b32.xlu0 %v2233, 16
        %v2452 = vpop.permute.xlu0 %2451
        %2453 = vrot.lane.b32.xlu0 %v2241, 16
        %v2454 = vpop.permute.xlu0 %2453
        %2455 = vrot.lane.b32.xlu0 %v2249, 16
        %v2456 = vpop.permute.xlu0 %2455
        %2457 = vrot.lane.b32.xlu0 %v2257, 16
        %v2458 = vpop.permute.xlu0 %2457
        %2459 = vrot.lane.b32.xlu0 %v2428, 16
        %v2460 = vpop.permute.xlu0 %2459
        %v2478 = vrot.slane %v2075, 1
        %v2479 = vrot.slane %v2076, 1
        %v2480 = vsel %vm2307, %v2478, %v2479
        %v2481 = vrot.slane %v2077, 1
        %v2482 = vsel %vm2307, %v2479, %v2481
        %v2483 = vrot.slane %v2078, 1
        %v2484 = vsel %vm2307, %v2481, %v2483
        %v2485 = vrot.slane %v2079, 1
        %v2486 = vsel %vm2307, %v2483, %v2485
        %v2487 = vrot.slane %v2080, 1
        %v2488 = vsel %vm2307, %v2485, %v2487
        %v2489 = vrot.slane %v2081, 1
        %v2490 = vsel %vm2307, %v2487, %v2489
        %v2491 = vrot.slane %v2082, 1
        %v2492 = vsel %vm2307, %v2489, %v2491
        %v2493 = vrot.slane %v2083, 1
        %v2494 = vsel %vm2307, %v2491, %v2493
        %v2495 = vrot.slane %v2084, 1
        %v2496 = vsel %vm2307, %v2493, %v2495
        %v2497 = vrot.slane %v2085, 1
        %v2498 = vsel %vm2307, %v2495, %v2497
        %v2499 = vrot.slane %v2086, 1
        %v2500 = vsel %vm2307, %v2497, %v2499
        %v2501 = vrot.slane %v2087, 1
        %v2502 = vsel %vm2307, %v2499, %v2501
        %v2503 = vrot.slane %v2088, 1
        %v2504 = vsel %vm2307, %v2501, %v2503
        %v2505 = vrot.slane %v2089, 1
        %v2506 = vsel %vm2307, %v2503, %v2505
        %v2507 = vrot.slane %v2090, 1
        %v2508 = vsel %vm2307, %v2505, %v2507
        %v2509 = vrot.slane %v2091, 1
        %v2510 = vsel %vm2307, %v2507, %v2509
        %2511 = vrot.lane.b32.xlu0 %v2480, 20
        %v2512 = vpop.permute.xlu0 %2511
        %2513 = vrot.lane.b32.xlu0 %v2482, 20
        %v2514 = vpop.permute.xlu0 %2513
        %2515 = vrot.lane.b32.xlu0 %v2484, 20
        %v2516 = vpop.permute.xlu0 %2515
        %2517 = vrot.lane.b32.xlu0 %v2486, 20
        %v2518 = vpop.permute.xlu0 %2517
        %2519 = vrot.lane.b32.xlu0 %v2488, 20
        %v2520 = vpop.permute.xlu0 %2519
        %2521 = vrot.lane.b32.xlu0 %v2490, 20
        %v2522 = vpop.permute.xlu0 %2521
        %2523 = vrot.lane.b32.xlu0 %v2492, 20
        %v2524 = vpop.permute.xlu0 %2523
        %2525 = vrot.lane.b32.xlu0 %v2494, 20
        %v2526 = vpop.permute.xlu0 %2525
        %2527 = vrot.lane.b32.xlu0 %v2496, 20
        %v2528 = vpop.permute.xlu0 %2527
        %2529 = vrot.lane.b32.xlu0 %v2498, 20
        %v2530 = vpop.permute.xlu0 %2529
        %2531 = vrot.lane.b32.xlu0 %v2500, 20
        %v2532 = vpop.permute.xlu0 %2531
        %2533 = vrot.lane.b32.xlu0 %v2502, 20
        %v2534 = vpop.permute.xlu0 %2533
        %2535 = vrot.lane.b32.xlu0 %v2504, 20
        %v2536 = vpop.permute.xlu0 %2535
        %2537 = vrot.lane.b32.xlu0 %v2506, 20
        %v2538 = vpop.permute.xlu0 %2537
        %2539 = vrot.lane.b32.xlu0 %v2508, 20
        %v2540 = vpop.permute.xlu0 %2539
        %2541 = vrot.lane.b32.xlu0 %v2510, 20
        %v2542 = vpop.permute.xlu0 %2541
        %2559 = vrot.lane.b32.xlu0 %v2092, 24
        %v2560 = vpop.permute.xlu0 %2559
        %2561 = vrot.lane.b32.xlu0 %v2093, 24
        %v2562 = vpop.permute.xlu0 %2561
        %2563 = vrot.lane.b32.xlu0 %v2094, 24
        %v2564 = vpop.permute.xlu0 %2563
        %2565 = vrot.lane.b32.xlu0 %v2095, 24
        %v2566 = vpop.permute.xlu0 %2565
        %2567 = vrot.lane.b32.xlu0 %v2096, 24
        %v2568 = vpop.permute.xlu0 %2567
        %2569 = vrot.lane.b32.xlu0 %v2097, 24
        %v2570 = vpop.permute.xlu0 %2569
        %2571 = vrot.lane.b32.xlu0 %v2098, 24
        %v2572 = vpop.permute.xlu0 %2571
        %2573 = vrot.lane.b32.xlu0 %v2099, 24
        %v2574 = vpop.permute.xlu0 %2573
        %2575 = vrot.lane.b32.xlu0 %v2100, 24
        %v2576 = vpop.permute.xlu0 %2575
        %2577 = vrot.lane.b32.xlu0 %v2101, 24
        %v2578 = vpop.permute.xlu0 %2577
        %2579 = vrot.lane.b32.xlu0 %v2102, 24
        %v2580 = vpop.permute.xlu0 %2579
        %2581 = vrot.lane.b32.xlu0 %v2103, 24
        %v2582 = vpop.permute.xlu0 %2581
        %2583 = vrot.lane.b32.xlu0 %v2104, 24
        %v2584 = vpop.permute.xlu0 %2583
        %2585 = vrot.lane.b32.xlu0 %v2105, 24
        %v2586 = vpop.permute.xlu0 %2585
        %2587 = vrot.lane.b32.xlu0 %v2106, 24
        %v2588 = vpop.permute.xlu0 %2587
        %2589 = vrot.lane.b32.xlu0 %v2107, 24
        %v2590 = vpop.permute.xlu0 %2589
        %v2591 = vshrl.u32 %v1033, 16
        %v2593 = vor.u32 %v2591, %v2427
        %v2594 = vsel %vm2125, %v2593, %v2131
        %2595 = vrot.lane.b32.xlu0 %v2153, 28
        %v2596 = vpop.permute.xlu0 %2595
        %2597 = vrot.lane.b32.xlu0 %v2161, 28
        %v2598 = vpop.permute.xlu0 %2597
        %2599 = vrot.lane.b32.xlu0 %v2169, 28
        %v2600 = vpop.permute.xlu0 %2599
        %2601 = vrot.lane.b32.xlu0 %v2177, 28
        %v2602 = vpop.permute.xlu0 %2601
        %2603 = vrot.lane.b32.xlu0 %v2185, 28
        %v2604 = vpop.permute.xlu0 %2603
        %2605 = vrot.lane.b32.xlu0 %v2193, 28
        %v2606 = vpop.permute.xlu0 %2605
        %2607 = vrot.lane.b32.xlu0 %v2201, 28
        %v2608 = vpop.permute.xlu0 %2607
        %2609 = vrot.lane.b32.xlu0 %v2209, 28
        %v2610 = vpop.permute.xlu0 %2609
        %2611 = vrot.lane.b32.xlu0 %v2217, 28
        %v2612 = vpop.permute.xlu0 %2611
        %2613 = vrot.lane.b32.xlu0 %v2225, 28
        %v2614 = vpop.permute.xlu0 %2613
        %2615 = vrot.lane.b32.xlu0 %v2233, 28
        %v2616 = vpop.permute.xlu0 %2615
        %2617 = vrot.lane.b32.xlu0 %v2241, 28
        %v2618 = vpop.permute.xlu0 %2617
        %2619 = vrot.lane.b32.xlu0 %v2249, 28
        %v2620 = vpop.permute.xlu0 %2619
        %2621 = vrot.lane.b32.xlu0 %v2257, 28
        %v2622 = vpop.permute.xlu0 %2621
        %2623 = vrot.lane.b32.xlu0 %v2428, 28
        %v2624 = vpop.permute.xlu0 %2623
        %2625 = vrot.lane.b32.xlu0 %v2594, 28
        %v2626 = vpop.permute.xlu0 %2625
        %v2644 = vrot.slane %v2108, 1
        %v2645 = vrot.slane %v2109, 1
        %v2646 = vsel %vm2307, %v2644, %v2645
        %v2647 = vrot.slane %v2110, 1
        %v2648 = vsel %vm2307, %v2645, %v2647
        %v2649 = vrot.slane %v2111, 1
        %v2650 = vsel %vm2307, %v2647, %v2649
        %v2651 = vrot.slane %v2112, 1
        %v2652 = vsel %vm2307, %v2649, %v2651
        %v2653 = vrot.slane %v2113, 1
        %v2654 = vsel %vm2307, %v2651, %v2653
        %v2655 = vrot.slane %v2114, 1
        %v2656 = vsel %vm2307, %v2653, %v2655
        %v2657 = vrot.slane %v2115, 1
        %v2658 = vsel %vm2307, %v2655, %v2657
        %v2659 = vrot.slane %v2116, 1
        %v2660 = vsel %vm2307, %v2657, %v2659
        %v2661 = vrot.slane %v2117, 1
        %v2662 = vsel %vm2307, %v2659, %v2661
        %v2663 = vrot.slane %v2118, 1
        %v2664 = vsel %vm2307, %v2661, %v2663
        %v2665 = vrot.slane %v2119, 1
        %v2666 = vsel %vm2307, %v2663, %v2665
        %v2667 = vrot.slane %v2120, 1
        %v2668 = vsel %vm2307, %v2665, %v2667
        %v2669 = vrot.slane %v2121, 1
        %v2670 = vsel %vm2307, %v2667, %v2669
        %v2671 = vrot.slane %v2122, 1
        %v2672 = vsel %vm2307, %v2669, %v2671
        %v2673 = vrot.slane %v2123, 1
        %v2674 = vsel %vm2307, %v2671, %v2673
        %v2675 = vrot.slane %v2124, 1
        %v2676 = vsel %vm2307, %v2673, %v2675
        %2677 = vrot.lane.b32.xlu0 %v2646, 32
        %v2678 = vpop.permute.xlu0 %2677
        %2679 = vrot.lane.b32.xlu0 %v2648, 32
        %v2680 = vpop.permute.xlu0 %2679
        %2681 = vrot.lane.b32.xlu0 %v2650, 32
        %v2682 = vpop.permute.xlu0 %2681
        %2683 = vrot.lane.b32.xlu0 %v2652, 32
        %v2684 = vpop.permute.xlu0 %2683
        %2685 = vrot.lane.b32.xlu0 %v2654, 32
        %v2686 = vpop.permute.xlu0 %2685
        %2687 = vrot.lane.b32.xlu0 %v2656, 32
        %v2688 = vpop.permute.xlu0 %2687
        %2689 = vrot.lane.b32.xlu0 %v2658, 32
        %v2690 = vpop.permute.xlu0 %2689
        %2691 = vrot.lane.b32.xlu0 %v2660, 32
        %v2692 = vpop.permute.xlu0 %2691
        %2693 = vrot.lane.b32.xlu0 %v2662, 32
        %v2694 = vpop.permute.xlu0 %2693
        %2695 = vrot.lane.b32.xlu0 %v2664, 32
        %v2696 = vpop.permute.xlu0 %2695
        %2697 = vrot.lane.b32.xlu0 %v2666, 32
        %v2698 = vpop.permute.xlu0 %2697
        %2699 = vrot.lane.b32.xlu0 %v2668, 32
        %v2700 = vpop.permute.xlu0 %2699
        %2701 = vrot.lane.b32.xlu0 %v2670, 32
        %v2702 = vpop.permute.xlu0 %2701
        %2703 = vrot.lane.b32.xlu0 %v2672, 32
        %v2704 = vpop.permute.xlu0 %2703
        %2705 = vrot.lane.b32.xlu0 %v2674, 32
        %v2706 = vpop.permute.xlu0 %2705
        %2707 = vrot.lane.b32.xlu0 %v2676, 32
        %v2708 = vpop.permute.xlu0 %2707
        %vm2709 = vcmask 31744
        %v2712 = vsel %vm2709, %v1546, %v2259
        %v2715 = vsel %vm2709, %v1547, %v2261
        %v2718 = vsel %vm2709, %v1548, %v2263
        %v2721 = vsel %vm2709, %v1549, %v2265
        %v2724 = vsel %vm2709, %v1550, %v2267
        %v2727 = vsel %vm2709, %v1551, %v2269
        %v2730 = vsel %vm2709, %v1552, %v2271
        %v2733 = vsel %vm2709, %v1553, %v2273
        %v2736 = vsel %vm2709, %v1554, %v2275
        %v2739 = vsel %vm2709, %v1555, %v2277
        %v2742 = vsel %vm2709, %v1556, %v2279
        %v2745 = vsel %vm2709, %v1557, %v2281
        %v2748 = vsel %vm2709, %v1558, %v2283
        %v2751 = vsel %vm2709, %v1559, %v2285
        %v2754 = vsel %vm2709, %v1560, %v2287
        %v2757 = vsel %vm2709, %v1561, %v2289
        %v2759 = vsel %vm495, %v2712, %v2342
        %v2761 = vsel %vm495, %v2715, %v2344
        %v2763 = vsel %vm495, %v2718, %v2346
        %v2765 = vsel %vm495, %v2721, %v2348
        %v2767 = vsel %vm495, %v2724, %v2350
        %v2769 = vsel %vm495, %v2727, %v2352
        %v2771 = vsel %vm495, %v2730, %v2354
        %v2773 = vsel %vm495, %v2733, %v2356
        %v2775 = vsel %vm495, %v2736, %v2358
        %v2777 = vsel %vm495, %v2739, %v2360
        %v2779 = vsel %vm495, %v2742, %v2362
        %v2781 = vsel %vm495, %v2745, %v2364
        %v2783 = vsel %vm495, %v2748, %v2366
        %v2785 = vsel %vm495, %v2751, %v2368
        %v2787 = vsel %vm495, %v2754, %v2370
        %v2789 = vsel %vm495, %v2757, %v2372
        %vm2790 = vcmask 97280
        %v2792 = vsel %vm2790, %v2759, %v2390
        %v2794 = vsel %vm2790, %v2761, %v2392
        %v2796 = vsel %vm2790, %v2763, %v2394
        %v2798 = vsel %vm2790, %v2765, %v2396
        %v2800 = vsel %vm2790, %v2767, %v2398
        %v2802 = vsel %vm2790, %v2769, %v2400
        %v2804 = vsel %vm2790, %v2771, %v2402
        %v2806 = vsel %vm2790, %v2773, %v2404
        %v2808 = vsel %vm2790, %v2775, %v2406
        %v2810 = vsel %vm2790, %v2777, %v2408
        %v2812 = vsel %vm2790, %v2779, %v2410
        %v2814 = vsel %vm2790, %v2781, %v2412
        %v2816 = vsel %vm2790, %v2783, %v2414
        %v2818 = vsel %vm2790, %v2785, %v2416
        %v2820 = vsel %vm2790, %v2787, %v2418
        %v2822 = vsel %vm2790, %v2789, %v2420
        %vm2823 = vcmask 130048
        %v2825 = vsel %vm2823, %v2792, %v2430
        %v2827 = vsel %vm2823, %v2794, %v2432
        %v2829 = vsel %vm2823, %v2796, %v2434
        %v2831 = vsel %vm2823, %v2798, %v2436
        %v2833 = vsel %vm2823, %v2800, %v2438
        %v2835 = vsel %vm2823, %v2802, %v2440
        %v2837 = vsel %vm2823, %v2804, %v2442
        %v2839 = vsel %vm2823, %v2806, %v2444
        %v2841 = vsel %vm2823, %v2808, %v2446
        %v2843 = vsel %vm2823, %v2810, %v2448
        %v2845 = vsel %vm2823, %v2812, %v2450
        %v2847 = vsel %vm2823, %v2814, %v2452
        %v2849 = vsel %vm2823, %v2816, %v2454
        %v2851 = vsel %vm2823, %v2818, %v2456
        %v2853 = vsel %vm2823, %v2820, %v2458
        %v2855 = vsel %vm2823, %v2822, %v2460
        %vm2856 = vcmask 162816
        %v2858 = vsel %vm2856, %v2825, %v2512
        %v2860 = vsel %vm2856, %v2827, %v2514
        %v2862 = vsel %vm2856, %v2829, %v2516
        %v2864 = vsel %vm2856, %v2831, %v2518
        %v2866 = vsel %vm2856, %v2833, %v2520
        %v2868 = vsel %vm2856, %v2835, %v2522
        %v2870 = vsel %vm2856, %v2837, %v2524
        %v2872 = vsel %vm2856, %v2839, %v2526
        %v2874 = vsel %vm2856, %v2841, %v2528
        %v2876 = vsel %vm2856, %v2843, %v2530
        %v2878 = vsel %vm2856, %v2845, %v2532
        %v2880 = vsel %vm2856, %v2847, %v2534
        %v2882 = vsel %vm2856, %v2849, %v2536
        %v2884 = vsel %vm2856, %v2851, %v2538
        %v2886 = vsel %vm2856, %v2853, %v2540
        %v2888 = vsel %vm2856, %v2855, %v2542
        %vm2889 = vcmask 195584
        %v2891 = vsel %vm2889, %v2858, %v2560
        %v2893 = vsel %vm2889, %v2860, %v2562
        %v2895 = vsel %vm2889, %v2862, %v2564
        %v2897 = vsel %vm2889, %v2864, %v2566
        %v2899 = vsel %vm2889, %v2866, %v2568
        %v2901 = vsel %vm2889, %v2868, %v2570
        %v2903 = vsel %vm2889, %v2870, %v2572
        %v2905 = vsel %vm2889, %v2872, %v2574
        %v2907 = vsel %vm2889, %v2874, %v2576
        %v2909 = vsel %vm2889, %v2876, %v2578
        %v2911 = vsel %vm2889, %v2878, %v2580
        %v2913 = vsel %vm2889, %v2880, %v2582
        %v2915 = vsel %vm2889, %v2882, %v2584
        %v2917 = vsel %vm2889, %v2884, %v2586
        %v2919 = vsel %vm2889, %v2886, %v2588
        %v2921 = vsel %vm2889, %v2888, %v2590
        %vm2922 = vcmask 228352
        %v2924 = vsel %vm2922, %v2891, %v2596
        %v2926 = vsel %vm2922, %v2893, %v2598
        %v2928 = vsel %vm2922, %v2895, %v2600
        %v2930 = vsel %vm2922, %v2897, %v2602
        %v2932 = vsel %vm2922, %v2899, %v2604
        %v2934 = vsel %vm2922, %v2901, %v2606
        %v2936 = vsel %vm2922, %v2903, %v2608
        %v2938 = vsel %vm2922, %v2905, %v2610
        %v2940 = vsel %vm2922, %v2907, %v2612
        %v2942 = vsel %vm2922, %v2909, %v2614
        %v2944 = vsel %vm2922, %v2911, %v2616
        %v2946 = vsel %vm2922, %v2913, %v2618
        %v2948 = vsel %vm2922, %v2915, %v2620
        %v2950 = vsel %vm2922, %v2917, %v2622
        %v2952 = vsel %vm2922, %v2919, %v2624
        %v2954 = vsel %vm2922, %v2921, %v2626
        %vm2955 = vcmask 261120
        %v2957 = vsel %vm2955, %v2924, %v2678
        %v2959 = vsel %vm2955, %v2926, %v2680
        %v2961 = vsel %vm2955, %v2928, %v2682
        %v2963 = vsel %vm2955, %v2930, %v2684
        %v2965 = vsel %vm2955, %v2932, %v2686
        %v2967 = vsel %vm2955, %v2934, %v2688
        %v2969 = vsel %vm2955, %v2936, %v2690
        %v2971 = vsel %vm2955, %v2938, %v2692
        %v2973 = vsel %vm2955, %v2940, %v2694
        %v2975 = vsel %vm2955, %v2942, %v2696
        %v2977 = vsel %vm2955, %v2944, %v2698
        %v2979 = vsel %vm2955, %v2946, %v2700
        %v2981 = vsel %vm2955, %v2948, %v2702
        %v2983 = vsel %vm2955, %v2950, %v2704
        %v2985 = vsel %vm2955, %v2952, %v2706
        %v2987 = vsel %vm2955, %v2954, %v2708
        %v2988 = vld [vmem:[%s4] sm:$0xf]
        %v2989 = vld [vmem:[%s4 + $0x4] sm:$0xf]
        %v2990 = vld [vmem:[%s4 + $0x8] sm:$0xf]
        %v2991 = vld [vmem:[%s4 + $0xc] sm:$0xf]
        %v2992 = vld [vmem:[%s4 + $0x10] sm:$0x3]
        %v2993 = vld [vmem:[%s5] sm:$0x1]
        %v2995 = vlaneseq
        %v2996 = vshrl.u32 %v2995, 7
        %v2997 = vsub.s32 0, %v2996
        %v2998 = vrot.slane %v2993, %v2997
        %v3005 = vunpack.c.l.b16 %v2988
        %v3006 = vunpack.c.l.b16 %v2989
        %v3007 = vunpack.c.l.b16 %v2990
        %v3008 = vunpack.c.l.b16 %v2991
        %v3009 = vunpack.c.l.b16 %v2992
        %v3010 = vpack.c.b16 %v3006, %v3005
        %v3011 = vpack.c.b16 %v3008, %v3007
        %v3012 = vpack.c.b16 %v3009, %v3009
        %vm3015 = vcmask 293888
        %v3016 = vsel %vm3015, %v2957, 0
        %v3018 = vsel %vm3015, %v2959, 0
        %v3020 = vsel %vm3015, %v2961, 0
        %v3022 = vsel %vm3015, %v2963, 0
        %v3024 = vsel %vm3015, %v2965, 0
        %v3026 = vsel %vm3015, %v2967, 0
        %v3028 = vsel %vm3015, %v2969, 0
        %v3030 = vsel %vm3015, %v2971, 0
        %v3032 = vsel %vm3015, %v2973, 0
        %v3034 = vsel %vm3015, %v2975, 0
        %v3036 = vsel %vm3015, %v2977, 0
        %v3038 = vsel %vm3015, %v2979, 0
        %v3040 = vsel %vm3015, %v2981, 0
        %v3042 = vsel %vm3015, %v2983, 0
        %v3044 = vsel %vm3015, %v2985, 0
        %v3046 = vsel %vm3015, %v2987, 0
        %vm3048 = vcmask 1041408
        %v3050 = vsel %vm3048, %v3012, 0
        %3052 = vmatprep.subr.bf16.mxu0 0
        %3053 = vmatpush1.bf16.msra.mxu0 %v3010
        %3054 = vmatprep.subr.bf16.mxu0 0
        %3055 = vmatpush1.bf16.msra.mxu0 %v3011
        %3056 = vmatprep.subr.bf16.mxu0 0
        %3057 = vmatpush1.bf16.msra.mxu0 %v3050
        %3058 = vmatprep.subr.bf16.mxu0 0
        %3059 = vmatpush1.bf16.msra.mxu0 0
        %3060 = vmatprep.subr.bf16.mxu0 0
        %3061 = vmatpush1.bf16.msra.mxu0 0
        %3062 = vmatprep.subr.bf16.mxu0 0
        %3063 = vmatpush1.bf16.msra.mxu0 0
        %3064 = vmatprep.subr.bf16.mxu0 0
        %3065 = vmatpush1.bf16.msra.mxu0 0
        %3066 = vmatprep.subr.bf16.mxu0 0
        %3067 = vmatpush1.bf16.msra.mxu0 0
        %3068 = vmatprep.subr.bf16.mxu0 0
        %3069 = vmatpush1.bf16.msra.mxu0 0
        %3070 = vmatprep.subr.bf16.mxu0 0
        %3071 = vmatpush1.bf16.msra.mxu0 0
        %3072 = vmatprep.subr.bf16.mxu0 0
        %3073 = vmatpush1.bf16.msra.mxu0 0
        %3074 = vmatprep.subr.bf16.mxu0 0
        %3075 = vmatpush1.bf16.msra.mxu0 0
        %3076 = vmatprep.subr.bf16.mxu0 0
        %3077 = vmatpush1.bf16.msra.mxu0 0
        %3078 = vmatprep.subr.bf16.mxu0 0
        %3079 = vmatpush1.bf16.msra.mxu0 0
        %3080 = vmatprep.subr.bf16.mxu0 0
        %3081 = vmatpush1.bf16.msra.mxu0 0
        %3082 = vmatprep.subr.bf16.mxu0 0
        %3083 = vmatpush1.bf16.msra.mxu0 0
        %3084 = vmatprep.mubr.bf16.mxu0 0
        %3085 = vmatmul.mubr.bf16.gmra.mrb[0].mxu0 %v3016
        %v3086 = vpop.f32.mrb[0].mxu0
        %v3087 = vadd.f32 %v2998, %v3086
        %v3088 = vpop.f32.mrb[0].mxu0
        %v3089 = vpop.f32.mrb[0].mxu0
        %v3090 = vadd.f32 %v2998, %v3089
        %v3091 = vpop.f32.mrb[0].mxu0
        %3092 = vmatprep.mubr.bf16.mxu0 0
        %3093 = vmatmul.mubr.bf16.gmra.mrb[0].mxu0 %v3018
        %v3094 = vpop.f32.mrb[0].mxu0
        %v3095 = vadd.f32 %v2998, %v3094
        %v3096 = vpop.f32.mrb[0].mxu0
        %v3097 = vpop.f32.mrb[0].mxu0
        %v3098 = vadd.f32 %v2998, %v3097
        %v3099 = vpop.f32.mrb[0].mxu0
        %3100 = vmatprep.mubr.bf16.mxu0 0
        %3101 = vmatmul.mubr.bf16.gmra.mrb[0].mxu0 %v3020
        %v3102 = vpop.f32.mrb[0].mxu0
        %v3103 = vadd.f32 %v2998, %v3102
        %v3104 = vpop.f32.mrb[0].mxu0
        %v3105 = vpop.f32.mrb[0].mxu0
        %v3106 = vadd.f32 %v2998, %v3105
        %v3107 = vpop.f32.mrb[0].mxu0
        %3108 = vmatprep.mubr.bf16.mxu0 0
        %3109 = vmatmul.mubr.bf16.gmra.mrb[0].mxu0 %v3022
        %v3110 = vpop.f32.mrb[0].mxu0
        %v3111 = vadd.f32 %v2998, %v3110
        %v3112 = vpop.f32.mrb[0].mxu0
        %v3113 = vpop.f32.mrb[0].mxu0
        %v3114 = vadd.f32 %v2998, %v3113
        %v3115 = vpop.f32.mrb[0].mxu0
        %3116 = vmatprep.mubr.bf16.mxu0 0
        %3117 = vmatmul.mubr.bf16.gmra.mrb[0].mxu0 %v3024
        %v3118 = vpop.f32.mrb[0].mxu0
        %v3119 = vadd.f32 %v2998, %v3118
        %v3120 = vpop.f32.mrb[0].mxu0
        %v3121 = vpop.f32.mrb[0].mxu0
        %v3122 = vadd.f32 %v2998, %v3121
        %v3123 = vpop.f32.mrb[0].mxu0
        %3124 = vmatprep.mubr.bf16.mxu0 0
        %3125 = vmatmul.mubr.bf16.gmra.mrb[0].mxu0 %v3026
        %v3126 = vpop.f32.mrb[0].mxu0
        %v3127 = vadd.f32 %v2998, %v3126
        %v3128 = vpop.f32.mrb[0].mxu0
        %v3129 = vpop.f32.mrb[0].mxu0
        %v3130 = vadd.f32 %v2998, %v3129
        %v3131 = vpop.f32.mrb[0].mxu0
        %3132 = vmatprep.mubr.bf16.mxu0 0
        %3133 = vmatmul.mubr.bf16.gmra.mrb[0].mxu0 %v3028
        %v3134 = vpop.f32.mrb[0].mxu0
        %v3135 = vadd.f32 %v2998, %v3134
        %v3136 = vpop.f32.mrb[0].mxu0
        %v3137 = vpop.f32.mrb[0].mxu0
        %v3138 = vadd.f32 %v2998, %v3137
        %v3139 = vpop.f32.mrb[0].mxu0
        %3140 = vmatprep.mubr.bf16.mxu0 0
        %3141 = vmatmul.mubr.bf16.gmra.mrb[0].mxu0 %v3030
        %v3142 = vpop.f32.mrb[0].mxu0
        %v3143 = vadd.f32 %v2998, %v3142
        %v3144 = vpop.f32.mrb[0].mxu0
        %v3145 = vpop.f32.mrb[0].mxu0
        %v3146 = vadd.f32 %v2998, %v3145
        %v3147 = vpop.f32.mrb[0].mxu0
        %3148 = vmatprep.mubr.bf16.mxu0 0
        %3149 = vmatmul.mubr.bf16.gmra.mrb[0].mxu0 %v3032
        %v3150 = vpop.f32.mrb[0].mxu0
        %v3151 = vadd.f32 %v2998, %v3150
        %v3152 = vpop.f32.mrb[0].mxu0
        %v3153 = vpop.f32.mrb[0].mxu0
        %v3154 = vadd.f32 %v2998, %v3153
        %v3155 = vpop.f32.mrb[0].mxu0
        %3156 = vmatprep.mubr.bf16.mxu0 0
        %3157 = vmatmul.mubr.bf16.gmra.mrb[0].mxu0 %v3034
        %v3158 = vpop.f32.mrb[0].mxu0
        %v3159 = vadd.f32 %v2998, %v3158
        %v3160 = vpop.f32.mrb[0].mxu0
        %v3161 = vpop.f32.mrb[0].mxu0
        %v3162 = vadd.f32 %v2998, %v3161
        %v3163 = vpop.f32.mrb[0].mxu0
        %3164 = vmatprep.mubr.bf16.mxu0 0
        %3165 = vmatmul.mubr.bf16.gmra.mrb[0].mxu0 %v3036
        %v3166 = vpop.f32.mrb[0].mxu0
        %v3167 = vadd.f32 %v2998, %v3166
        %v3168 = vpop.f32.mrb[0].mxu0
        %v3169 = vpop.f32.mrb[0].mxu0
        %v3170 = vadd.f32 %v2998, %v3169
        %v3171 = vpop.f32.mrb[0].mxu0
        %3172 = vmatprep.mubr.bf16.mxu0 0
        %3173 = vmatmul.mubr.bf16.gmra.mrb[0].mxu0 %v3038
        %v3174 = vpop.f32.mrb[0].mxu0
        %v3175 = vadd.f32 %v2998, %v3174
        %v3176 = vpop.f32.mrb[0].mxu0
        %v3177 = vpop.f32.mrb[0].mxu0
        %v3178 = vadd.f32 %v2998, %v3177
        %v3179 = vpop.f32.mrb[0].mxu0
        %3180 = vmatprep.mubr.bf16.mxu0 0
        %3181 = vmatmul.mubr.bf16.gmra.mrb[0].mxu0 %v3040
        %v3182 = vpop.f32.mrb[0].mxu0
        %v3183 = vadd.f32 %v2998, %v3182
        %v3184 = vpop.f32.mrb[0].mxu0
        %v3185 = vpop.f32.mrb[0].mxu0
        %v3186 = vadd.f32 %v2998, %v3185
        %v3187 = vpop.f32.mrb[0].mxu0
        %3188 = vmatprep.mubr.bf16.mxu0 0
        %3189 = vmatmul.mubr.bf16.gmra.mrb[0].mxu0 %v3042
        %v3190 = vpop.f32.mrb[0].mxu0
        %v3191 = vadd.f32 %v2998, %v3190
        %v3192 = vpop.f32.mrb[0].mxu0
        %v3193 = vpop.f32.mrb[0].mxu0
        %v3194 = vadd.f32 %v2998, %v3193
        %v3195 = vpop.f32.mrb[0].mxu0
        %3196 = vmatprep.mubr.bf16.mxu0 0
        %3197 = vmatmul.mubr.bf16.gmra.mrb[0].mxu0 %v3044
        %v3198 = vpop.f32.mrb[0].mxu0
        %v3199 = vadd.f32 %v2998, %v3198
        %v3200 = vpop.f32.mrb[0].mxu0
        %v3201 = vpop.f32.mrb[0].mxu0
        %v3202 = vadd.f32 %v2998, %v3201
        %v3203 = vpop.f32.mrb[0].mxu0
        %3204 = vmatprep.mubr.bf16.mxu0 0
        %3205 = vmatmul.mubr.bf16.gmra.mrb[0].mxu0 %v3046
        %v3206 = vpop.f32.mrb[0].mxu0
        %v3207 = vadd.f32 %v2998, %v3206
        %v3208 = vpop.f32.mrb[0].mxu0
        %v3209 = vpop.f32.mrb[0].mxu0
        %v3210 = vadd.f32 %v2998, %v3209
        %v3211 = vpop.f32.mrb[0].mxu0
        %3212 = vdwg.mxu0
        %v3213 = vmul.f32 %v3087, 0.5
        %v3214 = vmul.f32 %v3090, 0.5
        %v3215 = vmul.f32 %v3095, 0.5
        %v3216 = vmul.f32 %v3098, 0.5
        %v3217 = vmul.f32 %v3103, 0.5
        %v3218 = vmul.f32 %v3106, 0.5
        %v3219 = vmul.f32 %v3111, 0.5
        %v3220 = vmul.f32 %v3114, 0.5
        %v3221 = vmul.f32 %v3119, 0.5
        %v3222 = vmul.f32 %v3122, 0.5
        %v3223 = vmul.f32 %v3127, 0.5
        %v3224 = vmul.f32 %v3130, 0.5
        %v3225 = vmul.f32 %v3135, 0.5
        %v3226 = vmul.f32 %v3138, 0.5
        %v3227 = vmul.f32 %v3143, 0.5
        %v3228 = vmul.f32 %v3146, 0.5
        %v3229 = vmul.f32 %v3151, 0.5
        %v3230 = vmul.f32 %v3154, 0.5
        %v3231 = vmul.f32 %v3159, 0.5
        %v3232 = vmul.f32 %v3162, 0.5
        %v3233 = vmul.f32 %v3167, 0.5
        %v3234 = vmul.f32 %v3170, 0.5
        %v3235 = vmul.f32 %v3175, 0.5
        %v3236 = vmul.f32 %v3178, 0.5
        %v3237 = vmul.f32 %v3183, 0.5
        %v3238 = vmul.f32 %v3186, 0.5
        %v3239 = vmul.f32 %v3191, 0.5
        %v3240 = vmul.f32 %v3194, 0.5
        %v3241 = vmul.f32 %v3199, 0.5
        %v3242 = vmul.f32 %v3202, 0.5
        %v3243 = vmul.f32 %v3207, 0.5
        %v3244 = vmul.f32 %v3210, 0.5
        %v3245 = vtanh.pop %v3213
        %v3246 = vtanh.pop %v3214
        %v3247 = vtanh.pop %v3215
        %v3248 = vtanh.pop %v3216
        %v3249 = vtanh.pop %v3217
        %v3250 = vtanh.pop %v3218
        %v3251 = vtanh.pop %v3219
        %v3252 = vtanh.pop %v3220
        %v3253 = vtanh.pop %v3221
        %v3254 = vtanh.pop %v3222
        %v3255 = vtanh.pop %v3223
        %v3256 = vtanh.pop %v3224
        %v3257 = vtanh.pop %v3225
        %v3258 = vtanh.pop %v3226
        %v3259 = vtanh.pop %v3227
        %v3260 = vtanh.pop %v3228
        %v3261 = vtanh.pop %v3229
        %v3262 = vtanh.pop %v3230
        %v3263 = vtanh.pop %v3231
        %v3264 = vtanh.pop %v3232
        %v3265 = vtanh.pop %v3233
        %v3266 = vtanh.pop %v3234
        %v3267 = vtanh.pop %v3235
        %v3268 = vtanh.pop %v3236
        %v3269 = vtanh.pop %v3237
        %v3270 = vtanh.pop %v3238
        %v3271 = vtanh.pop %v3239
        %v3272 = vtanh.pop %v3240
        %v3273 = vtanh.pop %v3241
        %v3274 = vtanh.pop %v3242
        %v3275 = vtanh.pop %v3243
        %v3276 = vtanh.pop %v3244
        %v3277 = vmul.f32 %v3245, 0.5
        %v3278 = vmul.f32 %v3246, 0.5
        %v3279 = vmul.f32 %v3247, 0.5
        %v3280 = vmul.f32 %v3248, 0.5
        %v3281 = vmul.f32 %v3249, 0.5
        %v3282 = vmul.f32 %v3250, 0.5
        %v3283 = vmul.f32 %v3251, 0.5
        %v3284 = vmul.f32 %v3252, 0.5
        %v3285 = vmul.f32 %v3253, 0.5
        %v3286 = vmul.f32 %v3254, 0.5
        %v3287 = vmul.f32 %v3255, 0.5
        %v3288 = vmul.f32 %v3256, 0.5
        %v3289 = vmul.f32 %v3257, 0.5
        %v3290 = vmul.f32 %v3258, 0.5
        %v3291 = vmul.f32 %v3259, 0.5
        %v3292 = vmul.f32 %v3260, 0.5
        %v3293 = vmul.f32 %v3261, 0.5
        %v3294 = vmul.f32 %v3262, 0.5
        %v3295 = vmul.f32 %v3263, 0.5
        %v3296 = vmul.f32 %v3264, 0.5
        %v3297 = vmul.f32 %v3265, 0.5
        %v3298 = vmul.f32 %v3266, 0.5
        %v3299 = vmul.f32 %v3267, 0.5
        %v3300 = vmul.f32 %v3268, 0.5
        %v3301 = vmul.f32 %v3269, 0.5
        %v3302 = vmul.f32 %v3270, 0.5
        %v3303 = vmul.f32 %v3271, 0.5
        %v3304 = vmul.f32 %v3272, 0.5
        %v3305 = vmul.f32 %v3273, 0.5
        %v3306 = vmul.f32 %v3274, 0.5
        %v3307 = vmul.f32 %v3275, 0.5
        %v3308 = vmul.f32 %v3276, 0.5
        %v3309 = vadd.f32 %v3277, 0.5
        %v3310 = vadd.f32 %v3278, 0.5
        %v3311 = vadd.f32 %v3279, 0.5
        %v3312 = vadd.f32 %v3280, 0.5
        %v3313 = vadd.f32 %v3281, 0.5
        %v3314 = vadd.f32 %v3282, 0.5
        %v3315 = vadd.f32 %v3283, 0.5
        %v3316 = vadd.f32 %v3284, 0.5
        %v3317 = vadd.f32 %v3285, 0.5
        %v3318 = vadd.f32 %v3286, 0.5
        %v3319 = vadd.f32 %v3287, 0.5
        %v3320 = vadd.f32 %v3288, 0.5
        %v3321 = vadd.f32 %v3289, 0.5
        %v3322 = vadd.f32 %v3290, 0.5
        %v3323 = vadd.f32 %v3291, 0.5
        %v3324 = vadd.f32 %v3292, 0.5
        %v3325 = vadd.f32 %v3293, 0.5
        %v3326 = vadd.f32 %v3294, 0.5
        %v3327 = vadd.f32 %v3295, 0.5
        %v3328 = vadd.f32 %v3296, 0.5
        %v3329 = vadd.f32 %v3297, 0.5
        %v3330 = vadd.f32 %v3298, 0.5
        %v3331 = vadd.f32 %v3299, 0.5
        %v3332 = vadd.f32 %v3300, 0.5
        %v3333 = vadd.f32 %v3301, 0.5
        %v3334 = vadd.f32 %v3302, 0.5
        %v3335 = vadd.f32 %v3303, 0.5
        %v3336 = vadd.f32 %v3304, 0.5
        %v3337 = vadd.f32 %v3305, 0.5
        %v3338 = vadd.f32 %v3306, 0.5
        %v3339 = vadd.f32 %v3307, 0.5
        %v3340 = vadd.f32 %v3308, 0.5
        %v3341 = vmul.f32 %v3087, %v3309
        %v3342 = vmul.f32 %v3090, %v3310
        %v3343 = vmul.f32 %v3095, %v3311
        %v3344 = vmul.f32 %v3098, %v3312
        %v3345 = vmul.f32 %v3103, %v3313
        %v3346 = vmul.f32 %v3106, %v3314
        %v3347 = vmul.f32 %v3111, %v3315
        %v3348 = vmul.f32 %v3114, %v3316
        %v3349 = vmul.f32 %v3119, %v3317
        %v3350 = vmul.f32 %v3122, %v3318
        %v3351 = vmul.f32 %v3127, %v3319
        %v3352 = vmul.f32 %v3130, %v3320
        %v3353 = vmul.f32 %v3135, %v3321
        %v3354 = vmul.f32 %v3138, %v3322
        %v3355 = vmul.f32 %v3143, %v3323
        %v3356 = vmul.f32 %v3146, %v3324
        %v3357 = vmul.f32 %v3151, %v3325
        %v3358 = vmul.f32 %v3154, %v3326
        %v3359 = vmul.f32 %v3159, %v3327
        %v3360 = vmul.f32 %v3162, %v3328
        %v3361 = vmul.f32 %v3167, %v3329
        %v3362 = vmul.f32 %v3170, %v3330
        %v3363 = vmul.f32 %v3175, %v3331
        %v3364 = vmul.f32 %v3178, %v3332
        %v3365 = vmul.f32 %v3183, %v3333
        %v3366 = vmul.f32 %v3186, %v3334
        %v3367 = vmul.f32 %v3191, %v3335
        %v3368 = vmul.f32 %v3194, %v3336
        %v3369 = vmul.f32 %v3199, %v3337
        %v3370 = vmul.f32 %v3202, %v3338
        %v3371 = vmul.f32 %v3207, %v3339
        %v3372 = vmul.f32 %v3210, %v3340
        %v3373 = vsel %vm495, %v3341, -inf
        %3374 = vmax.xlane.f32.xlu0 %v3373
        %v3375 = vpop.xlane.xlu0 %3374
        %v3376 = vsel %vm495, %v3342, -inf
        %3377 = vmax.xlane.f32.xlu0 %v3376
        %v3378 = vpop.xlane.xlu0 %3377
        %v3379 = vsel %vm495, %v3343, -inf
        %3380 = vmax.xlane.f32.xlu0 %v3379
        %v3381 = vpop.xlane.xlu0 %3380
        %v3382 = vsel %vm495, %v3344, -inf
        %3383 = vmax.xlane.f32.xlu0 %v3382
        %v3384 = vpop.xlane.xlu0 %3383
        %v3385 = vsel %vm495, %v3345, -inf
        %3386 = vmax.xlane.f32.xlu0 %v3385
        %v3387 = vpop.xlane.xlu0 %3386
        %v3388 = vsel %vm495, %v3346, -inf
        %3389 = vmax.xlane.f32.xlu0 %v3388
        %v3390 = vpop.xlane.xlu0 %3389
        %v3391 = vsel %vm495, %v3347, -inf
        %3392 = vmax.xlane.f32.xlu0 %v3391
        %v3393 = vpop.xlane.xlu0 %3392
        %v3394 = vsel %vm495, %v3348, -inf
        %3395 = vmax.xlane.f32.xlu0 %v3394
        %v3396 = vpop.xlane.xlu0 %3395
        %v3397 = vsel %vm495, %v3349, -inf
        %3398 = vmax.xlane.f32.xlu0 %v3397
        %v3399 = vpop.xlane.xlu0 %3398
        %v3400 = vsel %vm495, %v3350, -inf
        %3401 = vmax.xlane.f32.xlu0 %v3400
        %v3402 = vpop.xlane.xlu0 %3401
        %v3403 = vsel %vm495, %v3351, -inf
        %3404 = vmax.xlane.f32.xlu0 %v3403
        %v3405 = vpop.xlane.xlu0 %3404
        %v3406 = vsel %vm495, %v3352, -inf
        %3407 = vmax.xlane.f32.xlu0 %v3406
        %v3408 = vpop.xlane.xlu0 %3407
        %v3409 = vsel %vm495, %v3353, -inf
        %3410 = vmax.xlane.f32.xlu0 %v3409
        %v3411 = vpop.xlane.xlu0 %3410
        %v3412 = vsel %vm495, %v3354, -inf
        %3413 = vmax.xlane.f32.xlu0 %v3412
        %v3414 = vpop.xlane.xlu0 %3413
        %v3415 = vsel %vm495, %v3355, -inf
        %3416 = vmax.xlane.f32.xlu0 %v3415
        %v3417 = vpop.xlane.xlu0 %3416
        %v3418 = vsel %vm495, %v3356, -inf
        %3419 = vmax.xlane.f32.xlu0 %v3418
        %v3420 = vpop.xlane.xlu0 %3419
        %v3421 = vsel %vm495, %v3357, -inf
        %3422 = vmax.xlane.f32.xlu0 %v3421
        %v3423 = vpop.xlane.xlu0 %3422
        %v3424 = vsel %vm495, %v3358, -inf
        %3425 = vmax.xlane.f32.xlu0 %v3424
        %v3426 = vpop.xlane.xlu0 %3425
        %v3427 = vsel %vm495, %v3359, -inf
        %3428 = vmax.xlane.f32.xlu0 %v3427
        %v3429 = vpop.xlane.xlu0 %3428
        %v3430 = vsel %vm495, %v3360, -inf
        %3431 = vmax.xlane.f32.xlu0 %v3430
        %v3432 = vpop.xlane.xlu0 %3431
        %v3433 = vsel %vm495, %v3361, -inf
        %3434 = vmax.xlane.f32.xlu0 %v3433
        %v3435 = vpop.xlane.xlu0 %3434
        %v3436 = vsel %vm495, %v3362, -inf
        %3437 = vmax.xlane.f32.xlu0 %v3436
        %v3438 = vpop.xlane.xlu0 %3437
        %v3439 = vsel %vm495, %v3363, -inf
        %3440 = vmax.xlane.f32.xlu0 %v3439
        %v3441 = vpop.xlane.xlu0 %3440
        %v3442 = vsel %vm495, %v3364, -inf
        %3443 = vmax.xlane.f32.xlu0 %v3442
        %v3444 = vpop.xlane.xlu0 %3443
        %v3445 = vsel %vm495, %v3365, -inf
        %3446 = vmax.xlane.f32.xlu0 %v3445
        %v3447 = vpop.xlane.xlu0 %3446
        %v3448 = vsel %vm495, %v3366, -inf
        %3449 = vmax.xlane.f32.xlu0 %v3448
        %v3450 = vpop.xlane.xlu0 %3449
        %v3451 = vsel %vm495, %v3367, -inf
        %3452 = vmax.xlane.f32.xlu0 %v3451
        %v3453 = vpop.xlane.xlu0 %3452
        %v3454 = vsel %vm495, %v3368, -inf
        %3455 = vmax.xlane.f32.xlu0 %v3454
        %v3456 = vpop.xlane.xlu0 %3455
        %v3457 = vsel %vm495, %v3369, -inf
        %3458 = vmax.xlane.f32.xlu0 %v3457
        %v3459 = vpop.xlane.xlu0 %3458
        %v3460 = vsel %vm495, %v3370, -inf
        %3461 = vmax.xlane.f32.xlu0 %v3460
        %v3462 = vpop.xlane.xlu0 %3461
        %v3463 = vsel %vm495, %v3371, -inf
        %3464 = vmax.xlane.f32.xlu0 %v3463
        %v3465 = vpop.xlane.xlu0 %3464
        %v3466 = vsel %vm495, %v3372, -inf
        %3467 = vmax.xlane.f32.xlu0 %v3466
        %v3468 = vpop.xlane.xlu0 %3467
        %v3469 = vsel %vm495, %v3341, 0.0
        %3470 = vadd.xlane.f32.xlu0 %v3469
        %v3471 = vpop.xlane.xlu0 %3470
        %v3472 = vsel %vm495, %v3342, 0.0
        %3473 = vadd.xlane.f32.xlu0 %v3472
        %v3474 = vpop.xlane.xlu0 %3473
        %v3475 = vsel %vm495, %v3343, 0.0
        %3476 = vadd.xlane.f32.xlu0 %v3475
        %v3477 = vpop.xlane.xlu0 %3476
        %v3478 = vsel %vm495, %v3344, 0.0
        %3479 = vadd.xlane.f32.xlu0 %v3478
        %v3480 = vpop.xlane.xlu0 %3479
        %v3481 = vsel %vm495, %v3345, 0.0
        %3482 = vadd.xlane.f32.xlu0 %v3481
        %v3483 = vpop.xlane.xlu0 %3482
        %v3484 = vsel %vm495, %v3346, 0.0
        %3485 = vadd.xlane.f32.xlu0 %v3484
        %v3486 = vpop.xlane.xlu0 %3485
        %v3487 = vsel %vm495, %v3347, 0.0
        %3488 = vadd.xlane.f32.xlu0 %v3487
        %v3489 = vpop.xlane.xlu0 %3488
        %v3490 = vsel %vm495, %v3348, 0.0
        %3491 = vadd.xlane.f32.xlu0 %v3490
        %v3492 = vpop.xlane.xlu0 %3491
        %v3493 = vsel %vm495, %v3349, 0.0
        %3494 = vadd.xlane.f32.xlu0 %v3493
        %v3495 = vpop.xlane.xlu0 %3494
        %v3496 = vsel %vm495, %v3350, 0.0
        %3497 = vadd.xlane.f32.xlu0 %v3496
        %v3498 = vpop.xlane.xlu0 %3497
        %v3499 = vsel %vm495, %v3351, 0.0
        %3500 = vadd.xlane.f32.xlu0 %v3499
        %v3501 = vpop.xlane.xlu0 %3500
        %v3502 = vsel %vm495, %v3352, 0.0
        %3503 = vadd.xlane.f32.xlu0 %v3502
        %v3504 = vpop.xlane.xlu0 %3503
        %v3505 = vsel %vm495, %v3353, 0.0
        %3506 = vadd.xlane.f32.xlu0 %v3505
        %v3507 = vpop.xlane.xlu0 %3506
        %v3508 = vsel %vm495, %v3354, 0.0
        %3509 = vadd.xlane.f32.xlu0 %v3508
        %v3510 = vpop.xlane.xlu0 %3509
        %v3511 = vsel %vm495, %v3355, 0.0
        %3512 = vadd.xlane.f32.xlu0 %v3511
        %v3513 = vpop.xlane.xlu0 %3512
        %v3514 = vsel %vm495, %v3356, 0.0
        %3515 = vadd.xlane.f32.xlu0 %v3514
        %v3516 = vpop.xlane.xlu0 %3515
        %v3517 = vsel %vm495, %v3357, 0.0
        %3518 = vadd.xlane.f32.xlu0 %v3517
        %v3519 = vpop.xlane.xlu0 %3518
        %v3520 = vsel %vm495, %v3358, 0.0
        %3521 = vadd.xlane.f32.xlu0 %v3520
        %v3522 = vpop.xlane.xlu0 %3521
        %v3523 = vsel %vm495, %v3359, 0.0
        %3524 = vadd.xlane.f32.xlu0 %v3523
        %v3525 = vpop.xlane.xlu0 %3524
        %v3526 = vsel %vm495, %v3360, 0.0
        %3527 = vadd.xlane.f32.xlu0 %v3526
        %v3528 = vpop.xlane.xlu0 %3527
        %v3529 = vsel %vm495, %v3361, 0.0
        %3530 = vadd.xlane.f32.xlu0 %v3529
        %v3531 = vpop.xlane.xlu0 %3530
        %v3532 = vsel %vm495, %v3362, 0.0
        %3533 = vadd.xlane.f32.xlu0 %v3532
        %v3534 = vpop.xlane.xlu0 %3533
        %v3535 = vsel %vm495, %v3363, 0.0
        %3536 = vadd.xlane.f32.xlu0 %v3535
        %v3537 = vpop.xlane.xlu0 %3536
        %v3538 = vsel %vm495, %v3364, 0.0
        %3539 = vadd.xlane.f32.xlu0 %v3538
        %v3540 = vpop.xlane.xlu0 %3539
        %v3541 = vsel %vm495, %v3365, 0.0
        %3542 = vadd.xlane.f32.xlu0 %v3541
        %v3543 = vpop.xlane.xlu0 %3542
        %v3544 = vsel %vm495, %v3366, 0.0
        %3545 = vadd.xlane.f32.xlu0 %v3544
        %v3546 = vpop.xlane.xlu0 %3545
        %v3547 = vsel %vm495, %v3367, 0.0
        %3548 = vadd.xlane.f32.xlu0 %v3547
        %v3549 = vpop.xlane.xlu0 %3548
        %v3550 = vsel %vm495, %v3368, 0.0
        %3551 = vadd.xlane.f32.xlu0 %v3550
        %v3552 = vpop.xlane.xlu0 %3551
        %v3553 = vsel %vm495, %v3369, 0.0
        %3554 = vadd.xlane.f32.xlu0 %v3553
        %v3555 = vpop.xlane.xlu0 %3554
        %v3556 = vsel %vm495, %v3370, 0.0
        %3557 = vadd.xlane.f32.xlu0 %v3556
        %v3558 = vpop.xlane.xlu0 %3557
        %v3559 = vsel %vm495, %v3371, 0.0
        %3560 = vadd.xlane.f32.xlu0 %v3559
        %v3561 = vpop.xlane.xlu0 %3560
        %v3562 = vsel %vm495, %v3372, 0.0
        %3563 = vadd.xlane.f32.xlu0 %v3562
        %v3564 = vpop.xlane.xlu0 %3563
        %v3565 = vrcp.pop 8.0
        %v3566 = vmul.f32 %v3471, %v3565
        %v3567 = vmul.f32 %v3474, %v3565
        %v3568 = vmul.f32 %v3477, %v3565
        %v3569 = vmul.f32 %v3480, %v3565
        %v3570 = vmul.f32 %v3483, %v3565
        %v3571 = vmul.f32 %v3486, %v3565
        %v3572 = vmul.f32 %v3489, %v3565
        %v3573 = vmul.f32 %v3492, %v3565
        %v3574 = vmul.f32 %v3495, %v3565
        %v3575 = vmul.f32 %v3498, %v3565
        %v3576 = vmul.f32 %v3501, %v3565
        %v3577 = vmul.f32 %v3504, %v3565
        %v3578 = vmul.f32 %v3507, %v3565
        %v3579 = vmul.f32 %v3510, %v3565
        %v3580 = vmul.f32 %v3513, %v3565
        %v3581 = vmul.f32 %v3516, %v3565
        %v3582 = vmul.f32 %v3519, %v3565
        %v3583 = vmul.f32 %v3522, %v3565
        %v3584 = vmul.f32 %v3525, %v3565
        %v3585 = vmul.f32 %v3528, %v3565
        %v3586 = vmul.f32 %v3531, %v3565
        %v3587 = vmul.f32 %v3534, %v3565
        %v3588 = vmul.f32 %v3537, %v3565
        %v3589 = vmul.f32 %v3540, %v3565
        %v3590 = vmul.f32 %v3543, %v3565
        %v3591 = vmul.f32 %v3546, %v3565
        %v3592 = vmul.f32 %v3549, %v3565
        %v3593 = vmul.f32 %v3552, %v3565
        %v3594 = vmul.f32 %v3555, %v3565
        %v3595 = vmul.f32 %v3558, %v3565
        %v3596 = vmul.f32 %v3561, %v3565
        %v3597 = vmul.f32 %v3564, %v3565
        %s3598 = sld [smem:[#allocation2]]
        %v3631 = vlaneseq
        %v3632 = vand.u32 %v3631, 127
        %v3633 = vlaneseq
        %v3634 = vshrl.u32 %v3633, 7
        %v3635 = vsub.s32 %v3632, %v3634
        %v3636 = vrot.slane %v3375, %v3635
        %v3637 = vadd.s32 %v3632, 4294967288
        %v3638 = vlaneseq
        %v3639 = vshrl.u32 %v3638, 7
        %v3640 = vsub.s32 %v3637, %v3639
        %v3641 = vrot.slane %v3378, %v3640
        %vm3642 = vcmask 130112
        %v3643 = vsel %vm3642, %v3641, %v3636
        %v3644 = vlaneseq
        %v3645 = vshrl.u32 %v3644, 7
        %v3646 = vsub.s32 %v3632, %v3645
        %v3647 = vrot.slane %v3381, %v3646
        %v3648 = vlaneseq
        %v3649 = vshrl.u32 %v3648, 7
        %v3650 = vsub.s32 %v3637, %v3649
        %v3651 = vrot.slane %v3384, %v3650
        %v3652 = vsel %vm3642, %v3651, %v3647
        %v3653 = vlaneseq
        %v3654 = vshrl.u32 %v3653, 7
        %v3655 = vsub.s32 %v3632, %v3654
        %v3656 = vrot.slane %v3387, %v3655
        %v3657 = vlaneseq
        %v3658 = vshrl.u32 %v3657, 7
        %v3659 = vsub.s32 %v3637, %v3658
        %v3660 = vrot.slane %v3390, %v3659
        %v3661 = vsel %vm3642, %v3660, %v3656
        %v3662 = vlaneseq
        %v3663 = vshrl.u32 %v3662, 7
        %v3664 = vsub.s32 %v3632, %v3663
        %v3665 = vrot.slane %v3393, %v3664
        %v3666 = vlaneseq
        %v3667 = vshrl.u32 %v3666, 7
        %v3668 = vsub.s32 %v3637, %v3667
        %v3669 = vrot.slane %v3396, %v3668
        %v3670 = vsel %vm3642, %v3669, %v3665
        %v3671 = vlaneseq
        %v3672 = vshrl.u32 %v3671, 7
        %v3673 = vsub.s32 %v3632, %v3672
        %v3674 = vrot.slane %v3399, %v3673
        %v3675 = vlaneseq
        %v3676 = vshrl.u32 %v3675, 7
        %v3677 = vsub.s32 %v3637, %v3676
        %v3678 = vrot.slane %v3402, %v3677
        %v3679 = vsel %vm3642, %v3678, %v3674
        %v3680 = vlaneseq
        %v3681 = vshrl.u32 %v3680, 7
        %v3682 = vsub.s32 %v3632, %v3681
        %v3683 = vrot.slane %v3405, %v3682
        %v3684 = vlaneseq
        %v3685 = vshrl.u32 %v3684, 7
        %v3686 = vsub.s32 %v3637, %v3685
        %v3687 = vrot.slane %v3408, %v3686
        %v3688 = vsel %vm3642, %v3687, %v3683
        %v3689 = vlaneseq
        %v3690 = vshrl.u32 %v3689, 7
        %v3691 = vsub.s32 %v3632, %v3690
        %v3692 = vrot.slane %v3411, %v3691
        %v3693 = vlaneseq
        %v3694 = vshrl.u32 %v3693, 7
        %v3695 = vsub.s32 %v3637, %v3694
        %v3696 = vrot.slane %v3414, %v3695
        %v3697 = vsel %vm3642, %v3696, %v3692
        %v3698 = vlaneseq
        %v3699 = vshrl.u32 %v3698, 7
        %v3700 = vsub.s32 %v3632, %v3699
        %v3701 = vrot.slane %v3417, %v3700
        %v3702 = vlaneseq
        %v3703 = vshrl.u32 %v3702, 7
        %v3704 = vsub.s32 %v3637, %v3703
        %v3705 = vrot.slane %v3420, %v3704
        %v3706 = vsel %vm3642, %v3705, %v3701
        %v3707 = vlaneseq
        %v3708 = vshrl.u32 %v3707, 7
        %v3709 = vsub.s32 %v3632, %v3708
        %v3710 = vrot.slane %v3423, %v3709
        %v3711 = vlaneseq
        %v3712 = vshrl.u32 %v3711, 7
        %v3713 = vsub.s32 %v3637, %v3712
        %v3714 = vrot.slane %v3426, %v3713
        %v3715 = vsel %vm3642, %v3714, %v3710
        %v3716 = vlaneseq
        %v3717 = vshrl.u32 %v3716, 7
        %v3718 = vsub.s32 %v3632, %v3717
        %v3719 = vrot.slane %v3429, %v3718
        %v3720 = vlaneseq
        %v3721 = vshrl.u32 %v3720, 7
        %v3722 = vsub.s32 %v3637, %v3721
        %v3723 = vrot.slane %v3432, %v3722
        %v3724 = vsel %vm3642, %v3723, %v3719
        %v3725 = vlaneseq
        %v3726 = vshrl.u32 %v3725, 7
        %v3727 = vsub.s32 %v3632, %v3726
        %v3728 = vrot.slane %v3435, %v3727
        %v3729 = vlaneseq
        %v3730 = vshrl.u32 %v3729, 7
        %v3731 = vsub.s32 %v3637, %v3730
        %v3732 = vrot.slane %v3438, %v3731
        %v3733 = vsel %vm3642, %v3732, %v3728
        %v3734 = vlaneseq
        %v3735 = vshrl.u32 %v3734, 7
        %v3736 = vsub.s32 %v3632, %v3735
        %v3737 = vrot.slane %v3441, %v3736
        %v3738 = vlaneseq
        %v3739 = vshrl.u32 %v3738, 7
        %v3740 = vsub.s32 %v3637, %v3739
        %v3741 = vrot.slane %v3444, %v3740
        %v3742 = vsel %vm3642, %v3741, %v3737
        %v3743 = vlaneseq
        %v3744 = vshrl.u32 %v3743, 7
        %v3745 = vsub.s32 %v3632, %v3744
        %v3746 = vrot.slane %v3447, %v3745
        %v3747 = vlaneseq
        %v3748 = vshrl.u32 %v3747, 7
        %v3749 = vsub.s32 %v3637, %v3748
        %v3750 = vrot.slane %v3450, %v3749
        %v3751 = vsel %vm3642, %v3750, %v3746
        %v3752 = vlaneseq
        %v3753 = vshrl.u32 %v3752, 7
        %v3754 = vsub.s32 %v3632, %v3753
        %v3755 = vrot.slane %v3453, %v3754
        %v3756 = vlaneseq
        %v3757 = vshrl.u32 %v3756, 7
        %v3758 = vsub.s32 %v3637, %v3757
        %v3759 = vrot.slane %v3456, %v3758
        %v3760 = vsel %vm3642, %v3759, %v3755
        %v3761 = vlaneseq
        %v3762 = vshrl.u32 %v3761, 7
        %v3763 = vsub.s32 %v3632, %v3762
        %v3764 = vrot.slane %v3459, %v3763
        %v3765 = vlaneseq
        %v3766 = vshrl.u32 %v3765, 7
        %v3767 = vsub.s32 %v3637, %v3766
        %v3768 = vrot.slane %v3462, %v3767
        %v3769 = vsel %vm3642, %v3768, %v3764
        %v3770 = vlaneseq
        %v3771 = vshrl.u32 %v3770, 7
        %v3772 = vsub.s32 %v3632, %v3771
        %v3773 = vrot.slane %v3465, %v3772
        %v3774 = vlaneseq
        %v3775 = vshrl.u32 %v3774, 7
        %v3776 = vsub.s32 %v3637, %v3775
        %v3777 = vrot.slane %v3468, %v3776
        %v3778 = vsel %vm3642, %v3777, %v3773
        %vm3779 = vcmask 1041409
        %v3780 = vsel %vm3779, %v3652, %v3643
        %vm3781 = vcmask 1042434
        %v3782 = vsel %vm3781, %v3661, %v3780
        %vm3783 = vcmask 1043459
        %v3784 = vsel %vm3783, %v3670, %v3782
        %vm3785 = vcmask 1044484
        %v3786 = vsel %vm3785, %v3679, %v3784
        %vm3787 = vcmask 1045509
        %v3788 = vsel %vm3787, %v3688, %v3786
        %vm3789 = vcmask 1046534
        %v3790 = vsel %vm3789, %v3697, %v3788
        %vm3791 = vcmask 1047559
        %v3792 = vsel %vm3791, %v3706, %v3790
        %v3793 = vsel %vm3779, %v3724, %v3715
        %v3794 = vsel %vm3781, %v3733, %v3793
        %v3795 = vsel %vm3783, %v3742, %v3794
        %v3796 = vsel %vm3785, %v3751, %v3795
        %v3797 = vsel %vm3787, %v3760, %v3796
        %v3798 = vsel %vm3789, %v3769, %v3797
        %v3799 = vsel %vm3791, %v3778, %v3798
        %v3834 = vadd.s32 %v3632, 4294967280
        %v3835 = vlaneseq
        %v3836 = vshrl.u32 %v3835, 7
        %v3837 = vsub.s32 %v3834, %v3836
        %v3838 = vrot.slane %v3566, %v3837
        %v3839 = vadd.s32 %v3632, 4294967272
        %v3840 = vlaneseq
        %v3841 = vshrl.u32 %v3840, 7
        %v3842 = vsub.s32 %v3839, %v3841
        %v3843 = vrot.slane %v3567, %v3842
        %vm3844 = vcmask 261312
        %v3845 = vsel %vm3844, %v3843, %v3838
        %v3846 = vlaneseq
        %v3847 = vshrl.u32 %v3846, 7
        %v3848 = vsub.s32 %v3834, %v3847
        %v3849 = vrot.slane %v3568, %v3848
        %v3850 = vlaneseq
        %v3851 = vshrl.u32 %v3850, 7
        %v3852 = vsub.s32 %v3839, %v3851
        %v3853 = vrot.slane %v3569, %v3852
        %v3854 = vsel %vm3844, %v3853, %v3849
        %v3855 = vlaneseq
        %v3856 = vshrl.u32 %v3855, 7
        %v3857 = vsub.s32 %v3834, %v3856
        %v3858 = vrot.slane %v3570, %v3857
        %v3859 = vlaneseq
        %v3860 = vshrl.u32 %v3859, 7
        %v3861 = vsub.s32 %v3839, %v3860
        %v3862 = vrot.slane %v3571, %v3861
        %v3863 = vsel %vm3844, %v3862, %v3858
        %v3864 = vlaneseq
        %v3865 = vshrl.u32 %v3864, 7
        %v3866 = vsub.s32 %v3834, %v3865
        %v3867 = vrot.slane %v3572, %v3866
        %v3868 = vlaneseq
        %v3869 = vshrl.u32 %v3868, 7
        %v3870 = vsub.s32 %v3839, %v3869
        %v3871 = vrot.slane %v3573, %v3870
        %v3872 = vsel %vm3844, %v3871, %v3867
        %v3873 = vlaneseq
        %v3874 = vshrl.u32 %v3873, 7
        %v3875 = vsub.s32 %v3834, %v3874
        %v3876 = vrot.slane %v3574, %v3875
        %v3877 = vlaneseq
        %v3878 = vshrl.u32 %v3877, 7
        %v3879 = vsub.s32 %v3839, %v3878
        %v3880 = vrot.slane %v3575, %v3879
        %v3881 = vsel %vm3844, %v3880, %v3876
        %v3882 = vlaneseq
        %v3883 = vshrl.u32 %v3882, 7
        %v3884 = vsub.s32 %v3834, %v3883
        %v3885 = vrot.slane %v3576, %v3884
        %v3886 = vlaneseq
        %v3887 = vshrl.u32 %v3886, 7
        %v3888 = vsub.s32 %v3839, %v3887
        %v3889 = vrot.slane %v3577, %v3888
        %v3890 = vsel %vm3844, %v3889, %v3885
        %v3891 = vlaneseq
        %v3892 = vshrl.u32 %v3891, 7
        %v3893 = vsub.s32 %v3834, %v3892
        %v3894 = vrot.slane %v3578, %v3893
        %v3895 = vlaneseq
        %v3896 = vshrl.u32 %v3895, 7
        %v3897 = vsub.s32 %v3839, %v3896
        %v3898 = vrot.slane %v3579, %v3897
        %v3899 = vsel %vm3844, %v3898, %v3894
        %v3900 = vlaneseq
        %v3901 = vshrl.u32 %v3900, 7
        %v3902 = vsub.s32 %v3834, %v3901
        %v3903 = vrot.slane %v3580, %v3902
        %v3904 = vlaneseq
        %v3905 = vshrl.u32 %v3904, 7
        %v3906 = vsub.s32 %v3839, %v3905
        %v3907 = vrot.slane %v3581, %v3906
        %v3908 = vsel %vm3844, %v3907, %v3903
        %v3909 = vlaneseq
        %v3910 = vshrl.u32 %v3909, 7
        %v3911 = vsub.s32 %v3834, %v3910
        %v3912 = vrot.slane %v3582, %v3911
        %v3913 = vlaneseq
        %v3914 = vshrl.u32 %v3913, 7
        %v3915 = vsub.s32 %v3839, %v3914
        %v3916 = vrot.slane %v3583, %v3915
        %v3917 = vsel %vm3844, %v3916, %v3912
        %v3918 = vlaneseq
        %v3919 = vshrl.u32 %v3918, 7
        %v3920 = vsub.s32 %v3834, %v3919
        %v3921 = vrot.slane %v3584, %v3920
        %v3922 = vlaneseq
        %v3923 = vshrl.u32 %v3922, 7
        %v3924 = vsub.s32 %v3839, %v3923
        %v3925 = vrot.slane %v3585, %v3924
        %v3926 = vsel %vm3844, %v3925, %v3921
        %v3927 = vlaneseq
        %v3928 = vshrl.u32 %v3927, 7
        %v3929 = vsub.s32 %v3834, %v3928
        %v3930 = vrot.slane %v3586, %v3929
        %v3931 = vlaneseq
        %v3932 = vshrl.u32 %v3931, 7
        %v3933 = vsub.s32 %v3839, %v3932
        %v3934 = vrot.slane %v3587, %v3933
        %v3935 = vsel %vm3844, %v3934, %v3930
        %v3936 = vlaneseq
        %v3937 = vshrl.u32 %v3936, 7
        %v3938 = vsub.s32 %v3834, %v3937
        %v3939 = vrot.slane %v3588, %v3938
        %v3940 = vlaneseq
        %v3941 = vshrl.u32 %v3940, 7
        %v3942 = vsub.s32 %v3839, %v3941
        %v3943 = vrot.slane %v3589, %v3942
        %v3944 = vsel %vm3844, %v3943, %v3939
        %v3945 = vlaneseq
        %v3946 = vshrl.u32 %v3945, 7
        %v3947 = vsub.s32 %v3834, %v3946
        %v3948 = vrot.slane %v3590, %v3947
        %v3949 = vlaneseq
        %v3950 = vshrl.u32 %v3949, 7
        %v3951 = vsub.s32 %v3839, %v3950
        %v3952 = vrot.slane %v3591, %v3951
        %v3953 = vsel %vm3844, %v3952, %v3948
        %v3954 = vlaneseq
        %v3955 = vshrl.u32 %v3954, 7
        %v3956 = vsub.s32 %v3834, %v3955
        %v3957 = vrot.slane %v3592, %v3956
        %v3958 = vlaneseq
        %v3959 = vshrl.u32 %v3958, 7
        %v3960 = vsub.s32 %v3839, %v3959
        %v3961 = vrot.slane %v3593, %v3960
        %v3962 = vsel %vm3844, %v3961, %v3957
        %v3963 = vlaneseq
        %v3964 = vshrl.u32 %v3963, 7
        %v3965 = vsub.s32 %v3834, %v3964
        %v3966 = vrot.slane %v3594, %v3965
        %v3967 = vlaneseq
        %v3968 = vshrl.u32 %v3967, 7
        %v3969 = vsub.s32 %v3839, %v3968
        %v3970 = vrot.slane %v3595, %v3969
        %v3971 = vsel %vm3844, %v3970, %v3966
        %v3972 = vlaneseq
        %v3973 = vshrl.u32 %v3972, 7
        %v3974 = vsub.s32 %v3834, %v3973
        %v3975 = vrot.slane %v3596, %v3974
        %v3976 = vlaneseq
        %v3977 = vshrl.u32 %v3976, 7
        %v3978 = vsub.s32 %v3839, %v3977
        %v3979 = vrot.slane %v3597, %v3978
        %v3980 = vsel %vm3844, %v3979, %v3975
        %v3981 = vsel %vm3779, %v3854, %v3845
        %v3982 = vsel %vm3781, %v3863, %v3981
        %v3983 = vsel %vm3783, %v3872, %v3982
        %v3984 = vsel %vm3785, %v3881, %v3983
        %v3985 = vsel %vm3787, %v3890, %v3984
        %v3986 = vsel %vm3789, %v3899, %v3985
        %v3987 = vsel %vm3791, %v3908, %v3986
        %v3988 = vsel %vm3779, %v3926, %v3917
        %v3989 = vsel %vm3781, %v3935, %v3988
        %v3990 = vsel %vm3783, %v3944, %v3989
        %v3991 = vsel %vm3785, %v3953, %v3990
        %v3992 = vsel %vm3787, %v3962, %v3991
        %v3993 = vsel %vm3789, %v3971, %v3992
        %v3994 = vsel %vm3791, %v3980, %v3993
        %v3997 = vsel %vm2823, %v3792, %v3987
        %v3998 = vsel %vm2823, %v3799, %v3994
        %v3999 = vpack.c.bf16 %v3998, %v3997
        %v4000 = vld [vmem:[%s6] sm:$0xf]
        %v4001 = vld [vmem:[%s6 + $0x4] sm:$0xf]
        %v4002 = vld [vmem:[%s6 + $0x8] sm:$0xf]
        %v4003 = vld [vmem:[%s6 + $0xc] sm:$0xf]
        %v4008 = vunpack.c.l.b16 %v4000
        %v4009 = vunpack.c.l.b16 %v4001
        %v4010 = vunpack.c.l.b16 %v4002
        %v4011 = vunpack.c.l.b16 %v4003
        %v4012 = vpack.c.b16 %v4009, %v4008
        %v4013 = vpack.c.b16 %v4011, %v4010
        %v4017 = vsel %vm2955, %v3999, 0
        %4019 = vmatprep.subr.bf16.mxu0 0
        %4020 = vmatpush1.bf16.msra.mxu0 %v4012
        %4021 = vmatprep.subr.bf16.mxu0 0
        %4022 = vmatpush1.bf16.msra.mxu0 %v4013
        %4023 = vmatprep.subr.bf16.mxu0 0
        %4024 = vmatpush1.bf16.msra.mxu0 0
        %4025 = vmatprep.subr.bf16.mxu0 0
        %4026 = vmatpush1.bf16.msra.mxu0 0
        %4027 = vmatprep.subr.bf16.mxu0 0
        %4028 = vmatpush1.bf16.msra.mxu0 0
        %4029 = vmatprep.subr.bf16.mxu0 0
        %4030 = vmatpush1.bf16.msra.mxu0 0
        %4031 = vmatprep.subr.bf16.mxu0 0
        %4032 = vmatpush1.bf16.msra.mxu0 0
        %4033 = vmatprep.subr.bf16.mxu0 0
        %4034 = vmatpush1.bf16.msra.mxu0 0
        %4035 = vmatprep.subr.bf16.mxu0 0
        %4036 = vmatpush1.bf16.msra.mxu0 0
        %4037 = vmatprep.subr.bf16.mxu0 0
        %4038 = vmatpush1.bf16.msra.mxu0 0
        %4039 = vmatprep.subr.bf16.mxu0 0
        %4040 = vmatpush1.bf16.msra.mxu0 0
        %4041 = vmatprep.subr.bf16.mxu0 0
        %4042 = vmatpush1.bf16.msra.mxu0 0
        %4043 = vmatprep.subr.bf16.mxu0 0
        %4044 = vmatpush1.bf16.msra.mxu0 0
        %4045 = vmatprep.subr.bf16.mxu0 0
        %4046 = vmatpush1.bf16.msra.mxu0 0
        %4047 = vmatprep.subr.bf16.mxu0 0
        %4048 = vmatpush1.bf16.msra.mxu0 0
        %4049 = vmatprep.subr.bf16.mxu0 0
        %4050 = vmatpush1.bf16.msra.mxu0 0
        %4051 = vmatprep.mubr.bf16.mxu0 0
        %4052 = vmatmul.mubr.bf16.gmra.mrb[0].mxu0 %v4017
        %v4053 = vpop.f32.mrb[0].mxu0
        %v4054 = vadd.f32 0.0, %v4053
        %v4055 = vpop.f32.mrb[0].mxu0
        %v4056 = vpop.f32.mrb[0].mxu0
        %v4057 = vadd.f32 0.0, %v4056
        %v4058 = vpop.f32.mrb[0].mxu0
        %4059 = vdwg.mxu0
        %vm4062 = vcmask 1042432
        %v4063 = vrot.slane %v4054, 5
        %v4064 = vrot.slane %v4057, 5
        %v4065 = vsel %vm4062, %v4063, %v4064
        %v4069 = vsel %vm4062, 0.0, %v4063
        %v4070 = vsel %vm4062, %v4064, 0.0
        %v4071 = vstv %s3598
        %v4072 = vadd.f32 %v4071, 0.0
        %v4073 = vadd.f32 %v4072, %v4069
        %v4074 = vadd.f32 %v4072, %v4065
        %vm4077 = vcmask 1046528
        %v4078 = vrot.slane %v4069, 1
        %v4079 = vrot.slane %v4065, 1
        %v4080 = vsel %vm4077, %v4078, %v4079
        %v4081 = vrot.slane %v4070, 1
        %v4082 = vsel %vm4077, %v4079, %v4081
        %4083 = vrot.lane.b32.xlu0 %v4080, 112
        %v4084 = vpop.permute.xlu0 %4083
        %4085 = vrot.lane.b32.xlu0 %v4082, 112
        %v4086 = vpop.permute.xlu0 %4085
        %v4089 = vadd.f32 %v4073, %v4084
        %v4090 = vadd.f32 %v4074, %v4086
        %vm4091 = vcmask 1045504
        %v4092 = vrot.slane %v4069, 2
        %v4093 = vrot.slane %v4065, 2
        %v4094 = vsel %vm4091, %v4092, %v4093
        %v4095 = vrot.slane %v4070, 2
        %v4096 = vsel %vm4091, %v4093, %v4095
        %4097 = vrot.lane.b32.xlu0 %v4094, 96
        %v4098 = vpop.permute.xlu0 %4097
        %4099 = vrot.lane.b32.xlu0 %v4096, 96
        %v4100 = vpop.permute.xlu0 %4099
        %v4103 = vadd.f32 %v4089, %v4098
        %v4104 = vadd.f32 %v4090, %v4100
        %vm4105 = vcmask 1044480
        %v4106 = vrot.slane %v4069, 3
        %v4107 = vrot.slane %v4065, 3
        %v4108 = vsel %vm4105, %v4106, %v4107
        %v4109 = vrot.slane %v4070, 3
        %v4110 = vsel %vm4105, %v4107, %v4109
        %4111 = vrot.lane.b32.xlu0 %v4108, 80
        %v4112 = vpop.permute.xlu0 %4111
        %4113 = vrot.lane.b32.xlu0 %v4110, 80
        %v4114 = vpop.permute.xlu0 %4113
        %v4117 = vadd.f32 %v4103, %v4112
        %v4118 = vadd.f32 %v4104, %v4114
        %v4119 = vrot.slane %v4069, 4
        %v4120 = vrot.slane %v4065, 4
        %v4121 = vsel %vm544, %v4119, %v4120
        %v4122 = vrot.slane %v4070, 4
        %v4123 = vsel %vm544, %v4120, %v4122
        %4124 = vrot.lane.b32.xlu0 %v4121, 64
        %v4125 = vpop.permute.xlu0 %4124
        %4126 = vrot.lane.b32.xlu0 %v4123, 64
        %v4127 = vpop.permute.xlu0 %4126
        %v4130 = vadd.f32 %v4117, %v4125
        %v4131 = vadd.f32 %v4118, %v4127
        %v4132 = vrot.slane %v4069, 5
        %v4133 = vrot.slane %v4065, 5
        %v4134 = vsel %vm4062, %v4132, %v4133
        %v4135 = vrot.slane %v4070, 5
        %v4136 = vsel %vm4062, %v4133, %v4135
        %4137 = vrot.lane.b32.xlu0 %v4134, 48
        %v4138 = vpop.permute.xlu0 %4137
        %4139 = vrot.lane.b32.xlu0 %v4136, 48
        %v4140 = vpop.permute.xlu0 %4139
        %v4143 = vadd.f32 %v4130, %v4138
        %v4144 = vadd.f32 %v4131, %v4140
        %v4145 = vrot.slane %v4069, 6
        %v4146 = vrot.slane %v4065, 6
        %v4147 = vsel %vm3048, %v4145, %v4146
        %v4148 = vrot.slane %v4070, 6
        %v4149 = vsel %vm3048, %v4146, %v4148
        %4150 = vrot.lane.b32.xlu0 %v4147, 32
        %v4151 = vpop.permute.xlu0 %4150
        %4152 = vrot.lane.b32.xlu0 %v4149, 32
        %v4153 = vpop.permute.xlu0 %4152
        %v4156 = vadd.f32 %v4143, %v4151
        %v4157 = vadd.f32 %v4144, %v4153
        %v4158 = vmul.f32 %v4156, 0.5
        %v4159 = vmul.f32 %v4157, 0.5
        %v4160 = vtanh.pop %v4158
        %v4161 = vtanh.pop %v4159
        %v4162 = vmul.f32 %v4160, 0.5
        %v4163 = vmul.f32 %v4161, 0.5
        %v4164 = vadd.f32 %v4162, 0.5
        %v4165 = vadd.f32 %v4163, 0.5
        %v4166 = vmax.f32 %v3373, %v3385
        %v4167 = vmax.f32 %v3379, %v3391
        %v4168 = vmax.f32 %v4166, %v3397
        %v4169 = vmax.f32 %v4167, %v3403
        %v4170 = vmax.f32 %v4168, %v3409
        %v4171 = vmax.f32 %v4169, %v3415
        %v4172 = vmax.f32 %v4170, %v3421
        %v4173 = vmax.f32 %v4171, %v3427
        %v4174 = vmax.f32 %v4172, %v3433
        %v4175 = vmax.f32 %v4173, %v3439
        %v4176 = vmax.f32 %v4174, %v3445
        %v4177 = vmax.f32 %v4175, %v3451
        %v4178 = vmax.f32 %v4176, %v3457
        %v4179 = vmax.f32 %v4177, %v3463
        %v4180 = vmax.f32 %v4178, %v4179
        %v4181 = vmax.f32 %v3376, %v3388
        %v4182 = vmax.f32 %v3382, %v3394
        %v4183 = vmax.f32 %v4181, %v3400
        %v4184 = vmax.f32 %v4182, %v3406
        %v4185 = vmax.f32 %v4183, %v3412
        %v4186 = vmax.f32 %v4184, %v3418
        %v4187 = vmax.f32 %v4185, %v3424
        %v4188 = vmax.f32 %v4186, %v3430
        %v4189 = vmax.f32 %v4187, %v3436
        %v4190 = vmax.f32 %v4188, %v3442
        %v4191 = vmax.f32 %v4189, %v3448
        %v4192 = vmax.f32 %v4190, %v3454
        %v4193 = vmax.f32 %v4191, %v3460
        %v4194 = vmax.f32 %v4192, %v3466
        %v4195 = vmax.f32 %v4193, %v4194
        %v4196 = vadd.f32 %v3469, %v3475
        %v4197 = vadd.f32 %v4196, %v3481
        %v4198 = vadd.f32 %v4197, %v3487
        %v4199 = vadd.f32 %v4198, %v3493
        %v4200 = vadd.f32 %v4199, %v3499
        %v4201 = vadd.f32 %v4200, %v3505
        %v4202 = vadd.f32 %v4201, %v3511
        %v4203 = vadd.f32 %v4202, %v3517
        %v4204 = vadd.f32 %v4203, %v3523
        %v4205 = vadd.f32 %v4204, %v3529
        %v4206 = vadd.f32 %v4205, %v3535
        %v4207 = vadd.f32 %v4206, %v3541
        %v4208 = vadd.f32 %v4207, %v3547
        %v4209 = vadd.f32 %v4208, %v3553
        %v4210 = vadd.f32 %v4209, %v3559
        %v4211 = vadd.f32 %v3472, %v3478
        %v4212 = vadd.f32 %v4211, %v3484
        %v4213 = vadd.f32 %v4212, %v3490
        %v4214 = vadd.f32 %v4213, %v3496
        %v4215 = vadd.f32 %v4214, %v3502
        %v4216 = vadd.f32 %v4215, %v3508
        %v4217 = vadd.f32 %v4216, %v3514
        %v4218 = vadd.f32 %v4217, %v3520
        %v4219 = vadd.f32 %v4218, %v3526
        %v4220 = vadd.f32 %v4219, %v3532
        %v4221 = vadd.f32 %v4220, %v3538
        %v4222 = vadd.f32 %v4221, %v3544
        %v4223 = vadd.f32 %v4222, %v3550
        %v4224 = vadd.f32 %v4223, %v3556
        %v4225 = vadd.f32 %v4224, %v3562
        %v4226 = vrcp.pop 16.0
        %v4227 = vmul.f32 %v4210, %v4226
        %v4228 = vmul.f32 %v4225, %v4226
        %s4229 = sld [smem:[#allocation2 + $0x1]]
        %4232 = vrot.lane.b32.xlu0 %v4227, 8
        %v4233 = vpop.permute.xlu0 %4232
        %4234 = vrot.lane.b32.xlu0 %v4228, 8
        %v4235 = vpop.permute.xlu0 %4234
        %v4238 = vsel %vm495, %v4180, %v4233
        %v4239 = vsel %vm495, %v4195, %v4235
        %v4240 = vpack.c.bf16 %v4239, %v4238
        %v4241 = vld [vmem:[%s7] sm:$0xf]
        %v4242 = vld [vmem:[%s7 + $0x4] sm:$0xf]
        %v4245 = vunpack.c.l.b16 %v4241
        %v4246 = vunpack.c.l.b16 %v4242
        %v4247 = vpack.c.b16 %v4246, %v4245
        %v4250 = vsel %vm2823, %v4240, 0
        %4252 = vmatprep.subr.bf16.mxu0 0
        %4253 = vmatpush1.bf16.msra.mxu0 %v4247
        %4254 = vmatprep.subr.bf16.mxu0 0
        %4255 = vmatpush1.bf16.msra.mxu0 0
        %4256 = vmatprep.subr.bf16.mxu0 0
        %4257 = vmatpush1.bf16.msra.mxu0 0
        %4258 = vmatprep.subr.bf16.mxu0 0
        %4259 = vmatpush1.bf16.msra.mxu0 0
        %4260 = vmatprep.subr.bf16.mxu0 0
        %4261 = vmatpush1.bf16.msra.mxu0 0
        %4262 = vmatprep.subr.bf16.mxu0 0
        %4263 = vmatpush1.bf16.msra.mxu0 0
        %4264 = vmatprep.subr.bf16.mxu0 0
        %4265 = vmatpush1.bf16.msra.mxu0 0
        %4266 = vmatprep.subr.bf16.mxu0 0
        %4267 = vmatpush1.bf16.msra.mxu0 0
        %4268 = vmatprep.subr.bf16.mxu0 0
        %4269 = vmatpush1.bf16.msra.mxu0 0
        %4270 = vmatprep.subr.bf16.mxu0 0
        %4271 = vmatpush1.bf16.msra.mxu0 0
        %4272 = vmatprep.subr.bf16.mxu0 0
        %4273 = vmatpush1.bf16.msra.mxu0 0
        %4274 = vmatprep.subr.bf16.mxu0 0
        %4275 = vmatpush1.bf16.msra.mxu0 0
        %4276 = vmatprep.subr.bf16.mxu0 0
        %4277 = vmatpush1.bf16.msra.mxu0 0
        %4278 = vmatprep.subr.bf16.mxu0 0
        %4279 = vmatpush1.bf16.msra.mxu0 0
        %4280 = vmatprep.subr.bf16.mxu0 0
        %4281 = vmatpush1.bf16.msra.mxu0 0
        %4282 = vmatprep.subr.bf16.mxu0 0
        %4283 = vmatpush1.bf16.msra.mxu0 0
        %4284 = vmatprep.mubr.bf16.mxu0 0
        %4285 = vmatmul.mubr.bf16.gmra.mrb[0].mxu0 %v4250
        %v4286 = vpop.f32.mrb[0].mxu0
        %v4287 = vadd.f32 0.0, %v4286
        %v4288 = vpop.f32.mrb[0].mxu0
        %v4289 = vpop.f32.mrb[0].mxu0
        %v4290 = vadd.f32 0.0, %v4289
        %v4291 = vpop.f32.mrb[0].mxu0
        %4292 = vdwg.mxu0
        %v4295 = vrot.slane %v4287, 5
        %v4296 = vrot.slane %v4290, 5
        %v4297 = vsel %vm4062, %v4295, %v4296
        %v4301 = vsel %vm4062, 0.0, %v4295
        %v4302 = vsel %vm4062, %v4296, 0.0
        %v4303 = vstv %s4229
        %v4304 = vadd.f32 %v4303, 0.0
        %v4305 = vadd.f32 %v4304, %v4301
        %v4306 = vadd.f32 %v4304, %v4297
        %v4309 = vrot.slane %v4301, 1
        %v4310 = vrot.slane %v4297, 1
        %v4311 = vsel %vm4077, %v4309, %v4310
        %v4312 = vrot.slane %v4302, 1
        %v4313 = vsel %vm4077, %v4310, %v4312
        %4314 = vrot.lane.b32.xlu0 %v4311, 120
        %v4315 = vpop.permute.xlu0 %4314
        %4316 = vrot.lane.b32.xlu0 %v4313, 120
        %v4317 = vpop.permute.xlu0 %4316
        %v4320 = vadd.f32 %v4305, %v4315
        %v4321 = vadd.f32 %v4306, %v4317
        %v4322 = vrot.slane %v4301, 2
        %v4323 = vrot.slane %v4297, 2
        %v4324 = vsel %vm4091, %v4322, %v4323
        %v4325 = vrot.slane %v4302, 2
        %v4326 = vsel %vm4091, %v4323, %v4325
        %4327 = vrot.lane.b32.xlu0 %v4324, 112
        %v4328 = vpop.permute.xlu0 %4327
        %4329 = vrot.lane.b32.xlu0 %v4326, 112
        %v4330 = vpop.permute.xlu0 %4329
        %v4333 = vadd.f32 %v4320, %v4328
        %v4334 = vadd.f32 %v4321, %v4330
        %v4335 = vrot.slane %v4301, 3
        %v4336 = vrot.slane %v4297, 3
        %v4337 = vsel %vm4105, %v4335, %v4336
        %v4338 = vrot.slane %v4302, 3
        %v4339 = vsel %vm4105, %v4336, %v4338
        %4340 = vrot.lane.b32.xlu0 %v4337, 104
        %v4341 = vpop.permute.xlu0 %4340
        %4342 = vrot.lane.b32.xlu0 %v4339, 104
        %v4343 = vpop.permute.xlu0 %4342
        %v4346 = vadd.f32 %v4333, %v4341
        %v4347 = vadd.f32 %v4334, %v4343
        %v4348 = vrot.slane %v4301, 4
        %v4349 = vrot.slane %v4297, 4
        %v4350 = vsel %vm544, %v4348, %v4349
        %v4351 = vrot.slane %v4302, 4
        %v4352 = vsel %vm544, %v4349, %v4351
        %4353 = vrot.lane.b32.xlu0 %v4350, 96
        %v4354 = vpop.permute.xlu0 %4353
        %4355 = vrot.lane.b32.xlu0 %v4352, 96
        %v4356 = vpop.permute.xlu0 %4355
        %v4359 = vadd.f32 %v4346, %v4354
        %v4360 = vadd.f32 %v4347, %v4356
        %v4361 = vrot.slane %v4301, 5
        %v4362 = vrot.slane %v4297, 5
        %v4363 = vsel %vm4062, %v4361, %v4362
        %v4364 = vrot.slane %v4302, 5
        %v4365 = vsel %vm4062, %v4362, %v4364
        %4366 = vrot.lane.b32.xlu0 %v4363, 88
        %v4367 = vpop.permute.xlu0 %4366
        %4368 = vrot.lane.b32.xlu0 %v4365, 88
        %v4369 = vpop.permute.xlu0 %4368
        %v4372 = vadd.f32 %v4359, %v4367
        %v4373 = vadd.f32 %v4360, %v4369
        %v4374 = vrot.slane %v4301, 6
        %v4375 = vrot.slane %v4297, 6
        %v4376 = vsel %vm3048, %v4374, %v4375
        %v4377 = vrot.slane %v4302, 6
        %v4378 = vsel %vm3048, %v4375, %v4377
        %4379 = vrot.lane.b32.xlu0 %v4376, 80
        %v4380 = vpop.permute.xlu0 %4379
        %4381 = vrot.lane.b32.xlu0 %v4378, 80
        %v4382 = vpop.permute.xlu0 %4381
        %v4385 = vadd.f32 %v4372, %v4380
        %v4386 = vadd.f32 %v4373, %v4382
        %v4387 = vmul.f32 %v4385, 0.5
        %v4388 = vmul.f32 %v4386, 0.5
        %v4389 = vtanh.pop %v4387
        %v4390 = vtanh.pop %v4388
        %v4391 = vmul.f32 %v4389, 0.5
        %v4392 = vmul.f32 %v4390, 0.5
        %v4393 = vadd.f32 %v4391, 0.5
        %v4394 = vadd.f32 %v4392, 0.5
        %v4395 = vmax.f32 %v3373, %v3376
        %v4396 = vrot.slane %v4395, 4
        %v4397 = vmax.f32 %v4395, %v4396
        %v4398 = vrot.slane %v4397, 2
        %v4399 = vmax.f32 %v4397, %v4398
        %v4400 = vrot.slane %v4399, 1
        %v4401 = vmax.f32 %v4399, %v4400
        %v4402 = vmax.f32 %v3379, %v3382
        %v4403 = vrot.slane %v4402, 4
        %v4404 = vmax.f32 %v4402, %v4403
        %v4405 = vrot.slane %v4404, 2
        %v4406 = vmax.f32 %v4404, %v4405
        %v4407 = vrot.slane %v4406, 1
        %v4408 = vmax.f32 %v4406, %v4407
        %v4409 = vmax.f32 %v3385, %v3388
        %v4410 = vrot.slane %v4409, 4
        %v4411 = vmax.f32 %v4409, %v4410
        %v4412 = vrot.slane %v4411, 2
        %v4413 = vmax.f32 %v4411, %v4412
        %v4414 = vrot.slane %v4413, 1
        %v4415 = vmax.f32 %v4413, %v4414
        %v4416 = vmax.f32 %v3391, %v3394
        %v4417 = vrot.slane %v4416, 4
        %v4418 = vmax.f32 %v4416, %v4417
        %v4419 = vrot.slane %v4418, 2
        %v4420 = vmax.f32 %v4418, %v4419
        %v4421 = vrot.slane %v4420, 1
        %v4422 = vmax.f32 %v4420, %v4421
        %v4423 = vmax.f32 %v3397, %v3400
        %v4424 = vrot.slane %v4423, 4
        %v4425 = vmax.f32 %v4423, %v4424
        %v4426 = vrot.slane %v4425, 2
        %v4427 = vmax.f32 %v4425, %v4426
        %v4428 = vrot.slane %v4427, 1
        %v4429 = vmax.f32 %v4427, %v4428
        %v4430 = vmax.f32 %v3403, %v3406
        %v4431 = vrot.slane %v4430, 4
        %v4432 = vmax.f32 %v4430, %v4431
        %v4433 = vrot.slane %v4432, 2
        %v4434 = vmax.f32 %v4432, %v4433
        %v4435 = vrot.slane %v4434, 1
        %v4436 = vmax.f32 %v4434, %v4435
        %v4437 = vmax.f32 %v3409, %v3412
        %v4438 = vrot.slane %v4437, 4
        %v4439 = vmax.f32 %v4437, %v4438
        %v4440 = vrot.slane %v4439, 2
        %v4441 = vmax.f32 %v4439, %v4440
        %v4442 = vrot.slane %v4441, 1
        %v4443 = vmax.f32 %v4441, %v4442
        %v4444 = vmax.f32 %v3415, %v3418
        %v4445 = vrot.slane %v4444, 4
        %v4446 = vmax.f32 %v4444, %v4445
        %v4447 = vrot.slane %v4446, 2
        %v4448 = vmax.f32 %v4446, %v4447
        %v4449 = vrot.slane %v4448, 1
        %v4450 = vmax.f32 %v4448, %v4449
        %v4451 = vmax.f32 %v3421, %v3424
        %v4452 = vrot.slane %v4451, 4
        %v4453 = vmax.f32 %v4451, %v4452
        %v4454 = vrot.slane %v4453, 2
        %v4455 = vmax.f32 %v4453, %v4454
        %v4456 = vrot.slane %v4455, 1
        %v4457 = vmax.f32 %v4455, %v4456
        %v4458 = vmax.f32 %v3427, %v3430
        %v4459 = vrot.slane %v4458, 4
        %v4460 = vmax.f32 %v4458, %v4459
        %v4461 = vrot.slane %v4460, 2
        %v4462 = vmax.f32 %v4460, %v4461
        %v4463 = vrot.slane %v4462, 1
        %v4464 = vmax.f32 %v4462, %v4463
        %v4465 = vmax.f32 %v3433, %v3436
        %v4466 = vrot.slane %v4465, 4
        %v4467 = vmax.f32 %v4465, %v4466
        %v4468 = vrot.slane %v4467, 2
        %v4469 = vmax.f32 %v4467, %v4468
        %v4470 = vrot.slane %v4469, 1
        %v4471 = vmax.f32 %v4469, %v4470
        %v4472 = vmax.f32 %v3439, %v3442
        %v4473 = vrot.slane %v4472, 4
        %v4474 = vmax.f32 %v4472, %v4473
        %v4475 = vrot.slane %v4474, 2
        %v4476 = vmax.f32 %v4474, %v4475
        %v4477 = vrot.slane %v4476, 1
        %v4478 = vmax.f32 %v4476, %v4477
        %v4479 = vmax.f32 %v3445, %v3448
        %v4480 = vrot.slane %v4479, 4
        %v4481 = vmax.f32 %v4479, %v4480
        %v4482 = vrot.slane %v4481, 2
        %v4483 = vmax.f32 %v4481, %v4482
        %v4484 = vrot.slane %v4483, 1
        %v4485 = vmax.f32 %v4483, %v4484
        %v4486 = vmax.f32 %v3451, %v3454
        %v4487 = vrot.slane %v4486, 4
        %v4488 = vmax.f32 %v4486, %v4487
        %v4489 = vrot.slane %v4488, 2
        %v4490 = vmax.f32 %v4488, %v4489
        %v4491 = vrot.slane %v4490, 1
        %v4492 = vmax.f32 %v4490, %v4491
        %v4493 = vmax.f32 %v3457, %v3460
        %v4494 = vrot.slane %v4493, 4
        %v4495 = vmax.f32 %v4493, %v4494
        %v4496 = vrot.slane %v4495, 2
        %v4497 = vmax.f32 %v4495, %v4496
        %v4498 = vrot.slane %v4497, 1
        %v4499 = vmax.f32 %v4497, %v4498
        %v4500 = vmax.f32 %v3463, %v3466
        %v4501 = vrot.slane %v4500, 4
        %v4502 = vmax.f32 %v4500, %v4501
        %v4503 = vrot.slane %v4502, 2
        %v4504 = vmax.f32 %v4502, %v4503
        %v4505 = vrot.slane %v4504, 1
        %v4506 = vmax.f32 %v4504, %v4505
        %v4507 = vadd.f32 %v3469, %v3472
        %v4508 = vrot.slane %v4507, 4
        %v4509 = vadd.f32 %v4507, %v4508
        %v4510 = vrot.slane %v4509, 2
        %v4511 = vadd.f32 %v4509, %v4510
        %v4512 = vrot.slane %v4511, 1
        %v4513 = vadd.f32 %v4511, %v4512
        %v4514 = vadd.f32 %v3475, %v3478
        %v4515 = vrot.slane %v4514, 4
        %v4516 = vadd.f32 %v4514, %v4515
        %v4517 = vrot.slane %v4516, 2
        %v4518 = vadd.f32 %v4516, %v4517
        %v4519 = vrot.slane %v4518, 1
        %v4520 = vadd.f32 %v4518, %v4519
        %v4521 = vadd.f32 %v3481, %v3484
        %v4522 = vrot.slane %v4521, 4
        %v4523 = vadd.f32 %v4521, %v4522
        %v4524 = vrot.slane %v4523, 2
        %v4525 = vadd.f32 %v4523, %v4524
        %v4526 = vrot.slane %v4525, 1
        %v4527 = vadd.f32 %v4525, %v4526
        %v4528 = vadd.f32 %v3487, %v3490
        %v4529 = vrot.slane %v4528, 4
        %v4530 = vadd.f32 %v4528, %v4529
        %v4531 = vrot.slane %v4530, 2
        %v4532 = vadd.f32 %v4530, %v4531
        %v4533 = vrot.slane %v4532, 1
        %v4534 = vadd.f32 %v4532, %v4533
        %v4535 = vadd.f32 %v3493, %v3496
        %v4536 = vrot.slane %v4535, 4
        %v4537 = vadd.f32 %v4535, %v4536
        %v4538 = vrot.slane %v4537, 2
        %v4539 = vadd.f32 %v4537, %v4538
        %v4540 = vrot.slane %v4539, 1
        %v4541 = vadd.f32 %v4539, %v4540
        %v4542 = vadd.f32 %v3499, %v3502
        %v4543 = vrot.slane %v4542, 4
        %v4544 = vadd.f32 %v4542, %v4543
        %v4545 = vrot.slane %v4544, 2
        %v4546 = vadd.f32 %v4544, %v4545
        %v4547 = vrot.slane %v4546, 1
        %v4548 = vadd.f32 %v4546, %v4547
        %v4549 = vadd.f32 %v3505, %v3508
        %v4550 = vrot.slane %v4549, 4
        %v4551 = vadd.f32 %v4549, %v4550
        %v4552 = vrot.slane %v4551, 2
        %v4553 = vadd.f32 %v4551, %v4552
        %v4554 = vrot.slane %v4553, 1
        %v4555 = vadd.f32 %v4553, %v4554
        %v4556 = vadd.f32 %v3511, %v3514
        %v4557 = vrot.slane %v4556, 4
        %v4558 = vadd.f32 %v4556, %v4557
        %v4559 = vrot.slane %v4558, 2
        %v4560 = vadd.f32 %v4558, %v4559
        %v4561 = vrot.slane %v4560, 1
        %v4562 = vadd.f32 %v4560, %v4561
        %v4563 = vadd.f32 %v3517, %v3520
        %v4564 = vrot.slane %v4563, 4
        %v4565 = vadd.f32 %v4563, %v4564
        %v4566 = vrot.slane %v4565, 2
        %v4567 = vadd.f32 %v4565, %v4566
        %v4568 = vrot.slane %v4567, 1
        %v4569 = vadd.f32 %v4567, %v4568
        %v4570 = vadd.f32 %v3523, %v3526
        %v4571 = vrot.slane %v4570, 4
        %v4572 = vadd.f32 %v4570, %v4571
        %v4573 = vrot.slane %v4572, 2
        %v4574 = vadd.f32 %v4572, %v4573
        %v4575 = vrot.slane %v4574, 1
        %v4576 = vadd.f32 %v4574, %v4575
        %v4577 = vadd.f32 %v3529, %v3532
        %v4578 = vrot.slane %v4577, 4
        %v4579 = vadd.f32 %v4577, %v4578
        %v4580 = vrot.slane %v4579, 2
        %v4581 = vadd.f32 %v4579, %v4580
        %v4582 = vrot.slane %v4581, 1
        %v4583 = vadd.f32 %v4581, %v4582
        %v4584 = vadd.f32 %v3535, %v3538
        %v4585 = vrot.slane %v4584, 4
        %v4586 = vadd.f32 %v4584, %v4585
        %v4587 = vrot.slane %v4586, 2
        %v4588 = vadd.f32 %v4586, %v4587
        %v4589 = vrot.slane %v4588, 1
        %v4590 = vadd.f32 %v4588, %v4589
        %v4591 = vadd.f32 %v3541, %v3544
        %v4592 = vrot.slane %v4591, 4
        %v4593 = vadd.f32 %v4591, %v4592
        %v4594 = vrot.slane %v4593, 2
        %v4595 = vadd.f32 %v4593, %v4594
        %v4596 = vrot.slane %v4595, 1
        %v4597 = vadd.f32 %v4595, %v4596
        %v4598 = vadd.f32 %v3547, %v3550
        %v4599 = vrot.slane %v4598, 4
        %v4600 = vadd.f32 %v4598, %v4599
        %v4601 = vrot.slane %v4600, 2
        %v4602 = vadd.f32 %v4600, %v4601
        %v4603 = vrot.slane %v4602, 1
        %v4604 = vadd.f32 %v4602, %v4603
        %v4605 = vadd.f32 %v3553, %v3556
        %v4606 = vrot.slane %v4605, 4
        %v4607 = vadd.f32 %v4605, %v4606
        %v4608 = vrot.slane %v4607, 2
        %v4609 = vadd.f32 %v4607, %v4608
        %v4610 = vrot.slane %v4609, 1
        %v4611 = vadd.f32 %v4609, %v4610
        %v4612 = vadd.f32 %v3559, %v3562
        %v4613 = vrot.slane %v4612, 4
        %v4614 = vadd.f32 %v4612, %v4613
        %v4615 = vrot.slane %v4614, 2
        %v4616 = vadd.f32 %v4614, %v4615
        %v4617 = vrot.slane %v4616, 1
        %v4618 = vadd.f32 %v4616, %v4617
        %v4619 = vmul.f32 %v4513, %v4226
        %v4620 = vmul.f32 %v4520, %v4226
        %v4621 = vmul.f32 %v4527, %v4226
        %v4622 = vmul.f32 %v4534, %v4226
        %v4623 = vmul.f32 %v4541, %v4226
        %v4624 = vmul.f32 %v4548, %v4226
        %v4625 = vmul.f32 %v4555, %v4226
        %v4626 = vmul.f32 %v4562, %v4226
        %v4627 = vmul.f32 %v4569, %v4226
        %v4628 = vmul.f32 %v4576, %v4226
        %v4629 = vmul.f32 %v4583, %v4226
        %v4630 = vmul.f32 %v4590, %v4226
        %v4631 = vmul.f32 %v4597, %v4226
        %v4632 = vmul.f32 %v4604, %v4226
        %v4633 = vmul.f32 %v4611, %v4226
        %v4634 = vmul.f32 %v4618, %v4226
        %s4635 = sld [smem:[#allocation2 + $0x2]]
        %v4652 = vsel %vm3779, %v4408, %v4401
        %v4653 = vsel %vm3781, %v4415, %v4652
        %v4654 = vsel %vm3783, %v4422, %v4653
        %v4655 = vsel %vm3785, %v4429, %v4654
        %v4656 = vsel %vm3787, %v4436, %v4655
        %v4657 = vsel %vm3789, %v4443, %v4656
        %v4658 = vsel %vm3791, %v4450, %v4657
        %v4659 = vsel %vm3779, %v4464, %v4457
        %v4660 = vsel %vm3781, %v4471, %v4659
        %v4661 = vsel %vm3783, %v4478, %v4660
        %v4662 = vsel %vm3785, %v4485, %v4661
        %v4663 = vsel %vm3787, %v4492, %v4662
        %v4664 = vsel %vm3789, %v4499, %v4663
        %v4665 = vsel %vm3791, %v4506, %v4664
        %v4684 = vsel %vm3779, %v4620, %v4619
        %v4685 = vsel %vm3781, %v4621, %v4684
        %v4686 = vsel %vm3783, %v4622, %v4685
        %v4687 = vsel %vm3785, %v4623, %v4686
        %v4688 = vsel %vm3787, %v4624, %v4687
        %v4689 = vsel %vm3789, %v4625, %v4688
        %v4690 = vsel %vm3791, %v4626, %v4689
        %v4691 = vsel %vm3779, %v4628, %v4627
        %v4692 = vsel %vm3781, %v4629, %v4691
        %v4693 = vsel %vm3783, %v4630, %v4692
        %v4694 = vsel %vm3785, %v4631, %v4693
        %v4695 = vsel %vm3787, %v4632, %v4694
        %v4696 = vsel %vm3789, %v4633, %v4695
        %v4697 = vsel %vm3791, %v4634, %v4696
        %4698 = vrot.lane.b32.xlu0 %v4690, 8
        %v4699 = vpop.permute.xlu0 %4698
        %4700 = vrot.lane.b32.xlu0 %v4697, 8
        %v4701 = vpop.permute.xlu0 %4700
        %v4704 = vsel %vm495, %v4658, %v4699
        %v4705 = vsel %vm495, %v4665, %v4701
        %v4706 = vpack.c.bf16 %v4705, %v4704
        %v4707 = vld [vmem:[%s8] sm:$0xf]
        %v4708 = vld [vmem:[%s8 + $0x4] sm:$0xf]
        %v4711 = vunpack.c.l.b16 %v4707
        %v4712 = vunpack.c.l.b16 %v4708
        %v4713 = vpack.c.b16 %v4712, %v4711
        %v4716 = vsel %vm2823, %v4706, 0
        %4718 = vmatprep.subr.bf16.mxu0 0
        %4719 = vmatpush1.bf16.msra.mxu0 %v4713
        %4720 = vmatprep.subr.bf16.mxu0 0
        %4721 = vmatpush1.bf16.msra.mxu0 0
        %4722 = vmatprep.subr.bf16.mxu0 0
        %4723 = vmatpush1.bf16.msra.mxu0 0
        %4724 = vmatprep.subr.bf16.mxu0 0
        %4725 = vmatpush1.bf16.msra.mxu0 0
        %4726 = vmatprep.subr.bf16.mxu0 0
        %4727 = vmatpush1.bf16.msra.mxu0 0
        %4728 = vmatprep.subr.bf16.mxu0 0
        %4729 = vmatpush1.bf16.msra.mxu0 0
        %4730 = vmatprep.subr.bf16.mxu0 0
        %4731 = vmatpush1.bf16.msra.mxu0 0
        %4732 = vmatprep.subr.bf16.mxu0 0
        %4733 = vmatpush1.bf16.msra.mxu0 0
        %4734 = vmatprep.subr.bf16.mxu0 0
        %4735 = vmatpush1.bf16.msra.mxu0 0
        %4736 = vmatprep.subr.bf16.mxu0 0
        %4737 = vmatpush1.bf16.msra.mxu0 0
        %4738 = vmatprep.subr.bf16.mxu0 0
        %4739 = vmatpush1.bf16.msra.mxu0 0
        %4740 = vmatprep.subr.bf16.mxu0 0
        %4741 = vmatpush1.bf16.msra.mxu0 0
        %4742 = vmatprep.subr.bf16.mxu0 0
        %4743 = vmatpush1.bf16.msra.mxu0 0
        %4744 = vmatprep.subr.bf16.mxu0 0
        %4745 = vmatpush1.bf16.msra.mxu0 0
        %4746 = vmatprep.subr.bf16.mxu0 0
        %4747 = vmatpush1.bf16.msra.mxu0 0
        %4748 = vmatprep.subr.bf16.mxu0 0
        %4749 = vmatpush1.bf16.msra.mxu0 0
        %4750 = vmatprep.mubr.bf16.mxu0 0
        %4751 = vmatmul.mubr.bf16.gmra.mrb[0].mxu0 %v4716
        %v4752 = vpop.f32.mrb[0].mxu0
        %v4753 = vadd.f32 0.0, %v4752
        %v4754 = vpop.f32.mrb[0].mxu0
        %v4755 = vpop.f32.mrb[0].mxu0
        %v4756 = vadd.f32 0.0, %v4755
        %v4757 = vpop.f32.mrb[0].mxu0
        %4758 = vdwg.mxu0
        %v4761 = vrot.slane %v4753, 5
        %v4762 = vrot.slane %v4756, 5
        %v4763 = vsel %vm4062, %v4761, %v4762
        %v4767 = vsel %vm4062, 0.0, %v4761
        %v4768 = vsel %vm4062, %v4762, 0.0
        %v4769 = vstv %s4635
        %v4770 = vadd.f32 %v4769, 0.0
        %v4771 = vadd.f32 %v4770, %v4767
        %v4772 = vadd.f32 %v4770, %v4763
        %v4775 = vrot.slane %v4767, 1
        %v4776 = vrot.slane %v4763, 1
        %v4777 = vsel %vm4077, %v4775, %v4776
        %v4778 = vrot.slane %v4768, 1
        %v4779 = vsel %vm4077, %v4776, %v4778
        %4780 = vrot.lane.b32.xlu0 %v4777, 120
        %v4781 = vpop.permute.xlu0 %4780
        %4782 = vrot.lane.b32.xlu0 %v4779, 120
        %v4783 = vpop.permute.xlu0 %4782
        %v4786 = vadd.f32 %v4771, %v4781
        %v4787 = vadd.f32 %v4772, %v4783
        %v4788 = vrot.slane %v4767, 2
        %v4789 = vrot.slane %v4763, 2
        %v4790 = vsel %vm4091, %v4788, %v4789
        %v4791 = vrot.slane %v4768, 2
        %v4792 = vsel %vm4091, %v4789, %v4791
        %4793 = vrot.lane.b32.xlu0 %v4790, 112
        %v4794 = vpop.permute.xlu0 %4793
        %4795 = vrot.lane.b32.xlu0 %v4792, 112
        %v4796 = vpop.permute.xlu0 %4795
        %v4799 = vadd.f32 %v4786, %v4794
        %v4800 = vadd.f32 %v4787, %v4796
        %v4801 = vrot.slane %v4767, 3
        %v4802 = vrot.slane %v4763, 3
        %v4803 = vsel %vm4105, %v4801, %v4802
        %v4804 = vrot.slane %v4768, 3
        %v4805 = vsel %vm4105, %v4802, %v4804
        %4806 = vrot.lane.b32.xlu0 %v4803, 104
        %v4807 = vpop.permute.xlu0 %4806
        %4808 = vrot.lane.b32.xlu0 %v4805, 104
        %v4809 = vpop.permute.xlu0 %4808
        %v4812 = vadd.f32 %v4799, %v4807
        %v4813 = vadd.f32 %v4800, %v4809
        %v4814 = vrot.slane %v4767, 4
        %v4815 = vrot.slane %v4763, 4
        %v4816 = vsel %vm544, %v4814, %v4815
        %v4817 = vrot.slane %v4768, 4
        %v4818 = vsel %vm544, %v4815, %v4817
        %4819 = vrot.lane.b32.xlu0 %v4816, 96
        %v4820 = vpop.permute.xlu0 %4819
        %4821 = vrot.lane.b32.xlu0 %v4818, 96
        %v4822 = vpop.permute.xlu0 %4821
        %v4825 = vadd.f32 %v4812, %v4820
        %v4826 = vadd.f32 %v4813, %v4822
        %v4827 = vrot.slane %v4767, 5
        %v4828 = vrot.slane %v4763, 5
        %v4829 = vsel %vm4062, %v4827, %v4828
        %v4830 = vrot.slane %v4768, 5
        %v4831 = vsel %vm4062, %v4828, %v4830
        %4832 = vrot.lane.b32.xlu0 %v4829, 88
        %v4833 = vpop.permute.xlu0 %4832
        %4834 = vrot.lane.b32.xlu0 %v4831, 88
        %v4835 = vpop.permute.xlu0 %4834
        %v4838 = vadd.f32 %v4825, %v4833
        %v4839 = vadd.f32 %v4826, %v4835
        %v4840 = vrot.slane %v4767, 6
        %v4841 = vrot.slane %v4763, 6
        %v4842 = vsel %vm3048, %v4840, %v4841
        %v4843 = vrot.slane %v4768, 6
        %v4844 = vsel %vm3048, %v4841, %v4843
        %4845 = vrot.lane.b32.xlu0 %v4842, 80
        %v4846 = vpop.permute.xlu0 %4845
        %4847 = vrot.lane.b32.xlu0 %v4844, 80
        %v4848 = vpop.permute.xlu0 %4847
        %v4851 = vadd.f32 %v4838, %v4846
        %v4852 = vadd.f32 %v4839, %v4848
        %v4853 = vmul.f32 %v4851, 0.5
        %v4854 = vmul.f32 %v4852, 0.5
        %v4855 = vtanh.pop %v4853
        %v4856 = vtanh.pop %v4854
        %v4857 = vmul.f32 %v4855, 0.5
        %v4858 = vmul.f32 %v4856, 0.5
        %v4859 = vadd.f32 %v4857, 0.5
        %v4860 = vadd.f32 %v4858, 0.5
        %v4863 = vcombine.high %v4859, %v4859
        %v4865 = vunpack.c.l.s4 1966171168
        %v4866 = vunpack.c.0.s8 %v4865
        %v4867 = vlaneseq
        %v4868 = vshrl.u32 %v4867, 7
        %v4869 = vsub.s32 %v4866, %v4868
        %v4870 = vrot.slane %v4859, %v4869
        %v4872 = vunpack.c.l.s4 1966171168
        %v4873 = vunpack.c.0.s8 %v4872
        %v4874 = vlaneseq
        %v4875 = vshrl.u32 %v4874, 7
        %v4876 = vsub.s32 %v4873, %v4875
        %v4877 = vrot.slane %v4863, %v4876
        %v4878 = vcombine.high %v4870, %v4870
        %v4879 = vcombine.high %v4877, %v4877
        %v4881 = vunpack.c.l.s4 1966171168
        %v4882 = vunpack.c.0.s8 %v4881
        %v4883 = vlaneseq
        %v4884 = vshrl.u32 %v4883, 7
        %v4885 = vsub.s32 %v4882, %v4884
        %v4886 = vrot.slane %v4870, %v4885
        %v4888 = vunpack.c.l.s4 1966171168
        %v4889 = vunpack.c.0.s8 %v4888
        %v4890 = vlaneseq
        %v4891 = vshrl.u32 %v4890, 7
        %v4892 = vsub.s32 %v4889, %v4891
        %v4893 = vrot.slane %v4877, %v4892
        %v4895 = vunpack.c.l.s4 1966171168
        %v4896 = vunpack.c.0.s8 %v4895
        %v4897 = vlaneseq
        %v4898 = vshrl.u32 %v4897, 7
        %v4899 = vsub.s32 %v4896, %v4898
        %v4900 = vrot.slane %v4878, %v4899
        %v4902 = vunpack.c.l.s4 1966171168
        %v4903 = vunpack.c.0.s8 %v4902
        %v4904 = vlaneseq
        %v4905 = vshrl.u32 %v4904, 7
        %v4906 = vsub.s32 %v4903, %v4905
        %v4907 = vrot.slane %v4879, %v4906
        %v4908 = vcombine.high %v4886, %v4886
        %v4909 = vcombine.high %v4893, %v4893
        %v4910 = vcombine.high %v4900, %v4900
        %v4911 = vcombine.high %v4907, %v4907
        %v4912 = vcombine.high %v4860, %v4860
        %v4914 = vunpack.c.l.s4 1966171168
        %v4915 = vunpack.c.0.s8 %v4914
        %v4916 = vlaneseq
        %v4917 = vshrl.u32 %v4916, 7
        %v4918 = vsub.s32 %v4915, %v4917
        %v4919 = vrot.slane %v4860, %v4918
        %v4921 = vunpack.c.l.s4 1966171168
        %v4922 = vunpack.c.0.s8 %v4921
        %v4923 = vlaneseq
        %v4924 = vshrl.u32 %v4923, 7
        %v4925 = vsub.s32 %v4922, %v4924
        %v4926 = vrot.slane %v4912, %v4925
        %v4927 = vcombine.high %v4919, %v4919
        %v4928 = vcombine.high %v4926, %v4926
        %v4930 = vunpack.c.l.s4 1966171168
        %v4931 = vunpack.c.0.s8 %v4930
        %v4932 = vlaneseq
        %v4933 = vshrl.u32 %v4932, 7
        %v4934 = vsub.s32 %v4931, %v4933
        %v4935 = vrot.slane %v4919, %v4934
        %v4937 = vunpack.c.l.s4 1966171168
        %v4938 = vunpack.c.0.s8 %v4937
        %v4939 = vlaneseq
        %v4940 = vshrl.u32 %v4939, 7
        %v4941 = vsub.s32 %v4938, %v4940
        %v4942 = vrot.slane %v4926, %v4941
        %v4944 = vunpack.c.l.s4 1966171168
        %v4945 = vunpack.c.0.s8 %v4944
        %v4946 = vlaneseq
        %v4947 = vshrl.u32 %v4946, 7
        %v4948 = vsub.s32 %v4945, %v4947
        %v4949 = vrot.slane %v4927, %v4948
        %v4951 = vunpack.c.l.s4 1966171168
        %v4952 = vunpack.c.0.s8 %v4951
        %v4953 = vlaneseq
        %v4954 = vshrl.u32 %v4953, 7
        %v4955 = vsub.s32 %v4952, %v4954
        %v4956 = vrot.slane %v4928, %v4955
        %v4957 = vcombine.high %v4935, %v4935
        %v4958 = vcombine.high %v4942, %v4942
        %v4959 = vcombine.high %v4949, %v4949
        %v4960 = vcombine.high %v4956, %v4956
        %v4961 = vlaneseq
        %v4962 = vshrl.u32 %v4961, 7
        %v4963 = vsub.s32 0, %v4962
        %v4964 = vrot.slane %v4886, %v4963
        %v4965 = vlaneseq
        %v4966 = vshrl.u32 %v4965, 7
        %v4967 = vsub.s32 0, %v4966
        %v4968 = vrot.slane %v4900, %v4967
        %v4969 = vlaneseq
        %v4970 = vshrl.u32 %v4969, 7
        %v4971 = vsub.s32 0, %v4970
        %v4972 = vrot.slane %v4908, %v4971
        %v4973 = vlaneseq
        %v4974 = vshrl.u32 %v4973, 7
        %v4975 = vsub.s32 0, %v4974
        %v4976 = vrot.slane %v4910, %v4975
        %v4977 = vlaneseq
        %v4978 = vshrl.u32 %v4977, 7
        %v4979 = vsub.s32 0, %v4978
        %v4980 = vrot.slane %v4893, %v4979
        %v4981 = vlaneseq
        %v4982 = vshrl.u32 %v4981, 7
        %v4983 = vsub.s32 0, %v4982
        %v4984 = vrot.slane %v4907, %v4983
        %v4985 = vlaneseq
        %v4986 = vshrl.u32 %v4985, 7
        %v4987 = vsub.s32 0, %v4986
        %v4988 = vrot.slane %v4909, %v4987
        %v4989 = vlaneseq
        %v4990 = vshrl.u32 %v4989, 7
        %v4991 = vsub.s32 0, %v4990
        %v4992 = vrot.slane %v4911, %v4991
        %v4993 = vlaneseq
        %v4994 = vshrl.u32 %v4993, 7
        %v4995 = vsub.s32 0, %v4994
        %v4996 = vrot.slane %v4935, %v4995
        %v4997 = vlaneseq
        %v4998 = vshrl.u32 %v4997, 7
        %v4999 = vsub.s32 0, %v4998
        %v5000 = vrot.slane %v4949, %v4999
        %v5001 = vlaneseq
        %v5002 = vshrl.u32 %v5001, 7
        %v5003 = vsub.s32 0, %v5002
        %v5004 = vrot.slane %v4957, %v5003
        %v5005 = vlaneseq
        %v5006 = vshrl.u32 %v5005, 7
        %v5007 = vsub.s32 0, %v5006
        %v5008 = vrot.slane %v4959, %v5007
        %v5009 = vlaneseq
        %v5010 = vshrl.u32 %v5009, 7
        %v5011 = vsub.s32 0, %v5010
        %v5012 = vrot.slane %v4942, %v5011
        %v5013 = vlaneseq
        %v5014 = vshrl.u32 %v5013, 7
        %v5015 = vsub.s32 0, %v5014
        %v5016 = vrot.slane %v4956, %v5015
        %v5017 = vlaneseq
        %v5018 = vshrl.u32 %v5017, 7
        %v5019 = vsub.s32 0, %v5018
        %v5020 = vrot.slane %v4958, %v5019
        %v5021 = vlaneseq
        %v5022 = vshrl.u32 %v5021, 7
        %v5023 = vsub.s32 0, %v5022
        %v5024 = vrot.slane %v4960, %v5023
        %v5041 = vadd.f32 %v4964, %v4393
        %v5042 = vadd.f32 %v4964, %v4394
        %v5043 = vadd.f32 %v4968, %v4393
        %v5044 = vadd.f32 %v4968, %v4394
        %v5045 = vadd.f32 %v4972, %v4393
        %v5046 = vadd.f32 %v4972, %v4394
        %v5047 = vadd.f32 %v4976, %v4393
        %v5048 = vadd.f32 %v4976, %v4394
        %v5049 = vadd.f32 %v4980, %v4393
        %v5050 = vadd.f32 %v4980, %v4394
        %v5051 = vadd.f32 %v4984, %v4393
        %v5052 = vadd.f32 %v4984, %v4394
        %v5053 = vadd.f32 %v4988, %v4393
        %v5054 = vadd.f32 %v4988, %v4394
        %v5055 = vadd.f32 %v4992, %v4393
        %v5056 = vadd.f32 %v4992, %v4394
        %v5057 = vadd.f32 %v4996, %v4393
        %v5058 = vadd.f32 %v4996, %v4394
        %v5059 = vadd.f32 %v5000, %v4393
        %v5060 = vadd.f32 %v5000, %v4394
        %v5061 = vadd.f32 %v5004, %v4393
        %v5062 = vadd.f32 %v5004, %v4394
        %v5063 = vadd.f32 %v5008, %v4393
        %v5064 = vadd.f32 %v5008, %v4394
        %v5065 = vadd.f32 %v5012, %v4393
        %v5066 = vadd.f32 %v5012, %v4394
        %v5067 = vadd.f32 %v5016, %v4393
        %v5068 = vadd.f32 %v5016, %v4394
        %v5069 = vadd.f32 %v5020, %v4393
        %v5070 = vadd.f32 %v5020, %v4394
        %v5071 = vadd.f32 %v5024, %v4393
        %v5072 = vadd.f32 %v5024, %v4394
        %v5073 = vlaneseq
        %v5074 = vshrl.u32 %v5073, 7
        %v5075 = vsub.s32 0, %v5074
        %v5076 = vrot.slane %v4164, %v5075
        %5078 = vbcast.lane.b32.xlu0 %v5076, 256
        %v5079 = vpop.permute.xlu0 %5078
        %s5081 = sor.u32 256, 8
        %5082 = vbcast.lane.b32.xlu0 %v5076, %s5081
        %v5083 = vpop.permute.xlu0 %5082
        %v5084 = vlaneseq
        %v5085 = vshrl.u32 %v5084, 7
        %v5086 = vsub.s32 1, %v5085
        %v5087 = vrot.slane %v4164, %v5086
        %5089 = vbcast.lane.b32.xlu0 %v5087, 256
        %v5090 = vpop.permute.xlu0 %5089
        %s5092 = sor.u32 256, 8
        %5093 = vbcast.lane.b32.xlu0 %v5087, %s5092
        %v5094 = vpop.permute.xlu0 %5093
        %v5095 = vlaneseq
        %v5096 = vshrl.u32 %v5095, 7
        %v5097 = vsub.s32 2, %v5096
        %v5098 = vrot.slane %v4164, %v5097
        %5100 = vbcast.lane.b32.xlu0 %v5098, 256
        %v5101 = vpop.permute.xlu0 %5100
        %s5103 = sor.u32 256, 8
        %5104 = vbcast.lane.b32.xlu0 %v5098, %s5103
        %v5105 = vpop.permute.xlu0 %5104
        %v5106 = vlaneseq
        %v5107 = vshrl.u32 %v5106, 7
        %v5108 = vsub.s32 3, %v5107
        %v5109 = vrot.slane %v4164, %v5108
        %5111 = vbcast.lane.b32.xlu0 %v5109, 256
        %v5112 = vpop.permute.xlu0 %5111
        %s5114 = sor.u32 256, 8
        %5115 = vbcast.lane.b32.xlu0 %v5109, %s5114
        %v5116 = vpop.permute.xlu0 %5115
        %v5117 = vlaneseq
        %v5118 = vshrl.u32 %v5117, 7
        %v5119 = vsub.s32 4, %v5118
        %v5120 = vrot.slane %v4164, %v5119
        %5122 = vbcast.lane.b32.xlu0 %v5120, 256
        %v5123 = vpop.permute.xlu0 %5122
        %s5125 = sor.u32 256, 8
        %5126 = vbcast.lane.b32.xlu0 %v5120, %s5125
        %v5127 = vpop.permute.xlu0 %5126
        %v5128 = vlaneseq
        %v5129 = vshrl.u32 %v5128, 7
        %v5130 = vsub.s32 5, %v5129
        %v5131 = vrot.slane %v4164, %v5130
        %5133 = vbcast.lane.b32.xlu0 %v5131, 256
        %v5134 = vpop.permute.xlu0 %5133
        %s5136 = sor.u32 256, 8
        %5137 = vbcast.lane.b32.xlu0 %v5131, %s5136
        %v5138 = vpop.permute.xlu0 %5137
        %v5139 = vlaneseq
        %v5140 = vshrl.u32 %v5139, 7
        %v5141 = vsub.s32 6, %v5140
        %v5142 = vrot.slane %v4164, %v5141
        %5144 = vbcast.lane.b32.xlu0 %v5142, 256
        %v5145 = vpop.permute.xlu0 %5144
        %s5147 = sor.u32 256, 8
        %5148 = vbcast.lane.b32.xlu0 %v5142, %s5147
        %v5149 = vpop.permute.xlu0 %5148
        %v5150 = vlaneseq
        %v5151 = vshrl.u32 %v5150, 7
        %v5152 = vsub.s32 7, %v5151
        %v5153 = vrot.slane %v4164, %v5152
        %5155 = vbcast.lane.b32.xlu0 %v5153, 256
        %v5156 = vpop.permute.xlu0 %5155
        %s5158 = sor.u32 256, 8
        %5159 = vbcast.lane.b32.xlu0 %v5153, %s5158
        %v5160 = vpop.permute.xlu0 %5159
        %v5161 = vlaneseq
        %v5162 = vshrl.u32 %v5161, 7
        %v5163 = vsub.s32 0, %v5162
        %v5164 = vrot.slane %v4165, %v5163
        %5166 = vbcast.lane.b32.xlu0 %v5164, 256
        %v5167 = vpop.permute.xlu0 %5166
        %s5169 = sor.u32 256, 8
        %5170 = vbcast.lane.b32.xlu0 %v5164, %s5169
        %v5171 = vpop.permute.xlu0 %5170
        %v5172 = vlaneseq
        %v5173 = vshrl.u32 %v5172, 7
        %v5174 = vsub.s32 1, %v5173
        %v5175 = vrot.slane %v4165, %v5174
        %5177 = vbcast.lane.b32.xlu0 %v5175, 256
        %v5178 = vpop.permute.xlu0 %5177
        %s5180 = sor.u32 256, 8
        %5181 = vbcast.lane.b32.xlu0 %v5175, %s5180
        %v5182 = vpop.permute.xlu0 %5181
        %v5183 = vlaneseq
        %v5184 = vshrl.u32 %v5183, 7
        %v5185 = vsub.s32 2, %v5184
        %v5186 = vrot.slane %v4165, %v5185
        %5188 = vbcast.lane.b32.xlu0 %v5186, 256
        %v5189 = vpop.permute.xlu0 %5188
        %s5191 = sor.u32 256, 8
        %5192 = vbcast.lane.b32.xlu0 %v5186, %s5191
        %v5193 = vpop.permute.xlu0 %5192
        %v5194 = vlaneseq
        %v5195 = vshrl.u32 %v5194, 7
        %v5196 = vsub.s32 3, %v5195
        %v5197 = vrot.slane %v4165, %v5196
        %5199 = vbcast.lane.b32.xlu0 %v5197, 256
        %v5200 = vpop.permute.xlu0 %5199
        %s5202 = sor.u32 256, 8
        %5203 = vbcast.lane.b32.xlu0 %v5197, %s5202
        %v5204 = vpop.permute.xlu0 %5203
        %v5205 = vlaneseq
        %v5206 = vshrl.u32 %v5205, 7
        %v5207 = vsub.s32 4, %v5206
        %v5208 = vrot.slane %v4165, %v5207
        %5210 = vbcast.lane.b32.xlu0 %v5208, 256
        %v5211 = vpop.permute.xlu0 %5210
        %s5213 = sor.u32 256, 8
        %5214 = vbcast.lane.b32.xlu0 %v5208, %s5213
        %v5215 = vpop.permute.xlu0 %5214
        %v5216 = vlaneseq
        %v5217 = vshrl.u32 %v5216, 7
        %v5218 = vsub.s32 5, %v5217
        %v5219 = vrot.slane %v4165, %v5218
        %5221 = vbcast.lane.b32.xlu0 %v5219, 256
        %v5222 = vpop.permute.xlu0 %5221
        %s5224 = sor.u32 256, 8
        %5225 = vbcast.lane.b32.xlu0 %v5219, %s5224
        %v5226 = vpop.permute.xlu0 %5225
        %v5227 = vlaneseq
        %v5228 = vshrl.u32 %v5227, 7
        %v5229 = vsub.s32 6, %v5228
        %v5230 = vrot.slane %v4165, %v5229
        %5232 = vbcast.lane.b32.xlu0 %v5230, 256
        %v5233 = vpop.permute.xlu0 %5232
        %s5235 = sor.u32 256, 8
        %5236 = vbcast.lane.b32.xlu0 %v5230, %s5235
        %v5237 = vpop.permute.xlu0 %5236
        %v5238 = vlaneseq
        %v5239 = vshrl.u32 %v5238, 7
        %v5240 = vsub.s32 7, %v5239
        %v5241 = vrot.slane %v4165, %v5240
        %5243 = vbcast.lane.b32.xlu0 %v5241, 256
        %v5244 = vpop.permute.xlu0 %5243
        %s5246 = sor.u32 256, 8
        %5247 = vbcast.lane.b32.xlu0 %v5241, %s5246
        %v5248 = vpop.permute.xlu0 %5247
        %v5249 = vadd.f32 %v5041, %v5079
        %v5250 = vadd.f32 %v5042, %v5083
        %v5251 = vadd.f32 %v5043, %v5090
        %v5252 = vadd.f32 %v5044, %v5094
        %v5253 = vadd.f32 %v5045, %v5101
        %v5254 = vadd.f32 %v5046, %v5105
        %v5255 = vadd.f32 %v5047, %v5112
        %v5256 = vadd.f32 %v5048, %v5116
        %v5257 = vadd.f32 %v5049, %v5123
        %v5258 = vadd.f32 %v5050, %v5127
        %v5259 = vadd.f32 %v5051, %v5134
        %v5260 = vadd.f32 %v5052, %v5138
        %v5261 = vadd.f32 %v5053, %v5145
        %v5262 = vadd.f32 %v5054, %v5149
        %v5263 = vadd.f32 %v5055, %v5156
        %v5264 = vadd.f32 %v5056, %v5160
        %v5265 = vadd.f32 %v5057, %v5167
        %v5266 = vadd.f32 %v5058, %v5171
        %v5267 = vadd.f32 %v5059, %v5178
        %v5268 = vadd.f32 %v5060, %v5182
        %v5269 = vadd.f32 %v5061, %v5189
        %v5270 = vadd.f32 %v5062, %v5193
        %v5271 = vadd.f32 %v5063, %v5200
        %v5272 = vadd.f32 %v5064, %v5204
        %v5273 = vadd.f32 %v5065, %v5211
        %v5274 = vadd.f32 %v5066, %v5215
        %v5275 = vadd.f32 %v5067, %v5222
        %v5276 = vadd.f32 %v5068, %v5226
        %v5277 = vadd.f32 %v5069, %v5233
        %v5278 = vadd.f32 %v5070, %v5237
        %v5279 = vadd.f32 %v5071, %v5244
        %v5280 = vadd.f32 %v5072, %v5248
        %v5281 = vmul.f32 %v5249, 0.33333334
        %v5282 = vmul.f32 %v5250, 0.33333334
        %v5283 = vmul.f32 %v5251, 0.33333334
        %v5284 = vmul.f32 %v5252, 0.33333334
        %v5285 = vmul.f32 %v5253, 0.33333334
        %v5286 = vmul.f32 %v5254, 0.33333334
        %v5287 = vmul.f32 %v5255, 0.33333334
        %v5288 = vmul.f32 %v5256, 0.33333334
        %v5289 = vmul.f32 %v5257, 0.33333334
        %v5290 = vmul.f32 %v5258, 0.33333334
        %v5291 = vmul.f32 %v5259, 0.33333334
        %v5292 = vmul.f32 %v5260, 0.33333334
        %v5293 = vmul.f32 %v5261, 0.33333334
        %v5294 = vmul.f32 %v5262, 0.33333334
        %v5295 = vmul.f32 %v5263, 0.33333334
        %v5296 = vmul.f32 %v5264, 0.33333334
        %v5297 = vmul.f32 %v5265, 0.33333334
        %v5298 = vmul.f32 %v5266, 0.33333334
        %v5299 = vmul.f32 %v5267, 0.33333334
        %v5300 = vmul.f32 %v5268, 0.33333334
        %v5301 = vmul.f32 %v5269, 0.33333334
        %v5302 = vmul.f32 %v5270, 0.33333334
        %v5303 = vmul.f32 %v5271, 0.33333334
        %v5304 = vmul.f32 %v5272, 0.33333334
        %v5305 = vmul.f32 %v5273, 0.33333334
        %v5306 = vmul.f32 %v5274, 0.33333334
        %v5307 = vmul.f32 %v5275, 0.33333334
        %v5308 = vmul.f32 %v5276, 0.33333334
        %v5309 = vmul.f32 %v5277, 0.33333334
        %v5310 = vmul.f32 %v5278, 0.33333334
        %v5311 = vmul.f32 %v5279, 0.33333334
        %v5312 = vmul.f32 %v5280, 0.33333334
        %v5313 = vmul.f32 %v3341, %v5281
        %v5314 = vmul.f32 %v3342, %v5282
        %v5315 = vmul.f32 %v3343, %v5283
        %v5316 = vmul.f32 %v3344, %v5284
        %v5317 = vmul.f32 %v3345, %v5285
        %v5318 = vmul.f32 %v3346, %v5286
        %v5319 = vmul.f32 %v3347, %v5287
        %v5320 = vmul.f32 %v3348, %v5288
        %v5321 = vmul.f32 %v3349, %v5289
        %v5322 = vmul.f32 %v3350, %v5290
        %v5323 = vmul.f32 %v3351, %v5291
        %v5324 = vmul.f32 %v3352, %v5292
        %v5325 = vmul.f32 %v3353, %v5293
        %v5326 = vmul.f32 %v3354, %v5294
        %v5327 = vmul.f32 %v3355, %v5295
        %v5328 = vmul.f32 %v3356, %v5296
        %v5329 = vmul.f32 %v3357, %v5297
        %v5330 = vmul.f32 %v3358, %v5298
        %v5331 = vmul.f32 %v3359, %v5299
        %v5332 = vmul.f32 %v3360, %v5300
        %v5333 = vmul.f32 %v3361, %v5301
        %v5334 = vmul.f32 %v3362, %v5302
        %v5335 = vmul.f32 %v3363, %v5303
        %v5336 = vmul.f32 %v3364, %v5304
        %v5337 = vmul.f32 %v3365, %v5305
        %v5338 = vmul.f32 %v3366, %v5306
        %v5339 = vmul.f32 %v3367, %v5307
        %v5340 = vmul.f32 %v3368, %v5308
        %v5341 = vmul.f32 %v3369, %v5309
        %v5342 = vmul.f32 %v3370, %v5310
        %v5343 = vmul.f32 %v3371, %v5311
        %v5344 = vmul.f32 %v3372, %v5312
        %v5345 = vunpack.c.l.bf16 %v375
        %v5346 = vunpack.c.l.bf16 %v376
        %v5347 = vunpack.c.l.bf16 %v377
        %v5348 = vunpack.c.l.bf16 %v378
        %v5349 = vunpack.c.l.bf16 %v379
        %v5350 = vunpack.c.l.bf16 %v380
        %v5351 = vunpack.c.l.bf16 %v381
        %v5352 = vunpack.c.l.bf16 %v382
        %v5353 = vunpack.c.l.bf16 %v383
        %v5354 = vunpack.c.l.bf16 %v384
        %v5355 = vunpack.c.l.bf16 %v385
        %v5356 = vunpack.c.l.bf16 %v386
        %v5357 = vunpack.c.l.bf16 %v387
        %v5358 = vunpack.c.l.bf16 %v388
        %v5359 = vunpack.c.l.bf16 %v389
        %v5360 = vunpack.c.l.bf16 %v390
        %v5361 = vunpack.c.l.bf16 %v391
        %v5362 = vunpack.c.l.bf16 %v392
        %v5363 = vunpack.c.l.bf16 %v393
        %v5364 = vunpack.c.l.bf16 %v394
        %v5365 = vunpack.c.l.bf16 %v395
        %v5366 = vunpack.c.l.bf16 %v396
        %v5367 = vunpack.c.l.bf16 %v397
        %v5368 = vunpack.c.l.bf16 %v398
        %v5369 = vunpack.c.l.bf16 %v399
        %v5370 = vunpack.c.l.bf16 %v400
        %v5371 = vunpack.c.l.bf16 %v401
        %v5372 = vunpack.c.l.bf16 %v402
        %v5373 = vunpack.c.l.bf16 %v403
        %v5374 = vunpack.c.l.bf16 %v404
        %v5375 = vunpack.c.l.bf16 %v405
        %v5376 = vunpack.c.l.bf16 %v406
        %v5377 = vadd.f32 %v5313, %v5345
        %v5378 = vadd.f32 %v5314, %v5346
        %v5379 = vadd.f32 %v5315, %v5347
        %v5380 = vadd.f32 %v5316, %v5348
        %v5381 = vadd.f32 %v5317, %v5349
        %v5382 = vadd.f32 %v5318, %v5350
        %v5383 = vadd.f32 %v5319, %v5351
        %v5384 = vadd.f32 %v5320, %v5352
        %v5385 = vadd.f32 %v5321, %v5353
        %v5386 = vadd.f32 %v5322, %v5354
        %v5387 = vadd.f32 %v5323, %v5355
        %v5388 = vadd.f32 %v5324, %v5356
        %v5389 = vadd.f32 %v5325, %v5357
        %v5390 = vadd.f32 %v5326, %v5358
        %v5391 = vadd.f32 %v5327, %v5359
        %v5392 = vadd.f32 %v5328, %v5360
        %v5393 = vadd.f32 %v5329, %v5361
        %v5394 = vadd.f32 %v5330, %v5362
        %v5395 = vadd.f32 %v5331, %v5363
        %v5396 = vadd.f32 %v5332, %v5364
        %v5397 = vadd.f32 %v5333, %v5365
        %v5398 = vadd.f32 %v5334, %v5366
        %v5399 = vadd.f32 %v5335, %v5367
        %v5400 = vadd.f32 %v5336, %v5368
        %v5401 = vadd.f32 %v5337, %v5369
        %v5402 = vadd.f32 %v5338, %v5370
        %v5403 = vadd.f32 %v5339, %v5371
        %v5404 = vadd.f32 %v5340, %v5372
        %v5405 = vadd.f32 %v5341, %v5373
        %v5406 = vadd.f32 %v5342, %v5374
        %v5407 = vadd.f32 %v5343, %v5375
        %v5408 = vadd.f32 %v5344, %v5376
        %5409 = vst.msk [vmem:[%s373] sm:$0xff] %vm495, %v5377
        %5410 = vst.msk [vmem:[%s373 + $0x8] sm:$0xff] %vm495, %v5378
        %5411 = vst.msk [vmem:[%s373 + $0x10] sm:$0xff] %vm495, %v5379
        %5412 = vst.msk [vmem:[%s373 + $0x18] sm:$0xff] %vm495, %v5380
        %5413 = vst.msk [vmem:[%s373 + $0x20] sm:$0xff] %vm495, %v5381
        %5414 = vst.msk [vmem:[%s373 + $0x28] sm:$0xff] %vm495, %v5382
        %5415 = vst.msk [vmem:[%s373 + $0x30] sm:$0xff] %vm495, %v5383
        %5416 = vst.msk [vmem:[%s373 + $0x38] sm:$0xff] %vm495, %v5384
        %5417 = vst.msk [vmem:[%s373 + $0x40] sm:$0xff] %vm495, %v5385
        %5418 = vst.msk [vmem:[%s373 + $0x48] sm:$0xff] %vm495, %v5386
        %5419 = vst.msk [vmem:[%s373 + $0x50] sm:$0xff] %vm495, %v5387
        %5420 = vst.msk [vmem:[%s373 + $0x58] sm:$0xff] %vm495, %v5388
        %5421 = vst.msk [vmem:[%s373 + $0x60] sm:$0xff] %vm495, %v5389
        %5422 = vst.msk [vmem:[%s373 + $0x68] sm:$0xff] %vm495, %v5390
        %5423 = vst.msk [vmem:[%s373 + $0x70] sm:$0xff] %vm495, %v5391
        %5424 = vst.msk [vmem:[%s373 + $0x78] sm:$0xff] %vm495, %v5392
        %5425 = vst.msk [vmem:[%s373 + $0x80] sm:$0xff] %vm495, %v5393
        %5426 = vst.msk [vmem:[%s373 + $0x88] sm:$0xff] %vm495, %v5394
        %5427 = vst.msk [vmem:[%s373 + $0x90] sm:$0xff] %vm495, %v5395
        %5428 = vst.msk [vmem:[%s373 + $0x98] sm:$0xff] %vm495, %v5396
        %5429 = vst.msk [vmem:[%s373 + $0xa0] sm:$0xff] %vm495, %v5397
        %5430 = vst.msk [vmem:[%s373 + $0xa8] sm:$0xff] %vm495, %v5398
        %5431 = vst.msk [vmem:[%s373 + $0xb0] sm:$0xff] %vm495, %v5399
        %5432 = vst.msk [vmem:[%s373 + $0xb8] sm:$0xff] %vm495, %v5400
        %5433 = vst.msk [vmem:[%s373 + $0xc0] sm:$0xff] %vm495, %v5401
        %5434 = vst.msk [vmem:[%s373 + $0xc8] sm:$0xff] %vm495, %v5402
        %5435 = vst.msk [vmem:[%s373 + $0xd0] sm:$0xff] %vm495, %v5403
        %5436 = vst.msk [vmem:[%s373 + $0xd8] sm:$0xff] %vm495, %v5404
        %5437 = vst.msk [vmem:[%s373 + $0xe0] sm:$0xff] %vm495, %v5405
        %5438 = vst.msk [vmem:[%s373 + $0xe8] sm:$0xff] %vm495, %v5406
        %5439 = vst.msk [vmem:[%s373 + $0xf0] sm:$0xff] %vm495, %v5407
        %5440 = vst.msk [vmem:[%s373 + $0xf8] sm:$0xff] %vm495, %v5408
        %p5441 = scmp.lt.s32.totalorder %s22, 1
        %s5442 = scalar_select %p5441, %s22, 1
        %s5443 = smul.addr %s5442, 32
        %s5444 = smul.addr %s5443, 8
        %s5445 = scalar_lea.vmem %s10, %s5444
        // Predicated region
        $region65: #{tpu_custom_call.1} parent=59 // pred_check
          %p5446 = pneg %p255
        $region66: #{tpu_custom_call.1} parent=59 // pred_check_branch
          %5448 = sbr.rel (%p5446) target = $region68
        $region67: #{tpu_custom_call.1} parent=59 // pred_region
          _
        $region68: #{tpu_custom_call.1} parent=59 // pred_fallthru
          _
      $region60: #{tpu_custom_call.1} parent=5 // pred_fallthru
        _
      %p5449 = scmp.le.s32.totalorder 2, %s17
      // Predicated region
      $region69: #{tpu_custom_call.1} parent=5 // pred_check
        %p5450 = pneg %p5449
      $region70: #{tpu_custom_call.1} parent=5 // pred_check_branch
        %5452 = sbr.rel (%p5450) target = $region72
      $region71: #{tpu_custom_call.1} parent=5 // pred_region
        %s5453 = ssub.s32 %s17, 2
        // Predicated region
        $region73: #{tpu_custom_call.1} parent=71 // pred_check
          %p5454 = pneg %p261
        $region74: #{tpu_custom_call.1} parent=71 // pred_check_branch
          %5456 = sbr.rel (%p5454) target = $region76
        $region75: #{tpu_custom_call.1} parent=71 // pred_region
          %p5457 = scmp.lt.s32.totalorder %s23, 1
          %s5458 = scalar_select %p5457, %s23, 1
          %s5459 = smul.addr %s5458, 32
          %s5460 = smul.addr %s5459, 8
          %s5461 = scalar_lea.vmem %s10, %s5460
        $region76: #{tpu_custom_call.1} parent=71 // pred_fallthru
          _
      $region72: #{tpu_custom_call.1} parent=5 // pred_fallthru
        _
    $region6: #{tpu_custom_call.1} parent=1 // loop_footer
      %s21 = sadd.s32 1, %s17
    $region7: #{tpu_custom_call.1} parent=1 // loop_footer_branch
      %16 = sbr.rel target = $region3
    $region8: #{tpu_custom_call.1} parent=1 // loop_exit
      _
    %5462 = vsyncpa [#allocation3], 1
    %s5463 = scalar_lea.sflag [#allocation3], 1
    %5464 = vsyncpa %s5463, 1

// kernel: tpu_custom_call.1
$region0: #{tpu_custom_call.1}
  #allocation0 [shape = 'u32[]', space=smem, size = 0x4, offset = 0x4, fixed_abs, tag = 'smem constant byte address 0x4 - core index']
  #allocation1 [shape = 'u32[144,128]{1,0:T(1,128)}', space=vmem, size = 0x12000, scoped, tag = 'internal scratch']
  %s0 = inlined_call_operand.vmem [shape: f32[3], index: 0, kind: input, shape index: {}]
  %s1 = inlined_call_operand.vmem [shape: bf16[2,256,8], index: 1, kind: input, shape index: {}]
  %s2 = inlined_call_operand.vmem [shape: bf16[8,4], index: 2, kind: input, shape index: {}]
  %s3 = inlined_call_operand.vmem [shape: f32[1,4], index: 3, kind: input, shape index: {}]
  %s4 = inlined_call_operand.vmem [shape: bf16[36,8], index: 4, kind: input, shape index: {}]
  %s5 = inlined_call_operand.vmem [shape: f32[1,8], index: 5, kind: input, shape index: {}]
  %s6 = inlined_call_operand.vmem [shape: bf16[32,112], index: 6, kind: input, shape index: {}]
  %s7 = inlined_call_operand.vmem [shape: bf16[16,56], index: 7, kind: input, shape index: {}]
  %s8 = inlined_call_operand.vmem [shape: bf16[16,56], index: 8, kind: input, shape index: {}]
  %s9 = inlined_call_operand.vmem [shape: bf16[256,2], index: 9, kind: input, shape index: {}]
  %s10 = inlined_call_operand.vmem [shape: f32[2,256,8], index: 10, kind: output, shape index: {}]
  %s11 = sld [smem:[#allocation0]]
  $region77: #{tpu_custom_call.1} parent=0
    _
  %s13 = ssub.s32 1, %s11
  %s14 = scalar_select 0, %s13, %s11
  $region1: #{tpu_custom_call.1} parent=0
    #allocation2 [shape = 'u8[512]{0}', space=smem, size = 0x200, scoped, tag = 'input window, operand 0, single buffered']
    #allocation3 [shape = 's32[2]{0}', space=sflag, size = 0x8, scoped, tag = 'scoped memory for tpu_custom_call.1']
    %15 = vsyncpa [#allocation3], 0
    loop: start=0, step=1, limit=4
    $region2: #{tpu_custom_call.1} parent=1 // loop_pre_header
      _
    $region3: #{tpu_custom_call.1} parent=1 // loop_header
      %s17 = sphi 0, %s21
      %p18 = scmp.ge.s32.totalorder %s17, 4
      %s25 = sphi 0, %s25
      %s27 = sphi 0, %s25
      %s28 = sphi 0, %s27
      %s42 = sphi 0, %s28
      %s48 = sphi 0, %s50
      %s51 = sphi 0, %s48
      %s52 = sphi 0, %s51
      %s68 = sphi 0, %s52
      %s72 = sphi 0, %s72
      %s74 = sphi 0, %s72
      %s75 = sphi 0, %s74
      %s89 = sphi 0, %s75
      %s93 = sphi 0, %s93
      %s95 = sphi 0, %s93
      %s96 = sphi 0, %s95
      %s110 = sphi 0, %s96
      %s114 = sphi 0, %s114
      %s116 = sphi 0, %s114
      %s117 = sphi 0, %s116
      %s131 = sphi 0, %s117
      %s135 = sphi 0, %s135
      %s137 = sphi 0, %s135
      %s138 = sphi 0, %s137
      %s152 = sphi 0, %s138
      %s156 = sphi 0, %s156
      %s158 = sphi 0, %s156
      %s159 = sphi 0, %s158
      %s173 = sphi 0, %s159
      %s177 = sphi 0, %s177
      %s179 = sphi 0, %s177
      %s180 = sphi 0, %s179
      %s194 = sphi 0, %s180
      %s198 = sphi 0, %s198
      %s200 = sphi 0, %s198
      %s201 = sphi 0, %s200
      %s215 = sphi 0, %s201
      %s219 = sphi 0, %s219
      %s221 = sphi 0, %s219
      %s222 = sphi 0, %s221
      %s236 = sphi 0, %s222
      %s242 = sphi 0, %s244
      %s245 = sphi 0, %s242
      %s246 = sphi 0, %s245
      %s262 = sphi 0, %s246
    $region4: #{tpu_custom_call.1} parent=1 // loop_header_branch
      %20 = sbr.rel (%p18) target = $region8
    $region5: #{tpu_custom_call.1} parent=1 // loop_body
      %s22 = ssub.s32 %s17, 1
      %s23 = ssub.s32 %s17, 2
      %s24 = sadd.s32 %s17, 1
      %s26 = sadd.s32 %s25, 1
      %p29 = scmp.eq.s32.totalorder %s17, 1
      %p30 = scmp.ne.s32.totalorder %s25, %s27
      %p31 = scmp.eq.s32.totalorder %s17, 0
      %p32 = por %p30, %p31
      %p33 = scmp.ne.s32.totalorder %s25, %s27
      %p34 = scmp.eq.s32.totalorder %s22, 1
      %p35 = por %p33, %p34
      %p36 = scmp.ne.s32.totalorder %s27, %s28
      %p37 = scmp.eq.s32.totalorder %s22, 0
      %p38 = por %p36, %p37
      %p39 = scmp.ne.s32.totalorder %s27, %s28
      %p40 = scmp.eq.s32.totalorder %s23, 1
      %p41 = por %p39, %p40
      %p43 = scmp.ne.s32.totalorder %s28, %s42
      %p44 = scmp.eq.s32.totalorder %s23, 0
      %p45 = por %p43, %p44
      %s46 = ssub.s32 %s17, %s24
      %p47 = scmp.eq.s32.totalorder %s46, 0
      %s49 = sadd.s32 %s48, 1
      %s50 = scalar_select %p47, %s48, %s49
      %p53 = pneg %p47
      %p54 = scmp.eq.s32.totalorder %s17, 1
      %p55 = por %p53, %p54
      %p56 = scmp.ne.s32.totalorder %s48, %s51
      %p57 = scmp.eq.s32.totalorder %s17, 0
      %p58 = por %p56, %p57
      %p59 = scmp.ne.s32.totalorder %s48, %s51
      %p60 = scmp.eq.s32.totalorder %s22, 1
      %p61 = por %p59, %p60
      %p62 = scmp.ne.s32.totalorder %s51, %s52
      %p63 = scmp.eq.s32.totalorder %s22, 0
      %p64 = por %p62, %p63
      %p65 = scmp.ne.s32.totalorder %s51, %s52
      %p66 = scmp.eq.s32.totalorder %s23, 1
      %p67 = por %p65, %p66
      %p69 = scmp.ne.s32.totalorder %s52, %s68
      %p70 = scmp.eq.s32.totalorder %s23, 0
      %p71 = por %p69, %p70
      %s73 = sadd.s32 %s72, 1
      %p76 = scmp.eq.s32.totalorder %s17, 1
      %p77 = scmp.ne.s32.totalorder %s72, %s74
      %p78 = scmp.eq.s32.totalorder %s17, 0
      %p79 = por %p77, %p78
      %p80 = scmp.ne.s32.totalorder %s72, %s74
      %p81 = scmp.eq.s32.totalorder %s22, 1
      %p82 = por %p80, %p81
      %p83 = scmp.ne.s32.totalorder %s74, %s75
      %p84 = scmp.eq.s32.totalorder %s22, 0
      %p85 = por %p83, %p84
      %p86 = scmp.ne.s32.totalorder %s74, %s75
      %p87 = scmp.eq.s32.totalorder %s23, 1
      %p88 = por %p86, %p87
      %p90 = scmp.ne.s32.totalorder %s75, %s89
      %p91 = scmp.eq.s32.totalorder %s23, 0
      %p92 = por %p90, %p91
      %s94 = sadd.s32 %s93, 1
      %p97 = scmp.eq.s32.totalorder %s17, 1
      %p98 = scmp.ne.s32.totalorder %s93, %s95
      %p99 = scmp.eq.s32.totalorder %s17, 0
      %p100 = por %p98, %p99
      %p101 = scmp.ne.s32.totalorder %s93, %s95
      %p102 = scmp.eq.s32.totalorder %s22, 1
      %p103 = por %p101, %p102
      %p104 = scmp.ne.s32.totalorder %s95, %s96
      %p105 = scmp.eq.s32.totalorder %s22, 0
      %p106 = por %p104, %p105
      %p107 = scmp.ne.s32.totalorder %s95, %s96
      %p108 = scmp.eq.s32.totalorder %s23, 1
      %p109 = por %p107, %p108
      %p111 = scmp.ne.s32.totalorder %s96, %s110
      %p112 = scmp.eq.s32.totalorder %s23, 0
      %p113 = por %p111, %p112
      %s115 = sadd.s32 %s114, 1
      %p118 = scmp.eq.s32.totalorder %s17, 1
      %p119 = scmp.ne.s32.totalorder %s114, %s116
      %p120 = scmp.eq.s32.totalorder %s17, 0
      %p121 = por %p119, %p120
      %p122 = scmp.ne.s32.totalorder %s114, %s116
      %p123 = scmp.eq.s32.totalorder %s22, 1
      %p124 = por %p122, %p123
      %p125 = scmp.ne.s32.totalorder %s116, %s117
      %p126 = scmp.eq.s32.totalorder %s22, 0
      %p127 = por %p125, %p126
      %p128 = scmp.ne.s32.totalorder %s116, %s117
      %p129 = scmp.eq.s32.totalorder %s23, 1
      %p130 = por %p128, %p129
      %p132 = scmp.ne.s32.totalorder %s117, %s131
      %p133 = scmp.eq.s32.totalorder %s23, 0
      %p134 = por %p132, %p133
      %s136 = sadd.s32 %s135, 1
      %p139 = scmp.eq.s32.totalorder %s17, 1
      %p140 = scmp.ne.s32.totalorder %s135, %s137
      %p141 = scmp.eq.s32.totalorder %s17, 0
      %p142 = por %p140, %p141
      %p143 = scmp.ne.s32.totalorder %s135, %s137
      %p144 = scmp.eq.s32.totalorder %s22, 1
      %p145 = por %p143, %p144
      %p146 = scmp.ne.s32.totalorder %s137, %s138
      %p147 = scmp.eq.s32.totalorder %s22, 0
      %p148 = por %p146, %p147
      %p149 = scmp.ne.s32.totalorder %s137, %s138
      %p150 = scmp.eq.s32.totalorder %s23, 1
      %p151 = por %p149, %p150
      %p153 = scmp.ne.s32.totalorder %s138, %s152
      %p154 = scmp.eq.s32.totalorder %s23, 0
      %p155 = por %p153, %p154
      %s157 = sadd.s32 %s156, 1
      %p160 = scmp.eq.s32.totalorder %s17, 1
      %p161 = scmp.ne.s32.totalorder %s156, %s158
      %p162 = scmp.eq.s32.totalorder %s17, 0
      %p163 = por %p161, %p162
      %p164 = scmp.ne.s32.totalorder %s156, %s158
      %p165 = scmp.eq.s32.totalorder %s22, 1
      %p166 = por %p164, %p165
      %p167 = scmp.ne.s32.totalorder %s158, %s159
      %p168 = scmp.eq.s32.totalorder %s22, 0
      %p169 = por %p167, %p168
      %p170 = scmp.ne.s32.totalorder %s158, %s159
      %p171 = scmp.eq.s32.totalorder %s23, 1
      %p172 = por %p170, %p171
      %p174 = scmp.ne.s32.totalorder %s159, %s173
      %p175 = scmp.eq.s32.totalorder %s23, 0
      %p176 = por %p174, %p175
      %s178 = sadd.s32 %s177, 1
      %p181 = scmp.eq.s32.totalorder %s17, 1
      %p182 = scmp.ne.s32.totalorder %s177, %s179
      %p183 = scmp.eq.s32.totalorder %s17, 0
      %p184 = por %p182, %p183
      %p185 = scmp.ne.s32.totalorder %s177, %s179
      %p186 = scmp.eq.s32.totalorder %s22, 1
      %p187 = por %p185, %p186
      %p188 = scmp.ne.s32.totalorder %s179, %s180
      %p189 = scmp.eq.s32.totalorder %s22, 0
      %p190 = por %p188, %p189
      %p191 = scmp.ne.s32.totalorder %s179, %s180
      %p192 = scmp.eq.s32.totalorder %s23, 1
      %p193 = por %p191, %p192
      %p195 = scmp.ne.s32.totalorder %s180, %s194
      %p196 = scmp.eq.s32.totalorder %s23, 0
      %p197 = por %p195, %p196
      %s199 = sadd.s32 %s198, 1
      %p202 = scmp.eq.s32.totalorder %s17, 1
      %p203 = scmp.ne.s32.totalorder %s198, %s200
      %p204 = scmp.eq.s32.totalorder %s17, 0
      %p205 = por %p203, %p204
      %p206 = scmp.ne.s32.totalorder %s198, %s200
      %p207 = scmp.eq.s32.totalorder %s22, 1
      %p208 = por %p206, %p207
      %p209 = scmp.ne.s32.totalorder %s200, %s201
      %p210 = scmp.eq.s32.totalorder %s22, 0
      %p211 = por %p209, %p210
      %p212 = scmp.ne.s32.totalorder %s200, %s201
      %p213 = scmp.eq.s32.totalorder %s23, 1
      %p214 = por %p212, %p213
      %p216 = scmp.ne.s32.totalorder %s201, %s215
      %p217 = scmp.eq.s32.totalorder %s23, 0
      %p218 = por %p216, %p217
      %s220 = sadd.s32 %s219, 1
      %p223 = scmp.eq.s32.totalorder %s17, 1
      %p224 = scmp.ne.s32.totalorder %s219, %s221
      %p225 = scmp.eq.s32.totalorder %s17, 0
      %p226 = por %p224, %p225
      %p227 = scmp.ne.s32.totalorder %s219, %s221
      %p228 = scmp.eq.s32.totalorder %s22, 1
      %p229 = por %p227, %p228
      %p230 = scmp.ne.s32.totalorder %s221, %s222
      %p231 = scmp.eq.s32.totalorder %s22, 0
      %p232 = por %p230, %p231
      %p233 = scmp.ne.s32.totalorder %s221, %s222
      %p234 = scmp.eq.s32.totalorder %s23, 1
      %p235 = por %p233, %p234
      %p237 = scmp.ne.s32.totalorder %s222, %s236
      %p238 = scmp.eq.s32.totalorder %s23, 0
      %p239 = por %p237, %p238
      %s240 = ssub.s32 %s17, %s24
      %p241 = scmp.eq.s32.totalorder %s240, 0
      %s243 = sadd.s32 %s242, 1
      %s244 = scalar_select %p241, %s242, %s243
      %p247 = pneg %p241
      %p248 = scmp.eq.s32.totalorder %s17, 1
      %p249 = por %p247, %p248
      %p250 = scmp.ne.s32.totalorder %s242, %s245
      %p251 = scmp.eq.s32.totalorder %s17, 0
      %p252 = por %p250, %p251
      %p253 = scmp.ne.s32.totalorder %s242, %s245
      %p254 = scmp.eq.s32.totalorder %s22, 1
      %p255 = por %p253, %p254
      %p256 = scmp.ne.s32.totalorder %s245, %s246
      %p257 = scmp.eq.s32.totalorder %s22, 0
      %p258 = por %p256, %p257
      %p259 = scmp.ne.s32.totalorder %s245, %s246
      %p260 = scmp.eq.s32.totalorder %s23, 1
      %p261 = por %p259, %p260
      %p263 = scmp.ne.s32.totalorder %s246, %s262
      %p264 = scmp.eq.s32.totalorder %s23, 0
      %p265 = por %p263, %p264
      %p266 = scmp.le.s32.totalorder 1, %s17
      %p267 = scmp.lt.s32.totalorder %s17, 3
      %p268 = pnand %p266, %p267
      %p269 = pneg %p268
      // Predicated region
      $region9: #{tpu_custom_call.1} parent=5 // pred_check
        _
      $region10: #{tpu_custom_call.1} parent=5 // pred_check_branch
        %271 = sbr.rel (%p268) target = $region12
      $region11: #{tpu_custom_call.1} parent=5 // pred_region
        %s272 = ssub.s32 %s17, 1
        // Predicated region
        $region13: #{tpu_custom_call.1} parent=11 // pred_check
          %p273 = pneg %p38
        $region14: #{tpu_custom_call.1} parent=11 // pred_check_branch
          %275 = sbr.rel (%p273) target = $region16
        $region15: #{tpu_custom_call.1} parent=11 // pred_region
          %s277 = ssub.s32 16, 16
          %278 = vsyncadd [#allocation3], %s277
          %s280 = sshll.u32 %s0, 4
          %s281 = int_to_ptr.vmem [resolvable:$true] %s280
          %283 = dma.vmem_to_smem %s281, 16, [#allocation2], [#allocation3]
        $region16: #{tpu_custom_call.1} parent=11 // pred_fallthru
          _
        // Predicated region
        $region17: #{tpu_custom_call.1} parent=11 // pred_check
          %p284 = pneg %p85
        $region18: #{tpu_custom_call.1} parent=11 // pred_check_branch
          %286 = sbr.rel (%p284) target = $region20
        $region19: #{tpu_custom_call.1} parent=11 // pred_region
          _
        $region20: #{tpu_custom_call.1} parent=11 // pred_fallthru
          _
        // Predicated region
        $region21: #{tpu_custom_call.1} parent=11 // pred_check
          %p287 = pneg %p106
        $region22: #{tpu_custom_call.1} parent=11 // pred_check_branch
          %289 = sbr.rel (%p287) target = $region24
        $region23: #{tpu_custom_call.1} parent=11 // pred_region
          _
        $region24: #{tpu_custom_call.1} parent=11 // pred_fallthru
          _
        // Predicated region
        $region25: #{tpu_custom_call.1} parent=11 // pred_check
          %p290 = pneg %p127
        $region26: #{tpu_custom_call.1} parent=11 // pred_check_branch
          %292 = sbr.rel (%p290) target = $region28
        $region27: #{tpu_custom_call.1} parent=11 // pred_region
          _
        $region28: #{tpu_custom_call.1} parent=11 // pred_fallthru
          _
        // Predicated region
        $region29: #{tpu_custom_call.1} parent=11 // pred_check
          %p293 = pneg %p148
        $region30: #{tpu_custom_call.1} parent=11 // pred_check_branch
          %295 = sbr.rel (%p293) target = $region32
        $region31: #{tpu_custom_call.1} parent=11 // pred_region
          _
        $region32: #{tpu_custom_call.1} parent=11 // pred_fallthru
          _
        // Predicated region
        $region33: #{tpu_custom_call.1} parent=11 // pred_check
          %p296 = pneg %p169
        $region34: #{tpu_custom_call.1} parent=11 // pred_check_branch
          %298 = sbr.rel (%p296) target = $region36
        $region35: #{tpu_custom_call.1} parent=11 // pred_region
          _
        $region36: #{tpu_custom_call.1} parent=11 // pred_fallthru
          _
        // Predicated region
        $region37: #{tpu_custom_call.1} parent=11 // pred_check
          %p299 = pneg %p190
        $region38: #{tpu_custom_call.1} parent=11 // pred_check_branch
          %301 = sbr.rel (%p299) target = $region40
        $region39: #{tpu_custom_call.1} parent=11 // pred_region
          _
        $region40: #{tpu_custom_call.1} parent=11 // pred_fallthru
          _
        // Predicated region
        $region41: #{tpu_custom_call.1} parent=11 // pred_check
          %p302 = pneg %p211
        $region42: #{tpu_custom_call.1} parent=11 // pred_check_branch
          %304 = sbr.rel (%p302) target = $region44
        $region43: #{tpu_custom_call.1} parent=11 // pred_region
          _
        $region44: #{tpu_custom_call.1} parent=11 // pred_fallthru
          _
        // Predicated region
        $region45: #{tpu_custom_call.1} parent=11 // pred_check
          %p305 = pneg %p232
        $region46: #{tpu_custom_call.1} parent=11 // pred_check_branch
          %307 = sbr.rel (%p305) target = $region48
        $region47: #{tpu_custom_call.1} parent=11 // pred_region
          _
        $region48: #{tpu_custom_call.1} parent=11 // pred_fallthru
          _
      $region12: #{tpu_custom_call.1} parent=5 // pred_fallthru
        _
      %p308 = scmp.lt.s32.totalorder %s17, 2
      // Predicated region
      $region49: #{tpu_custom_call.1} parent=5 // pred_check
        %p309 = pneg %p308
      $region50: #{tpu_custom_call.1} parent=5 // pred_check_branch
        %311 = sbr.rel (%p309) target = $region52
      $region51: #{tpu_custom_call.1} parent=5 // pred_region
        // Predicated region
        $region53: #{tpu_custom_call.1} parent=51 // pred_check
          %p312 = pneg %p58
        $region54: #{tpu_custom_call.1} parent=51 // pred_check_branch
          %314 = sbr.rel (%p312) target = $region56
        $region55: #{tpu_custom_call.1} parent=51 // pred_region
          %p315 = scmp.lt.s32.totalorder %s17, 1
          %s316 = scalar_select %p315, %s17, 1
          %s317 = smul.addr %s316, 32
          %s318 = smul.addr %s317, 4
          %s319 = scalar_lea.vmem %s1, %s318
        $region56: #{tpu_custom_call.1} parent=51 // pred_fallthru
          _
      $region52: #{tpu_custom_call.1} parent=5 // pred_fallthru
        _
      %p320 = scmp.le.s32.totalorder 1, %s17
      %p321 = scmp.lt.s32.totalorder %s17, 3
      %p322 = pnand %p320, %p321
      %p323 = pneg %p322
      // Predicated region
      $region57: #{tpu_custom_call.1} parent=5 // pred_check
        _
      $region58: #{tpu_custom_call.1} parent=5 // pred_check_branch
        %325 = sbr.rel (%p322) target = $region60
      $region59: #{tpu_custom_call.1} parent=5 // pred_region
        %s326 = ssub.s32 %s17, 1
        // Predicated region
        $region61: #{tpu_custom_call.1} parent=59 // pred_check
          %p327 = pneg %p38
        $region62: #{tpu_custom_call.1} parent=59 // pred_check_branch
          %329 = sbr.rel (%p327) target = $region64
        $region63: #{tpu_custom_call.1} parent=59 // pred_region
          %330 = dma.done [#allocation3], 16
        $region64: #{tpu_custom_call.1} parent=59 // pred_fallthru
          _
        %331 = sfence
        %p332 = pneg %p38
        %p333 = pneg %p35
        %p334 = scmp.lt.s32.totalorder %s22, 1
        %s335 = scalar_select %p334, %s22, 1
        %s336 = smul.addr %s335, 32
        %s337 = smul.addr %s336, 4
        %s338 = scalar_lea.vmem %s1, %s337
        %p339 = pneg %p64
        %p340 = pneg %p61
        %p341 = pneg %p85
        %p342 = pneg %p82
        %p343 = pneg %p106
        %p344 = pneg %p103
        %p345 = pneg %p127
        %p346 = pneg %p124
        %p347 = pneg %p148
        %p348 = pneg %p145
        %p349 = pneg %p169
        %p350 = pneg %p166
        %p351 = pneg %p190
        %p352 = pneg %p187
        %p353 = pneg %p211
        %p354 = pneg %p208
        %p355 = pneg %p232
        %p356 = pneg %p229
        %p357 = pneg %p258
        %p358 = pneg %p255
        %p359 = scmp.lt.s32.totalorder %s22, 1
        %s360 = scalar_select %p359, %s22, 1
        %s361 = smul.addr %s360, 32
        %s362 = smul.addr %s361, 8
        %s363 = scalar_lea.vmem %s10, %s362
        %p364 = scmp.lt.s32.totalorder %s22, 1
        %s365 = scalar_select %p364, %s22, 1
        %s366 = smul.addr %s365, 32
        %s367 = smul.addr %s366, 4
        %s368 = scalar_lea.vmem %s1, %s367
        %p369 = scmp.lt.s32.totalorder %s22, 1
        %s370 = scalar_select %p369, %s22, 1
        %s371 = smul.addr %s370, 32
        %s372 = smul.addr %s371, 8
        %s373 = scalar_lea.vmem %s10, %s372
        %v375 = vld [vmem:[%s368] sm:$0xf]
        %v376 = vld [vmem:[%s368 + $0x4] sm:$0xf]
        %v377 = vld [vmem:[%s368 + $0x8] sm:$0xf]
        %v378 = vld [vmem:[%s368 + $0xc] sm:$0xf]
        %v379 = vld [vmem:[%s368 + $0x10] sm:$0xf]
        %v380 = vld [vmem:[%s368 + $0x14] sm:$0xf]
        %v381 = vld [vmem:[%s368 + $0x18] sm:$0xf]
        %v382 = vld [vmem:[%s368 + $0x1c] sm:$0xf]
        %v383 = vld [vmem:[%s368 + $0x20] sm:$0xf]
        %v384 = vld [vmem:[%s368 + $0x24] sm:$0xf]
        %v385 = vld [vmem:[%s368 + $0x28] sm:$0xf]
        %v386 = vld [vmem:[%s368 + $0x2c] sm:$0xf]
        %v387 = vld [vmem:[%s368 + $0x30] sm:$0xf]
        %v388 = vld [vmem:[%s368 + $0x34] sm:$0xf]
        %v389 = vld [vmem:[%s368 + $0x38] sm:$0xf]
        %v390 = vld [vmem:[%s368 + $0x3c] sm:$0xf]
        %v391 = vld [vmem:[%s368 + $0x40] sm:$0xf]
        %v392 = vld [vmem:[%s368 + $0x44] sm:$0xf]
        %v393 = vld [vmem:[%s368 + $0x48] sm:$0xf]
        %v394 = vld [vmem:[%s368 + $0x4c] sm:$0xf]
        %v395 = vld [vmem:[%s368 + $0x50] sm:$0xf]
        %v396 = vld [vmem:[%s368 + $0x54] sm:$0xf]
        %v397 = vld [vmem:[%s368 + $0x58] sm:$0xf]
        %v398 = vld [vmem:[%s368 + $0x5c] sm:$0xf]
        %v399 = vld [vmem:[%s368 + $0x60] sm:$0xf]
        %v400 = vld [vmem:[%s368 + $0x64] sm:$0xf]
        %v401 = vld [vmem:[%s368 + $0x68] sm:$0xf]
        %v402 = vld [vmem:[%s368 + $0x6c] sm:$0xf]
        %v403 = vld [vmem:[%s368 + $0x70] sm:$0xf]
        %v404 = vld [vmem:[%s368 + $0x74] sm:$0xf]
        %v405 = vld [vmem:[%s368 + $0x78] sm:$0xf]
        %v406 = vld [vmem:[%s368 + $0x7c] sm:$0xf]
        %v407 = vld [vmem:[%s2] sm:$0xf]
        %v408 = vld [vmem:[%s3] sm:$0x1]
        %v410 = vlaneseq
        %v411 = vshrl.u32 %v410, 7
        %v412 = vsub.s32 0, %v411
        %v413 = vrot.slane %v408, %v412
        %v447 = vunpack.c.l.b16 %v375
        %v448 = vunpack.c.l.b16 %v376
        %v449 = vunpack.c.l.b16 %v377
        %v450 = vunpack.c.l.b16 %v378
        %v451 = vunpack.c.l.b16 %v379
        %v452 = vunpack.c.l.b16 %v380
        %v453 = vunpack.c.l.b16 %v381
        %v454 = vunpack.c.l.b16 %v382
        %v455 = vunpack.c.l.b16 %v383
        %v456 = vunpack.c.l.b16 %v384
        %v457 = vunpack.c.l.b16 %v385
        %v458 = vunpack.c.l.b16 %v386
        %v459 = vunpack.c.l.b16 %v387
        %v460 = vunpack.c.l.b16 %v388
        %v461 = vunpack.c.l.b16 %v389
        %v462 = vunpack.c.l.b16 %v390
        %v463 = vunpack.c.l.b16 %v391
        %v464 = vunpack.c.l.b16 %v392
        %v465 = vunpack.c.l.b16 %v393
        %v466 = vunpack.c.l.b16 %v394
        %v467 = vunpack.c.l.b16 %v395
        %v468 = vunpack.c.l.b16 %v396
        %v469 = vunpack.c.l.b16 %v397
        %v470 = vunpack.c.l.b16 %v398
        %v471 = vunpack.c.l.b16 %v399
        %v472 = vunpack.c.l.b16 %v400
        %v473 = vunpack.c.l.b16 %v401
        %v474 = vunpack.c.l.b16 %v402
        %v475 = vunpack.c.l.b16 %v403
        %v476 = vunpack.c.l.b16 %v404
        %v477 = vunpack.c.l.b16 %v405
        %v478 = vunpack.c.l.b16 %v406
        %v479 = vpack.c.b16 %v448, %v447
        %v480 = vpack.c.b16 %v450, %v449
        %v481 = vpack.c.b16 %v452, %v451
        %v482 = vpack.c.b16 %v454, %v453
        %v483 = vpack.c.b16 %v456, %v455
        %v484 = vpack.c.b16 %v458, %v457
        %v485 = vpack.c.b16 %v460, %v459
        %v486 = vpack.c.b16 %v462, %v461
        %v487 = vpack.c.b16 %v464, %v463
        %v488 = vpack.c.b16 %v466, %v465
        %v489 = vpack.c.b16 %v468, %v467
        %v490 = vpack.c.b16 %v470, %v469
        %v491 = vpack.c.b16 %v472, %v471
        %v492 = vpack.c.b16 %v474, %v473
        %v493 = vpack.c.b16 %v476, %v475
        %v494 = vpack.c.b16 %v478, %v477
        %vm495 = vcmask 64512
        %v497 = vsel %vm495, %v479, 0
        %v500 = vsel %vm495, %v480, 0
        %v503 = vsel %vm495, %v481, 0
        %v506 = vsel %vm495, %v482, 0
        %v509 = vsel %vm495, %v483, 0
        %v512 = vsel %vm495, %v484, 0
        %v515 = vsel %vm495, %v485, 0
        %v518 = vsel %vm495, %v486, 0
        %v521 = vsel %vm495, %v487, 0
        %v524 = vsel %vm495, %v488, 0
        %v527 = vsel %vm495, %v489, 0
        %v530 = vsel %vm495, %v490, 0
        %v533 = vsel %vm495, %v491, 0
        %v536 = vsel %vm495, %v492, 0
        %v539 = vsel %vm495, %v493, 0
        %v542 = vsel %vm495, %v494, 0
        %vm544 = vcmask 1043456
        %v546 = vsel %vm544, %v407, 0
        %548 = vmatprep.subr.bf16.mxu0 0
        %549 = vmatpush1.bf16.msra.mxu0 %v546
        %550 = vmatprep.subr.bf16.mxu0 0
        %551 = vmatpush1.bf16.msra.mxu0 0
        %552 = vmatprep.subr.bf16.mxu0 0
        %553 = vmatpush1.bf16.msra.mxu0 0
        %554 = vmatprep.subr.bf16.mxu0 0
        %555 = vmatpush1.bf16.msra.mxu0 0
        %556 = vmatprep.subr.bf16.mxu0 0
        %557 = vmatpush1.bf16.msra.mxu0 0
        %558 = vmatprep.subr.bf16.mxu0 0
        %559 = vmatpush1.bf16.msra.mxu0 0
        %560 = vmatprep.subr.bf16.mxu0 0
        %561 = vmatpush1.bf16.msra.mxu0 0
        %562 = vmatprep.subr.bf16.mxu0 0
        %563 = vmatpush1.bf16.msra.mxu0 0
        %564 = vmatprep.subr.bf16.mxu0 0
        %565 = vmatpush1.bf16.msra.mxu0 0
        %566 = vmatprep.subr.bf16.mxu0 0
        %567 = vmatpush1.bf16.msra.mxu0 0
        %568 = vmatprep.subr.bf16.mxu0 0
        %569 = vmatpush1.bf16.msra.mxu0 0
        %570 = vmatprep.subr.bf16.mxu0 0
        %571 = vmatpush1.bf16.msra.mxu0 0
        %572 = vmatprep.subr.bf16.mxu0 0
        %573 = vmatpush1.bf16.msra.mxu0 0
        %574 = vmatprep.subr.bf16.mxu0 0
        %575 = vmatpush1.bf16.msra.mxu0 0
        %576 = vmatprep.subr.bf16.mxu0 0
        %577 = vmatpush1.bf16.msra.mxu0 0
        %578 = vmatprep.subr.bf16.mxu0 0
        %579 = vmatpush1.bf16.msra.mxu0 0
        %580 = vmatprep.mubr.bf16.mxu0 0
        %581 = vmatmul.mubr.bf16.gmra.mrb[0].mxu0 %v497
        %v582 = vpop.f32.mrb[0].mxu0
        %v583 = vadd.f32 %v413, %v582
        %v584 = vpop.f32.mrb[0].mxu0
        %v585 = vpop.f32.mrb[0].mxu0
        %v586 = vadd.f32 %v413, %v585
        %v587 = vpop.f32.mrb[0].mxu0
        %588 = vmatprep.mubr.bf16.mxu0 0
        %589 = vmatmul.mubr.bf16.gmra.mrb[0].mxu0 %v500
        %v590 = vpop.f32.mrb[0].mxu0
        %v591 = vadd.f32 %v413, %v590
        %v592 = vpop.f32.mrb[0].mxu0
        %v593 = vpop.f32.mrb[0].mxu0
        %v594 = vadd.f32 %v413, %v593
        %v595 = vpop.f32.mrb[0].mxu0
        %596 = vmatprep.mubr.bf16.mxu0 0
        %597 = vmatmul.mubr.bf16.gmra.mrb[0].mxu0 %v503
        %v598 = vpop.f32.mrb[0].mxu0
        %v599 = vadd.f32 %v413, %v598
        %v600 = vpop.f32.mrb[0].mxu0
        %v601 = vpop.f32.mrb[0].mxu0
        %v602 = vadd.f32 %v413, %v601
        %v603 = vpop.f32.mrb[0].mxu0
        %604 = vmatprep.mubr.bf16.mxu0 0
        %605 = vmatmul.mubr.bf16.gmra.mrb[0].mxu0 %v506
        %v606 = vpop.f32.mrb[0].mxu0
        %v607 = vadd.f32 %v413, %v606
        %v608 = vpop.f32.mrb[0].mxu0
        %v609 = vpop.f32.mrb[0].mxu0
        %v610 = vadd.f32 %v413, %v609
        %v611 = vpop.f32.mrb[0].mxu0
        %612 = vmatprep.mubr.bf16.mxu0 0
        %613 = vmatmul.mubr.bf16.gmra.mrb[0].mxu0 %v509
        %v614 = vpop.f32.mrb[0].mxu0
        %v615 = vadd.f32 %v413, %v614
        %v616 = vpop.f32.mrb[0].mxu0
        %v617 = vpop.f32.mrb[0].mxu0
        %v618 = vadd.f32 %v413, %v617
        %v619 = vpop.f32.mrb[0].mxu0
        %620 = vmatprep.mubr.bf16.mxu0 0
        %621 = vmatmul.mubr.bf16.gmra.mrb[0].mxu0 %v512
        %v622 = vpop.f32.mrb[0].mxu0
        %v623 = vadd.f32 %v413, %v622
        %v624 = vpop.f32.mrb[0].mxu0
        %v625 = vpop.f32.mrb[0].mxu0
        %v626 = vadd.f32 %v413, %v625
        %v627 = vpop.f32.mrb[0].mxu0
        %628 = vmatprep.mubr.bf16.mxu0 0
        %629 = vmatmul.mubr.bf16.gmra.mrb[0].mxu0 %v515
        %v630 = vpop.f32.mrb[0].mxu0
        %v631 = vadd.f32 %v413, %v630
        %v632 = vpop.f32.mrb[0].mxu0
        %v633 = vpop.f32.mrb[0].mxu0
        %v634 = vadd.f32 %v413, %v633
        %v635 = vpop.f32.mrb[0].mxu0
        %636 = vmatprep.mubr.bf16.mxu0 0
        %637 = vmatmul.mubr.bf16.gmra.mrb[0].mxu0 %v518
        %v638 = vpop.f32.mrb[0].mxu0
        %v639 = vadd.f32 %v413, %v638
        %v640 = vpop.f32.mrb[0].mxu0
        %v641 = vpop.f32.mrb[0].mxu0
        %v642 = vadd.f32 %v413, %v641
        %v643 = vpop.f32.mrb[0].mxu0
        %644 = vmatprep.mubr.bf16.mxu0 0
        %645 = vmatmul.mubr.bf16.gmra.mrb[0].mxu0 %v521
        %v646 = vpop.f32.mrb[0].mxu0
        %v647 = vadd.f32 %v413, %v646
        %v648 = vpop.f32.mrb[0].mxu0
        %v649 = vpop.f32.mrb[0].mxu0
        %v650 = vadd.f32 %v413, %v649
        %v651 = vpop.f32.mrb[0].mxu0
        %652 = vmatprep.mubr.bf16.mxu0 0
        %653 = vmatmul.mubr.bf16.gmra.mrb[0].mxu0 %v524
        %v654 = vpop.f32.mrb[0].mxu0
        %v655 = vadd.f32 %v413, %v654
        %v656 = vpop.f32.mrb[0].mxu0
        %v657 = vpop.f32.mrb[0].mxu0
        %v658 = vadd.f32 %v413, %v657
        %v659 = vpop.f32.mrb[0].mxu0
        %660 = vmatprep.mubr.bf16.mxu0 0
        %661 = vmatmul.mubr.bf16.gmra.mrb[0].mxu0 %v527
        %v662 = vpop.f32.mrb[0].mxu0
        %v663 = vadd.f32 %v413, %v662
        %v664 = vpop.f32.mrb[0].mxu0
        %v665 = vpop.f32.mrb[0].mxu0
        %v666 = vadd.f32 %v413, %v665
        %v667 = vpop.f32.mrb[0].mxu0
        %668 = vmatprep.mubr.bf16.mxu0 0
        %669 = vmatmul.mubr.bf16.gmra.mrb[0].mxu0 %v530
        %v670 = vpop.f32.mrb[0].mxu0
        %v671 = vadd.f32 %v413, %v670
        %v672 = vpop.f32.mrb[0].mxu0
        %v673 = vpop.f32.mrb[0].mxu0
        %v674 = vadd.f32 %v413, %v673
        %v675 = vpop.f32.mrb[0].mxu0
        %676 = vmatprep.mubr.bf16.mxu0 0
        %677 = vmatmul.mubr.bf16.gmra.mrb[0].mxu0 %v533
        %v678 = vpop.f32.mrb[0].mxu0
        %v679 = vadd.f32 %v413, %v678
        %v680 = vpop.f32.mrb[0].mxu0
        %v681 = vpop.f32.mrb[0].mxu0
        %v682 = vadd.f32 %v413, %v681
        %v683 = vpop.f32.mrb[0].mxu0
        %684 = vmatprep.mubr.bf16.mxu0 0
        %685 = vmatmul.mubr.bf16.gmra.mrb[0].mxu0 %v536
        %v686 = vpop.f32.mrb[0].mxu0
        %v687 = vadd.f32 %v413, %v686
        %v688 = vpop.f32.mrb[0].mxu0
        %v689 = vpop.f32.mrb[0].mxu0
        %v690 = vadd.f32 %v413, %v689
        %v691 = vpop.f32.mrb[0].mxu0
        %692 = vmatprep.mubr.bf16.mxu0 0
        %693 = vmatmul.mubr.bf16.gmra.mrb[0].mxu0 %v539
        %v694 = vpop.f32.mrb[0].mxu0
        %v695 = vadd.f32 %v413, %v694
        %v696 = vpop.f32.mrb[0].mxu0
        %v697 = vpop.f32.mrb[0].mxu0
        %v698 = vadd.f32 %v413, %v697
        %v699 = vpop.f32.mrb[0].mxu0
        %700 = vmatprep.mubr.bf16.mxu0 0
        %701 = vmatmul.mubr.bf16.gmra.mrb[0].mxu0 %v542
        %v702 = vpop.f32.mrb[0].mxu0
        %v703 = vadd.f32 %v413, %v702
        %v704 = vpop.f32.mrb[0].mxu0
        %v705 = vpop.f32.mrb[0].mxu0
        %v706 = vadd.f32 %v413, %v705
        %v707 = vpop.f32.mrb[0].mxu0
        %708 = vdwg.mxu0
        %v709 = vmul.f32 %v583, 0.5
        %v710 = vmul.f32 %v586, 0.5
        %v711 = vmul.f32 %v591, 0.5
        %v712 = vmul.f32 %v594, 0.5
        %v713 = vmul.f32 %v599, 0.5
        %v714 = vmul.f32 %v602, 0.5
        %v715 = vmul.f32 %v607, 0.5
        %v716 = vmul.f32 %v610, 0.5
        %v717 = vmul.f32 %v615, 0.5
        %v718 = vmul.f32 %v618, 0.5
        %v719 = vmul.f32 %v623, 0.5
        %v720 = vmul.f32 %v626, 0.5
        %v721 = vmul.f32 %v631, 0.5
        %v722 = vmul.f32 %v634, 0.5
        %v723 = vmul.f32 %v639, 0.5
        %v724 = vmul.f32 %v642, 0.5
        %v725 = vmul.f32 %v647, 0.5
        %v726 = vmul.f32 %v650, 0.5
        %v727 = vmul.f32 %v655, 0.5
        %v728 = vmul.f32 %v658, 0.5
        %v729 = vmul.f32 %v663, 0.5
        %v730 = vmul.f32 %v666, 0.5
        %v731 = vmul.f32 %v671, 0.5
        %v732 = vmul.f32 %v674, 0.5
        %v733 = vmul.f32 %v679, 0.5
        %v734 = vmul.f32 %v682, 0.5
        %v735 = vmul.f32 %v687, 0.5
        %v736 = vmul.f32 %v690, 0.5
        %v737 = vmul.f32 %v695, 0.5
        %v738 = vmul.f32 %v698, 0.5
        %v739 = vmul.f32 %v703, 0.5
        %v740 = vmul.f32 %v706, 0.5
        %v741 = vtanh.pop %v709
        %v742 = vtanh.pop %v710
        %v743 = vtanh.pop %v711
        %v744 = vtanh.pop %v712
        %v745 = vtanh.pop %v713
        %v746 = vtanh.pop %v714
        %v747 = vtanh.pop %v715
        %v748 = vtanh.pop %v716
        %v749 = vtanh.pop %v717
        %v750 = vtanh.pop %v718
        %v751 = vtanh.pop %v719
        %v752 = vtanh.pop %v720
        %v753 = vtanh.pop %v721
        %v754 = vtanh.pop %v722
        %v755 = vtanh.pop %v723
        %v756 = vtanh.pop %v724
        %v757 = vtanh.pop %v725
        %v758 = vtanh.pop %v726
        %v759 = vtanh.pop %v727
        %v760 = vtanh.pop %v728
        %v761 = vtanh.pop %v729
        %v762 = vtanh.pop %v730
        %v763 = vtanh.pop %v731
        %v764 = vtanh.pop %v732
        %v765 = vtanh.pop %v733
        %v766 = vtanh.pop %v734
        %v767 = vtanh.pop %v735
        %v768 = vtanh.pop %v736
        %v769 = vtanh.pop %v737
        %v770 = vtanh.pop %v738
        %v771 = vtanh.pop %v739
        %v772 = vtanh.pop %v740
        %v773 = vmul.f32 %v741, 0.5
        %v774 = vmul.f32 %v742, 0.5
        %v775 = vmul.f32 %v743, 0.5
        %v776 = vmul.f32 %v744, 0.5
        %v777 = vmul.f32 %v745, 0.5
        %v778 = vmul.f32 %v746, 0.5
        %v779 = vmul.f32 %v747, 0.5
        %v780 = vmul.f32 %v748, 0.5
        %v781 = vmul.f32 %v749, 0.5
        %v782 = vmul.f32 %v750, 0.5
        %v783 = vmul.f32 %v751, 0.5
        %v784 = vmul.f32 %v752, 0.5
        %v785 = vmul.f32 %v753, 0.5
        %v786 = vmul.f32 %v754, 0.5
        %v787 = vmul.f32 %v755, 0.5
        %v788 = vmul.f32 %v756, 0.5
        %v789 = vmul.f32 %v757, 0.5
        %v790 = vmul.f32 %v758, 0.5
        %v791 = vmul.f32 %v759, 0.5
        %v792 = vmul.f32 %v760, 0.5
        %v793 = vmul.f32 %v761, 0.5
        %v794 = vmul.f32 %v762, 0.5
        %v795 = vmul.f32 %v763, 0.5
        %v796 = vmul.f32 %v764, 0.5
        %v797 = vmul.f32 %v765, 0.5
        %v798 = vmul.f32 %v766, 0.5
        %v799 = vmul.f32 %v767, 0.5
        %v800 = vmul.f32 %v768, 0.5
        %v801 = vmul.f32 %v769, 0.5
        %v802 = vmul.f32 %v770, 0.5
        %v803 = vmul.f32 %v771, 0.5
        %v804 = vmul.f32 %v772, 0.5
        %v805 = vadd.f32 %v773, 0.5
        %v806 = vadd.f32 %v774, 0.5
        %v807 = vadd.f32 %v775, 0.5
        %v808 = vadd.f32 %v776, 0.5
        %v809 = vadd.f32 %v777, 0.5
        %v810 = vadd.f32 %v778, 0.5
        %v811 = vadd.f32 %v779, 0.5
        %v812 = vadd.f32 %v780, 0.5
        %v813 = vadd.f32 %v781, 0.5
        %v814 = vadd.f32 %v782, 0.5
        %v815 = vadd.f32 %v783, 0.5
        %v816 = vadd.f32 %v784, 0.5
        %v817 = vadd.f32 %v785, 0.5
        %v818 = vadd.f32 %v786, 0.5
        %v819 = vadd.f32 %v787, 0.5
        %v820 = vadd.f32 %v788, 0.5
        %v821 = vadd.f32 %v789, 0.5
        %v822 = vadd.f32 %v790, 0.5
        %v823 = vadd.f32 %v791, 0.5
        %v824 = vadd.f32 %v792, 0.5
        %v825 = vadd.f32 %v793, 0.5
        %v826 = vadd.f32 %v794, 0.5
        %v827 = vadd.f32 %v795, 0.5
        %v828 = vadd.f32 %v796, 0.5
        %v829 = vadd.f32 %v797, 0.5
        %v830 = vadd.f32 %v798, 0.5
        %v831 = vadd.f32 %v799, 0.5
        %v832 = vadd.f32 %v800, 0.5
        %v833 = vadd.f32 %v801, 0.5
        %v834 = vadd.f32 %v802, 0.5
        %v835 = vadd.f32 %v803, 0.5
        %v836 = vadd.f32 %v804, 0.5
        %v837 = vmul.f32 %v583, %v805
        %v838 = vmul.f32 %v586, %v806
        %v839 = vmul.f32 %v591, %v807
        %v840 = vmul.f32 %v594, %v808
        %v841 = vmul.f32 %v599, %v809
        %v842 = vmul.f32 %v602, %v810
        %v843 = vmul.f32 %v607, %v811
        %v844 = vmul.f32 %v610, %v812
        %v845 = vmul.f32 %v615, %v813
        %v846 = vmul.f32 %v618, %v814
        %v847 = vmul.f32 %v623, %v815
        %v848 = vmul.f32 %v626, %v816
        %v849 = vmul.f32 %v631, %v817
        %v850 = vmul.f32 %v634, %v818
        %v851 = vmul.f32 %v639, %v819
        %v852 = vmul.f32 %v642, %v820
        %v853 = vmul.f32 %v647, %v821
        %v854 = vmul.f32 %v650, %v822
        %v855 = vmul.f32 %v655, %v823
        %v856 = vmul.f32 %v658, %v824
        %v857 = vmul.f32 %v663, %v825
        %v858 = vmul.f32 %v666, %v826
        %v859 = vmul.f32 %v671, %v827
        %v860 = vmul.f32 %v674, %v828
        %v861 = vmul.f32 %v679, %v829
        %v862 = vmul.f32 %v682, %v830
        %v863 = vmul.f32 %v687, %v831
        %v864 = vmul.f32 %v690, %v832
        %v865 = vmul.f32 %v695, %v833
        %v866 = vmul.f32 %v698, %v834
        %v867 = vmul.f32 %v703, %v835
        %v868 = vmul.f32 %v706, %v836
        %v869 = vpack.c.bf16 %v838, %v837
        %v870 = vpack.c.bf16 %v840, %v839
        %v871 = vpack.c.bf16 %v842, %v841
        %v872 = vpack.c.bf16 %v844, %v843
        %v873 = vpack.c.bf16 %v846, %v845
        %v874 = vpack.c.bf16 %v848, %v847
        %v875 = vpack.c.bf16 %v850, %v849
        %v876 = vpack.c.bf16 %v852, %v851
        %v877 = vpack.c.bf16 %v854, %v853
        %v878 = vpack.c.bf16 %v856, %v855
        %v879 = vpack.c.bf16 %v858, %v857
        %v880 = vpack.c.bf16 %v860, %v859
        %v881 = vpack.c.bf16 %v862, %v861
        %v882 = vpack.c.bf16 %v864, %v863
        %v883 = vpack.c.bf16 %v866, %v865
        %v884 = vpack.c.bf16 %v868, %v867
        %vm885 = vsmask.f32 256
        %v887 = vshrl.u32 %v869, 16
        %v889 = vrot.slane %v887, 7
        %v890 = vshll.u32 %v869, 16
        %v892 = vor.u32 %v889, %v890
        %v894 = vshrl.u32 %v870, 16
        %v896 = vrot.slane %v894, 7
        %v897 = vshll.u32 %v870, 16
        %v899 = vor.u32 %v896, %v897
        %v900 = vsel %vm885, %v889, %v899
        %v902 = vshrl.u32 %v871, 16
        %v904 = vrot.slane %v902, 7
        %v905 = vshll.u32 %v871, 16
        %v907 = vor.u32 %v904, %v905
        %v908 = vsel %vm885, %v896, %v907
        %v910 = vshrl.u32 %v872, 16
        %v912 = vrot.slane %v910, 7
        %v913 = vshll.u32 %v872, 16
        %v915 = vor.u32 %v912, %v913
        %v916 = vsel %vm885, %v904, %v915
        %v918 = vshrl.u32 %v873, 16
        %v920 = vrot.slane %v918, 7
        %v921 = vshll.u32 %v873, 16
        %v923 = vor.u32 %v920, %v921
        %v924 = vsel %vm885, %v912, %v923
        %v926 = vshrl.u32 %v874, 16
        %v928 = vrot.slane %v926, 7
        %v929 = vshll.u32 %v874, 16
        %v931 = vor.u32 %v928, %v929
        %v932 = vsel %vm885, %v920, %v931
        %v934 = vshrl.u32 %v875, 16
        %v936 = vrot.slane %v934, 7
        %v937 = vshll.u32 %v875, 16
        %v939 = vor.u32 %v936, %v937
        %v940 = vsel %vm885, %v928, %v939
        %v942 = vshrl.u32 %v876, 16
        %v944 = vrot.slane %v942, 7
        %v945 = vshll.u32 %v876, 16
        %v947 = vor.u32 %v944, %v945
        %v948 = vsel %vm885, %v936, %v947
        %v950 = vshrl.u32 %v877, 16
        %v952 = vrot.slane %v950, 7
        %v953 = vshll.u32 %v877, 16
        %v955 = vor.u32 %v952, %v953
        %v956 = vsel %vm885, %v944, %v955
        %v958 = vshrl.u32 %v878, 16
        %v960 = vrot.slane %v958, 7
        %v961 = vshll.u32 %v878, 16
        %v963 = vor.u32 %v960, %v961
        %v964 = vsel %vm885, %v952, %v963
        %v966 = vshrl.u32 %v879, 16
        %v968 = vrot.slane %v966, 7
        %v969 = vshll.u32 %v879, 16
        %v971 = vor.u32 %v968, %v969
        %v972 = vsel %vm885, %v960, %v971
        %v974 = vshrl.u32 %v880, 16
        %v976 = vrot.slane %v974, 7
        %v977 = vshll.u32 %v880, 16
        %v979 = vor.u32 %v976, %v977
        %v980 = vsel %vm885, %v968, %v979
        %v982 = vshrl.u32 %v881, 16
        %v984 = vrot.slane %v982, 7
        %v985 = vshll.u32 %v881, 16
        %v987 = vor.u32 %v984, %v985
        %v988 = vsel %vm885, %v976, %v987
        %v990 = vshrl.u32 %v882, 16
        %v992 = vrot.slane %v990, 7
        %v993 = vshll.u32 %v882, 16
        %v995 = vor.u32 %v992, %v993
        %v996 = vsel %vm885, %v984, %v995
        %v998 = vshrl.u32 %v883, 16
        %v1000 = vrot.slane %v998, 7
        %v1001 = vshll.u32 %v883, 16
        %v1003 = vor.u32 %v1000, %v1001
        %v1004 = vsel %vm885, %v992, %v1003
        %v1006 = vshrl.u32 %v884, 16
        %v1008 = vrot.slane %v1006, 7
        %v1009 = vshll.u32 %v884, 16
        %v1011 = vor.u32 %v1008, %v1009
        %v1012 = vsel %vm885, %v1000, %v1011
        %vm1030 = vcmask 1040384
        %vm1031 = vmand %vm1030, %vm885
        %v1032 = vsel %vm1031, 0, %v892
        %v1033 = vsel %vm1031, %v1008, 0
        %v1034 = vld [vmem:[%s9] sm:$0xf]
        %v1035 = vld [vmem:[%s9 + $0x4] sm:$0xf]
        %v1036 = vld [vmem:[%s9 + $0x8] sm:$0xf]
        %v1037 = vld [vmem:[%s9 + $0xc] sm:$0xf]
        %v1038 = vld [vmem:[%s9 + $0x10] sm:$0xf]
        %v1039 = vld [vmem:[%s9 + $0x14] sm:$0xf]
        %v1040 = vld [vmem:[%s9 + $0x18] sm:$0xf]
        %v1041 = vld [vmem:[%s9 + $0x1c] sm:$0xf]
        %v1042 = vld [vmem:[%s9 + $0x20] sm:$0xf]
        %v1043 = vld [vmem:[%s9 + $0x24] sm:$0xf]
        %v1044 = vld [vmem:[%s9 + $0x28] sm:$0xf]
        %v1045 = vld [vmem:[%s9 + $0x2c] sm:$0xf]
        %v1046 = vld [vmem:[%s9 + $0x30] sm:$0xf]
        %v1047 = vld [vmem:[%s9 + $0x34] sm:$0xf]
        %v1048 = vld [vmem:[%s9 + $0x38] sm:$0xf]
        %v1049 = vld [vmem:[%s9 + $0x3c] sm:$0xf]
        %v1050 = vld [vmem:[%s9 + $0x40] sm:$0xf]
        %v1051 = vld [vmem:[%s9 + $0x44] sm:$0xf]
        %v1052 = vld [vmem:[%s9 + $0x48] sm:$0xf]
        %v1053 = vld [vmem:[%s9 + $0x4c] sm:$0xf]
        %v1054 = vld [vmem:[%s9 + $0x50] sm:$0xf]
        %v1055 = vld [vmem:[%s9 + $0x54] sm:$0xf]
        %v1056 = vld [vmem:[%s9 + $0x58] sm:$0xf]
        %v1057 = vld [vmem:[%s9 + $0x5c] sm:$0xf]
        %v1058 = vld [vmem:[%s9 + $0x60] sm:$0xf]
        %v1059 = vld [vmem:[%s9 + $0x64] sm:$0xf]
        %v1060 = vld [vmem:[%s9 + $0x68] sm:$0xf]
        %v1061 = vld [vmem:[%s9 + $0x6c] sm:$0xf]
        %v1062 = vld [vmem:[%s9 + $0x70] sm:$0xf]
        %v1063 = vld [vmem:[%s9 + $0x74] sm:$0xf]
        %v1064 = vld [vmem:[%s9 + $0x78] sm:$0xf]
        %v1065 = vld [vmem:[%s9 + $0x7c] sm:$0xf]
        %1067 = vset.pattern.permute.xlu0 0
        %1068 = vperm.xlu0 %1067, %v1034
        %v1069 = vpop.permute.xlu0 %1068
        %v1072 = vunpack.c.l.s4 839922192
        %v1073 = vunpack.c.0.s8 %v1072
        %v1074 = vlaneseq
        %v1075 = vshrl.u32 %v1074, 7
        %v1076 = vsub.s32 %v1073, %v1075
        %v1077 = vrot.slane %v1069, %v1076
        %1079 = vset.pattern.permute.xlu0 0
        %1080 = vperm.xlu0 %1079, %v1035
        %v1081 = vpop.permute.xlu0 %1080
        %v1084 = vunpack.c.l.s4 839922192
        %v1085 = vunpack.c.0.s8 %v1084
        %v1086 = vlaneseq
        %v1087 = vshrl.u32 %v1086, 7
        %v1088 = vsub.s32 %v1085, %v1087
        %v1089 = vrot.slane %v1081, %v1088
        %1091 = vset.pattern.permute.xlu0 0
        %1092 = vperm.xlu0 %1091, %v1036
        %v1093 = vpop.permute.xlu0 %1092
        %v1096 = vunpack.c.l.s4 839922192
        %v1097 = vunpack.c.0.s8 %v1096
        %v1098 = vlaneseq
        %v1099 = vshrl.u32 %v1098, 7
        %v1100 = vsub.s32 %v1097, %v1099
        %v1101 = vrot.slane %v1093, %v1100
        %1103 = vset.pattern.permute.xlu0 0
        %1104 = vperm.xlu0 %1103, %v1037
        %v1105 = vpop.permute.xlu0 %1104
        %v1108 = vunpack.c.l.s4 839922192
        %v1109 = vunpack.c.0.s8 %v1108
        %v1110 = vlaneseq
        %v1111 = vshrl.u32 %v1110, 7
        %v1112 = vsub.s32 %v1109, %v1111
        %v1113 = vrot.slane %v1105, %v1112
        %1115 = vset.pattern.permute.xlu0 0
        %1116 = vperm.xlu0 %1115, %v1038
        %v1117 = vpop.permute.xlu0 %1116
        %v1120 = vunpack.c.l.s4 839922192
        %v1121 = vunpack.c.0.s8 %v1120
        %v1122 = vlaneseq
        %v1123 = vshrl.u32 %v1122, 7
        %v1124 = vsub.s32 %v1121, %v1123
        %v1125 = vrot.slane %v1117, %v1124
        %1127 = vset.pattern.permute.xlu0 0
        %1128 = vperm.xlu0 %1127, %v1039
        %v1129 = vpop.permute.xlu0 %1128
        %v1132 = vunpack.c.l.s4 839922192
        %v1133 = vunpack.c.0.s8 %v1132
        %v1134 = vlaneseq
        %v1135 = vshrl.u32 %v1134, 7
        %v1136 = vsub.s32 %v1133, %v1135
        %v1137 = vrot.slane %v1129, %v1136
        %1139 = vset.pattern.permute.xlu0 0
        %1140 = vperm.xlu0 %1139, %v1040
        %v1141 = vpop.permute.xlu0 %1140
        %v1144 = vunpack.c.l.s4 839922192
        %v1145 = vunpack.c.0.s8 %v1144
        %v1146 = vlaneseq
        %v1147 = vshrl.u32 %v1146, 7
        %v1148 = vsub.s32 %v1145, %v1147
        %v1149 = vrot.slane %v1141, %v1148
        %1151 = vset.pattern.permute.xlu0 0
        %1152 = vperm.xlu0 %1151, %v1041
        %v1153 = vpop.permute.xlu0 %1152
        %v1156 = vunpack.c.l.s4 839922192
        %v1157 = vunpack.c.0.s8 %v1156
        %v1158 = vlaneseq
        %v1159 = vshrl.u32 %v1158, 7
        %v1160 = vsub.s32 %v1157, %v1159
        %v1161 = vrot.slane %v1153, %v1160
        %1163 = vset.pattern.permute.xlu0 0
        %1164 = vperm.xlu0 %1163, %v1042
        %v1165 = vpop.permute.xlu0 %1164
        %v1168 = vunpack.c.l.s4 839922192
        %v1169 = vunpack.c.0.s8 %v1168
        %v1170 = vlaneseq
        %v1171 = vshrl.u32 %v1170, 7
        %v1172 = vsub.s32 %v1169, %v1171
        %v1173 = vrot.slane %v1165, %v1172
        %1175 = vset.pattern.permute.xlu0 0
        %1176 = vperm.xlu0 %1175, %v1043
        %v1177 = vpop.permute.xlu0 %1176
        %v1180 = vunpack.c.l.s4 839922192
        %v1181 = vunpack.c.0.s8 %v1180
        %v1182 = vlaneseq
        %v1183 = vshrl.u32 %v1182, 7
        %v1184 = vsub.s32 %v1181, %v1183
        %v1185 = vrot.slane %v1177, %v1184
        %1187 = vset.pattern.permute.xlu0 0
        %1188 = vperm.xlu0 %1187, %v1044
        %v1189 = vpop.permute.xlu0 %1188
        %v1192 = vunpack.c.l.s4 839922192
        %v1193 = vunpack.c.0.s8 %v1192
        %v1194 = vlaneseq
        %v1195 = vshrl.u32 %v1194, 7
        %v1196 = vsub.s32 %v1193, %v1195
        %v1197 = vrot.slane %v1189, %v1196
        %1199 = vset.pattern.permute.xlu0 0
        %1200 = vperm.xlu0 %1199, %v1045
        %v1201 = vpop.permute.xlu0 %1200
        %v1204 = vunpack.c.l.s4 839922192
        %v1205 = vunpack.c.0.s8 %v1204
        %v1206 = vlaneseq
        %v1207 = vshrl.u32 %v1206, 7
        %v1208 = vsub.s32 %v1205, %v1207
        %v1209 = vrot.slane %v1201, %v1208
        %1211 = vset.pattern.permute.xlu0 0
        %1212 = vperm.xlu0 %1211, %v1046
        %v1213 = vpop.permute.xlu0 %1212
        %v1216 = vunpack.c.l.s4 839922192
        %v1217 = vunpack.c.0.s8 %v1216
        %v1218 = vlaneseq
        %v1219 = vshrl.u32 %v1218, 7
        %v1220 = vsub.s32 %v1217, %v1219
        %v1221 = vrot.slane %v1213, %v1220
        %1223 = vset.pattern.permute.xlu0 0
        %1224 = vperm.xlu0 %1223, %v1047
        %v1225 = vpop.permute.xlu0 %1224
        %v1228 = vunpack.c.l.s4 839922192
        %v1229 = vunpack.c.0.s8 %v1228
        %v1230 = vlaneseq
        %v1231 = vshrl.u32 %v1230, 7
        %v1232 = vsub.s32 %v1229, %v1231
        %v1233 = vrot.slane %v1225, %v1232
        %1235 = vset.pattern.permute.xlu0 0
        %1236 = vperm.xlu0 %1235, %v1048
        %v1237 = vpop.permute.xlu0 %1236
        %v1240 = vunpack.c.l.s4 839922192
        %v1241 = vunpack.c.0.s8 %v1240
        %v1242 = vlaneseq
        %v1243 = vshrl.u32 %v1242, 7
        %v1244 = vsub.s32 %v1241, %v1243
        %v1245 = vrot.slane %v1237, %v1244
        %1247 = vset.pattern.permute.xlu0 0
        %1248 = vperm.xlu0 %1247, %v1049
        %v1249 = vpop.permute.xlu0 %1248
        %v1252 = vunpack.c.l.s4 839922192
        %v1253 = vunpack.c.0.s8 %v1252
        %v1254 = vlaneseq
        %v1255 = vshrl.u32 %v1254, 7
        %v1256 = vsub.s32 %v1253, %v1255
        %v1257 = vrot.slane %v1249, %v1256
        %1259 = vset.pattern.permute.xlu0 0
        %1260 = vperm.xlu0 %1259, %v1050
        %v1261 = vpop.permute.xlu0 %1260
        %v1264 = vunpack.c.l.s4 839922192
        %v1265 = vunpack.c.0.s8 %v1264
        %v1266 = vlaneseq
        %v1267 = vshrl.u32 %v1266, 7
        %v1268 = vsub.s32 %v1265, %v1267
        %v1269 = vrot.slane %v1261, %v1268
        %1271 = vset.pattern.permute.xlu0 0
        %1272 = vperm.xlu0 %1271, %v1051
        %v1273 = vpop.permute.xlu0 %1272
        %v1276 = vunpack.c.l.s4 839922192
        %v1277 = vunpack.c.0.s8 %v1276
        %v1278 = vlaneseq
        %v1279 = vshrl.u32 %v1278, 7
        %v1280 = vsub.s32 %v1277, %v1279
        %v1281 = vrot.slane %v1273, %v1280
        %1283 = vset.pattern.permute.xlu0 0
        %1284 = vperm.xlu0 %1283, %v1052
        %v1285 = vpop.permute.xlu0 %1284
        %v1288 = vunpack.c.l.s4 839922192
        %v1289 = vunpack.c.0.s8 %v1288
        %v1290 = vlaneseq
        %v1291 = vshrl.u32 %v1290, 7
        %v1292 = vsub.s32 %v1289, %v1291
        %v1293 = vrot.slane %v1285, %v1292
        %1295 = vset.pattern.permute.xlu0 0
        %1296 = vperm.xlu0 %1295, %v1053
        %v1297 = vpop.permute.xlu0 %1296
        %v1300 = vunpack.c.l.s4 839922192
        %v1301 = vunpack.c.0.s8 %v1300
        %v1302 = vlaneseq
        %v1303 = vshrl.u32 %v1302, 7
        %v1304 = vsub.s32 %v1301, %v1303
        %v1305 = vrot.slane %v1297, %v1304
        %1307 = vset.pattern.permute.xlu0 0
        %1308 = vperm.xlu0 %1307, %v1054
        %v1309 = vpop.permute.xlu0 %1308
        %v1312 = vunpack.c.l.s4 839922192
        %v1313 = vunpack.c.0.s8 %v1312
        %v1314 = vlaneseq
        %v1315 = vshrl.u32 %v1314, 7
        %v1316 = vsub.s32 %v1313, %v1315
        %v1317 = vrot.slane %v1309, %v1316
        %1319 = vset.pattern.permute.xlu0 0
        %1320 = vperm.xlu0 %1319, %v1055
        %v1321 = vpop.permute.xlu0 %1320
        %v1324 = vunpack.c.l.s4 839922192
        %v1325 = vunpack.c.0.s8 %v1324
        %v1326 = vlaneseq
        %v1327 = vshrl.u32 %v1326, 7
        %v1328 = vsub.s32 %v1325, %v1327
        %v1329 = vrot.slane %v1321, %v1328
        %1331 = vset.pattern.permute.xlu0 0
        %1332 = vperm.xlu0 %1331, %v1056
        %v1333 = vpop.permute.xlu0 %1332
        %v1336 = vunpack.c.l.s4 839922192
        %v1337 = vunpack.c.0.s8 %v1336
        %v1338 = vlaneseq
        %v1339 = vshrl.u32 %v1338, 7
        %v1340 = vsub.s32 %v1337, %v1339
        %v1341 = vrot.slane %v1333, %v1340
        %1343 = vset.pattern.permute.xlu0 0
        %1344 = vperm.xlu0 %1343, %v1057
        %v1345 = vpop.permute.xlu0 %1344
        %v1348 = vunpack.c.l.s4 839922192
        %v1349 = vunpack.c.0.s8 %v1348
        %v1350 = vlaneseq
        %v1351 = vshrl.u32 %v1350, 7
        %v1352 = vsub.s32 %v1349, %v1351
        %v1353 = vrot.slane %v1345, %v1352
        %1355 = vset.pattern.permute.xlu0 0
        %1356 = vperm.xlu0 %1355, %v1058
        %v1357 = vpop.permute.xlu0 %1356
        %v1360 = vunpack.c.l.s4 839922192
        %v1361 = vunpack.c.0.s8 %v1360
        %v1362 = vlaneseq
        %v1363 = vshrl.u32 %v1362, 7
        %v1364 = vsub.s32 %v1361, %v1363
        %v1365 = vrot.slane %v1357, %v1364
        %1367 = vset.pattern.permute.xlu0 0
        %1368 = vperm.xlu0 %1367, %v1059
        %v1369 = vpop.permute.xlu0 %1368
        %v1372 = vunpack.c.l.s4 839922192
        %v1373 = vunpack.c.0.s8 %v1372
        %v1374 = vlaneseq
        %v1375 = vshrl.u32 %v1374, 7
        %v1376 = vsub.s32 %v1373, %v1375
        %v1377 = vrot.slane %v1369, %v1376
        %1379 = vset.pattern.permute.xlu0 0
        %1380 = vperm.xlu0 %1379, %v1060
        %v1381 = vpop.permute.xlu0 %1380
        %v1384 = vunpack.c.l.s4 839922192
        %v1385 = vunpack.c.0.s8 %v1384
        %v1386 = vlaneseq
        %v1387 = vshrl.u32 %v1386, 7
        %v1388 = vsub.s32 %v1385, %v1387
        %v1389 = vrot.slane %v1381, %v1388
        %1391 = vset.pattern.permute.xlu0 0
        %1392 = vperm.xlu0 %1391, %v1061
        %v1393 = vpop.permute.xlu0 %1392
        %v1396 = vunpack.c.l.s4 839922192
        %v1397 = vunpack.c.0.s8 %v1396
        %v1398 = vlaneseq
        %v1399 = vshrl.u32 %v1398, 7
        %v1400 = vsub.s32 %v1397, %v1399
        %v1401 = vrot.slane %v1393, %v1400
        %1403 = vset.pattern.permute.xlu0 0
        %1404 = vperm.xlu0 %1403, %v1062
        %v1405 = vpop.permute.xlu0 %1404
        %v1408 = vunpack.c.l.s4 839922192
        %v1409 = vunpack.c.0.s8 %v1408
        %v1410 = vlaneseq
        %v1411 = vshrl.u32 %v1410, 7
        %v1412 = vsub.s32 %v1409, %v1411
        %v1413 = vrot.slane %v1405, %v1412
        %1415 = vset.pattern.permute.xlu0 0
        %1416 = vperm.xlu0 %1415, %v1063
        %v1417 = vpop.permute.xlu0 %1416
        %v1420 = vunpack.c.l.s4 839922192
        %v1421 = vunpack.c.0.s8 %v1420
        %v1422 = vlaneseq
        %v1423 = vshrl.u32 %v1422, 7
        %v1424 = vsub.s32 %v1421, %v1423
        %v1425 = vrot.slane %v1417, %v1424
        %1427 = vset.pattern.permute.xlu0 0
        %1428 = vperm.xlu0 %1427, %v1064
        %v1429 = vpop.permute.xlu0 %1428
        %v1432 = vunpack.c.l.s4 839922192
        %v1433 = vunpack.c.0.s8 %v1432
        %v1434 = vlaneseq
        %v1435 = vshrl.u32 %v1434, 7
        %v1436 = vsub.s32 %v1433, %v1435
        %v1437 = vrot.slane %v1429, %v1436
        %1439 = vset.pattern.permute.xlu0 0
        %1440 = vperm.xlu0 %1439, %v1065
        %v1441 = vpop.permute.xlu0 %1440
        %v1444 = vunpack.c.l.s4 839922192
        %v1445 = vunpack.c.0.s8 %v1444
        %v1446 = vlaneseq
        %v1447 = vshrl.u32 %v1446, 7
        %v1448 = vsub.s32 %v1445, %v1447
        %v1449 = vrot.slane %v1441, %v1448
        %v1482 = vunpack.c.l.b16 %v1077
        %v1483 = vunpack.c.l.b16 %v1089
        %v1484 = vunpack.c.l.b16 %v1101
        %v1485 = vunpack.c.l.b16 %v1113
        %v1486 = vunpack.c.l.b16 %v1125
        %v1487 = vunpack.c.l.b16 %v1137
        %v1488 = vunpack.c.l.b16 %v1149
        %v1489 = vunpack.c.l.b16 %v1161
        %v1490 = vunpack.c.l.b16 %v1173
        %v1491 = vunpack.c.l.b16 %v1185
        %v1492 = vunpack.c.l.b16 %v1197
        %v1493 = vunpack.c.l.b16 %v1209
        %v1494 = vunpack.c.l.b16 %v1221
        %v1495 = vunpack.c.l.b16 %v1233
        %v1496 = vunpack.c.l.b16 %v1245
        %v1497 = vunpack.c.l.b16 %v1257
        %v1498 = vunpack.c.l.b16 %v1269
        %v1499 = vunpack.c.l.b16 %v1281
        %v1500 = vunpack.c.l.b16 %v1293
        %v1501 = vunpack.c.l.b16 %v1305
        %v1502 = vunpack.c.l.b16 %v1317
        %v1503 = vunpack.c.l.b16 %v1329
        %v1504 = vunpack.c.l.b16 %v1341
        %v1505 = vunpack.c.l.b16 %v1353
        %v1506 = vunpack.c.l.b16 %v1365
        %v1507 = vunpack.c.l.b16 %v1377
        %v1508 = vunpack.c.l.b16 %v1389
        %v1509 = vunpack.c.l.b16 %v1401
        %v1510 = vunpack.c.l.b16 %v1413
        %v1511 = vunpack.c.l.b16 %v1425
        %v1512 = vunpack.c.l.b16 %v1437
        %v1513 = vunpack.c.l.b16 %v1449
        %v1514 = vpack.c.b16 %v1483, %v1482
        %v1515 = vpack.c.b16 %v1485, %v1484
        %v1516 = vpack.c.b16 %v1487, %v1486
        %v1517 = vpack.c.b16 %v1489, %v1488
        %v1518 = vpack.c.b16 %v1491, %v1490
        %v1519 = vpack.c.b16 %v1493, %v1492
        %v1520 = vpack.c.b16 %v1495, %v1494
        %v1521 = vpack.c.b16 %v1497, %v1496
        %v1522 = vpack.c.b16 %v1499, %v1498
        %v1523 = vpack.c.b16 %v1501, %v1500
        %v1524 = vpack.c.b16 %v1503, %v1502
        %v1525 = vpack.c.b16 %v1505, %v1504
        %v1526 = vpack.c.b16 %v1507, %v1506
        %v1527 = vpack.c.b16 %v1509, %v1508
        %v1528 = vpack.c.b16 %v1511, %v1510
        %v1529 = vpack.c.b16 %v1513, %v1512
        %v1546 = vmul.bf16 %v1514, 0
        %v1547 = vmul.bf16 %v1032, %v1515
        %v1548 = vmul.bf16 %v900, %v1516
        %v1549 = vmul.bf16 %v908, %v1517
        %v1550 = vmul.bf16 %v916, %v1518
        %v1551 = vmul.bf16 %v924, %v1519
        %v1552 = vmul.bf16 %v932, %v1520
        %v1553 = vmul.bf16 %v940, %v1521
        %v1554 = vmul.bf16 %v948, %v1522
        %v1555 = vmul.bf16 %v956, %v1523
        %v1556 = vmul.bf16 %v964, %v1524
        %v1557 = vmul.bf16 %v972, %v1525
        %v1558 = vmul.bf16 %v980, %v1526
        %v1559 = vmul.bf16 %v988, %v1527
        %v1560 = vmul.bf16 %v996, %v1528
        %v1561 = vmul.bf16 %v1004, %v1529
        %1562 = vset.pattern.permute.xlu0 1
        %1563 = vperm.xlu0 %1562, %v1034
        %v1564 = vpop.permute.xlu0 %1563
        %v1567 = vunpack.c.l.s4 839922192
        %v1568 = vunpack.c.0.s8 %v1567
        %v1569 = vlaneseq
        %v1570 = vshrl.u32 %v1569, 7
        %v1571 = vsub.s32 %v1568, %v1570
        %v1572 = vrot.slane %v1564, %v1571
        %1573 = vset.pattern.permute.xlu0 1
        %1574 = vperm.xlu0 %1573, %v1035
        %v1575 = vpop.permute.xlu0 %1574
        %v1578 = vunpack.c.l.s4 839922192
        %v1579 = vunpack.c.0.s8 %v1578
        %v1580 = vlaneseq
        %v1581 = vshrl.u32 %v1580, 7
        %v1582 = vsub.s32 %v1579, %v1581
        %v1583 = vrot.slane %v1575, %v1582
        %1584 = vset.pattern.permute.xlu0 1
        %1585 = vperm.xlu0 %1584, %v1036
        %v1586 = vpop.permute.xlu0 %1585
        %v1589 = vunpack.c.l.s4 839922192
        %v1590 = vunpack.c.0.s8 %v1589
        %v1591 = vlaneseq
        %v1592 = vshrl.u32 %v1591, 7
        %v1593 = vsub.s32 %v1590, %v1592
        %v1594 = vrot.slane %v1586, %v1593
        %1595 = vset.pattern.permute.xlu0 1
        %1596 = vperm.xlu0 %1595, %v1037
        %v1597 = vpop.permute.xlu0 %1596
        %v1600 = vunpack.c.l.s4 839922192
        %v1601 = vunpack.c.0.s8 %v1600
        %v1602 = vlaneseq
        %v1603 = vshrl.u32 %v1602, 7
        %v1604 = vsub.s32 %v1601, %v1603
        %v1605 = vrot.slane %v1597, %v1604
        %1606 = vset.pattern.permute.xlu0 1
        %1607 = vperm.xlu0 %1606, %v1038
        %v1608 = vpop.permute.xlu0 %1607
        %v1611 = vunpack.c.l.s4 839922192
        %v1612 = vunpack.c.0.s8 %v1611
        %v1613 = vlaneseq
        %v1614 = vshrl.u32 %v1613, 7
        %v1615 = vsub.s32 %v1612, %v1614
        %v1616 = vrot.slane %v1608, %v1615
        %1617 = vset.pattern.permute.xlu0 1
        %1618 = vperm.xlu0 %1617, %v1039
        %v1619 = vpop.permute.xlu0 %1618
        %v1622 = vunpack.c.l.s4 839922192
        %v1623 = vunpack.c.0.s8 %v1622
        %v1624 = vlaneseq
        %v1625 = vshrl.u32 %v1624, 7
        %v1626 = vsub.s32 %v1623, %v1625
        %v1627 = vrot.slane %v1619, %v1626
        %1628 = vset.pattern.permute.xlu0 1
        %1629 = vperm.xlu0 %1628, %v1040
        %v1630 = vpop.permute.xlu0 %1629
        %v1633 = vunpack.c.l.s4 839922192
        %v1634 = vunpack.c.0.s8 %v1633
        %v1635 = vlaneseq
        %v1636 = vshrl.u32 %v1635, 7
        %v1637 = vsub.s32 %v1634, %v1636
        %v1638 = vrot.slane %v1630, %v1637
        %1639 = vset.pattern.permute.xlu0 1
        %1640 = vperm.xlu0 %1639, %v1041
        %v1641 = vpop.permute.xlu0 %1640
        %v1644 = vunpack.c.l.s4 839922192
        %v1645 = vunpack.c.0.s8 %v1644
        %v1646 = vlaneseq
        %v1647 = vshrl.u32 %v1646, 7
        %v1648 = vsub.s32 %v1645, %v1647
        %v1649 = vrot.slane %v1641, %v1648
        %1650 = vset.pattern.permute.xlu0 1
        %1651 = vperm.xlu0 %1650, %v1042
        %v1652 = vpop.permute.xlu0 %1651
        %v1655 = vunpack.c.l.s4 839922192
        %v1656 = vunpack.c.0.s8 %v1655
        %v1657 = vlaneseq
        %v1658 = vshrl.u32 %v1657, 7
        %v1659 = vsub.s32 %v1656, %v1658
        %v1660 = vrot.slane %v1652, %v1659
        %1661 = vset.pattern.permute.xlu0 1
        %1662 = vperm.xlu0 %1661, %v1043
        %v1663 = vpop.permute.xlu0 %1662
        %v1666 = vunpack.c.l.s4 839922192
        %v1667 = vunpack.c.0.s8 %v1666
        %v1668 = vlaneseq
        %v1669 = vshrl.u32 %v1668, 7
        %v1670 = vsub.s32 %v1667, %v1669
        %v1671 = vrot.slane %v1663, %v1670
        %1672 = vset.pattern.permute.xlu0 1
        %1673 = vperm.xlu0 %1672, %v1044
        %v1674 = vpop.permute.xlu0 %1673
        %v1677 = vunpack.c.l.s4 839922192
        %v1678 = vunpack.c.0.s8 %v1677
        %v1679 = vlaneseq
        %v1680 = vshrl.u32 %v1679, 7
        %v1681 = vsub.s32 %v1678, %v1680
        %v1682 = vrot.slane %v1674, %v1681
        %1683 = vset.pattern.permute.xlu0 1
        %1684 = vperm.xlu0 %1683, %v1045
        %v1685 = vpop.permute.xlu0 %1684
        %v1688 = vunpack.c.l.s4 839922192
        %v1689 = vunpack.c.0.s8 %v1688
        %v1690 = vlaneseq
        %v1691 = vshrl.u32 %v1690, 7
        %v1692 = vsub.s32 %v1689, %v1691
        %v1693 = vrot.slane %v1685, %v1692
        %1694 = vset.pattern.permute.xlu0 1
        %1695 = vperm.xlu0 %1694, %v1046
        %v1696 = vpop.permute.xlu0 %1695
        %v1699 = vunpack.c.l.s4 839922192
        %v1700 = vunpack.c.0.s8 %v1699
        %v1701 = vlaneseq
        %v1702 = vshrl.u32 %v1701, 7
        %v1703 = vsub.s32 %v1700, %v1702
        %v1704 = vrot.slane %v1696, %v1703
        %1705 = vset.pattern.permute.xlu0 1
        %1706 = vperm.xlu0 %1705, %v1047
        %v1707 = vpop.permute.xlu0 %1706
        %v1710 = vunpack.c.l.s4 839922192
        %v1711 = vunpack.c.0.s8 %v1710
        %v1712 = vlaneseq
        %v1713 = vshrl.u32 %v1712, 7
        %v1714 = vsub.s32 %v1711, %v1713
        %v1715 = vrot.slane %v1707, %v1714
        %1716 = vset.pattern.permute.xlu0 1
        %1717 = vperm.xlu0 %1716, %v1048
        %v1718 = vpop.permute.xlu0 %1717
        %v1721 = vunpack.c.l.s4 839922192
        %v1722 = vunpack.c.0.s8 %v1721
        %v1723 = vlaneseq
        %v1724 = vshrl.u32 %v1723, 7
        %v1725 = vsub.s32 %v1722, %v1724
        %v1726 = vrot.slane %v1718, %v1725
        %1727 = vset.pattern.permute.xlu0 1
        %1728 = vperm.xlu0 %1727, %v1049
        %v1729 = vpop.permute.xlu0 %1728
        %v1732 = vunpack.c.l.s4 839922192
        %v1733 = vunpack.c.0.s8 %v1732
        %v1734 = vlaneseq
        %v1735 = vshrl.u32 %v1734, 7
        %v1736 = vsub.s32 %v1733, %v1735
        %v1737 = vrot.slane %v1729, %v1736
        %1738 = vset.pattern.permute.xlu0 1
        %1739 = vperm.xlu0 %1738, %v1050
        %v1740 = vpop.permute.xlu0 %1739
        %v1743 = vunpack.c.l.s4 839922192
        %v1744 = vunpack.c.0.s8 %v1743
        %v1745 = vlaneseq
        %v1746 = vshrl.u32 %v1745, 7
        %v1747 = vsub.s32 %v1744, %v1746
        %v1748 = vrot.slane %v1740, %v1747
        %1749 = vset.pattern.permute.xlu0 1
        %1750 = vperm.xlu0 %1749, %v1051
        %v1751 = vpop.permute.xlu0 %1750
        %v1754 = vunpack.c.l.s4 839922192
        %v1755 = vunpack.c.0.s8 %v1754
        %v1756 = vlaneseq
        %v1757 = vshrl.u32 %v1756, 7
        %v1758 = vsub.s32 %v1755, %v1757
        %v1759 = vrot.slane %v1751, %v1758
        %1760 = vset.pattern.permute.xlu0 1
        %1761 = vperm.xlu0 %1760, %v1052
        %v1762 = vpop.permute.xlu0 %1761
        %v1765 = vunpack.c.l.s4 839922192
        %v1766 = vunpack.c.0.s8 %v1765
        %v1767 = vlaneseq
        %v1768 = vshrl.u32 %v1767, 7
        %v1769 = vsub.s32 %v1766, %v1768
        %v1770 = vrot.slane %v1762, %v1769
        %1771 = vset.pattern.permute.xlu0 1
        %1772 = vperm.xlu0 %1771, %v1053
        %v1773 = vpop.permute.xlu0 %1772
        %v1776 = vunpack.c.l.s4 839922192
        %v1777 = vunpack.c.0.s8 %v1776
        %v1778 = vlaneseq
        %v1779 = vshrl.u32 %v1778, 7
        %v1780 = vsub.s32 %v1777, %v1779
        %v1781 = vrot.slane %v1773, %v1780
        %1782 = vset.pattern.permute.xlu0 1
        %1783 = vperm.xlu0 %1782, %v1054
        %v1784 = vpop.permute.xlu0 %1783
        %v1787 = vunpack.c.l.s4 839922192
        %v1788 = vunpack.c.0.s8 %v1787
        %v1789 = vlaneseq
        %v1790 = vshrl.u32 %v1789, 7
        %v1791 = vsub.s32 %v1788, %v1790
        %v1792 = vrot.slane %v1784, %v1791
        %1793 = vset.pattern.permute.xlu0 1
        %1794 = vperm.xlu0 %1793, %v1055
        %v1795 = vpop.permute.xlu0 %1794
        %v1798 = vunpack.c.l.s4 839922192
        %v1799 = vunpack.c.0.s8 %v1798
        %v1800 = vlaneseq
        %v1801 = vshrl.u32 %v1800, 7
        %v1802 = vsub.s32 %v1799, %v1801
        %v1803 = vrot.slane %v1795, %v1802
        %1804 = vset.pattern.permute.xlu0 1
        %1805 = vperm.xlu0 %1804, %v1056
        %v1806 = vpop.permute.xlu0 %1805
        %v1809 = vunpack.c.l.s4 839922192
        %v1810 = vunpack.c.0.s8 %v1809
        %v1811 = vlaneseq
        %v1812 = vshrl.u32 %v1811, 7
        %v1813 = vsub.s32 %v1810, %v1812
        %v1814 = vrot.slane %v1806, %v1813
        %1815 = vset.pattern.permute.xlu0 1
        %1816 = vperm.xlu0 %1815, %v1057
        %v1817 = vpop.permute.xlu0 %1816
        %v1820 = vunpack.c.l.s4 839922192
        %v1821 = vunpack.c.0.s8 %v1820
        %v1822 = vlaneseq
        %v1823 = vshrl.u32 %v1822, 7
        %v1824 = vsub.s32 %v1821, %v1823
        %v1825 = vrot.slane %v1817, %v1824
        %1826 = vset.pattern.permute.xlu0 1
        %1827 = vperm.xlu0 %1826, %v1058
        %v1828 = vpop.permute.xlu0 %1827
        %v1831 = vunpack.c.l.s4 839922192
        %v1832 = vunpack.c.0.s8 %v1831
        %v1833 = vlaneseq
        %v1834 = vshrl.u32 %v1833, 7
        %v1835 = vsub.s32 %v1832, %v1834
        %v1836 = vrot.slane %v1828, %v1835
        %1837 = vset.pattern.permute.xlu0 1
        %1838 = vperm.xlu0 %1837, %v1059
        %v1839 = vpop.permute.xlu0 %1838
        %v1842 = vunpack.c.l.s4 839922192
        %v1843 = vunpack.c.0.s8 %v1842
        %v1844 = vlaneseq
        %v1845 = vshrl.u32 %v1844, 7
        %v1846 = vsub.s32 %v1843, %v1845
        %v1847 = vrot.slane %v1839, %v1846
        %1848 = vset.pattern.permute.xlu0 1
        %1849 = vperm.xlu0 %1848, %v1060
        %v1850 = vpop.permute.xlu0 %1849
        %v1853 = vunpack.c.l.s4 839922192
        %v1854 = vunpack.c.0.s8 %v1853
        %v1855 = vlaneseq
        %v1856 = vshrl.u32 %v1855, 7
        %v1857 = vsub.s32 %v1854, %v1856
        %v1858 = vrot.slane %v1850, %v1857
        %1859 = vset.pattern.permute.xlu0 1
        %1860 = vperm.xlu0 %1859, %v1061
        %v1861 = vpop.permute.xlu0 %1860
        %v1864 = vunpack.c.l.s4 839922192
        %v1865 = vunpack.c.0.s8 %v1864
        %v1866 = vlaneseq
        %v1867 = vshrl.u32 %v1866, 7
        %v1868 = vsub.s32 %v1865, %v1867
        %v1869 = vrot.slane %v1861, %v1868
        %1870 = vset.pattern.permute.xlu0 1
        %1871 = vperm.xlu0 %1870, %v1062
        %v1872 = vpop.permute.xlu0 %1871
        %v1875 = vunpack.c.l.s4 839922192
        %v1876 = vunpack.c.0.s8 %v1875
        %v1877 = vlaneseq
        %v1878 = vshrl.u32 %v1877, 7
        %v1879 = vsub.s32 %v1876, %v1878
        %v1880 = vrot.slane %v1872, %v1879
        %1881 = vset.pattern.permute.xlu0 1
        %1882 = vperm.xlu0 %1881, %v1063
        %v1883 = vpop.permute.xlu0 %1882
        %v1886 = vunpack.c.l.s4 839922192
        %v1887 = vunpack.c.0.s8 %v1886
        %v1888 = vlaneseq
        %v1889 = vshrl.u32 %v1888, 7
        %v1890 = vsub.s32 %v1887, %v1889
        %v1891 = vrot.slane %v1883, %v1890
        %1892 = vset.pattern.permute.xlu0 1
        %1893 = vperm.xlu0 %1892, %v1064
        %v1894 = vpop.permute.xlu0 %1893
        %v1897 = vunpack.c.l.s4 839922192
        %v1898 = vunpack.c.0.s8 %v1897
        %v1899 = vlaneseq
        %v1900 = vshrl.u32 %v1899, 7
        %v1901 = vsub.s32 %v1898, %v1900
        %v1902 = vrot.slane %v1894, %v1901
        %1903 = vset.pattern.permute.xlu0 1
        %1904 = vperm.xlu0 %1903, %v1065
        %v1905 = vpop.permute.xlu0 %1904
        %v1908 = vunpack.c.l.s4 839922192
        %v1909 = vunpack.c.0.s8 %v1908
        %v1910 = vlaneseq
        %v1911 = vshrl.u32 %v1910, 7
        %v1912 = vsub.s32 %v1909, %v1911
        %v1913 = vrot.slane %v1905, %v1912
        %v1946 = vunpack.c.l.b16 %v1572
        %v1947 = vunpack.c.l.b16 %v1583
        %v1948 = vunpack.c.l.b16 %v1594
        %v1949 = vunpack.c.l.b16 %v1605
        %v1950 = vunpack.c.l.b16 %v1616
        %v1951 = vunpack.c.l.b16 %v1627
        %v1952 = vunpack.c.l.b16 %v1638
        %v1953 = vunpack.c.l.b16 %v1649
        %v1954 = vunpack.c.l.b16 %v1660
        %v1955 = vunpack.c.l.b16 %v1671
        %v1956 = vunpack.c.l.b16 %v1682
        %v1957 = vunpack.c.l.b16 %v1693
        %v1958 = vunpack.c.l.b16 %v1704
        %v1959 = vunpack.c.l.b16 %v1715
        %v1960 = vunpack.c.l.b16 %v1726
        %v1961 = vunpack.c.l.b16 %v1737
        %v1962 = vunpack.c.l.b16 %v1748
        %v1963 = vunpack.c.l.b16 %v1759
        %v1964 = vunpack.c.l.b16 %v1770
        %v1965 = vunpack.c.l.b16 %v1781
        %v1966 = vunpack.c.l.b16 %v1792
        %v1967 = vunpack.c.l.b16 %v1803
        %v1968 = vunpack.c.l.b16 %v1814
        %v1969 = vunpack.c.l.b16 %v1825
        %v1970 = vunpack.c.l.b16 %v1836
        %v1971 = vunpack.c.l.b16 %v1847
        %v1972 = vunpack.c.l.b16 %v1858
        %v1973 = vunpack.c.l.b16 %v1869
        %v1974 = vunpack.c.l.b16 %v1880
        %v1975 = vunpack.c.l.b16 %v1891
        %v1976 = vunpack.c.l.b16 %v1902
        %v1977 = vunpack.c.l.b16 %v1913
        %v1978 = vpack.c.b16 %v1947, %v1946
        %v1979 = vpack.c.b16 %v1949, %v1948
        %v1980 = vpack.c.b16 %v1951, %v1950
        %v1981 = vpack.c.b16 %v1953, %v1952
        %v1982 = vpack.c.b16 %v1955, %v1954
        %v1983 = vpack.c.b16 %v1957, %v1956
        %v1984 = vpack.c.b16 %v1959, %v1958
        %v1985 = vpack.c.b16 %v1961, %v1960
        %v1986 = vpack.c.b16 %v1963, %v1962
        %v1987 = vpack.c.b16 %v1965, %v1964
        %v1988 = vpack.c.b16 %v1967, %v1966
        %v1989 = vpack.c.b16 %v1969, %v1968
        %v1990 = vpack.c.b16 %v1971, %v1970
        %v1991 = vpack.c.b16 %v1973, %v1972
        %v1992 = vpack.c.b16 %v1975, %v1974
        %v1993 = vpack.c.b16 %v1977, %v1976
        %v1994 = vrot.slane %v1978, 7
        %v1995 = vrot.slane %v1979, 7
        %v1996 = vsel %vm1030, %v1994, %v1995
        %v1997 = vrot.slane %v1980, 7
        %v1998 = vsel %vm1030, %v1995, %v1997
        %v1999 = vrot.slane %v1981, 7
        %v2000 = vsel %vm1030, %v1997, %v1999
        %v2001 = vrot.slane %v1982, 7
        %v2002 = vsel %vm1030, %v1999, %v2001
        %v2003 = vrot.slane %v1983, 7
        %v2004 = vsel %vm1030, %v2001, %v2003
        %v2005 = vrot.slane %v1984, 7
        %v2006 = vsel %vm1030, %v2003, %v2005
        %v2007 = vrot.slane %v1985, 7
        %v2008 = vsel %vm1030, %v2005, %v2007
        %v2009 = vrot.slane %v1986, 7
        %v2010 = vsel %vm1030, %v2007, %v2009
        %v2011 = vrot.slane %v1987, 7
        %v2012 = vsel %vm1030, %v2009, %v2011
        %v2013 = vrot.slane %v1988, 7
        %v2014 = vsel %vm1030, %v2011, %v2013
        %v2015 = vrot.slane %v1989, 7
        %v2016 = vsel %vm1030, %v2013, %v2015
        %v2017 = vrot.slane %v1990, 7
        %v2018 = vsel %vm1030, %v2015, %v2017
        %v2019 = vrot.slane %v1991, 7
        %v2020 = vsel %vm1030, %v2017, %v2019
        %v2021 = vrot.slane %v1992, 7
        %v2022 = vsel %vm1030, %v2019, %v2021
        %v2023 = vrot.slane %v1993, 7
        %v2024 = vsel %vm1030, %v2021, %v2023
        %v2042 = vmul.bf16 %v1994, 0
        %v2043 = vmul.bf16 %v1032, %v1996
        %v2044 = vmul.bf16 %v900, %v1998
        %v2045 = vmul.bf16 %v908, %v2000
        %v2046 = vmul.bf16 %v916, %v2002
        %v2047 = vmul.bf16 %v924, %v2004
        %v2048 = vmul.bf16 %v932, %v2006
        %v2049 = vmul.bf16 %v940, %v2008
        %v2050 = vmul.bf16 %v948, %v2010
        %v2051 = vmul.bf16 %v956, %v2012
        %v2052 = vmul.bf16 %v964, %v2014
        %v2053 = vmul.bf16 %v972, %v2016
        %v2054 = vmul.bf16 %v980, %v2018
        %v2055 = vmul.bf16 %v988, %v2020
        %v2056 = vmul.bf16 %v996, %v2022
        %v2057 = vmul.bf16 %v1004, %v2024
        %v2058 = vmul.bf16 %v1012, %v2023
        %v2059 = vmul.bf16 %v1032, %v1514
        %v2060 = vmul.bf16 %v900, %v1515
        %v2061 = vmul.bf16 %v908, %v1516
        %v2062 = vmul.bf16 %v916, %v1517
        %v2063 = vmul.bf16 %v924, %v1518
        %v2064 = vmul.bf16 %v932, %v1519
        %v2065 = vmul.bf16 %v940, %v1520
        %v2066 = vmul.bf16 %v948, %v1521
        %v2067 = vmul.bf16 %v956, %v1522
        %v2068 = vmul.bf16 %v964, %v1523
        %v2069 = vmul.bf16 %v972, %v1524
        %v2070 = vmul.bf16 %v980, %v1525
        %v2071 = vmul.bf16 %v988, %v1526
        %v2072 = vmul.bf16 %v996, %v1527
        %v2073 = vmul.bf16 %v1004, %v1528
        %v2074 = vmul.bf16 %v1012, %v1529
        %v2075 = vmul.bf16 %v1032, %v1994
        %v2076 = vmul.bf16 %v900, %v1996
        %v2077 = vmul.bf16 %v908, %v1998
        %v2078 = vmul.bf16 %v916, %v2000
        %v2079 = vmul.bf16 %v924, %v2002
        %v2080 = vmul.bf16 %v932, %v2004
        %v2081 = vmul.bf16 %v940, %v2006
        %v2082 = vmul.bf16 %v948, %v2008
        %v2083 = vmul.bf16 %v956, %v2010
        %v2084 = vmul.bf16 %v964, %v2012
        %v2085 = vmul.bf16 %v972, %v2014
        %v2086 = vmul.bf16 %v980, %v2016
        %v2087 = vmul.bf16 %v988, %v2018
        %v2088 = vmul.bf16 %v996, %v2020
        %v2089 = vmul.bf16 %v1004, %v2022
        %v2090 = vmul.bf16 %v1012, %v2024
        %v2091 = vmul.bf16 %v1033, %v2023
        %v2092 = vmul.bf16 %v900, %v1514
        %v2093 = vmul.bf16 %v908, %v1515
        %v2094 = vmul.bf16 %v916, %v1516
        %v2095 = vmul.bf16 %v924, %v1517
        %v2096 = vmul.bf16 %v932, %v1518
        %v2097 = vmul.bf16 %v940, %v1519
        %v2098 = vmul.bf16 %v948, %v1520
        %v2099 = vmul.bf16 %v956, %v1521
        %v2100 = vmul.bf16 %v964, %v1522
        %v2101 = vmul.bf16 %v972, %v1523
        %v2102 = vmul.bf16 %v980, %v1524
        %v2103 = vmul.bf16 %v988, %v1525
        %v2104 = vmul.bf16 %v996, %v1526
        %v2105 = vmul.bf16 %v1004, %v1527
        %v2106 = vmul.bf16 %v1012, %v1528
        %v2107 = vmul.bf16 %v1033, %v1529
        %v2108 = vmul.bf16 %v900, %v1994
        %v2109 = vmul.bf16 %v908, %v1996
        %v2110 = vmul.bf16 %v916, %v1998
        %v2111 = vmul.bf16 %v924, %v2000
        %v2112 = vmul.bf16 %v932, %v2002
        %v2113 = vmul.bf16 %v940, %v2004
        %v2114 = vmul.bf16 %v948, %v2006
        %v2115 = vmul.bf16 %v956, %v2008
        %v2116 = vmul.bf16 %v964, %v2010
        %v2117 = vmul.bf16 %v972, %v2012
        %v2118 = vmul.bf16 %v980, %v2014
        %v2119 = vmul.bf16 %v988, %v2016
        %v2120 = vmul.bf16 %v996, %v2018
        %v2121 = vmul.bf16 %v1004, %v2020
        %v2122 = vmul.bf16 %v1012, %v2022
        %v2123 = vmul.bf16 %v1033, %v2024
        %v2124 = vmul.bf16 %v2023, 0
        %vm2125 = vsmask.f32 7424
        %v2127 = vshrl.u32 0, 16
        %v2129 = vshll.u32 0, 16
        %v2131 = vrot.slane %v2129, 1
        %v2132 = vor.u32 %v2127, %v2131
        %v2134 = vshll.u32 %v1032, 16
        %v2136 = vrot.slane %v2134, 1
        %v2137 = vsel %vm2125, %v2132, %v2136
        %v2138 = vshrl.u32 %v1032, 16
        %v2140 = vor.u32 %v2138, %v2136
        %v2142 = vshll.u32 %v900, 16
        %v2144 = vrot.slane %v2142, 1
        %v2145 = vsel %vm2125, %v2140, %v2144
        %v2146 = vshrl.u32 %v900, 16
        %v2148 = vor.u32 %v2146, %v2144
        %v2150 = vshll.u32 %v908, 16
        %v2152 = vrot.slane %v2150, 1
        %v2153 = vsel %vm2125, %v2148, %v2152
        %v2154 = vshrl.u32 %v908, 16
        %v2156 = vor.u32 %v2154, %v2152
        %v2158 = vshll.u32 %v916, 16
        %v2160 = vrot.slane %v2158, 1
        %v2161 = vsel %vm2125, %v2156, %v2160
        %v2162 = vshrl.u32 %v916, 16
        %v2164 = vor.u32 %v2162, %v2160
        %v2166 = vshll.u32 %v924, 16
        %v2168 = vrot.slane %v2166, 1
        %v2169 = vsel %vm2125, %v2164, %v2168
        %v2170 = vshrl.u32 %v924, 16
        %v2172 = vor.u32 %v2170, %v2168
        %v2174 = vshll.u32 %v932, 16
        %v2176 = vrot.slane %v2174, 1
        %v2177 = vsel %vm2125, %v2172, %v2176
        %v2178 = vshrl.u32 %v932, 16
        %v2180 = vor.u32 %v2178, %v2176
        %v2182 = vshll.u32 %v940, 16
        %v2184 = vrot.slane %v2182, 1
        %v2185 = vsel %vm2125, %v2180, %v2184
        %v2186 = vshrl.u32 %v940, 16
        %v2188 = vor.u32 %v2186, %v2184
        %v2190 = vshll.u32 %v948, 16
        %v2192 = vrot.slane %v2190, 1
        %v2193 = vsel %vm2125, %v2188, %v2192
        %v2194 = vshrl.u32 %v948, 16
        %v2196 = vor.u32 %v2194, %v2192
        %v2198 = vshll.u32 %v956, 16
        %v2200 = vrot.slane %v2198, 1
        %v2201 = vsel %vm2125, %v2196, %v2200
        %v2202 = vshrl.u32 %v956, 16
        %v2204 = vor.u32 %v2202, %v2200
        %v2206 = vshll.u32 %v964, 16
        %v2208 = vrot.slane %v2206, 1
        %v2209 = vsel %vm2125, %v2204, %v2208
        %v2210 = vshrl.u32 %v964, 16
        %v2212 = vor.u32 %v2210, %v2208
        %v2214 = vshll.u32 %v972, 16
        %v2216 = vrot.slane %v2214, 1
        %v2217 = vsel %vm2125, %v2212, %v2216
        %v2218 = vshrl.u32 %v972, 16
        %v2220 = vor.u32 %v2218, %v2216
        %v2222 = vshll.u32 %v980, 16
        %v2224 = vrot.slane %v2222, 1
        %v2225 = vsel %vm2125, %v2220, %v2224
        %v2226 = vshrl.u32 %v980, 16
        %v2228 = vor.u32 %v2226, %v2224
        %v2230 = vshll.u32 %v988, 16
        %v2232 = vrot.slane %v2230, 1
        %v2233 = vsel %vm2125, %v2228, %v2232
        %v2234 = vshrl.u32 %v988, 16
        %v2236 = vor.u32 %v2234, %v2232
        %v2238 = vshll.u32 %v996, 16
        %v2240 = vrot.slane %v2238, 1
        %v2241 = vsel %vm2125, %v2236, %v2240
        %v2242 = vshrl.u32 %v996, 16
        %v2244 = vor.u32 %v2242, %v2240
        %v2246 = vshll.u32 %v1004, 16
        %v2248 = vrot.slane %v2246, 1
        %v2249 = vsel %vm2125, %v2244, %v2248
        %v2250 = vshrl.u32 %v1004, 16
        %v2252 = vor.u32 %v2250, %v2248
        %v2254 = vshll.u32 %v1012, 16
        %v2256 = vrot.slane %v2254, 1
        %v2257 = vsel %vm2125, %v2252, %v2256
        %2258 = vrot.lane.b32.xlu0 %v2137, 4
        %v2259 = vpop.permute.xlu0 %2258
        %2260 = vrot.lane.b32.xlu0 %v2145, 4
        %v2261 = vpop.permute.xlu0 %2260
        %2262 = vrot.lane.b32.xlu0 %v2153, 4
        %v2263 = vpop.permute.xlu0 %2262
        %2264 = vrot.lane.b32.xlu0 %v2161, 4
        %v2265 = vpop.permute.xlu0 %2264
        %2266 = vrot.lane.b32.xlu0 %v2169, 4
        %v2267 = vpop.permute.xlu0 %2266
        %2268 = vrot.lane.b32.xlu0 %v2177, 4
        %v2269 = vpop.permute.xlu0 %2268
        %2270 = vrot.lane.b32.xlu0 %v2185, 4
        %v2271 = vpop.permute.xlu0 %2270
        %2272 = vrot.lane.b32.xlu0 %v2193, 4
        %v2273 = vpop.permute.xlu0 %2272
        %2274 = vrot.lane.b32.xlu0 %v2201, 4
        %v2275 = vpop.permute.xlu0 %2274
        %2276 = vrot.lane.b32.xlu0 %v2209, 4
        %v2277 = vpop.permute.xlu0 %2276
        %2278 = vrot.lane.b32.xlu0 %v2217, 4
        %v2279 = vpop.permute.xlu0 %2278
        %2280 = vrot.lane.b32.xlu0 %v2225, 4
        %v2281 = vpop.permute.xlu0 %2280
        %2282 = vrot.lane.b32.xlu0 %v2233, 4
        %v2283 = vpop.permute.xlu0 %2282
        %2284 = vrot.lane.b32.xlu0 %v2241, 4
        %v2285 = vpop.permute.xlu0 %2284
        %2286 = vrot.lane.b32.xlu0 %v2249, 4
        %v2287 = vpop.permute.xlu0 %2286
        %2288 = vrot.lane.b32.xlu0 %v2257, 4
        %v2289 = vpop.permute.xlu0 %2288
        %vm2307 = vcmask 1046528
        %v2308 = vrot.slane %v2042, 1
        %v2309 = vrot.slane %v2043, 1
        %v2310 = vsel %vm2307, %v2308, %v2309
        %v2311 = vrot.slane %v2044, 1
        %v2312 = vsel %vm2307, %v2309, %v2311
        %v2313 = vrot.slane %v2045, 1
        %v2314 = vsel %vm2307, %v2311, %v2313
        %v2315 = vrot.slane %v2046, 1
        %v2316 = vsel %vm2307, %v2313, %v2315
        %v2317 = vrot.slane %v2047, 1
        %v2318 = vsel %vm2307, %v2315, %v2317
        %v2319 = vrot.slane %v2048, 1
        %v2320 = vsel %vm2307, %v2317, %v2319
        %v2321 = vrot.slane %v2049, 1
        %v2322 = vsel %vm2307, %v2319, %v2321
        %v2323 = vrot.slane %v2050, 1
        %v2324 = vsel %vm2307, %v2321, %v2323
        %v2325 = vrot.slane %v2051, 1
        %v2326 = vsel %vm2307, %v2323, %v2325
        %v2327 = vrot.slane %v2052, 1
        %v2328 = vsel %vm2307, %v2325, %v2327
        %v2329 = vrot.slane %v2053, 1
        %v2330 = vsel %vm2307, %v2327, %v2329
        %v2331 = vrot.slane %v2054, 1
        %v2332 = vsel %vm2307, %v2329, %v2331
        %v2333 = vrot.slane %v2055, 1
        %v2334 = vsel %vm2307, %v2331, %v2333
        %v2335 = vrot.slane %v2056, 1
        %v2336 = vsel %vm2307, %v2333, %v2335
        %v2337 = vrot.slane %v2057, 1
        %v2338 = vsel %vm2307, %v2335, %v2337
        %v2339 = vrot.slane %v2058, 1
        %v2340 = vsel %vm2307, %v2337, %v2339
        %2341 = vrot.lane.b32.xlu0 %v2310, 8
        %v2342 = vpop.permute.xlu0 %2341
        %2343 = vrot.lane.b32.xlu0 %v2312, 8
        %v2344 = vpop.permute.xlu0 %2343
        %2345 = vrot.lane.b32.xlu0 %v2314, 8
        %v2346 = vpop.permute.xlu0 %2345
        %2347 = vrot.lane.b32.xlu0 %v2316, 8
        %v2348 = vpop.permute.xlu0 %2347
        %2349 = vrot.lane.b32.xlu0 %v2318, 8
        %v2350 = vpop.permute.xlu0 %2349
        %2351 = vrot.lane.b32.xlu0 %v2320, 8
        %v2352 = vpop.permute.xlu0 %2351
        %2353 = vrot.lane.b32.xlu0 %v2322, 8
        %v2354 = vpop.permute.xlu0 %2353
        %2355 = vrot.lane.b32.xlu0 %v2324, 8
        %v2356 = vpop.permute.xlu0 %2355
        %2357 = vrot.lane.b32.xlu0 %v2326, 8
        %v2358 = vpop.permute.xlu0 %2357
        %2359 = vrot.lane.b32.xlu0 %v2328, 8
        %v2360 = vpop.permute.xlu0 %2359
        %2361 = vrot.lane.b32.xlu0 %v2330, 8
        %v2362 = vpop.permute.xlu0 %2361
        %2363 = vrot.lane.b32.xlu0 %v2332, 8
        %v2364 = vpop.permute.xlu0 %2363
        %2365 = vrot.lane.b32.xlu0 %v2334, 8
        %v2366 = vpop.permute.xlu0 %2365
        %2367 = vrot.lane.b32.xlu0 %v2336, 8
        %v2368 = vpop.permute.xlu0 %2367
        %2369 = vrot.lane.b32.xlu0 %v2338, 8
        %v2370 = vpop.permute.xlu0 %2369
        %2371 = vrot.lane.b32.xlu0 %v2340, 8
        %v2372 = vpop.permute.xlu0 %2371
        %2389 = vrot.lane.b32.xlu0 %v2059, 12
        %v2390 = vpop.permute.xlu0 %2389
        %2391 = vrot.lane.b32.xlu0 %v2060, 12
        %v2392 = vpop.permute.xlu0 %2391
        %2393 = vrot.lane.b32.xlu0 %v2061, 12
        %v2394 = vpop.permute.xlu0 %2393
        %2395 = vrot.lane.b32.xlu0 %v2062, 12
        %v2396 = vpop.permute.xlu0 %2395
        %2397 = vrot.lane.b32.xlu0 %v2063, 12
        %v2398 = vpop.permute.xlu0 %2397
        %2399 = vrot.lane.b32.xlu0 %v2064, 12
        %v2400 = vpop.permute.xlu0 %2399
        %2401 = vrot.lane.b32.xlu0 %v2065, 12
        %v2402 = vpop.permute.xlu0 %2401
        %2403 = vrot.lane.b32.xlu0 %v2066, 12
        %v2404 = vpop.permute.xlu0 %2403
        %2405 = vrot.lane.b32.xlu0 %v2067, 12
        %v2406 = vpop.permute.xlu0 %2405
        %2407 = vrot.lane.b32.xlu0 %v2068, 12
        %v2408 = vpop.permute.xlu0 %2407
        %2409 = vrot.lane.b32.xlu0 %v2069, 12
        %v2410 = vpop.permute.xlu0 %2409
        %2411 = vrot.lane.b32.xlu0 %v2070, 12
        %v2412 = vpop.permute.xlu0 %2411
        %2413 = vrot.lane.b32.xlu0 %v2071, 12
        %v2414 = vpop.permute.xlu0 %2413
        %2415 = vrot.lane.b32.xlu0 %v2072, 12
        %v2416 = vpop.permute.xlu0 %2415
        %2417 = vrot.lane.b32.xlu0 %v2073, 12
        %v2418 = vpop.permute.xlu0 %2417
        %2419 = vrot.lane.b32.xlu0 %v2074, 12
        %v2420 = vpop.permute.xlu0 %2419
        %v2421 = vshrl.u32 %v1012, 16
        %v2423 = vor.u32 %v2421, %v2256
        %v2425 = vshll.u32 %v1033, 16
        %v2427 = vrot.slane %v2425, 1
        %v2428 = vsel %vm2125, %v2423, %v2427
        %2429 = vrot.lane.b32.xlu0 %v2145, 16
        %v2430 = vpop.permute.xlu0 %2429
        %2431 = vrot.lane.b32.xlu0 %v2153, 16
        %v2432 = vpop.permute.xlu0 %2431
        %2433 = vrot.lane.b32.xlu0 %v2161, 16
        %v2434 = vpop.permute.xlu0 %2433
        %2435 = vrot.lane.b32.xlu0 %v2169, 16
        %v2436 = vpop.permute.xlu0 %2435
        %2437 = vrot.lane.b32.xlu0 %v2177, 16
        %v2438 = vpop.permute.xlu0 %2437
        %2439 = vrot.lane.b32.xlu0 %v2185, 16
        %v2440 = vpop.permute.xlu0 %2439
        %2441 = vrot.lane.b32.xlu0 %v2193, 16
        %v2442 = vpop.permute.xlu0 %2441
        %2443 = vrot.lane.b32.xlu0 %v2201, 16
        %v2444 = vpop.permute.xlu0 %2443
        %2445 = vrot.lane.b32.xlu0 %v2209, 16
        %v2446 = vpop.permute.xlu0 %2445
        %2447 = vrot.lane.b32.xlu0 %v2217, 16
        %v2448 = vpop.permute.xlu0 %2447
        %2449 = vrot.lane.b32.xlu0 %v2225, 16
        %v2450 = vpop.permute.xlu0 %2449
        %2451 = vrot.lane.b32.xlu0 %v2233, 16
        %v2452 = vpop.permute.xlu0 %2451
        %2453 = vrot.lane.b32.xlu0 %v2241, 16
        %v2454 = vpop.permute.xlu0 %2453
        %2455 = vrot.lane.b32.xlu0 %v2249, 16
        %v2456 = vpop.permute.xlu0 %2455
        %2457 = vrot.lane.b32.xlu0 %v2257, 16
        %v2458 = vpop.permute.xlu0 %2457
        %2459 = vrot.lane.b32.xlu0 %v2428, 16
        %v2460 = vpop.permute.xlu0 %2459
        %v2478 = vrot.slane %v2075, 1
        %v2479 = vrot.slane %v2076, 1
        %v2480 = vsel %vm2307, %v2478, %v2479
        %v2481 = vrot.slane %v2077, 1
        %v2482 = vsel %vm2307, %v2479, %v2481
        %v2483 = vrot.slane %v2078, 1
        %v2484 = vsel %vm2307, %v2481, %v2483
        %v2485 = vrot.slane %v2079, 1
        %v2486 = vsel %vm2307, %v2483, %v2485
        %v2487 = vrot.slane %v2080, 1
        %v2488 = vsel %vm2307, %v2485, %v2487
        %v2489 = vrot.slane %v2081, 1
        %v2490 = vsel %vm2307, %v2487, %v2489
        %v2491 = vrot.slane %v2082, 1
        %v2492 = vsel %vm2307, %v2489, %v2491
        %v2493 = vrot.slane %v2083, 1
        %v2494 = vsel %vm2307, %v2491, %v2493
        %v2495 = vrot.slane %v2084, 1
        %v2496 = vsel %vm2307, %v2493, %v2495
        %v2497 = vrot.slane %v2085, 1
        %v2498 = vsel %vm2307, %v2495, %v2497
        %v2499 = vrot.slane %v2086, 1
        %v2500 = vsel %vm2307, %v2497, %v2499
        %v2501 = vrot.slane %v2087, 1
        %v2502 = vsel %vm2307, %v2499, %v2501
        %v2503 = vrot.slane %v2088, 1
        %v2504 = vsel %vm2307, %v2501, %v2503
        %v2505 = vrot.slane %v2089, 1
        %v2506 = vsel %vm2307, %v2503, %v2505
        %v2507 = vrot.slane %v2090, 1
        %v2508 = vsel %vm2307, %v2505, %v2507
        %v2509 = vrot.slane %v2091, 1
        %v2510 = vsel %vm2307, %v2507, %v2509
        %2511 = vrot.lane.b32.xlu0 %v2480, 20
        %v2512 = vpop.permute.xlu0 %2511
        %2513 = vrot.lane.b32.xlu0 %v2482, 20
        %v2514 = vpop.permute.xlu0 %2513
        %2515 = vrot.lane.b32.xlu0 %v2484, 20
        %v2516 = vpop.permute.xlu0 %2515
        %2517 = vrot.lane.b32.xlu0 %v2486, 20
        %v2518 = vpop.permute.xlu0 %2517
        %2519 = vrot.lane.b32.xlu0 %v2488, 20
        %v2520 = vpop.permute.xlu0 %2519
        %2521 = vrot.lane.b32.xlu0 %v2490, 20
        %v2522 = vpop.permute.xlu0 %2521
        %2523 = vrot.lane.b32.xlu0 %v2492, 20
        %v2524 = vpop.permute.xlu0 %2523
        %2525 = vrot.lane.b32.xlu0 %v2494, 20
        %v2526 = vpop.permute.xlu0 %2525
        %2527 = vrot.lane.b32.xlu0 %v2496, 20
        %v2528 = vpop.permute.xlu0 %2527
        %2529 = vrot.lane.b32.xlu0 %v2498, 20
        %v2530 = vpop.permute.xlu0 %2529
        %2531 = vrot.lane.b32.xlu0 %v2500, 20
        %v2532 = vpop.permute.xlu0 %2531
        %2533 = vrot.lane.b32.xlu0 %v2502, 20
        %v2534 = vpop.permute.xlu0 %2533
        %2535 = vrot.lane.b32.xlu0 %v2504, 20
        %v2536 = vpop.permute.xlu0 %2535
        %2537 = vrot.lane.b32.xlu0 %v2506, 20
        %v2538 = vpop.permute.xlu0 %2537
        %2539 = vrot.lane.b32.xlu0 %v2508, 20
        %v2540 = vpop.permute.xlu0 %2539
        %2541 = vrot.lane.b32.xlu0 %v2510, 20
        %v2542 = vpop.permute.xlu0 %2541
        %2559 = vrot.lane.b32.xlu0 %v2092, 24
        %v2560 = vpop.permute.xlu0 %2559
        %2561 = vrot.lane.b32.xlu0 %v2093, 24
        %v2562 = vpop.permute.xlu0 %2561
        %2563 = vrot.lane.b32.xlu0 %v2094, 24
        %v2564 = vpop.permute.xlu0 %2563
        %2565 = vrot.lane.b32.xlu0 %v2095, 24
        %v2566 = vpop.permute.xlu0 %2565
        %2567 = vrot.lane.b32.xlu0 %v2096, 24
        %v2568 = vpop.permute.xlu0 %2567
        %2569 = vrot.lane.b32.xlu0 %v2097, 24
        %v2570 = vpop.permute.xlu0 %2569
        %2571 = vrot.lane.b32.xlu0 %v2098, 24
        %v2572 = vpop.permute.xlu0 %2571
        %2573 = vrot.lane.b32.xlu0 %v2099, 24
        %v2574 = vpop.permute.xlu0 %2573
        %2575 = vrot.lane.b32.xlu0 %v2100, 24
        %v2576 = vpop.permute.xlu0 %2575
        %2577 = vrot.lane.b32.xlu0 %v2101, 24
        %v2578 = vpop.permute.xlu0 %2577
        %2579 = vrot.lane.b32.xlu0 %v2102, 24
        %v2580 = vpop.permute.xlu0 %2579
        %2581 = vrot.lane.b32.xlu0 %v2103, 24
        %v2582 = vpop.permute.xlu0 %2581
        %2583 = vrot.lane.b32.xlu0 %v2104, 24
        %v2584 = vpop.permute.xlu0 %2583
        %2585 = vrot.lane.b32.xlu0 %v2105, 24
        %v2586 = vpop.permute.xlu0 %2585
        %2587 = vrot.lane.b32.xlu0 %v2106, 24
        %v2588 = vpop.permute.xlu0 %2587
        %2589 = vrot.lane.b32.xlu0 %v2107, 24
        %v2590 = vpop.permute.xlu0 %2589
        %v2591 = vshrl.u32 %v1033, 16
        %v2593 = vor.u32 %v2591, %v2427
        %v2594 = vsel %vm2125, %v2593, %v2131
        %2595 = vrot.lane.b32.xlu0 %v2153, 28
        %v2596 = vpop.permute.xlu0 %2595
        %2597 = vrot.lane.b32.xlu0 %v2161, 28
        %v2598 = vpop.permute.xlu0 %2597
        %2599 = vrot.lane.b32.xlu0 %v2169, 28
        %v2600 = vpop.permute.xlu0 %2599
        %2601 = vrot.lane.b32.xlu0 %v2177, 28
        %v2602 = vpop.permute.xlu0 %2601
        %2603 = vrot.lane.b32.xlu0 %v2185, 28
        %v2604 = vpop.permute.xlu0 %2603
        %2605 = vrot.lane.b32.xlu0 %v2193, 28
        %v2606 = vpop.permute.xlu0 %2605
        %2607 = vrot.lane.b32.xlu0 %v2201, 28
        %v2608 = vpop.permute.xlu0 %2607
        %2609 = vrot.lane.b32.xlu0 %v2209, 28
        %v2610 = vpop.permute.xlu0 %2609
        %2611 = vrot.lane.b32.xlu0 %v2217, 28
        %v2612 = vpop.permute.xlu0 %2611
        %2613 = vrot.lane.b32.xlu0 %v2225, 28
        %v2614 = vpop.permute.xlu0 %2613
        %2615 = vrot.lane.b32.xlu0 %v2233, 28
        %v2616 = vpop.permute.xlu0 %2615
        %2617 = vrot.lane.b32.xlu0 %v2241, 28
        %v2618 = vpop.permute.xlu0 %2617
        %2619 = vrot.lane.b32.xlu0 %v2249, 28
        %v2620 = vpop.permute.xlu0 %2619
        %2621 = vrot.lane.b32.xlu0 %v2257, 28
        %v2622 = vpop.permute.xlu0 %2621
        %2623 = vrot.lane.b32.xlu0 %v2428, 28
        %v2624 = vpop.permute.xlu0 %2623
        %2625 = vrot.lane.b32.xlu0 %v2594, 28
        %v2626 = vpop.permute.xlu0 %2625
        %v2644 = vrot.slane %v2108, 1
        %v2645 = vrot.slane %v2109, 1
        %v2646 = vsel %vm2307, %v2644, %v2645
        %v2647 = vrot.slane %v2110, 1
        %v2648 = vsel %vm2307, %v2645, %v2647
        %v2649 = vrot.slane %v2111, 1
        %v2650 = vsel %vm2307, %v2647, %v2649
        %v2651 = vrot.slane %v2112, 1
        %v2652 = vsel %vm2307, %v2649, %v2651
        %v2653 = vrot.slane %v2113, 1
        %v2654 = vsel %vm2307, %v2651, %v2653
        %v2655 = vrot.slane %v2114, 1
        %v2656 = vsel %vm2307, %v2653, %v2655
        %v2657 = vrot.slane %v2115, 1
        %v2658 = vsel %vm2307, %v2655, %v2657
        %v2659 = vrot.slane %v2116, 1
        %v2660 = vsel %vm2307, %v2657, %v2659
        %v2661 = vrot.slane %v2117, 1
        %v2662 = vsel %vm2307, %v2659, %v2661
        %v2663 = vrot.slane %v2118, 1
        %v2664 = vsel %vm2307, %v2661, %v2663
        %v2665 = vrot.slane %v2119, 1
        %v2666 = vsel %vm2307, %v2663, %v2665
        %v2667 = vrot.slane %v2120, 1
        %v2668 = vsel %vm2307, %v2665, %v2667
        %v2669 = vrot.slane %v2121, 1
        %v2670 = vsel %vm2307, %v2667, %v2669
        %v2671 = vrot.slane %v2122, 1
        %v2672 = vsel %vm2307, %v2669, %v2671
        %v2673 = vrot.slane %v2123, 1
        %v2674 = vsel %vm2307, %v2671, %v2673
        %v2675 = vrot.slane %v2124, 1
        %v2676 = vsel %vm2307, %v2673, %v2675
        %2677 = vrot.lane.b32.xlu0 %v2646, 32
        %v2678 = vpop.permute.xlu0 %2677
        %2679 = vrot.lane.b32.xlu0 %v2648, 32
        %v2680 = vpop.permute.xlu0 %2679
        %2681 = vrot.lane.b32.xlu0 %v2650, 32
        %v2682 = vpop.permute.xlu0 %2681
        %2683 = vrot.lane.b32.xlu0 %v2652, 32
        %v2684 = vpop.permute.xlu0 %2683
        %2685 = vrot.lane.b32.xlu0 %v2654, 32
        %v2686 = vpop.permute.xlu0 %2685
        %2687 = vrot.lane.b32.xlu0 %v2656, 32
        %v2688 = vpop.permute.xlu0 %2687
        %2689 = vrot.lane.b32.xlu0 %v2658, 32
        %v2690 = vpop.permute.xlu0 %2689
        %2691 = vrot.lane.b32.xlu0 %v2660, 32
        %v2692 = vpop.permute.xlu0 %2691
        %2693 = vrot.lane.b32.xlu0 %v2662, 32
        %v2694 = vpop.permute.xlu0 %2693
        %2695 = vrot.lane.b32.xlu0 %v2664, 32
        %v2696 = vpop.permute.xlu0 %2695
        %2697 = vrot.lane.b32.xlu0 %v2666, 32
        %v2698 = vpop.permute.xlu0 %2697
        %2699 = vrot.lane.b32.xlu0 %v2668, 32
        %v2700 = vpop.permute.xlu0 %2699
        %2701 = vrot.lane.b32.xlu0 %v2670, 32
        %v2702 = vpop.permute.xlu0 %2701
        %2703 = vrot.lane.b32.xlu0 %v2672, 32
        %v2704 = vpop.permute.xlu0 %2703
        %2705 = vrot.lane.b32.xlu0 %v2674, 32
        %v2706 = vpop.permute.xlu0 %2705
        %2707 = vrot.lane.b32.xlu0 %v2676, 32
        %v2708 = vpop.permute.xlu0 %2707
        %vm2709 = vcmask 31744
        %v2712 = vsel %vm2709, %v1546, %v2259
        %v2715 = vsel %vm2709, %v1547, %v2261
        %v2718 = vsel %vm2709, %v1548, %v2263
        %v2721 = vsel %vm2709, %v1549, %v2265
        %v2724 = vsel %vm2709, %v1550, %v2267
        %v2727 = vsel %vm2709, %v1551, %v2269
        %v2730 = vsel %vm2709, %v1552, %v2271
        %v2733 = vsel %vm2709, %v1553, %v2273
        %v2736 = vsel %vm2709, %v1554, %v2275
        %v2739 = vsel %vm2709, %v1555, %v2277
        %v2742 = vsel %vm2709, %v1556, %v2279
        %v2745 = vsel %vm2709, %v1557, %v2281
        %v2748 = vsel %vm2709, %v1558, %v2283
        %v2751 = vsel %vm2709, %v1559, %v2285
        %v2754 = vsel %vm2709, %v1560, %v2287
        %v2757 = vsel %vm2709, %v1561, %v2289
        %v2759 = vsel %vm495, %v2712, %v2342
        %v2761 = vsel %vm495, %v2715, %v2344
        %v2763 = vsel %vm495, %v2718, %v2346
        %v2765 = vsel %vm495, %v2721, %v2348
        %v2767 = vsel %vm495, %v2724, %v2350
        %v2769 = vsel %vm495, %v2727, %v2352
        %v2771 = vsel %vm495, %v2730, %v2354
        %v2773 = vsel %vm495, %v2733, %v2356
        %v2775 = vsel %vm495, %v2736, %v2358
        %v2777 = vsel %vm495, %v2739, %v2360
        %v2779 = vsel %vm495, %v2742, %v2362
        %v2781 = vsel %vm495, %v2745, %v2364
        %v2783 = vsel %vm495, %v2748, %v2366
        %v2785 = vsel %vm495, %v2751, %v2368
        %v2787 = vsel %vm495, %v2754, %v2370
        %v2789 = vsel %vm495, %v2757, %v2372
        %vm2790 = vcmask 97280
        %v2792 = vsel %vm2790, %v2759, %v2390
        %v2794 = vsel %vm2790, %v2761, %v2392
        %v2796 = vsel %vm2790, %v2763, %v2394
        %v2798 = vsel %vm2790, %v2765, %v2396
        %v2800 = vsel %vm2790, %v2767, %v2398
        %v2802 = vsel %vm2790, %v2769, %v2400
        %v2804 = vsel %vm2790, %v2771, %v2402
        %v2806 = vsel %vm2790, %v2773, %v2404
        %v2808 = vsel %vm2790, %v2775, %v2406
        %v2810 = vsel %vm2790, %v2777, %v2408
        %v2812 = vsel %vm2790, %v2779, %v2410
        %v2814 = vsel %vm2790, %v2781, %v2412
        %v2816 = vsel %vm2790, %v2783, %v2414
        %v2818 = vsel %vm2790, %v2785, %v2416
        %v2820 = vsel %vm2790, %v2787, %v2418
        %v2822 = vsel %vm2790, %v2789, %v2420
        %vm2823 = vcmask 130048
        %v2825 = vsel %vm2823, %v2792, %v2430
        %v2827 = vsel %vm2823, %v2794, %v2432
        %v2829 = vsel %vm2823, %v2796, %v2434
        %v2831 = vsel %vm2823, %v2798, %v2436
        %v2833 = vsel %vm2823, %v2800, %v2438
        %v2835 = vsel %vm2823, %v2802, %v2440
        %v2837 = vsel %vm2823, %v2804, %v2442
        %v2839 = vsel %vm2823, %v2806, %v2444
        %v2841 = vsel %vm2823, %v2808, %v2446
        %v2843 = vsel %vm2823, %v2810, %v2448
        %v2845 = vsel %vm2823, %v2812, %v2450
        %v2847 = vsel %vm2823, %v2814, %v2452
        %v2849 = vsel %vm2823, %v2816, %v2454
        %v2851 = vsel %vm2823, %v2818, %v2456
        %v2853 = vsel %vm2823, %v2820, %v2458
        %v2855 = vsel %vm2823, %v2822, %v2460
        %vm2856 = vcmask 162816
        %v2858 = vsel %vm2856, %v2825, %v2512
        %v2860 = vsel %vm2856, %v2827, %v2514
        %v2862 = vsel %vm2856, %v2829, %v2516
        %v2864 = vsel %vm2856, %v2831, %v2518
        %v2866 = vsel %vm2856, %v2833, %v2520
        %v2868 = vsel %vm2856, %v2835, %v2522
        %v2870 = vsel %vm2856, %v2837, %v2524
        %v2872 = vsel %vm2856, %v2839, %v2526
        %v2874 = vsel %vm2856, %v2841, %v2528
        %v2876 = vsel %vm2856, %v2843, %v2530
        %v2878 = vsel %vm2856, %v2845, %v2532
        %v2880 = vsel %vm2856, %v2847, %v2534
        %v2882 = vsel %vm2856, %v2849, %v2536
        %v2884 = vsel %vm2856, %v2851, %v2538
        %v2886 = vsel %vm2856, %v2853, %v2540
        %v2888 = vsel %vm2856, %v2855, %v2542
        %vm2889 = vcmask 195584
        %v2891 = vsel %vm2889, %v2858, %v2560
        %v2893 = vsel %vm2889, %v2860, %v2562
        %v2895 = vsel %vm2889, %v2862, %v2564
        %v2897 = vsel %vm2889, %v2864, %v2566
        %v2899 = vsel %vm2889, %v2866, %v2568
        %v2901 = vsel %vm2889, %v2868, %v2570
        %v2903 = vsel %vm2889, %v2870, %v2572
        %v2905 = vsel %vm2889, %v2872, %v2574
        %v2907 = vsel %vm2889, %v2874, %v2576
        %v2909 = vsel %vm2889, %v2876, %v2578
        %v2911 = vsel %vm2889, %v2878, %v2580
        %v2913 = vsel %vm2889, %v2880, %v2582
        %v2915 = vsel %vm2889, %v2882, %v2584
        %v2917 = vsel %vm2889, %v2884, %v2586
        %v2919 = vsel %vm2889, %v2886, %v2588
        %v2921 = vsel %vm2889, %v2888, %v2590
        %vm2922 = vcmask 228352
        %v2924 = vsel %vm2922, %v2891, %v2596
        %v2926 = vsel %vm2922, %v2893, %v2598
        %v2928 = vsel %vm2922, %v2895, %v2600
        %v2930 = vsel %vm2922, %v2897, %v2602
        %v2932 = vsel %vm2922, %v2899, %v2604
        %v2934 = vsel %vm2922, %v2901, %v2606
        %v2936 = vsel %vm2922, %v2903, %v2608
        %v2938 = vsel %vm2922, %v2905, %v2610
        %v2940 = vsel %vm2922, %v2907, %v2612
        %v2942 = vsel %vm2922, %v2909, %v2614
        %v2944 = vsel %vm2922, %v2911, %v2616
        %v2946 = vsel %vm2922, %v2913, %v2618
        %v2948 = vsel %vm2922, %v2915, %v2620
        %v2950 = vsel %vm2922, %v2917, %v2622
        %v2952 = vsel %vm2922, %v2919, %v2624
        %v2954 = vsel %vm2922, %v2921, %v2626
        %vm2955 = vcmask 261120
        %v2957 = vsel %vm2955, %v2924, %v2678
        %v2959 = vsel %vm2955, %v2926, %v2680
        %v2961 = vsel %vm2955, %v2928, %v2682
        %v2963 = vsel %vm2955, %v2930, %v2684
        %v2965 = vsel %vm2955, %v2932, %v2686
        %v2967 = vsel %vm2955, %v2934, %v2688
        %v2969 = vsel %vm2955, %v2936, %v2690
        %v2971 = vsel %vm2955, %v2938, %v2692
        %v2973 = vsel %vm2955, %v2940, %v2694
        %v2975 = vsel %vm2955, %v2942, %v2696
        %v2977 = vsel %vm2955, %v2944, %v2698
        %v2979 = vsel %vm2955, %v2946, %v2700
        %v2981 = vsel %vm2955, %v2948, %v2702
        %v2983 = vsel %vm2955, %v2950, %v2704
        %v2985 = vsel %vm2955, %v2952, %v2706
        %v2987 = vsel %vm2955, %v2954, %v2708
        %v2988 = vld [vmem:[%s4] sm:$0xf]
        %v2989 = vld [vmem:[%s4 + $0x4] sm:$0xf]
        %v2990 = vld [vmem:[%s4 + $0x8] sm:$0xf]
        %v2991 = vld [vmem:[%s4 + $0xc] sm:$0xf]
        %v2992 = vld [vmem:[%s4 + $0x10] sm:$0x3]
        %v2993 = vld [vmem:[%s5] sm:$0x1]
        %v2995 = vlaneseq
        %v2996 = vshrl.u32 %v2995, 7
        %v2997 = vsub.s32 0, %v2996
        %v2998 = vrot.slane %v2993, %v2997
        %v3005 = vunpack.c.l.b16 %v2988
        %v3006 = vunpack.c.l.b16 %v2989
        %v3007 = vunpack.c.l.b16 %v2990
        %v3008 = vunpack.c.l.b16 %v2991
        %v3009 = vunpack.c.l.b16 %v2992
        %v3010 = vpack.c.b16 %v3006, %v3005
        %v3011 = vpack.c.b16 %v3008, %v3007
        %v3012 = vpack.c.b16 %v3009, %v3009
        %vm3015 = vcmask 293888
        %v3016 = vsel %vm3015, %v2957, 0
        %v3018 = vsel %vm3015, %v2959, 0
        %v3020 = vsel %vm3015, %v2961, 0
        %v3022 = vsel %vm3015, %v2963, 0
        %v3024 = vsel %vm3015, %v2965, 0
        %v3026 = vsel %vm3015, %v2967, 0
        %v3028 = vsel %vm3015, %v2969, 0
        %v3030 = vsel %vm3015, %v2971, 0
        %v3032 = vsel %vm3015, %v2973, 0
        %v3034 = vsel %vm3015, %v2975, 0
        %v3036 = vsel %vm3015, %v2977, 0
        %v3038 = vsel %vm3015, %v2979, 0
        %v3040 = vsel %vm3015, %v2981, 0
        %v3042 = vsel %vm3015, %v2983, 0
        %v3044 = vsel %vm3015, %v2985, 0
        %v3046 = vsel %vm3015, %v2987, 0
        %vm3048 = vcmask 1041408
        %v3050 = vsel %vm3048, %v3012, 0
        %3052 = vmatprep.subr.bf16.mxu0 0
        %3053 = vmatpush1.bf16.msra.mxu0 %v3010
        %3054 = vmatprep.subr.bf16.mxu0 0
        %3055 = vmatpush1.bf16.msra.mxu0 %v3011
        %3056 = vmatprep.subr.bf16.mxu0 0
        %3057 = vmatpush1.bf16.msra.mxu0 %v3050
        %3058 = vmatprep.subr.bf16.mxu0 0
        %3059 = vmatpush1.bf16.msra.mxu0 0
        %3060 = vmatprep.subr.bf16.mxu0 0
        %3061 = vmatpush1.bf16.msra.mxu0 0
        %3062 = vmatprep.subr.bf16.mxu0 0
        %3063 = vmatpush1.bf16.msra.mxu0 0
        %3064 = vmatprep.subr.bf16.mxu0 0
        %3065 = vmatpush1.bf16.msra.mxu0 0
        %3066 = vmatprep.subr.bf16.mxu0 0
        %3067 = vmatpush1.bf16.msra.mxu0 0
        %3068 = vmatprep.subr.bf16.mxu0 0
        %3069 = vmatpush1.bf16.msra.mxu0 0
        %3070 = vmatprep.subr.bf16.mxu0 0
        %3071 = vmatpush1.bf16.msra.mxu0 0
        %3072 = vmatprep.subr.bf16.mxu0 0
        %3073 = vmatpush1.bf16.msra.mxu0 0
        %3074 = vmatprep.subr.bf16.mxu0 0
        %3075 = vmatpush1.bf16.msra.mxu0 0
        %3076 = vmatprep.subr.bf16.mxu0 0
        %3077 = vmatpush1.bf16.msra.mxu0 0
        %3078 = vmatprep.subr.bf16.mxu0 0
        %3079 = vmatpush1.bf16.msra.mxu0 0
        %3080 = vmatprep.subr.bf16.mxu0 0
        %3081 = vmatpush1.bf16.msra.mxu0 0
        %3082 = vmatprep.subr.bf16.mxu0 0
        %3083 = vmatpush1.bf16.msra.mxu0 0
        %3084 = vmatprep.mubr.bf16.mxu0 0
        %3085 = vmatmul.mubr.bf16.gmra.mrb[0].mxu0 %v3016
        %v3086 = vpop.f32.mrb[0].mxu0
        %v3087 = vadd.f32 %v2998, %v3086
        %v3088 = vpop.f32.mrb[0].mxu0
        %v3089 = vpop.f32.mrb[0].mxu0
        %v3090 = vadd.f32 %v2998, %v3089
        %v3091 = vpop.f32.mrb[0].mxu0
        %3092 = vmatprep.mubr.bf16.mxu0 0
        %3093 = vmatmul.mubr.bf16.gmra.mrb[0].mxu0 %v3018
        %v3094 = vpop.f32.mrb[0].mxu0
        %v3095 = vadd.f32 %v2998, %v3094
        %v3096 = vpop.f32.mrb[0].mxu0
        %v3097 = vpop.f32.mrb[0].mxu0
        %v3098 = vadd.f32 %v2998, %v3097
        %v3099 = vpop.f32.mrb[0].mxu0
        %3100 = vmatprep.mubr.bf16.mxu0 0
        %3101 = vmatmul.mubr.bf16.gmra.mrb[0].mxu0 %v3020
        %v3102 = vpop.f32.mrb[0].mxu0
        %v3103 = vadd.f32 %v2998, %v3102
        %v3104 = vpop.f32.mrb[0].mxu0
        %v3105 = vpop.f32.mrb[0].mxu0
        %v3106 = vadd.f32 %v2998, %v3105
        %v3107 = vpop.f32.mrb[0].mxu0
        %3108 = vmatprep.mubr.bf16.mxu0 0
        %3109 = vmatmul.mubr.bf16.gmra.mrb[0].mxu0 %v3022
        %v3110 = vpop.f32.mrb[0].mxu0
        %v3111 = vadd.f32 %v2998, %v3110
        %v3112 = vpop.f32.mrb[0].mxu0
        %v3113 = vpop.f32.mrb[0].mxu0
        %v3114 = vadd.f32 %v2998, %v3113
        %v3115 = vpop.f32.mrb[0].mxu0
        %3116 = vmatprep.mubr.bf16.mxu0 0
        %3117 = vmatmul.mubr.bf16.gmra.mrb[0].mxu0 %v3024
        %v3118 = vpop.f32.mrb[0].mxu0
        %v3119 = vadd.f32 %v2998, %v3118
        %v3120 = vpop.f32.mrb[0].mxu0
        %v3121 = vpop.f32.mrb[0].mxu0
        %v3122 = vadd.f32 %v2998, %v3121
        %v3123 = vpop.f32.mrb[0].mxu0
        %3124 = vmatprep.mubr.bf16.mxu0 0
        %3125 = vmatmul.mubr.bf16.gmra.mrb[0].mxu0 %v3026
        %v3126 = vpop.f32.mrb[0].mxu0
        %v3127 = vadd.f32 %v2998, %v3126
        %v3128 = vpop.f32.mrb[0].mxu0
        %v3129 = vpop.f32.mrb[0].mxu0
        %v3130 = vadd.f32 %v2998, %v3129
        %v3131 = vpop.f32.mrb[0].mxu0
        %3132 = vmatprep.mubr.bf16.mxu0 0
        %3133 = vmatmul.mubr.bf16.gmra.mrb[0].mxu0 %v3028
        %v3134 = vpop.f32.mrb[0].mxu0
        %v3135 = vadd.f32 %v2998, %v3134
        %v3136 = vpop.f32.mrb[0].mxu0
        %v3137 = vpop.f32.mrb[0].mxu0
        %v3138 = vadd.f32 %v2998, %v3137
        %v3139 = vpop.f32.mrb[0].mxu0
        %3140 = vmatprep.mubr.bf16.mxu0 0
        %3141 = vmatmul.mubr.bf16.gmra.mrb[0].mxu0 %v3030
        %v3142 = vpop.f32.mrb[0].mxu0
        %v3143 = vadd.f32 %v2998, %v3142
        %v3144 = vpop.f32.mrb[0].mxu0
        %v3145 = vpop.f32.mrb[0].mxu0
        %v3146 = vadd.f32 %v2998, %v3145
        %v3147 = vpop.f32.mrb[0].mxu0
        %3148 = vmatprep.mubr.bf16.mxu0 0
        %3149 = vmatmul.mubr.bf16.gmra.mrb[0].mxu0 %v3032
        %v3150 = vpop.f32.mrb[0].mxu0
        %v3151 = vadd.f32 %v2998, %v3150
        %v3152 = vpop.f32.mrb[0].mxu0
        %v3153 = vpop.f32.mrb[0].mxu0
        %v3154 = vadd.f32 %v2998, %v3153
        %v3155 = vpop.f32.mrb[0].mxu0
        %3156 = vmatprep.mubr.bf16.mxu0 0
        %3157 = vmatmul.mubr.bf16.gmra.mrb[0].mxu0 %v3034
        %v3158 = vpop.f32.mrb[0].mxu0
        %v3159 = vadd.f32 %v2998, %v3158
        %v3160 = vpop.f32.mrb[0].mxu0
        %v3161 = vpop.f32.mrb[0].mxu0
        %v3162 = vadd.f32 %v2998, %v3161
        %v3163 = vpop.f32.mrb[0].mxu0
        %3164 = vmatprep.mubr.bf16.mxu0 0
        %3165 = vmatmul.mubr.bf16.gmra.mrb[0].mxu0 %v3036
        %v3166 = vpop.f32.mrb[0].mxu0
        %v3167 = vadd.f32 %v2998, %v3166
        %v3168 = vpop.f32.mrb[0].mxu0
        %v3169 = vpop.f32.mrb[0].mxu0
        %v3170 = vadd.f32 %v2998, %v3169
        %v3171 = vpop.f32.mrb[0].mxu0
        %3172 = vmatprep.mubr.bf16.mxu0 0
        %3173 = vmatmul.mubr.bf16.gmra.mrb[0].mxu0 %v3038
        %v3174 = vpop.f32.mrb[0].mxu0
        %v3175 = vadd.f32 %v2998, %v3174
        %v3176 = vpop.f32.mrb[0].mxu0
        %v3177 = vpop.f32.mrb[0].mxu0
        %v3178 = vadd.f32 %v2998, %v3177
        %v3179 = vpop.f32.mrb[0].mxu0
        %3180 = vmatprep.mubr.bf16.mxu0 0
        %3181 = vmatmul.mubr.bf16.gmra.mrb[0].mxu0 %v3040
        %v3182 = vpop.f32.mrb[0].mxu0
        %v3183 = vadd.f32 %v2998, %v3182
        %v3184 = vpop.f32.mrb[0].mxu0
        %v3185 = vpop.f32.mrb[0].mxu0
        %v3186 = vadd.f32 %v2998, %v3185
        %v3187 = vpop.f32.mrb[0].mxu0
        %3188 = vmatprep.mubr.bf16.mxu0 0
        %3189 = vmatmul.mubr.bf16.gmra.mrb[0].mxu0 %v3042
        %v3190 = vpop.f32.mrb[0].mxu0
        %v3191 = vadd.f32 %v2998, %v3190
        %v3192 = vpop.f32.mrb[0].mxu0
        %v3193 = vpop.f32.mrb[0].mxu0
        %v3194 = vadd.f32 %v2998, %v3193
        %v3195 = vpop.f32.mrb[0].mxu0
        %3196 = vmatprep.mubr.bf16.mxu0 0
        %3197 = vmatmul.mubr.bf16.gmra.mrb[0].mxu0 %v3044
        %v3198 = vpop.f32.mrb[0].mxu0
        %v3199 = vadd.f32 %v2998, %v3198
        %v3200 = vpop.f32.mrb[0].mxu0
        %v3201 = vpop.f32.mrb[0].mxu0
        %v3202 = vadd.f32 %v2998, %v3201
        %v3203 = vpop.f32.mrb[0].mxu0
        %3204 = vmatprep.mubr.bf16.mxu0 0
        %3205 = vmatmul.mubr.bf16.gmra.mrb[0].mxu0 %v3046
        %v3206 = vpop.f32.mrb[0].mxu0
        %v3207 = vadd.f32 %v2998, %v3206
        %v3208 = vpop.f32.mrb[0].mxu0
        %v3209 = vpop.f32.mrb[0].mxu0
        %v3210 = vadd.f32 %v2998, %v3209
        %v3211 = vpop.f32.mrb[0].mxu0
        %3212 = vdwg.mxu0
        %v3213 = vmul.f32 %v3087, 0.5
        %v3214 = vmul.f32 %v3090, 0.5
        %v3215 = vmul.f32 %v3095, 0.5
        %v3216 = vmul.f32 %v3098, 0.5
        %v3217 = vmul.f32 %v3103, 0.5
        %v3218 = vmul.f32 %v3106, 0.5
        %v3219 = vmul.f32 %v3111, 0.5
        %v3220 = vmul.f32 %v3114, 0.5
        %v3221 = vmul.f32 %v3119, 0.5
        %v3222 = vmul.f32 %v3122, 0.5
        %v3223 = vmul.f32 %v3127, 0.5
        %v3224 = vmul.f32 %v3130, 0.5
        %v3225 = vmul.f32 %v3135, 0.5
        %v3226 = vmul.f32 %v3138, 0.5
        %v3227 = vmul.f32 %v3143, 0.5
        %v3228 = vmul.f32 %v3146, 0.5
        %v3229 = vmul.f32 %v3151, 0.5
        %v3230 = vmul.f32 %v3154, 0.5
        %v3231 = vmul.f32 %v3159, 0.5
        %v3232 = vmul.f32 %v3162, 0.5
        %v3233 = vmul.f32 %v3167, 0.5
        %v3234 = vmul.f32 %v3170, 0.5
        %v3235 = vmul.f32 %v3175, 0.5
        %v3236 = vmul.f32 %v3178, 0.5
        %v3237 = vmul.f32 %v3183, 0.5
        %v3238 = vmul.f32 %v3186, 0.5
        %v3239 = vmul.f32 %v3191, 0.5
        %v3240 = vmul.f32 %v3194, 0.5
        %v3241 = vmul.f32 %v3199, 0.5
        %v3242 = vmul.f32 %v3202, 0.5
        %v3243 = vmul.f32 %v3207, 0.5
        %v3244 = vmul.f32 %v3210, 0.5
        %v3245 = vtanh.pop %v3213
        %v3246 = vtanh.pop %v3214
        %v3247 = vtanh.pop %v3215
        %v3248 = vtanh.pop %v3216
        %v3249 = vtanh.pop %v3217
        %v3250 = vtanh.pop %v3218
        %v3251 = vtanh.pop %v3219
        %v3252 = vtanh.pop %v3220
        %v3253 = vtanh.pop %v3221
        %v3254 = vtanh.pop %v3222
        %v3255 = vtanh.pop %v3223
        %v3256 = vtanh.pop %v3224
        %v3257 = vtanh.pop %v3225
        %v3258 = vtanh.pop %v3226
        %v3259 = vtanh.pop %v3227
        %v3260 = vtanh.pop %v3228
        %v3261 = vtanh.pop %v3229
        %v3262 = vtanh.pop %v3230
        %v3263 = vtanh.pop %v3231
        %v3264 = vtanh.pop %v3232
        %v3265 = vtanh.pop %v3233
        %v3266 = vtanh.pop %v3234
        %v3267 = vtanh.pop %v3235
        %v3268 = vtanh.pop %v3236
        %v3269 = vtanh.pop %v3237
        %v3270 = vtanh.pop %v3238
        %v3271 = vtanh.pop %v3239
        %v3272 = vtanh.pop %v3240
        %v3273 = vtanh.pop %v3241
        %v3274 = vtanh.pop %v3242
        %v3275 = vtanh.pop %v3243
        %v3276 = vtanh.pop %v3244
        %v3277 = vmul.f32 %v3245, 0.5
        %v3278 = vmul.f32 %v3246, 0.5
        %v3279 = vmul.f32 %v3247, 0.5
        %v3280 = vmul.f32 %v3248, 0.5
        %v3281 = vmul.f32 %v3249, 0.5
        %v3282 = vmul.f32 %v3250, 0.5
        %v3283 = vmul.f32 %v3251, 0.5
        %v3284 = vmul.f32 %v3252, 0.5
        %v3285 = vmul.f32 %v3253, 0.5
        %v3286 = vmul.f32 %v3254, 0.5
        %v3287 = vmul.f32 %v3255, 0.5
        %v3288 = vmul.f32 %v3256, 0.5
        %v3289 = vmul.f32 %v3257, 0.5
        %v3290 = vmul.f32 %v3258, 0.5
        %v3291 = vmul.f32 %v3259, 0.5
        %v3292 = vmul.f32 %v3260, 0.5
        %v3293 = vmul.f32 %v3261, 0.5
        %v3294 = vmul.f32 %v3262, 0.5
        %v3295 = vmul.f32 %v3263, 0.5
        %v3296 = vmul.f32 %v3264, 0.5
        %v3297 = vmul.f32 %v3265, 0.5
        %v3298 = vmul.f32 %v3266, 0.5
        %v3299 = vmul.f32 %v3267, 0.5
        %v3300 = vmul.f32 %v3268, 0.5
        %v3301 = vmul.f32 %v3269, 0.5
        %v3302 = vmul.f32 %v3270, 0.5
        %v3303 = vmul.f32 %v3271, 0.5
        %v3304 = vmul.f32 %v3272, 0.5
        %v3305 = vmul.f32 %v3273, 0.5
        %v3306 = vmul.f32 %v3274, 0.5
        %v3307 = vmul.f32 %v3275, 0.5
        %v3308 = vmul.f32 %v3276, 0.5
        %v3309 = vadd.f32 %v3277, 0.5
        %v3310 = vadd.f32 %v3278, 0.5
        %v3311 = vadd.f32 %v3279, 0.5
        %v3312 = vadd.f32 %v3280, 0.5
        %v3313 = vadd.f32 %v3281, 0.5
        %v3314 = vadd.f32 %v3282, 0.5
        %v3315 = vadd.f32 %v3283, 0.5
        %v3316 = vadd.f32 %v3284, 0.5
        %v3317 = vadd.f32 %v3285, 0.5
        %v3318 = vadd.f32 %v3286, 0.5
        %v3319 = vadd.f32 %v3287, 0.5
        %v3320 = vadd.f32 %v3288, 0.5
        %v3321 = vadd.f32 %v3289, 0.5
        %v3322 = vadd.f32 %v3290, 0.5
        %v3323 = vadd.f32 %v3291, 0.5
        %v3324 = vadd.f32 %v3292, 0.5
        %v3325 = vadd.f32 %v3293, 0.5
        %v3326 = vadd.f32 %v3294, 0.5
        %v3327 = vadd.f32 %v3295, 0.5
        %v3328 = vadd.f32 %v3296, 0.5
        %v3329 = vadd.f32 %v3297, 0.5
        %v3330 = vadd.f32 %v3298, 0.5
        %v3331 = vadd.f32 %v3299, 0.5
        %v3332 = vadd.f32 %v3300, 0.5
        %v3333 = vadd.f32 %v3301, 0.5
        %v3334 = vadd.f32 %v3302, 0.5
        %v3335 = vadd.f32 %v3303, 0.5
        %v3336 = vadd.f32 %v3304, 0.5
        %v3337 = vadd.f32 %v3305, 0.5
        %v3338 = vadd.f32 %v3306, 0.5
        %v3339 = vadd.f32 %v3307, 0.5
        %v3340 = vadd.f32 %v3308, 0.5
        %v3341 = vmul.f32 %v3087, %v3309
        %v3342 = vmul.f32 %v3090, %v3310
        %v3343 = vmul.f32 %v3095, %v3311
        %v3344 = vmul.f32 %v3098, %v3312
        %v3345 = vmul.f32 %v3103, %v3313
        %v3346 = vmul.f32 %v3106, %v3314
        %v3347 = vmul.f32 %v3111, %v3315
        %v3348 = vmul.f32 %v3114, %v3316
        %v3349 = vmul.f32 %v3119, %v3317
        %v3350 = vmul.f32 %v3122, %v3318
        %v3351 = vmul.f32 %v3127, %v3319
        %v3352 = vmul.f32 %v3130, %v3320
        %v3353 = vmul.f32 %v3135, %v3321
        %v3354 = vmul.f32 %v3138, %v3322
        %v3355 = vmul.f32 %v3143, %v3323
        %v3356 = vmul.f32 %v3146, %v3324
        %v3357 = vmul.f32 %v3151, %v3325
        %v3358 = vmul.f32 %v3154, %v3326
        %v3359 = vmul.f32 %v3159, %v3327
        %v3360 = vmul.f32 %v3162, %v3328
        %v3361 = vmul.f32 %v3167, %v3329
        %v3362 = vmul.f32 %v3170, %v3330
        %v3363 = vmul.f32 %v3175, %v3331
        %v3364 = vmul.f32 %v3178, %v3332
        %v3365 = vmul.f32 %v3183, %v3333
        %v3366 = vmul.f32 %v3186, %v3334
        %v3367 = vmul.f32 %v3191, %v3335
        %v3368 = vmul.f32 %v3194, %v3336
        %v3369 = vmul.f32 %v3199, %v3337
        %v3370 = vmul.f32 %v3202, %v3338
        %v3371 = vmul.f32 %v3207, %v3339
        %v3372 = vmul.f32 %v3210, %v3340
        %v3373 = vsel %vm495, %v3341, -inf
        %3374 = vmax.xlane.f32.xlu0 %v3373
        %v3375 = vpop.xlane.xlu0 %3374
        %v3376 = vsel %vm495, %v3342, -inf
        %3377 = vmax.xlane.f32.xlu0 %v3376
        %v3378 = vpop.xlane.xlu0 %3377
        %v3379 = vsel %vm495, %v3343, -inf
        %3380 = vmax.xlane.f32.xlu0 %v3379
        %v3381 = vpop.xlane.xlu0 %3380
        %v3382 = vsel %vm495, %v3344, -inf
        %3383 = vmax.xlane.f32.xlu0 %v3382
        %v3384 = vpop.xlane.xlu0 %3383
        %v3385 = vsel %vm495, %v3345, -inf
        %3386 = vmax.xlane.f32.xlu0 %v3385
        %v3387 = vpop.xlane.xlu0 %3386
        %v3388 = vsel %vm495, %v3346, -inf
        %3389 = vmax.xlane.f32.xlu0 %v3388
        %v3390 = vpop.xlane.xlu0 %3389
        %v3391 = vsel %vm495, %v3347, -inf
        %3392 = vmax.xlane.f32.xlu0 %v3391
        %v3393 = vpop.xlane.xlu0 %3392
        %v3394 = vsel %vm495, %v3348, -inf
        %3395 = vmax.xlane.f32.xlu0 %v3394
        %v3396 = vpop.xlane.xlu0 %3395
        %v3397 = vsel %vm495, %v3349, -inf
        %3398 = vmax.xlane.f32.xlu0 %v3397
        %v3399 = vpop.xlane.xlu0 %3398
        %v3400 = vsel %vm495, %v3350, -inf
        %3401 = vmax.xlane.f32.xlu0 %v3400
        %v3402 = vpop.xlane.xlu0 %3401
        %v3403 = vsel %vm495, %v3351, -inf
        %3404 = vmax.xlane.f32.xlu0 %v3403
        %v3405 = vpop.xlane.xlu0 %3404
        %v3406 = vsel %vm495, %v3352, -inf
        %3407 = vmax.xlane.f32.xlu0 %v3406
        %v3408 = vpop.xlane.xlu0 %3407
        %v3409 = vsel %vm495, %v3353, -inf
        %3410 = vmax.xlane.f32.xlu0 %v3409
        %v3411 = vpop.xlane.xlu0 %3410
        %v3412 = vsel %vm495, %v3354, -inf
        %3413 = vmax.xlane.f32.xlu0 %v3412
        %v3414 = vpop.xlane.xlu0 %3413
        %v3415 = vsel %vm495, %v3355, -inf
        %3416 = vmax.xlane.f32.xlu0 %v3415
        %v3417 = vpop.xlane.xlu0 %3416
        %v3418 = vsel %vm495, %v3356, -inf
        %3419 = vmax.xlane.f32.xlu0 %v3418
        %v3420 = vpop.xlane.xlu0 %3419
        %v3421 = vsel %vm495, %v3357, -inf
        %3422 = vmax.xlane.f32.xlu0 %v3421
        %v3423 = vpop.xlane.xlu0 %3422
        %v3424 = vsel %vm495, %v3358, -inf
        %3425 = vmax.xlane.f32.xlu0 %v3424
        %v3426 = vpop.xlane.xlu0 %3425
        %v3427 = vsel %vm495, %v3359, -inf
        %3428 = vmax.xlane.f32.xlu0 %v3427
        %v3429 = vpop.xlane.xlu0 %3428
        %v3430 = vsel %vm495, %v3360, -inf
        %3431 = vmax.xlane.f32.xlu0 %v3430
        %v3432 = vpop.xlane.xlu0 %3431
        %v3433 = vsel %vm495, %v3361, -inf
        %3434 = vmax.xlane.f32.xlu0 %v3433
        %v3435 = vpop.xlane.xlu0 %3434
        %v3436 = vsel %vm495, %v3362, -inf
        %3437 = vmax.xlane.f32.xlu0 %v3436
        %v3438 = vpop.xlane.xlu0 %3437
        %v3439 = vsel %vm495, %v3363, -inf
        %3440 = vmax.xlane.f32.xlu0 %v3439
        %v3441 = vpop.xlane.xlu0 %3440
        %v3442 = vsel %vm495, %v3364, -inf
        %3443 = vmax.xlane.f32.xlu0 %v3442
        %v3444 = vpop.xlane.xlu0 %3443
        %v3445 = vsel %vm495, %v3365, -inf
        %3446 = vmax.xlane.f32.xlu0 %v3445
        %v3447 = vpop.xlane.xlu0 %3446
        %v3448 = vsel %vm495, %v3366, -inf
        %3449 = vmax.xlane.f32.xlu0 %v3448
        %v3450 = vpop.xlane.xlu0 %3449
        %v3451 = vsel %vm495, %v3367, -inf
        %3452 = vmax.xlane.f32.xlu0 %v3451
        %v3453 = vpop.xlane.xlu0 %3452
        %v3454 = vsel %vm495, %v3368, -inf
        %3455 = vmax.xlane.f32.xlu0 %v3454
        %v3456 = vpop.xlane.xlu0 %3455
        %v3457 = vsel %vm495, %v3369, -inf
        %3458 = vmax.xlane.f32.xlu0 %v3457
        %v3459 = vpop.xlane.xlu0 %3458
        %v3460 = vsel %vm495, %v3370, -inf
        %3461 = vmax.xlane.f32.xlu0 %v3460
        %v3462 = vpop.xlane.xlu0 %3461
        %v3463 = vsel %vm495, %v3371, -inf
        %3464 = vmax.xlane.f32.xlu0 %v3463
        %v3465 = vpop.xlane.xlu0 %3464
        %v3466 = vsel %vm495, %v3372, -inf
        %3467 = vmax.xlane.f32.xlu0 %v3466
        %v3468 = vpop.xlane.xlu0 %3467
        %v3469 = vsel %vm495, %v3341, 0.0
        %3470 = vadd.xlane.f32.xlu0 %v3469
        %v3471 = vpop.xlane.xlu0 %3470
        %v3472 = vsel %vm495, %v3342, 0.0
        %3473 = vadd.xlane.f32.xlu0 %v3472
        %v3474 = vpop.xlane.xlu0 %3473
        %v3475 = vsel %vm495, %v3343, 0.0
        %3476 = vadd.xlane.f32.xlu0 %v3475
        %v3477 = vpop.xlane.xlu0 %3476
        %v3478 = vsel %vm495, %v3344, 0.0
        %3479 = vadd.xlane.f32.xlu0 %v3478
        %v3480 = vpop.xlane.xlu0 %3479
        %v3481 = vsel %vm495, %v3345, 0.0
        %3482 = vadd.xlane.f32.xlu0 %v3481
        %v3483 = vpop.xlane.xlu0 %3482
        %v3484 = vsel %vm495, %v3346, 0.0
        %3485 = vadd.xlane.f32.xlu0 %v3484
        %v3486 = vpop.xlane.xlu0 %3485
        %v3487 = vsel %vm495, %v3347, 0.0
        %3488 = vadd.xlane.f32.xlu0 %v3487
        %v3489 = vpop.xlane.xlu0 %3488
        %v3490 = vsel %vm495, %v3348, 0.0
        %3491 = vadd.xlane.f32.xlu0 %v3490
        %v3492 = vpop.xlane.xlu0 %3491
        %v3493 = vsel %vm495, %v3349, 0.0
        %3494 = vadd.xlane.f32.xlu0 %v3493
        %v3495 = vpop.xlane.xlu0 %3494
        %v3496 = vsel %vm495, %v3350, 0.0
        %3497 = vadd.xlane.f32.xlu0 %v3496
        %v3498 = vpop.xlane.xlu0 %3497
        %v3499 = vsel %vm495, %v3351, 0.0
        %3500 = vadd.xlane.f32.xlu0 %v3499
        %v3501 = vpop.xlane.xlu0 %3500
        %v3502 = vsel %vm495, %v3352, 0.0
        %3503 = vadd.xlane.f32.xlu0 %v3502
        %v3504 = vpop.xlane.xlu0 %3503
        %v3505 = vsel %vm495, %v3353, 0.0
        %3506 = vadd.xlane.f32.xlu0 %v3505
        %v3507 = vpop.xlane.xlu0 %3506
        %v3508 = vsel %vm495, %v3354, 0.0
        %3509 = vadd.xlane.f32.xlu0 %v3508
        %v3510 = vpop.xlane.xlu0 %3509
        %v3511 = vsel %vm495, %v3355, 0.0
        %3512 = vadd.xlane.f32.xlu0 %v3511
        %v3513 = vpop.xlane.xlu0 %3512
        %v3514 = vsel %vm495, %v3356, 0.0
        %3515 = vadd.xlane.f32.xlu0 %v3514
        %v3516 = vpop.xlane.xlu0 %3515
        %v3517 = vsel %vm495, %v3357, 0.0
        %3518 = vadd.xlane.f32.xlu0 %v3517
        %v3519 = vpop.xlane.xlu0 %3518
        %v3520 = vsel %vm495, %v3358, 0.0
        %3521 = vadd.xlane.f32.xlu0 %v3520
        %v3522 = vpop.xlane.xlu0 %3521
        %v3523 = vsel %vm495, %v3359, 0.0
        %3524 = vadd.xlane.f32.xlu0 %v3523
        %v3525 = vpop.xlane.xlu0 %3524
        %v3526 = vsel %vm495, %v3360, 0.0
        %3527 = vadd.xlane.f32.xlu0 %v3526
        %v3528 = vpop.xlane.xlu0 %3527
        %v3529 = vsel %vm495, %v3361, 0.0
        %3530 = vadd.xlane.f32.xlu0 %v3529
        %v3531 = vpop.xlane.xlu0 %3530
        %v3532 = vsel %vm495, %v3362, 0.0
        %3533 = vadd.xlane.f32.xlu0 %v3532
        %v3534 = vpop.xlane.xlu0 %3533
        %v3535 = vsel %vm495, %v3363, 0.0
        %3536 = vadd.xlane.f32.xlu0 %v3535
        %v3537 = vpop.xlane.xlu0 %3536
        %v3538 = vsel %vm495, %v3364, 0.0
        %3539 = vadd.xlane.f32.xlu0 %v3538
        %v3540 = vpop.xlane.xlu0 %3539
        %v3541 = vsel %vm495, %v3365, 0.0
        %3542 = vadd.xlane.f32.xlu0 %v3541
        %v3543 = vpop.xlane.xlu0 %3542
        %v3544 = vsel %vm495, %v3366, 0.0
        %3545 = vadd.xlane.f32.xlu0 %v3544
        %v3546 = vpop.xlane.xlu0 %3545
        %v3547 = vsel %vm495, %v3367, 0.0
        %3548 = vadd.xlane.f32.xlu0 %v3547
        %v3549 = vpop.xlane.xlu0 %3548
        %v3550 = vsel %vm495, %v3368, 0.0
        %3551 = vadd.xlane.f32.xlu0 %v3550
        %v3552 = vpop.xlane.xlu0 %3551
        %v3553 = vsel %vm495, %v3369, 0.0
        %3554 = vadd.xlane.f32.xlu0 %v3553
        %v3555 = vpop.xlane.xlu0 %3554
        %v3556 = vsel %vm495, %v3370, 0.0
        %3557 = vadd.xlane.f32.xlu0 %v3556
        %v3558 = vpop.xlane.xlu0 %3557
        %v3559 = vsel %vm495, %v3371, 0.0
        %3560 = vadd.xlane.f32.xlu0 %v3559
        %v3561 = vpop.xlane.xlu0 %3560
        %v3562 = vsel %vm495, %v3372, 0.0
        %3563 = vadd.xlane.f32.xlu0 %v3562
        %v3564 = vpop.xlane.xlu0 %3563
        %v3565 = vrcp.pop 8.0
        %v3566 = vmul.f32 %v3471, %v3565
        %v3567 = vmul.f32 %v3474, %v3565
        %v3568 = vmul.f32 %v3477, %v3565
        %v3569 = vmul.f32 %v3480, %v3565
        %v3570 = vmul.f32 %v3483, %v3565
        %v3571 = vmul.f32 %v3486, %v3565
        %v3572 = vmul.f32 %v3489, %v3565
        %v3573 = vmul.f32 %v3492, %v3565
        %v3574 = vmul.f32 %v3495, %v3565
        %v3575 = vmul.f32 %v3498, %v3565
        %v3576 = vmul.f32 %v3501, %v3565
        %v3577 = vmul.f32 %v3504, %v3565
        %v3578 = vmul.f32 %v3507, %v3565
        %v3579 = vmul.f32 %v3510, %v3565
        %v3580 = vmul.f32 %v3513, %v3565
        %v3581 = vmul.f32 %v3516, %v3565
        %v3582 = vmul.f32 %v3519, %v3565
        %v3583 = vmul.f32 %v3522, %v3565
        %v3584 = vmul.f32 %v3525, %v3565
        %v3585 = vmul.f32 %v3528, %v3565
        %v3586 = vmul.f32 %v3531, %v3565
        %v3587 = vmul.f32 %v3534, %v3565
        %v3588 = vmul.f32 %v3537, %v3565
        %v3589 = vmul.f32 %v3540, %v3565
        %v3590 = vmul.f32 %v3543, %v3565
        %v3591 = vmul.f32 %v3546, %v3565
        %v3592 = vmul.f32 %v3549, %v3565
        %v3593 = vmul.f32 %v3552, %v3565
        %v3594 = vmul.f32 %v3555, %v3565
        %v3595 = vmul.f32 %v3558, %v3565
        %v3596 = vmul.f32 %v3561, %v3565
        %v3597 = vmul.f32 %v3564, %v3565
        %s3598 = sld [smem:[#allocation2]]
        %v3631 = vlaneseq
        %v3632 = vand.u32 %v3631, 127
        %v3633 = vlaneseq
        %v3634 = vshrl.u32 %v3633, 7
        %v3635 = vsub.s32 %v3632, %v3634
        %v3636 = vrot.slane %v3375, %v3635
        %v3637 = vadd.s32 %v3632, 4294967288
        %v3638 = vlaneseq
        %v3639 = vshrl.u32 %v3638, 7
        %v3640 = vsub.s32 %v3637, %v3639
        %v3641 = vrot.slane %v3378, %v3640
        %vm3642 = vcmask 130112
        %v3643 = vsel %vm3642, %v3641, %v3636
        %v3644 = vlaneseq
        %v3645 = vshrl.u32 %v3644, 7
        %v3646 = vsub.s32 %v3632, %v3645
        %v3647 = vrot.slane %v3381, %v3646
        %v3648 = vlaneseq
        %v3649 = vshrl.u32 %v3648, 7
        %v3650 = vsub.s32 %v3637, %v3649
        %v3651 = vrot.slane %v3384, %v3650
        %v3652 = vsel %vm3642, %v3651, %v3647
        %v3653 = vlaneseq
        %v3654 = vshrl.u32 %v3653, 7
        %v3655 = vsub.s32 %v3632, %v3654
        %v3656 = vrot.slane %v3387, %v3655
        %v3657 = vlaneseq
        %v3658 = vshrl.u32 %v3657, 7
        %v3659 = vsub.s32 %v3637, %v3658
        %v3660 = vrot.slane %v3390, %v3659
        %v3661 = vsel %vm3642, %v3660, %v3656
        %v3662 = vlaneseq
        %v3663 = vshrl.u32 %v3662, 7
        %v3664 = vsub.s32 %v3632, %v3663
        %v3665 = vrot.slane %v3393, %v3664
        %v3666 = vlaneseq
        %v3667 = vshrl.u32 %v3666, 7
        %v3668 = vsub.s32 %v3637, %v3667
        %v3669 = vrot.slane %v3396, %v3668
        %v3670 = vsel %vm3642, %v3669, %v3665
        %v3671 = vlaneseq
        %v3672 = vshrl.u32 %v3671, 7
        %v3673 = vsub.s32 %v3632, %v3672
        %v3674 = vrot.slane %v3399, %v3673
        %v3675 = vlaneseq
        %v3676 = vshrl.u32 %v3675, 7
        %v3677 = vsub.s32 %v3637, %v3676
        %v3678 = vrot.slane %v3402, %v3677
        %v3679 = vsel %vm3642, %v3678, %v3674
        %v3680 = vlaneseq
        %v3681 = vshrl.u32 %v3680, 7
        %v3682 = vsub.s32 %v3632, %v3681
        %v3683 = vrot.slane %v3405, %v3682
        %v3684 = vlaneseq
        %v3685 = vshrl.u32 %v3684, 7
        %v3686 = vsub.s32 %v3637, %v3685
        %v3687 = vrot.slane %v3408, %v3686
        %v3688 = vsel %vm3642, %v3687, %v3683
        %v3689 = vlaneseq
        %v3690 = vshrl.u32 %v3689, 7
        %v3691 = vsub.s32 %v3632, %v3690
        %v3692 = vrot.slane %v3411, %v3691
        %v3693 = vlaneseq
        %v3694 = vshrl.u32 %v3693, 7
        %v3695 = vsub.s32 %v3637, %v3694
        %v3696 = vrot.slane %v3414, %v3695
        %v3697 = vsel %vm3642, %v3696, %v3692
        %v3698 = vlaneseq
        %v3699 = vshrl.u32 %v3698, 7
        %v3700 = vsub.s32 %v3632, %v3699
        %v3701 = vrot.slane %v3417, %v3700
        %v3702 = vlaneseq
        %v3703 = vshrl.u32 %v3702, 7
        %v3704 = vsub.s32 %v3637, %v3703
        %v3705 = vrot.slane %v3420, %v3704
        %v3706 = vsel %vm3642, %v3705, %v3701
        %v3707 = vlaneseq
        %v3708 = vshrl.u32 %v3707, 7
        %v3709 = vsub.s32 %v3632, %v3708
        %v3710 = vrot.slane %v3423, %v3709
        %v3711 = vlaneseq
        %v3712 = vshrl.u32 %v3711, 7
        %v3713 = vsub.s32 %v3637, %v3712
        %v3714 = vrot.slane %v3426, %v3713
        %v3715 = vsel %vm3642, %v3714, %v3710
        %v3716 = vlaneseq
        %v3717 = vshrl.u32 %v3716, 7
        %v3718 = vsub.s32 %v3632, %v3717
        %v3719 = vrot.slane %v3429, %v3718
        %v3720 = vlaneseq
        %v3721 = vshrl.u32 %v3720, 7
        %v3722 = vsub.s32 %v3637, %v3721
        %v3723 = vrot.slane %v3432, %v3722
        %v3724 = vsel %vm3642, %v3723, %v3719
        %v3725 = vlaneseq
        %v3726 = vshrl.u32 %v3725, 7
        %v3727 = vsub.s32 %v3632, %v3726
        %v3728 = vrot.slane %v3435, %v3727
        %v3729 = vlaneseq
        %v3730 = vshrl.u32 %v3729, 7
        %v3731 = vsub.s32 %v3637, %v3730
        %v3732 = vrot.slane %v3438, %v3731
        %v3733 = vsel %vm3642, %v3732, %v3728
        %v3734 = vlaneseq
        %v3735 = vshrl.u32 %v3734, 7
        %v3736 = vsub.s32 %v3632, %v3735
        %v3737 = vrot.slane %v3441, %v3736
        %v3738 = vlaneseq
        %v3739 = vshrl.u32 %v3738, 7
        %v3740 = vsub.s32 %v3637, %v3739
        %v3741 = vrot.slane %v3444, %v3740
        %v3742 = vsel %vm3642, %v3741, %v3737
        %v3743 = vlaneseq
        %v3744 = vshrl.u32 %v3743, 7
        %v3745 = vsub.s32 %v3632, %v3744
        %v3746 = vrot.slane %v3447, %v3745
        %v3747 = vlaneseq
        %v3748 = vshrl.u32 %v3747, 7
        %v3749 = vsub.s32 %v3637, %v3748
        %v3750 = vrot.slane %v3450, %v3749
        %v3751 = vsel %vm3642, %v3750, %v3746
        %v3752 = vlaneseq
        %v3753 = vshrl.u32 %v3752, 7
        %v3754 = vsub.s32 %v3632, %v3753
        %v3755 = vrot.slane %v3453, %v3754
        %v3756 = vlaneseq
        %v3757 = vshrl.u32 %v3756, 7
        %v3758 = vsub.s32 %v3637, %v3757
        %v3759 = vrot.slane %v3456, %v3758
        %v3760 = vsel %vm3642, %v3759, %v3755
        %v3761 = vlaneseq
        %v3762 = vshrl.u32 %v3761, 7
        %v3763 = vsub.s32 %v3632, %v3762
        %v3764 = vrot.slane %v3459, %v3763
        %v3765 = vlaneseq
        %v3766 = vshrl.u32 %v3765, 7
        %v3767 = vsub.s32 %v3637, %v3766
        %v3768 = vrot.slane %v3462, %v3767
        %v3769 = vsel %vm3642, %v3768, %v3764
        %v3770 = vlaneseq
        %v3771 = vshrl.u32 %v3770, 7
        %v3772 = vsub.s32 %v3632, %v3771
        %v3773 = vrot.slane %v3465, %v3772
        %v3774 = vlaneseq
        %v3775 = vshrl.u32 %v3774, 7
        %v3776 = vsub.s32 %v3637, %v3775
        %v3777 = vrot.slane %v3468, %v3776
        %v3778 = vsel %vm3642, %v3777, %v3773
        %vm3779 = vcmask 1041409
        %v3780 = vsel %vm3779, %v3652, %v3643
        %vm3781 = vcmask 1042434
        %v3782 = vsel %vm3781, %v3661, %v3780
        %vm3783 = vcmask 1043459
        %v3784 = vsel %vm3783, %v3670, %v3782
        %vm3785 = vcmask 1044484
        %v3786 = vsel %vm3785, %v3679, %v3784
        %vm3787 = vcmask 1045509
        %v3788 = vsel %vm3787, %v3688, %v3786
        %vm3789 = vcmask 1046534
        %v3790 = vsel %vm3789, %v3697, %v3788
        %vm3791 = vcmask 1047559
        %v3792 = vsel %vm3791, %v3706, %v3790
        %v3793 = vsel %vm3779, %v3724, %v3715
        %v3794 = vsel %vm3781, %v3733, %v3793
        %v3795 = vsel %vm3783, %v3742, %v3794
        %v3796 = vsel %vm3785, %v3751, %v3795
        %v3797 = vsel %vm3787, %v3760, %v3796
        %v3798 = vsel %vm3789, %v3769, %v3797
        %v3799 = vsel %vm3791, %v3778, %v3798
        %v3834 = vadd.s32 %v3632, 4294967280
        %v3835 = vlaneseq
        %v3836 = vshrl.u32 %v3835, 7
        %v3837 = vsub.s32 %v3834, %v3836
        %v3838 = vrot.slane %v3566, %v3837
        %v3839 = vadd.s32 %v3632, 4294967272
        %v3840 = vlaneseq
        %v3841 = vshrl.u32 %v3840, 7
        %v3842 = vsub.s32 %v3839, %v3841
        %v3843 = vrot.slane %v3567, %v3842
        %vm3844 = vcmask 261312
        %v3845 = vsel %vm3844, %v3843, %v3838
        %v3846 = vlaneseq
        %v3847 = vshrl.u32 %v3846, 7
        %v3848 = vsub.s32 %v3834, %v3847
        %v3849 = vrot.slane %v3568, %v3848
        %v3850 = vlaneseq
        %v3851 = vshrl.u32 %v3850, 7
        %v3852 = vsub.s32 %v3839, %v3851
        %v3853 = vrot.slane %v3569, %v3852
        %v3854 = vsel %vm3844, %v3853, %v3849
        %v3855 = vlaneseq
        %v3856 = vshrl.u32 %v3855, 7
        %v3857 = vsub.s32 %v3834, %v3856
        %v3858 = vrot.slane %v3570, %v3857
        %v3859 = vlaneseq
        %v3860 = vshrl.u32 %v3859, 7
        %v3861 = vsub.s32 %v3839, %v3860
        %v3862 = vrot.slane %v3571, %v3861
        %v3863 = vsel %vm3844, %v3862, %v3858
        %v3864 = vlaneseq
        %v3865 = vshrl.u32 %v3864, 7
        %v3866 = vsub.s32 %v3834, %v3865
        %v3867 = vrot.slane %v3572, %v3866
        %v3868 = vlaneseq
        %v3869 = vshrl.u32 %v3868, 7
        %v3870 = vsub.s32 %v3839, %v3869
        %v3871 = vrot.slane %v3573, %v3870
        %v3872 = vsel %vm3844, %v3871, %v3867
        %v3873 = vlaneseq
        %v3874 = vshrl.u32 %v3873, 7
        %v3875 = vsub.s32 %v3834, %v3874
        %v3876 = vrot.slane %v3574, %v3875
        %v3877 = vlaneseq
        %v3878 = vshrl.u32 %v3877, 7
        %v3879 = vsub.s32 %v3839, %v3878
        %v3880 = vrot.slane %v3575, %v3879
        %v3881 = vsel %vm3844, %v3880, %v3876
        %v3882 = vlaneseq
        %v3883 = vshrl.u32 %v3882, 7
        %v3884 = vsub.s32 %v3834, %v3883
        %v3885 = vrot.slane %v3576, %v3884
        %v3886 = vlaneseq
        %v3887 = vshrl.u32 %v3886, 7
        %v3888 = vsub.s32 %v3839, %v3887
        %v3889 = vrot.slane %v3577, %v3888
        %v3890 = vsel %vm3844, %v3889, %v3885
        %v3891 = vlaneseq
        %v3892 = vshrl.u32 %v3891, 7
        %v3893 = vsub.s32 %v3834, %v3892
        %v3894 = vrot.slane %v3578, %v3893
        %v3895 = vlaneseq
        %v3896 = vshrl.u32 %v3895, 7
        %v3897 = vsub.s32 %v3839, %v3896
        %v3898 = vrot.slane %v3579, %v3897
        %v3899 = vsel %vm3844, %v3898, %v3894
        %v3900 = vlaneseq
        %v3901 = vshrl.u32 %v3900, 7
        %v3902 = vsub.s32 %v3834, %v3901
        %v3903 = vrot.slane %v3580, %v3902
        %v3904 = vlaneseq
        %v3905 = vshrl.u32 %v3904, 7
        %v3906 = vsub.s32 %v3839, %v3905
        %v3907 = vrot.slane %v3581, %v3906
        %v3908 = vsel %vm3844, %v3907, %v3903
        %v3909 = vlaneseq
        %v3910 = vshrl.u32 %v3909, 7
        %v3911 = vsub.s32 %v3834, %v3910
        %v3912 = vrot.slane %v3582, %v3911
        %v3913 = vlaneseq
        %v3914 = vshrl.u32 %v3913, 7
        %v3915 = vsub.s32 %v3839, %v3914
        %v3916 = vrot.slane %v3583, %v3915
        %v3917 = vsel %vm3844, %v3916, %v3912
        %v3918 = vlaneseq
        %v3919 = vshrl.u32 %v3918, 7
        %v3920 = vsub.s32 %v3834, %v3919
        %v3921 = vrot.slane %v3584, %v3920
        %v3922 = vlaneseq
        %v3923 = vshrl.u32 %v3922, 7
        %v3924 = vsub.s32 %v3839, %v3923
        %v3925 = vrot.slane %v3585, %v3924
        %v3926 = vsel %vm3844, %v3925, %v3921
        %v3927 = vlaneseq
        %v3928 = vshrl.u32 %v3927, 7
        %v3929 = vsub.s32 %v3834, %v3928
        %v3930 = vrot.slane %v3586, %v3929
        %v3931 = vlaneseq
        %v3932 = vshrl.u32 %v3931, 7
        %v3933 = vsub.s32 %v3839, %v3932
        %v3934 = vrot.slane %v3587, %v3933
        %v3935 = vsel %vm3844, %v3934, %v3930
        %v3936 = vlaneseq
        %v3937 = vshrl.u32 %v3936, 7
        %v3938 = vsub.s32 %v3834, %v3937
        %v3939 = vrot.slane %v3588, %v3938
        %v3940 = vlaneseq
        %v3941 = vshrl.u32 %v3940, 7
        %v3942 = vsub.s32 %v3839, %v3941
        %v3943 = vrot.slane %v3589, %v3942
        %v3944 = vsel %vm3844, %v3943, %v3939
        %v3945 = vlaneseq
        %v3946 = vshrl.u32 %v3945, 7
        %v3947 = vsub.s32 %v3834, %v3946
        %v3948 = vrot.slane %v3590, %v3947
        %v3949 = vlaneseq
        %v3950 = vshrl.u32 %v3949, 7
        %v3951 = vsub.s32 %v3839, %v3950
        %v3952 = vrot.slane %v3591, %v3951
        %v3953 = vsel %vm3844, %v3952, %v3948
        %v3954 = vlaneseq
        %v3955 = vshrl.u32 %v3954, 7
        %v3956 = vsub.s32 %v3834, %v3955
        %v3957 = vrot.slane %v3592, %v3956
        %v3958 = vlaneseq
        %v3959 = vshrl.u32 %v3958, 7
        %v3960 = vsub.s32 %v3839, %v3959
        %v3961 = vrot.slane %v3593, %v3960
        %v3962 = vsel %vm3844, %v3961, %v3957
        %v3963 = vlaneseq
        %v3964 = vshrl.u32 %v3963, 7
        %v3965 = vsub.s32 %v3834, %v3964
        %v3966 = vrot.slane %v3594, %v3965
        %v3967 = vlaneseq
        %v3968 = vshrl.u32 %v3967, 7
        %v3969 = vsub.s32 %v3839, %v3968
        %v3970 = vrot.slane %v3595, %v3969
        %v3971 = vsel %vm3844, %v3970, %v3966
        %v3972 = vlaneseq
        %v3973 = vshrl.u32 %v3972, 7
        %v3974 = vsub.s32 %v3834, %v3973
        %v3975 = vrot.slane %v3596, %v3974
        %v3976 = vlaneseq
        %v3977 = vshrl.u32 %v3976, 7
        %v3978 = vsub.s32 %v3839, %v3977
        %v3979 = vrot.slane %v3597, %v3978
        %v3980 = vsel %vm3844, %v3979, %v3975
        %v3981 = vsel %vm3779, %v3854, %v3845
        %v3982 = vsel %vm3781, %v3863, %v3981
        %v3983 = vsel %vm3783, %v3872, %v3982
        %v3984 = vsel %vm3785, %v3881, %v3983
        %v3985 = vsel %vm3787, %v3890, %v3984
        %v3986 = vsel %vm3789, %v3899, %v3985
        %v3987 = vsel %vm3791, %v3908, %v3986
        %v3988 = vsel %vm3779, %v3926, %v3917
        %v3989 = vsel %vm3781, %v3935, %v3988
        %v3990 = vsel %vm3783, %v3944, %v3989
        %v3991 = vsel %vm3785, %v3953, %v3990
        %v3992 = vsel %vm3787, %v3962, %v3991
        %v3993 = vsel %vm3789, %v3971, %v3992
        %v3994 = vsel %vm3791, %v3980, %v3993
        %v3997 = vsel %vm2823, %v3792, %v3987
        %v3998 = vsel %vm2823, %v3799, %v3994
        %v3999 = vpack.c.bf16 %v3998, %v3997
        %v4000 = vld [vmem:[%s6] sm:$0xf]
        %v4001 = vld [vmem:[%s6 + $0x4] sm:$0xf]
        %v4002 = vld [vmem:[%s6 + $0x8] sm:$0xf]
        %v4003 = vld [vmem:[%s6 + $0xc] sm:$0xf]
        %v4008 = vunpack.c.l.b16 %v4000
        %v4009 = vunpack.c.l.b16 %v4001
        %v4010 = vunpack.c.l.b16 %v4002
        %v4011 = vunpack.c.l.b16 %v4003
        %v4012 = vpack.c.b16 %v4009, %v4008
        %v4013 = vpack.c.b16 %v4011, %v4010
        %v4017 = vsel %vm2955, %v3999, 0
        %4019 = vmatprep.subr.bf16.mxu0 0
        %4020 = vmatpush1.bf16.msra.mxu0 %v4012
        %4021 = vmatprep.subr.bf16.mxu0 0
        %4022 = vmatpush1.bf16.msra.mxu0 %v4013
        %4023 = vmatprep.subr.bf16.mxu0 0
        %4024 = vmatpush1.bf16.msra.mxu0 0
        %4025 = vmatprep.subr.bf16.mxu0 0
        %4026 = vmatpush1.bf16.msra.mxu0 0
        %4027 = vmatprep.subr.bf16.mxu0 0
        %4028 = vmatpush1.bf16.msra.mxu0 0
        %4029 = vmatprep.subr.bf16.mxu0 0
        %4030 = vmatpush1.bf16.msra.mxu0 0
        %4031 = vmatprep.subr.bf16.mxu0 0
        %4032 = vmatpush1.bf16.msra.mxu0 0
        %4033 = vmatprep.subr.bf16.mxu0 0
        %4034 = vmatpush1.bf16.msra.mxu0 0
        %4035 = vmatprep.subr.bf16.mxu0 0
        %4036 = vmatpush1.bf16.msra.mxu0 0
        %4037 = vmatprep.subr.bf16.mxu0 0
        %4038 = vmatpush1.bf16.msra.mxu0 0
        %4039 = vmatprep.subr.bf16.mxu0 0
        %4040 = vmatpush1.bf16.msra.mxu0 0
        %4041 = vmatprep.subr.bf16.mxu0 0
        %4042 = vmatpush1.bf16.msra.mxu0 0
        %4043 = vmatprep.subr.bf16.mxu0 0
        %4044 = vmatpush1.bf16.msra.mxu0 0
        %4045 = vmatprep.subr.bf16.mxu0 0
        %4046 = vmatpush1.bf16.msra.mxu0 0
        %4047 = vmatprep.subr.bf16.mxu0 0
        %4048 = vmatpush1.bf16.msra.mxu0 0
        %4049 = vmatprep.subr.bf16.mxu0 0
        %4050 = vmatpush1.bf16.msra.mxu0 0
        %4051 = vmatprep.mubr.bf16.mxu0 0
        %4052 = vmatmul.mubr.bf16.gmra.mrb[0].mxu0 %v4017
        %v4053 = vpop.f32.mrb[0].mxu0
        %v4054 = vadd.f32 0.0, %v4053
        %v4055 = vpop.f32.mrb[0].mxu0
        %v4056 = vpop.f32.mrb[0].mxu0
        %v4057 = vadd.f32 0.0, %v4056
        %v4058 = vpop.f32.mrb[0].mxu0
        %4059 = vdwg.mxu0
        %vm4062 = vcmask 1042432
        %v4063 = vrot.slane %v4054, 5
        %v4064 = vrot.slane %v4057, 5
        %v4065 = vsel %vm4062, %v4063, %v4064
        %v4069 = vsel %vm4062, 0.0, %v4063
        %v4070 = vsel %vm4062, %v4064, 0.0
        %v4071 = vstv %s3598
        %v4072 = vadd.f32 %v4071, 0.0
        %v4073 = vadd.f32 %v4072, %v4069
        %v4074 = vadd.f32 %v4072, %v4065
        %vm4077 = vcmask 1046528
        %v4078 = vrot.slane %v4069, 1
        %v4079 = vrot.slane %v4065, 1
        %v4080 = vsel %vm4077, %v4078, %v4079
        %v4081 = vrot.slane %v4070, 1
        %v4082 = vsel %vm4077, %v4079, %v4081
        %4083 = vrot.lane.b32.xlu0 %v4080, 112
        %v4084 = vpop.permute.xlu0 %4083
        %4085 = vrot.lane.b32.xlu0 %v4082, 112
        %v4086 = vpop.permute.xlu0 %4085
        %v4089 = vadd.f32 %v4073, %v4084
        %v4090 = vadd.f32 %v4074, %v4086
        %vm4091 = vcmask 1045504
        %v4092 = vrot.slane %v4069, 2
        %v4093 = vrot.slane %v4065, 2
        %v4094 = vsel %vm4091, %v4092, %v4093
        %v4095 = vrot.slane %v4070, 2
        %v4096 = vsel %vm4091, %v4093, %v4095
        %4097 = vrot.lane.b32.xlu0 %v4094, 96
        %v4098 = vpop.permute.xlu0 %4097
        %4099 = vrot.lane.b32.xlu0 %v4096, 96
        %v4100 = vpop.permute.xlu0 %4099
        %v4103 = vadd.f32 %v4089, %v4098
        %v4104 = vadd.f32 %v4090, %v4100
        %vm4105 = vcmask 1044480
        %v4106 = vrot.slane %v4069, 3
        %v4107 = vrot.slane %v4065, 3
        %v4108 = vsel %vm4105, %v4106, %v4107
        %v4109 = vrot.slane %v4070, 3
        %v4110 = vsel %vm4105, %v4107, %v4109
        %4111 = vrot.lane.b32.xlu0 %v4108, 80
        %v4112 = vpop.permute.xlu0 %4111
        %4113 = vrot.lane.b32.xlu0 %v4110, 80
        %v4114 = vpop.permute.xlu0 %4113
        %v4117 = vadd.f32 %v4103, %v4112
        %v4118 = vadd.f32 %v4104, %v4114
        %v4119 = vrot.slane %v4069, 4
        %v4120 = vrot.slane %v4065, 4
        %v4121 = vsel %vm544, %v4119, %v4120
        %v4122 = vrot.slane %v4070, 4
        %v4123 = vsel %vm544, %v4120, %v4122
        %4124 = vrot.lane.b32.xlu0 %v4121, 64
        %v4125 = vpop.permute.xlu0 %4124
        %4126 = vrot.lane.b32.xlu0 %v4123, 64
        %v4127 = vpop.permute.xlu0 %4126
        %v4130 = vadd.f32 %v4117, %v4125
        %v4131 = vadd.f32 %v4118, %v4127
        %v4132 = vrot.slane %v4069, 5
        %v4133 = vrot.slane %v4065, 5
        %v4134 = vsel %vm4062, %v4132, %v4133
        %v4135 = vrot.slane %v4070, 5
        %v4136 = vsel %vm4062, %v4133, %v4135
        %4137 = vrot.lane.b32.xlu0 %v4134, 48
        %v4138 = vpop.permute.xlu0 %4137
        %4139 = vrot.lane.b32.xlu0 %v4136, 48
        %v4140 = vpop.permute.xlu0 %4139
        %v4143 = vadd.f32 %v4130, %v4138
        %v4144 = vadd.f32 %v4131, %v4140
        %v4145 = vrot.slane %v4069, 6
        %v4146 = vrot.slane %v4065, 6
        %v4147 = vsel %vm3048, %v4145, %v4146
        %v4148 = vrot.slane %v4070, 6
        %v4149 = vsel %vm3048, %v4146, %v4148
        %4150 = vrot.lane.b32.xlu0 %v4147, 32
        %v4151 = vpop.permute.xlu0 %4150
        %4152 = vrot.lane.b32.xlu0 %v4149, 32
        %v4153 = vpop.permute.xlu0 %4152
        %v4156 = vadd.f32 %v4143, %v4151
        %v4157 = vadd.f32 %v4144, %v4153
        %v4158 = vmul.f32 %v4156, 0.5
        %v4159 = vmul.f32 %v4157, 0.5
        %v4160 = vtanh.pop %v4158
        %v4161 = vtanh.pop %v4159
        %v4162 = vmul.f32 %v4160, 0.5
        %v4163 = vmul.f32 %v4161, 0.5
        %v4164 = vadd.f32 %v4162, 0.5
        %v4165 = vadd.f32 %v4163, 0.5
        %v4166 = vmax.f32 %v3373, %v3385
        %v4167 = vmax.f32 %v3379, %v3391
        %v4168 = vmax.f32 %v4166, %v3397
        %v4169 = vmax.f32 %v4167, %v3403
        %v4170 = vmax.f32 %v4168, %v3409
        %v4171 = vmax.f32 %v4169, %v3415
        %v4172 = vmax.f32 %v4170, %v3421
        %v4173 = vmax.f32 %v4171, %v3427
        %v4174 = vmax.f32 %v4172, %v3433
        %v4175 = vmax.f32 %v4173, %v3439
        %v4176 = vmax.f32 %v4174, %v3445
        %v4177 = vmax.f32 %v4175, %v3451
        %v4178 = vmax.f32 %v4176, %v3457
        %v4179 = vmax.f32 %v4177, %v3463
        %v4180 = vmax.f32 %v4178, %v4179
        %v4181 = vmax.f32 %v3376, %v3388
        %v4182 = vmax.f32 %v3382, %v3394
        %v4183 = vmax.f32 %v4181, %v3400
        %v4184 = vmax.f32 %v4182, %v3406
        %v4185 = vmax.f32 %v4183, %v3412
        %v4186 = vmax.f32 %v4184, %v3418
        %v4187 = vmax.f32 %v4185, %v3424
        %v4188 = vmax.f32 %v4186, %v3430
        %v4189 = vmax.f32 %v4187, %v3436
        %v4190 = vmax.f32 %v4188, %v3442
        %v4191 = vmax.f32 %v4189, %v3448
        %v4192 = vmax.f32 %v4190, %v3454
        %v4193 = vmax.f32 %v4191, %v3460
        %v4194 = vmax.f32 %v4192, %v3466
        %v4195 = vmax.f32 %v4193, %v4194
        %v4196 = vadd.f32 %v3469, %v3475
        %v4197 = vadd.f32 %v4196, %v3481
        %v4198 = vadd.f32 %v4197, %v3487
        %v4199 = vadd.f32 %v4198, %v3493
        %v4200 = vadd.f32 %v4199, %v3499
        %v4201 = vadd.f32 %v4200, %v3505
        %v4202 = vadd.f32 %v4201, %v3511
        %v4203 = vadd.f32 %v4202, %v3517
        %v4204 = vadd.f32 %v4203, %v3523
        %v4205 = vadd.f32 %v4204, %v3529
        %v4206 = vadd.f32 %v4205, %v3535
        %v4207 = vadd.f32 %v4206, %v3541
        %v4208 = vadd.f32 %v4207, %v3547
        %v4209 = vadd.f32 %v4208, %v3553
        %v4210 = vadd.f32 %v4209, %v3559
        %v4211 = vadd.f32 %v3472, %v3478
        %v4212 = vadd.f32 %v4211, %v3484
        %v4213 = vadd.f32 %v4212, %v3490
        %v4214 = vadd.f32 %v4213, %v3496
        %v4215 = vadd.f32 %v4214, %v3502
        %v4216 = vadd.f32 %v4215, %v3508
        %v4217 = vadd.f32 %v4216, %v3514
        %v4218 = vadd.f32 %v4217, %v3520
        %v4219 = vadd.f32 %v4218, %v3526
        %v4220 = vadd.f32 %v4219, %v3532
        %v4221 = vadd.f32 %v4220, %v3538
        %v4222 = vadd.f32 %v4221, %v3544
        %v4223 = vadd.f32 %v4222, %v3550
        %v4224 = vadd.f32 %v4223, %v3556
        %v4225 = vadd.f32 %v4224, %v3562
        %v4226 = vrcp.pop 16.0
        %v4227 = vmul.f32 %v4210, %v4226
        %v4228 = vmul.f32 %v4225, %v4226
        %s4229 = sld [smem:[#allocation2 + $0x1]]
        %4232 = vrot.lane.b32.xlu0 %v4227, 8
        %v4233 = vpop.permute.xlu0 %4232
        %4234 = vrot.lane.b32.xlu0 %v4228, 8
        %v4235 = vpop.permute.xlu0 %4234
        %v4238 = vsel %vm495, %v4180, %v4233
        %v4239 = vsel %vm495, %v4195, %v4235
        %v4240 = vpack.c.bf16 %v4239, %v4238
        %v4241 = vld [vmem:[%s7] sm:$0xf]
        %v4242 = vld [vmem:[%s7 + $0x4] sm:$0xf]
        %v4245 = vunpack.c.l.b16 %v4241
        %v4246 = vunpack.c.l.b16 %v4242
        %v4247 = vpack.c.b16 %v4246, %v4245
        %v4250 = vsel %vm2823, %v4240, 0
        %4252 = vmatprep.subr.bf16.mxu0 0
        %4253 = vmatpush1.bf16.msra.mxu0 %v4247
        %4254 = vmatprep.subr.bf16.mxu0 0
        %4255 = vmatpush1.bf16.msra.mxu0 0
        %4256 = vmatprep.subr.bf16.mxu0 0
        %4257 = vmatpush1.bf16.msra.mxu0 0
        %4258 = vmatprep.subr.bf16.mxu0 0
        %4259 = vmatpush1.bf16.msra.mxu0 0
        %4260 = vmatprep.subr.bf16.mxu0 0
        %4261 = vmatpush1.bf16.msra.mxu0 0
        %4262 = vmatprep.subr.bf16.mxu0 0
        %4263 = vmatpush1.bf16.msra.mxu0 0
        %4264 = vmatprep.subr.bf16.mxu0 0
        %4265 = vmatpush1.bf16.msra.mxu0 0
        %4266 = vmatprep.subr.bf16.mxu0 0
        %4267 = vmatpush1.bf16.msra.mxu0 0
        %4268 = vmatprep.subr.bf16.mxu0 0
        %4269 = vmatpush1.bf16.msra.mxu0 0
        %4270 = vmatprep.subr.bf16.mxu0 0
        %4271 = vmatpush1.bf16.msra.mxu0 0
        %4272 = vmatprep.subr.bf16.mxu0 0
        %4273 = vmatpush1.bf16.msra.mxu0 0
        %4274 = vmatprep.subr.bf16.mxu0 0
        %4275 = vmatpush1.bf16.msra.mxu0 0
        %4276 = vmatprep.subr.bf16.mxu0 0
        %4277 = vmatpush1.bf16.msra.mxu0 0
        %4278 = vmatprep.subr.bf16.mxu0 0
        %4279 = vmatpush1.bf16.msra.mxu0 0
        %4280 = vmatprep.subr.bf16.mxu0 0
        %4281 = vmatpush1.bf16.msra.mxu0 0
        %4282 = vmatprep.subr.bf16.mxu0 0
        %4283 = vmatpush1.bf16.msra.mxu0 0
        %4284 = vmatprep.mubr.bf16.mxu0 0
        %4285 = vmatmul.mubr.bf16.gmra.mrb[0].mxu0 %v4250
        %v4286 = vpop.f32.mrb[0].mxu0
        %v4287 = vadd.f32 0.0, %v4286
        %v4288 = vpop.f32.mrb[0].mxu0
        %v4289 = vpop.f32.mrb[0].mxu0
        %v4290 = vadd.f32 0.0, %v4289
        %v4291 = vpop.f32.mrb[0].mxu0
        %4292 = vdwg.mxu0
        %v4295 = vrot.slane %v4287, 5
        %v4296 = vrot.slane %v4290, 5
        %v4297 = vsel %vm4062, %v4295, %v4296
        %v4301 = vsel %vm4062, 0.0, %v4295
        %v4302 = vsel %vm4062, %v4296, 0.0
        %v4303 = vstv %s4229
        %v4304 = vadd.f32 %v4303, 0.0
        %v4305 = vadd.f32 %v4304, %v4301
        %v4306 = vadd.f32 %v4304, %v4297
        %v4309 = vrot.slane %v4301, 1
        %v4310 = vrot.slane %v4297, 1
        %v4311 = vsel %vm4077, %v4309, %v4310
        %v4312 = vrot.slane %v4302, 1
        %v4313 = vsel %vm4077, %v4310, %v4312
        %4314 = vrot.lane.b32.xlu0 %v4311, 120
        %v4315 = vpop.permute.xlu0 %4314
        %4316 = vrot.lane.b32.xlu0 %v4313, 120
        %v4317 = vpop.permute.xlu0 %4316
        %v4320 = vadd.f32 %v4305, %v4315
        %v4321 = vadd.f32 %v4306, %v4317
        %v4322 = vrot.slane %v4301, 2
        %v4323 = vrot.slane %v4297, 2
        %v4324 = vsel %vm4091, %v4322, %v4323
        %v4325 = vrot.slane %v4302, 2
        %v4326 = vsel %vm4091, %v4323, %v4325
        %4327 = vrot.lane.b32.xlu0 %v4324, 112
        %v4328 = vpop.permute.xlu0 %4327
        %4329 = vrot.lane.b32.xlu0 %v4326, 112
        %v4330 = vpop.permute.xlu0 %4329
        %v4333 = vadd.f32 %v4320, %v4328
        %v4334 = vadd.f32 %v4321, %v4330
        %v4335 = vrot.slane %v4301, 3
        %v4336 = vrot.slane %v4297, 3
        %v4337 = vsel %vm4105, %v4335, %v4336
        %v4338 = vrot.slane %v4302, 3
        %v4339 = vsel %vm4105, %v4336, %v4338
        %4340 = vrot.lane.b32.xlu0 %v4337, 104
        %v4341 = vpop.permute.xlu0 %4340
        %4342 = vrot.lane.b32.xlu0 %v4339, 104
        %v4343 = vpop.permute.xlu0 %4342
        %v4346 = vadd.f32 %v4333, %v4341
        %v4347 = vadd.f32 %v4334, %v4343
        %v4348 = vrot.slane %v4301, 4
        %v4349 = vrot.slane %v4297, 4
        %v4350 = vsel %vm544, %v4348, %v4349
        %v4351 = vrot.slane %v4302, 4
        %v4352 = vsel %vm544, %v4349, %v4351
        %4353 = vrot.lane.b32.xlu0 %v4350, 96
        %v4354 = vpop.permute.xlu0 %4353
        %4355 = vrot.lane.b32.xlu0 %v4352, 96
        %v4356 = vpop.permute.xlu0 %4355
        %v4359 = vadd.f32 %v4346, %v4354
        %v4360 = vadd.f32 %v4347, %v4356
        %v4361 = vrot.slane %v4301, 5
        %v4362 = vrot.slane %v4297, 5
        %v4363 = vsel %vm4062, %v4361, %v4362
        %v4364 = vrot.slane %v4302, 5
        %v4365 = vsel %vm4062, %v4362, %v4364
        %4366 = vrot.lane.b32.xlu0 %v4363, 88
        %v4367 = vpop.permute.xlu0 %4366
        %4368 = vrot.lane.b32.xlu0 %v4365, 88
        %v4369 = vpop.permute.xlu0 %4368
        %v4372 = vadd.f32 %v4359, %v4367
        %v4373 = vadd.f32 %v4360, %v4369
        %v4374 = vrot.slane %v4301, 6
        %v4375 = vrot.slane %v4297, 6
        %v4376 = vsel %vm3048, %v4374, %v4375
        %v4377 = vrot.slane %v4302, 6
        %v4378 = vsel %vm3048, %v4375, %v4377
        %4379 = vrot.lane.b32.xlu0 %v4376, 80
        %v4380 = vpop.permute.xlu0 %4379
        %4381 = vrot.lane.b32.xlu0 %v4378, 80
        %v4382 = vpop.permute.xlu0 %4381
        %v4385 = vadd.f32 %v4372, %v4380
        %v4386 = vadd.f32 %v4373, %v4382
        %v4387 = vmul.f32 %v4385, 0.5
        %v4388 = vmul.f32 %v4386, 0.5
        %v4389 = vtanh.pop %v4387
        %v4390 = vtanh.pop %v4388
        %v4391 = vmul.f32 %v4389, 0.5
        %v4392 = vmul.f32 %v4390, 0.5
        %v4393 = vadd.f32 %v4391, 0.5
        %v4394 = vadd.f32 %v4392, 0.5
        %v4395 = vmax.f32 %v3373, %v3376
        %v4396 = vrot.slane %v4395, 4
        %v4397 = vmax.f32 %v4395, %v4396
        %v4398 = vrot.slane %v4397, 2
        %v4399 = vmax.f32 %v4397, %v4398
        %v4400 = vrot.slane %v4399, 1
        %v4401 = vmax.f32 %v4399, %v4400
        %v4402 = vmax.f32 %v3379, %v3382
        %v4403 = vrot.slane %v4402, 4
        %v4404 = vmax.f32 %v4402, %v4403
        %v4405 = vrot.slane %v4404, 2
        %v4406 = vmax.f32 %v4404, %v4405
        %v4407 = vrot.slane %v4406, 1
        %v4408 = vmax.f32 %v4406, %v4407
        %v4409 = vmax.f32 %v3385, %v3388
        %v4410 = vrot.slane %v4409, 4
        %v4411 = vmax.f32 %v4409, %v4410
        %v4412 = vrot.slane %v4411, 2
        %v4413 = vmax.f32 %v4411, %v4412
        %v4414 = vrot.slane %v4413, 1
        %v4415 = vmax.f32 %v4413, %v4414
        %v4416 = vmax.f32 %v3391, %v3394
        %v4417 = vrot.slane %v4416, 4
        %v4418 = vmax.f32 %v4416, %v4417
        %v4419 = vrot.slane %v4418, 2
        %v4420 = vmax.f32 %v4418, %v4419
        %v4421 = vrot.slane %v4420, 1
        %v4422 = vmax.f32 %v4420, %v4421
        %v4423 = vmax.f32 %v3397, %v3400
        %v4424 = vrot.slane %v4423, 4
        %v4425 = vmax.f32 %v4423, %v4424
        %v4426 = vrot.slane %v4425, 2
        %v4427 = vmax.f32 %v4425, %v4426
        %v4428 = vrot.slane %v4427, 1
        %v4429 = vmax.f32 %v4427, %v4428
        %v4430 = vmax.f32 %v3403, %v3406
        %v4431 = vrot.slane %v4430, 4
        %v4432 = vmax.f32 %v4430, %v4431
        %v4433 = vrot.slane %v4432, 2
        %v4434 = vmax.f32 %v4432, %v4433
        %v4435 = vrot.slane %v4434, 1
        %v4436 = vmax.f32 %v4434, %v4435
        %v4437 = vmax.f32 %v3409, %v3412
        %v4438 = vrot.slane %v4437, 4
        %v4439 = vmax.f32 %v4437, %v4438
        %v4440 = vrot.slane %v4439, 2
        %v4441 = vmax.f32 %v4439, %v4440
        %v4442 = vrot.slane %v4441, 1
        %v4443 = vmax.f32 %v4441, %v4442
        %v4444 = vmax.f32 %v3415, %v3418
        %v4445 = vrot.slane %v4444, 4
        %v4446 = vmax.f32 %v4444, %v4445
        %v4447 = vrot.slane %v4446, 2
        %v4448 = vmax.f32 %v4446, %v4447
        %v4449 = vrot.slane %v4448, 1
        %v4450 = vmax.f32 %v4448, %v4449
        %v4451 = vmax.f32 %v3421, %v3424
        %v4452 = vrot.slane %v4451, 4
        %v4453 = vmax.f32 %v4451, %v4452
        %v4454 = vrot.slane %v4453, 2
        %v4455 = vmax.f32 %v4453, %v4454
        %v4456 = vrot.slane %v4455, 1
        %v4457 = vmax.f32 %v4455, %v4456
        %v4458 = vmax.f32 %v3427, %v3430
        %v4459 = vrot.slane %v4458, 4
        %v4460 = vmax.f32 %v4458, %v4459
        %v4461 = vrot.slane %v4460, 2
        %v4462 = vmax.f32 %v4460, %v4461
        %v4463 = vrot.slane %v4462, 1
        %v4464 = vmax.f32 %v4462, %v4463
        %v4465 = vmax.f32 %v3433, %v3436
        %v4466 = vrot.slane %v4465, 4
        %v4467 = vmax.f32 %v4465, %v4466
        %v4468 = vrot.slane %v4467, 2
        %v4469 = vmax.f32 %v4467, %v4468
        %v4470 = vrot.slane %v4469, 1
        %v4471 = vmax.f32 %v4469, %v4470
        %v4472 = vmax.f32 %v3439, %v3442
        %v4473 = vrot.slane %v4472, 4
        %v4474 = vmax.f32 %v4472, %v4473
        %v4475 = vrot.slane %v4474, 2
        %v4476 = vmax.f32 %v4474, %v4475
        %v4477 = vrot.slane %v4476, 1
        %v4478 = vmax.f32 %v4476, %v4477
        %v4479 = vmax.f32 %v3445, %v3448
        %v4480 = vrot.slane %v4479, 4
        %v4481 = vmax.f32 %v4479, %v4480
        %v4482 = vrot.slane %v4481, 2
        %v4483 = vmax.f32 %v4481, %v4482
        %v4484 = vrot.slane %v4483, 1
        %v4485 = vmax.f32 %v4483, %v4484
        %v4486 = vmax.f32 %v3451, %v3454
        %v4487 = vrot.slane %v4486, 4
        %v4488 = vmax.f32 %v4486, %v4487
        %v4489 = vrot.slane %v4488, 2
        %v4490 = vmax.f32 %v4488, %v4489
        %v4491 = vrot.slane %v4490, 1
        %v4492 = vmax.f32 %v4490, %v4491
        %v4493 = vmax.f32 %v3457, %v3460
        %v4494 = vrot.slane %v4493, 4
        %v4495 = vmax.f32 %v4493, %v4494
        %v4496 = vrot.slane %v4495, 2
        %v4497 = vmax.f32 %v4495, %v4496
        %v4498 = vrot.slane %v4497, 1
        %v4499 = vmax.f32 %v4497, %v4498
        %v4500 = vmax.f32 %v3463, %v3466
        %v4501 = vrot.slane %v4500, 4
        %v4502 = vmax.f32 %v4500, %v4501
        %v4503 = vrot.slane %v4502, 2
        %v4504 = vmax.f32 %v4502, %v4503
        %v4505 = vrot.slane %v4504, 1
        %v4506 = vmax.f32 %v4504, %v4505
        %v4507 = vadd.f32 %v3469, %v3472
        %v4508 = vrot.slane %v4507, 4
        %v4509 = vadd.f32 %v4507, %v4508
        %v4510 = vrot.slane %v4509, 2
        %v4511 = vadd.f32 %v4509, %v4510
        %v4512 = vrot.slane %v4511, 1
        %v4513 = vadd.f32 %v4511, %v4512
        %v4514 = vadd.f32 %v3475, %v3478
        %v4515 = vrot.slane %v4514, 4
        %v4516 = vadd.f32 %v4514, %v4515
        %v4517 = vrot.slane %v4516, 2
        %v4518 = vadd.f32 %v4516, %v4517
        %v4519 = vrot.slane %v4518, 1
        %v4520 = vadd.f32 %v4518, %v4519
        %v4521 = vadd.f32 %v3481, %v3484
        %v4522 = vrot.slane %v4521, 4
        %v4523 = vadd.f32 %v4521, %v4522
        %v4524 = vrot.slane %v4523, 2
        %v4525 = vadd.f32 %v4523, %v4524
        %v4526 = vrot.slane %v4525, 1
        %v4527 = vadd.f32 %v4525, %v4526
        %v4528 = vadd.f32 %v3487, %v3490
        %v4529 = vrot.slane %v4528, 4
        %v4530 = vadd.f32 %v4528, %v4529
        %v4531 = vrot.slane %v4530, 2
        %v4532 = vadd.f32 %v4530, %v4531
        %v4533 = vrot.slane %v4532, 1
        %v4534 = vadd.f32 %v4532, %v4533
        %v4535 = vadd.f32 %v3493, %v3496
        %v4536 = vrot.slane %v4535, 4
        %v4537 = vadd.f32 %v4535, %v4536
        %v4538 = vrot.slane %v4537, 2
        %v4539 = vadd.f32 %v4537, %v4538
        %v4540 = vrot.slane %v4539, 1
        %v4541 = vadd.f32 %v4539, %v4540
        %v4542 = vadd.f32 %v3499, %v3502
        %v4543 = vrot.slane %v4542, 4
        %v4544 = vadd.f32 %v4542, %v4543
        %v4545 = vrot.slane %v4544, 2
        %v4546 = vadd.f32 %v4544, %v4545
        %v4547 = vrot.slane %v4546, 1
        %v4548 = vadd.f32 %v4546, %v4547
        %v4549 = vadd.f32 %v3505, %v3508
        %v4550 = vrot.slane %v4549, 4
        %v4551 = vadd.f32 %v4549, %v4550
        %v4552 = vrot.slane %v4551, 2
        %v4553 = vadd.f32 %v4551, %v4552
        %v4554 = vrot.slane %v4553, 1
        %v4555 = vadd.f32 %v4553, %v4554
        %v4556 = vadd.f32 %v3511, %v3514
        %v4557 = vrot.slane %v4556, 4
        %v4558 = vadd.f32 %v4556, %v4557
        %v4559 = vrot.slane %v4558, 2
        %v4560 = vadd.f32 %v4558, %v4559
        %v4561 = vrot.slane %v4560, 1
        %v4562 = vadd.f32 %v4560, %v4561
        %v4563 = vadd.f32 %v3517, %v3520
        %v4564 = vrot.slane %v4563, 4
        %v4565 = vadd.f32 %v4563, %v4564
        %v4566 = vrot.slane %v4565, 2
        %v4567 = vadd.f32 %v4565, %v4566
        %v4568 = vrot.slane %v4567, 1
        %v4569 = vadd.f32 %v4567, %v4568
        %v4570 = vadd.f32 %v3523, %v3526
        %v4571 = vrot.slane %v4570, 4
        %v4572 = vadd.f32 %v4570, %v4571
        %v4573 = vrot.slane %v4572, 2
        %v4574 = vadd.f32 %v4572, %v4573
        %v4575 = vrot.slane %v4574, 1
        %v4576 = vadd.f32 %v4574, %v4575
        %v4577 = vadd.f32 %v3529, %v3532
        %v4578 = vrot.slane %v4577, 4
        %v4579 = vadd.f32 %v4577, %v4578
        %v4580 = vrot.slane %v4579, 2
        %v4581 = vadd.f32 %v4579, %v4580
        %v4582 = vrot.slane %v4581, 1
        %v4583 = vadd.f32 %v4581, %v4582
        %v4584 = vadd.f32 %v3535, %v3538
        %v4585 = vrot.slane %v4584, 4
        %v4586 = vadd.f32 %v4584, %v4585
        %v4587 = vrot.slane %v4586, 2
        %v4588 = vadd.f32 %v4586, %v4587
        %v4589 = vrot.slane %v4588, 1
        %v4590 = vadd.f32 %v4588, %v4589
        %v4591 = vadd.f32 %v3541, %v3544
        %v4592 = vrot.slane %v4591, 4
        %v4593 = vadd.f32 %v4591, %v4592
        %v4594 = vrot.slane %v4593, 2
        %v4595 = vadd.f32 %v4593, %v4594
        %v4596 = vrot.slane %v4595, 1
        %v4597 = vadd.f32 %v4595, %v4596
        %v4598 = vadd.f32 %v3547, %v3550
        %v4599 = vrot.slane %v4598, 4
        %v4600 = vadd.f32 %v4598, %v4599
        %v4601 = vrot.slane %v4600, 2
        %v4602 = vadd.f32 %v4600, %v4601
        %v4603 = vrot.slane %v4602, 1
        %v4604 = vadd.f32 %v4602, %v4603
        %v4605 = vadd.f32 %v3553, %v3556
        %v4606 = vrot.slane %v4605, 4
        %v4607 = vadd.f32 %v4605, %v4606
        %v4608 = vrot.slane %v4607, 2
        %v4609 = vadd.f32 %v4607, %v4608
        %v4610 = vrot.slane %v4609, 1
        %v4611 = vadd.f32 %v4609, %v4610
        %v4612 = vadd.f32 %v3559, %v3562
        %v4613 = vrot.slane %v4612, 4
        %v4614 = vadd.f32 %v4612, %v4613
        %v4615 = vrot.slane %v4614, 2
        %v4616 = vadd.f32 %v4614, %v4615
        %v4617 = vrot.slane %v4616, 1
        %v4618 = vadd.f32 %v4616, %v4617
        %v4619 = vmul.f32 %v4513, %v4226
        %v4620 = vmul.f32 %v4520, %v4226
        %v4621 = vmul.f32 %v4527, %v4226
        %v4622 = vmul.f32 %v4534, %v4226
        %v4623 = vmul.f32 %v4541, %v4226
        %v4624 = vmul.f32 %v4548, %v4226
        %v4625 = vmul.f32 %v4555, %v4226
        %v4626 = vmul.f32 %v4562, %v4226
        %v4627 = vmul.f32 %v4569, %v4226
        %v4628 = vmul.f32 %v4576, %v4226
        %v4629 = vmul.f32 %v4583, %v4226
        %v4630 = vmul.f32 %v4590, %v4226
        %v4631 = vmul.f32 %v4597, %v4226
        %v4632 = vmul.f32 %v4604, %v4226
        %v4633 = vmul.f32 %v4611, %v4226
        %v4634 = vmul.f32 %v4618, %v4226
        %s4635 = sld [smem:[#allocation2 + $0x2]]
        %v4652 = vsel %vm3779, %v4408, %v4401
        %v4653 = vsel %vm3781, %v4415, %v4652
        %v4654 = vsel %vm3783, %v4422, %v4653
        %v4655 = vsel %vm3785, %v4429, %v4654
        %v4656 = vsel %vm3787, %v4436, %v4655
        %v4657 = vsel %vm3789, %v4443, %v4656
        %v4658 = vsel %vm3791, %v4450, %v4657
        %v4659 = vsel %vm3779, %v4464, %v4457
        %v4660 = vsel %vm3781, %v4471, %v4659
        %v4661 = vsel %vm3783, %v4478, %v4660
        %v4662 = vsel %vm3785, %v4485, %v4661
        %v4663 = vsel %vm3787, %v4492, %v4662
        %v4664 = vsel %vm3789, %v4499, %v4663
        %v4665 = vsel %vm3791, %v4506, %v4664
        %v4684 = vsel %vm3779, %v4620, %v4619
        %v4685 = vsel %vm3781, %v4621, %v4684
        %v4686 = vsel %vm3783, %v4622, %v4685
        %v4687 = vsel %vm3785, %v4623, %v4686
        %v4688 = vsel %vm3787, %v4624, %v4687
        %v4689 = vsel %vm3789, %v4625, %v4688
        %v4690 = vsel %vm3791, %v4626, %v4689
        %v4691 = vsel %vm3779, %v4628, %v4627
        %v4692 = vsel %vm3781, %v4629, %v4691
        %v4693 = vsel %vm3783, %v4630, %v4692
        %v4694 = vsel %vm3785, %v4631, %v4693
        %v4695 = vsel %vm3787, %v4632, %v4694
        %v4696 = vsel %vm3789, %v4633, %v4695
        %v4697 = vsel %vm3791, %v4634, %v4696
        %4698 = vrot.lane.b32.xlu0 %v4690, 8
        %v4699 = vpop.permute.xlu0 %4698
        %4700 = vrot.lane.b32.xlu0 %v4697, 8
        %v4701 = vpop.permute.xlu0 %4700
        %v4704 = vsel %vm495, %v4658, %v4699
        %v4705 = vsel %vm495, %v4665, %v4701
        %v4706 = vpack.c.bf16 %v4705, %v4704
        %v4707 = vld [vmem:[%s8] sm:$0xf]
        %v4708 = vld [vmem:[%s8 + $0x4] sm:$0xf]
        %v4711 = vunpack.c.l.b16 %v4707
        %v4712 = vunpack.c.l.b16 %v4708
        %v4713 = vpack.c.b16 %v4712, %v4711
        %v4716 = vsel %vm2823, %v4706, 0
        %4718 = vmatprep.subr.bf16.mxu0 0
        %4719 = vmatpush1.bf16.msra.mxu0 %v4713
        %4720 = vmatprep.subr.bf16.mxu0 0
        %4721 = vmatpush1.bf16.msra.mxu0 0
        %4722 = vmatprep.subr.bf16.mxu0 0
        %4723 = vmatpush1.bf16.msra.mxu0 0
        %4724 = vmatprep.subr.bf16.mxu0 0
        %4725 = vmatpush1.bf16.msra.mxu0 0
        %4726 = vmatprep.subr.bf16.mxu0 0
        %4727 = vmatpush1.bf16.msra.mxu0 0
        %4728 = vmatprep.subr.bf16.mxu0 0
        %4729 = vmatpush1.bf16.msra.mxu0 0
        %4730 = vmatprep.subr.bf16.mxu0 0
        %4731 = vmatpush1.bf16.msra.mxu0 0
        %4732 = vmatprep.subr.bf16.mxu0 0
        %4733 = vmatpush1.bf16.msra.mxu0 0
        %4734 = vmatprep.subr.bf16.mxu0 0
        %4735 = vmatpush1.bf16.msra.mxu0 0
        %4736 = vmatprep.subr.bf16.mxu0 0
        %4737 = vmatpush1.bf16.msra.mxu0 0
        %4738 = vmatprep.subr.bf16.mxu0 0
        %4739 = vmatpush1.bf16.msra.mxu0 0
        %4740 = vmatprep.subr.bf16.mxu0 0
        %4741 = vmatpush1.bf16.msra.mxu0 0
        %4742 = vmatprep.subr.bf16.mxu0 0
        %4743 = vmatpush1.bf16.msra.mxu0 0
        %4744 = vmatprep.subr.bf16.mxu0 0
        %4745 = vmatpush1.bf16.msra.mxu0 0
        %4746 = vmatprep.subr.bf16.mxu0 0
        %4747 = vmatpush1.bf16.msra.mxu0 0
        %4748 = vmatprep.subr.bf16.mxu0 0
        %4749 = vmatpush1.bf16.msra.mxu0 0
        %4750 = vmatprep.mubr.bf16.mxu0 0
        %4751 = vmatmul.mubr.bf16.gmra.mrb[0].mxu0 %v4716
        %v4752 = vpop.f32.mrb[0].mxu0
        %v4753 = vadd.f32 0.0, %v4752
        %v4754 = vpop.f32.mrb[0].mxu0
        %v4755 = vpop.f32.mrb[0].mxu0
        %v4756 = vadd.f32 0.0, %v4755
        %v4757 = vpop.f32.mrb[0].mxu0
        %4758 = vdwg.mxu0
        %v4761 = vrot.slane %v4753, 5
        %v4762 = vrot.slane %v4756, 5
        %v4763 = vsel %vm4062, %v4761, %v4762
        %v4767 = vsel %vm4062, 0.0, %v4761
        %v4768 = vsel %vm4062, %v4762, 0.0
        %v4769 = vstv %s4635
        %v4770 = vadd.f32 %v4769, 0.0
        %v4771 = vadd.f32 %v4770, %v4767
        %v4772 = vadd.f32 %v4770, %v4763
        %v4775 = vrot.slane %v4767, 1
        %v4776 = vrot.slane %v4763, 1
        %v4777 = vsel %vm4077, %v4775, %v4776
        %v4778 = vrot.slane %v4768, 1
        %v4779 = vsel %vm4077, %v4776, %v4778
        %4780 = vrot.lane.b32.xlu0 %v4777, 120
        %v4781 = vpop.permute.xlu0 %4780
        %4782 = vrot.lane.b32.xlu0 %v4779, 120
        %v4783 = vpop.permute.xlu0 %4782
        %v4786 = vadd.f32 %v4771, %v4781
        %v4787 = vadd.f32 %v4772, %v4783
        %v4788 = vrot.slane %v4767, 2
        %v4789 = vrot.slane %v4763, 2
        %v4790 = vsel %vm4091, %v4788, %v4789
        %v4791 = vrot.slane %v4768, 2
        %v4792 = vsel %vm4091, %v4789, %v4791
        %4793 = vrot.lane.b32.xlu0 %v4790, 112
        %v4794 = vpop.permute.xlu0 %4793
        %4795 = vrot.lane.b32.xlu0 %v4792, 112
        %v4796 = vpop.permute.xlu0 %4795
        %v4799 = vadd.f32 %v4786, %v4794
        %v4800 = vadd.f32 %v4787, %v4796
        %v4801 = vrot.slane %v4767, 3
        %v4802 = vrot.slane %v4763, 3
        %v4803 = vsel %vm4105, %v4801, %v4802
        %v4804 = vrot.slane %v4768, 3
        %v4805 = vsel %vm4105, %v4802, %v4804
        %4806 = vrot.lane.b32.xlu0 %v4803, 104
        %v4807 = vpop.permute.xlu0 %4806
        %4808 = vrot.lane.b32.xlu0 %v4805, 104
        %v4809 = vpop.permute.xlu0 %4808
        %v4812 = vadd.f32 %v4799, %v4807
        %v4813 = vadd.f32 %v4800, %v4809
        %v4814 = vrot.slane %v4767, 4
        %v4815 = vrot.slane %v4763, 4
        %v4816 = vsel %vm544, %v4814, %v4815
        %v4817 = vrot.slane %v4768, 4
        %v4818 = vsel %vm544, %v4815, %v4817
        %4819 = vrot.lane.b32.xlu0 %v4816, 96
        %v4820 = vpop.permute.xlu0 %4819
        %4821 = vrot.lane.b32.xlu0 %v4818, 96
        %v4822 = vpop.permute.xlu0 %4821
        %v4825 = vadd.f32 %v4812, %v4820
        %v4826 = vadd.f32 %v4813, %v4822
        %v4827 = vrot.slane %v4767, 5
        %v4828 = vrot.slane %v4763, 5
        %v4829 = vsel %vm4062, %v4827, %v4828
        %v4830 = vrot.slane %v4768, 5
        %v4831 = vsel %vm4062, %v4828, %v4830
        %4832 = vrot.lane.b32.xlu0 %v4829, 88
        %v4833 = vpop.permute.xlu0 %4832
        %4834 = vrot.lane.b32.xlu0 %v4831, 88
        %v4835 = vpop.permute.xlu0 %4834
        %v4838 = vadd.f32 %v4825, %v4833
        %v4839 = vadd.f32 %v4826, %v4835
        %v4840 = vrot.slane %v4767, 6
        %v4841 = vrot.slane %v4763, 6
        %v4842 = vsel %vm3048, %v4840, %v4841
        %v4843 = vrot.slane %v4768, 6
        %v4844 = vsel %vm3048, %v4841, %v4843
        %4845 = vrot.lane.b32.xlu0 %v4842, 80
        %v4846 = vpop.permute.xlu0 %4845
        %4847 = vrot.lane.b32.xlu0 %v4844, 80
        %v4848 = vpop.permute.xlu0 %4847
        %v4851 = vadd.f32 %v4838, %v4846
        %v4852 = vadd.f32 %v4839, %v4848
        %v4853 = vmul.f32 %v4851, 0.5
        %v4854 = vmul.f32 %v4852, 0.5
        %v4855 = vtanh.pop %v4853
        %v4856 = vtanh.pop %v4854
        %v4857 = vmul.f32 %v4855, 0.5
        %v4858 = vmul.f32 %v4856, 0.5
        %v4859 = vadd.f32 %v4857, 0.5
        %v4860 = vadd.f32 %v4858, 0.5
        %v4863 = vcombine.high %v4859, %v4859
        %v4865 = vunpack.c.l.s4 1966171168
        %v4866 = vunpack.c.0.s8 %v4865
        %v4867 = vlaneseq
        %v4868 = vshrl.u32 %v4867, 7
        %v4869 = vsub.s32 %v4866, %v4868
        %v4870 = vrot.slane %v4859, %v4869
        %v4872 = vunpack.c.l.s4 1966171168
        %v4873 = vunpack.c.0.s8 %v4872
        %v4874 = vlaneseq
        %v4875 = vshrl.u32 %v4874, 7
        %v4876 = vsub.s32 %v4873, %v4875
        %v4877 = vrot.slane %v4863, %v4876
        %v4878 = vcombine.high %v4870, %v4870
        %v4879 = vcombine.high %v4877, %v4877
        %v4881 = vunpack.c.l.s4 1966171168
        %v4882 = vunpack.c.0.s8 %v4881
        %v4883 = vlaneseq
        %v4884 = vshrl.u32 %v4883, 7
        %v4885 = vsub.s32 %v4882, %v4884
        %v4886 = vrot.slane %v4870, %v4885
        %v4888 = vunpack.c.l.s4 1966171168
        %v4889 = vunpack.c.0.s8 %v4888
        %v4890 = vlaneseq
        %v4891 = vshrl.u32 %v4890, 7
        %v4892 = vsub.s32 %v4889, %v4891
        %v4893 = vrot.slane %v4877, %v4892
        %v4895 = vunpack.c.l.s4 1966171168
        %v4896 = vunpack.c.0.s8 %v4895
        %v4897 = vlaneseq
        %v4898 = vshrl.u32 %v4897, 7
        %v4899 = vsub.s32 %v4896, %v4898
        %v4900 = vrot.slane %v4878, %v4899
        %v4902 = vunpack.c.l.s4 1966171168
        %v4903 = vunpack.c.0.s8 %v4902
        %v4904 = vlaneseq
        %v4905 = vshrl.u32 %v4904, 7
        %v4906 = vsub.s32 %v4903, %v4905
        %v4907 = vrot.slane %v4879, %v4906
        %v4908 = vcombine.high %v4886, %v4886
        %v4909 = vcombine.high %v4893, %v4893
        %v4910 = vcombine.high %v4900, %v4900
        %v4911 = vcombine.high %v4907, %v4907
        %v4912 = vcombine.high %v4860, %v4860
        %v4914 = vunpack.c.l.s4 1966171168
        %v4915 = vunpack.c.0.s8 %v4914
        %v4916 = vlaneseq
        %v4917 = vshrl.u32 %v4916, 7
        %v4918 = vsub.s32 %v4915, %v4917
        %v4919 = vrot.slane %v4860, %v4918
        %v4921 = vunpack.c.l.s4 1966171168
        %v4922 = vunpack.c.0.s8 %v4921
        %v4923 = vlaneseq
        %v4924 = vshrl.u32 %v4923, 7
        %v4925 = vsub.s32 %v4922, %v4924
        %v4926 = vrot.slane %v4912, %v4925
        %v4927 = vcombine.high %v4919, %v4919
        %v4928 = vcombine.high %v4926, %v4926
        %v4930 = vunpack.c.l.s4 1966171168
        %v4931 = vunpack.c.0.s8 %v4930
        %v4932 = vlaneseq
        %v4933 = vshrl.u32 %v4932, 7
        %v4934 = vsub.s32 %v4931, %v4933
        %v4935 = vrot.slane %v4919, %v4934
        %v4937 = vunpack.c.l.s4 1966171168
        %v4938 = vunpack.c.0.s8 %v4937
        %v4939 = vlaneseq
        %v4940 = vshrl.u32 %v4939, 7
        %v4941 = vsub.s32 %v4938, %v4940
        %v4942 = vrot.slane %v4926, %v4941
        %v4944 = vunpack.c.l.s4 1966171168
        %v4945 = vunpack.c.0.s8 %v4944
        %v4946 = vlaneseq
        %v4947 = vshrl.u32 %v4946, 7
        %v4948 = vsub.s32 %v4945, %v4947
        %v4949 = vrot.slane %v4927, %v4948
        %v4951 = vunpack.c.l.s4 1966171168
        %v4952 = vunpack.c.0.s8 %v4951
        %v4953 = vlaneseq
        %v4954 = vshrl.u32 %v4953, 7
        %v4955 = vsub.s32 %v4952, %v4954
        %v4956 = vrot.slane %v4928, %v4955
        %v4957 = vcombine.high %v4935, %v4935
        %v4958 = vcombine.high %v4942, %v4942
        %v4959 = vcombine.high %v4949, %v4949
        %v4960 = vcombine.high %v4956, %v4956
        %v4961 = vlaneseq
        %v4962 = vshrl.u32 %v4961, 7
        %v4963 = vsub.s32 0, %v4962
        %v4964 = vrot.slane %v4886, %v4963
        %v4965 = vlaneseq
        %v4966 = vshrl.u32 %v4965, 7
        %v4967 = vsub.s32 0, %v4966
        %v4968 = vrot.slane %v4900, %v4967
        %v4969 = vlaneseq
        %v4970 = vshrl.u32 %v4969, 7
        %v4971 = vsub.s32 0, %v4970
        %v4972 = vrot.slane %v4908, %v4971
        %v4973 = vlaneseq
        %v4974 = vshrl.u32 %v4973, 7
        %v4975 = vsub.s32 0, %v4974
        %v4976 = vrot.slane %v4910, %v4975
        %v4977 = vlaneseq
        %v4978 = vshrl.u32 %v4977, 7
        %v4979 = vsub.s32 0, %v4978
        %v4980 = vrot.slane %v4893, %v4979
        %v4981 = vlaneseq
        %v4982 = vshrl.u32 %v4981, 7
        %v4983 = vsub.s32 0, %v4982
        %v4984 = vrot.slane %v4907, %v4983
        %v4985 = vlaneseq
        %v4986 = vshrl.u32 %v4985, 7
        %v4987 = vsub.s32 0, %v4986
        %v4988 = vrot.slane %v4909, %v4987
        %v4989 = vlaneseq
        %v4990 = vshrl.u32 %v4989, 7
        %v4991 = vsub.s32 0, %v4990
        %v4992 = vrot.slane %v4911, %v4991
        %v4993 = vlaneseq
        %v4994 = vshrl.u32 %v4993, 7
        %v4995 = vsub.s32 0, %v4994
        %v4996 = vrot.slane %v4935, %v4995
        %v4997 = vlaneseq
        %v4998 = vshrl.u32 %v4997, 7
        %v4999 = vsub.s32 0, %v4998
        %v5000 = vrot.slane %v4949, %v4999
        %v5001 = vlaneseq
        %v5002 = vshrl.u32 %v5001, 7
        %v5003 = vsub.s32 0, %v5002
        %v5004 = vrot.slane %v4957, %v5003
        %v5005 = vlaneseq
        %v5006 = vshrl.u32 %v5005, 7
        %v5007 = vsub.s32 0, %v5006
        %v5008 = vrot.slane %v4959, %v5007
        %v5009 = vlaneseq
        %v5010 = vshrl.u32 %v5009, 7
        %v5011 = vsub.s32 0, %v5010
        %v5012 = vrot.slane %v4942, %v5011
        %v5013 = vlaneseq
        %v5014 = vshrl.u32 %v5013, 7
        %v5015 = vsub.s32 0, %v5014
        %v5016 = vrot.slane %v4956, %v5015
        %v5017 = vlaneseq
        %v5018 = vshrl.u32 %v5017, 7
        %v5019 = vsub.s32 0, %v5018
        %v5020 = vrot.slane %v4958, %v5019
        %v5021 = vlaneseq
        %v5022 = vshrl.u32 %v5021, 7
        %v5023 = vsub.s32 0, %v5022
        %v5024 = vrot.slane %v4960, %v5023
        %v5041 = vadd.f32 %v4964, %v4393
        %v5042 = vadd.f32 %v4964, %v4394
        %v5043 = vadd.f32 %v4968, %v4393
        %v5044 = vadd.f32 %v4968, %v4394
        %v5045 = vadd.f32 %v4972, %v4393
        %v5046 = vadd.f32 %v4972, %v4394
        %v5047 = vadd.f32 %v4976, %v4393
        %v5048 = vadd.f32 %v4976, %v4394
        %v5049 = vadd.f32 %v4980, %v4393
        %v5050 = vadd.f32 %v4980, %v4394
        %v5051 = vadd.f32 %v4984, %v4393
        %v5052 = vadd.f32 %v4984, %v4394
        %v5053 = vadd.f32 %v4988, %v4393
        %v5054 = vadd.f32 %v4988, %v4394
        %v5055 = vadd.f32 %v4992, %v4393
        %v5056 = vadd.f32 %v4992, %v4394
        %v5057 = vadd.f32 %v4996, %v4393
        %v5058 = vadd.f32 %v4996, %v4394
        %v5059 = vadd.f32 %v5000, %v4393
        %v5060 = vadd.f32 %v5000, %v4394
        %v5061 = vadd.f32 %v5004, %v4393
        %v5062 = vadd.f32 %v5004, %v4394
        %v5063 = vadd.f32 %v5008, %v4393
        %v5064 = vadd.f32 %v5008, %v4394
        %v5065 = vadd.f32 %v5012, %v4393
        %v5066 = vadd.f32 %v5012, %v4394
        %v5067 = vadd.f32 %v5016, %v4393
        %v5068 = vadd.f32 %v5016, %v4394
        %v5069 = vadd.f32 %v5020, %v4393
        %v5070 = vadd.f32 %v5020, %v4394
        %v5071 = vadd.f32 %v5024, %v4393
        %v5072 = vadd.f32 %v5024, %v4394
        %v5073 = vlaneseq
        %v5074 = vshrl.u32 %v5073, 7
        %v5075 = vsub.s32 0, %v5074
        %v5076 = vrot.slane %v4164, %v5075
        %5078 = vbcast.lane.b32.xlu0 %v5076, 256
        %v5079 = vpop.permute.xlu0 %5078
        %s5081 = sor.u32 256, 8
        %5082 = vbcast.lane.b32.xlu0 %v5076, %s5081
        %v5083 = vpop.permute.xlu0 %5082
        %v5084 = vlaneseq
        %v5085 = vshrl.u32 %v5084, 7
        %v5086 = vsub.s32 1, %v5085
        %v5087 = vrot.slane %v4164, %v5086
        %5089 = vbcast.lane.b32.xlu0 %v5087, 256
        %v5090 = vpop.permute.xlu0 %5089
        %s5092 = sor.u32 256, 8
        %5093 = vbcast.lane.b32.xlu0 %v5087, %s5092
        %v5094 = vpop.permute.xlu0 %5093
        %v5095 = vlaneseq
        %v5096 = vshrl.u32 %v5095, 7
        %v5097 = vsub.s32 2, %v5096
        %v5098 = vrot.slane %v4164, %v5097
        %5100 = vbcast.lane.b32.xlu0 %v5098, 256
        %v5101 = vpop.permute.xlu0 %5100
        %s5103 = sor.u32 256, 8
        %5104 = vbcast.lane.b32.xlu0 %v5098, %s5103
        %v5105 = vpop.permute.xlu0 %5104
        %v5106 = vlaneseq
        %v5107 = vshrl.u32 %v5106, 7
        %v5108 = vsub.s32 3, %v5107
        %v5109 = vrot.slane %v4164, %v5108
        %5111 = vbcast.lane.b32.xlu0 %v5109, 256
        %v5112 = vpop.permute.xlu0 %5111
        %s5114 = sor.u32 256, 8
        %5115 = vbcast.lane.b32.xlu0 %v5109, %s5114
        %v5116 = vpop.permute.xlu0 %5115
        %v5117 = vlaneseq
        %v5118 = vshrl.u32 %v5117, 7
        %v5119 = vsub.s32 4, %v5118
        %v5120 = vrot.slane %v4164, %v5119
        %5122 = vbcast.lane.b32.xlu0 %v5120, 256
        %v5123 = vpop.permute.xlu0 %5122
        %s5125 = sor.u32 256, 8
        %5126 = vbcast.lane.b32.xlu0 %v5120, %s5125
        %v5127 = vpop.permute.xlu0 %5126
        %v5128 = vlaneseq
        %v5129 = vshrl.u32 %v5128, 7
        %v5130 = vsub.s32 5, %v5129
        %v5131 = vrot.slane %v4164, %v5130
        %5133 = vbcast.lane.b32.xlu0 %v5131, 256
        %v5134 = vpop.permute.xlu0 %5133
        %s5136 = sor.u32 256, 8
        %5137 = vbcast.lane.b32.xlu0 %v5131, %s5136
        %v5138 = vpop.permute.xlu0 %5137
        %v5139 = vlaneseq
        %v5140 = vshrl.u32 %v5139, 7
        %v5141 = vsub.s32 6, %v5140
        %v5142 = vrot.slane %v4164, %v5141
        %5144 = vbcast.lane.b32.xlu0 %v5142, 256
        %v5145 = vpop.permute.xlu0 %5144
        %s5147 = sor.u32 256, 8
        %5148 = vbcast.lane.b32.xlu0 %v5142, %s5147
        %v5149 = vpop.permute.xlu0 %5148
        %v5150 = vlaneseq
        %v5151 = vshrl.u32 %v5150, 7
        %v5152 = vsub.s32 7, %v5151
        %v5153 = vrot.slane %v4164, %v5152
        %5155 = vbcast.lane.b32.xlu0 %v5153, 256
        %v5156 = vpop.permute.xlu0 %5155
        %s5158 = sor.u32 256, 8
        %5159 = vbcast.lane.b32.xlu0 %v5153, %s5158
        %v5160 = vpop.permute.xlu0 %5159
        %v5161 = vlaneseq
        %v5162 = vshrl.u32 %v5161, 7
        %v5163 = vsub.s32 0, %v5162
        %v5164 = vrot.slane %v4165, %v5163
        %5166 = vbcast.lane.b32.xlu0 %v5164, 256
        %v5167 = vpop.permute.xlu0 %5166
        %s5169 = sor.u32 256, 8
        %5170 = vbcast.lane.b32.xlu0 %v5164, %s5169
        %v5171 = vpop.permute.xlu0 %5170
        %v5172 = vlaneseq
        %v5173 = vshrl.u32 %v5172, 7
        %v5174 = vsub.s32 1, %v5173
        %v5175 = vrot.slane %v4165, %v5174
        %5177 = vbcast.lane.b32.xlu0 %v5175, 256
        %v5178 = vpop.permute.xlu0 %5177
        %s5180 = sor.u32 256, 8
        %5181 = vbcast.lane.b32.xlu0 %v5175, %s5180
        %v5182 = vpop.permute.xlu0 %5181
        %v5183 = vlaneseq
        %v5184 = vshrl.u32 %v5183, 7
        %v5185 = vsub.s32 2, %v5184
        %v5186 = vrot.slane %v4165, %v5185
        %5188 = vbcast.lane.b32.xlu0 %v5186, 256
        %v5189 = vpop.permute.xlu0 %5188
        %s5191 = sor.u32 256, 8
        %5192 = vbcast.lane.b32.xlu0 %v5186, %s5191
        %v5193 = vpop.permute.xlu0 %5192
        %v5194 = vlaneseq
        %v5195 = vshrl.u32 %v5194, 7
        %v5196 = vsub.s32 3, %v5195
        %v5197 = vrot.slane %v4165, %v5196
        %5199 = vbcast.lane.b32.xlu0 %v5197, 256
        %v5200 = vpop.permute.xlu0 %5199
        %s5202 = sor.u32 256, 8
        %5203 = vbcast.lane.b32.xlu0 %v5197, %s5202
        %v5204 = vpop.permute.xlu0 %5203
        %v5205 = vlaneseq
        %v5206 = vshrl.u32 %v5205, 7
        %v5207 = vsub.s32 4, %v5206
        %v5208 = vrot.slane %v4165, %v5207
        %5210 = vbcast.lane.b32.xlu0 %v5208, 256
        %v5211 = vpop.permute.xlu0 %5210
        %s5213 = sor.u32 256, 8
        %5214 = vbcast.lane.b32.xlu0 %v5208, %s5213
        %v5215 = vpop.permute.xlu0 %5214
        %v5216 = vlaneseq
        %v5217 = vshrl.u32 %v5216, 7
        %v5218 = vsub.s32 5, %v5217
        %v5219 = vrot.slane %v4165, %v5218
        %5221 = vbcast.lane.b32.xlu0 %v5219, 256
        %v5222 = vpop.permute.xlu0 %5221
        %s5224 = sor.u32 256, 8
        %5225 = vbcast.lane.b32.xlu0 %v5219, %s5224
        %v5226 = vpop.permute.xlu0 %5225
        %v5227 = vlaneseq
        %v5228 = vshrl.u32 %v5227, 7
        %v5229 = vsub.s32 6, %v5228
        %v5230 = vrot.slane %v4165, %v5229
        %5232 = vbcast.lane.b32.xlu0 %v5230, 256
        %v5233 = vpop.permute.xlu0 %5232
        %s5235 = sor.u32 256, 8
        %5236 = vbcast.lane.b32.xlu0 %v5230, %s5235
        %v5237 = vpop.permute.xlu0 %5236
        %v5238 = vlaneseq
        %v5239 = vshrl.u32 %v5238, 7
        %v5240 = vsub.s32 7, %v5239
        %v5241 = vrot.slane %v4165, %v5240
        %5243 = vbcast.lane.b32.xlu0 %v5241, 256
        %v5244 = vpop.permute.xlu0 %5243
        %s5246 = sor.u32 256, 8
        %5247 = vbcast.lane.b32.xlu0 %v5241, %s5246
        %v5248 = vpop.permute.xlu0 %5247
        %v5249 = vadd.f32 %v5041, %v5079
        %v5250 = vadd.f32 %v5042, %v5083
        %v5251 = vadd.f32 %v5043, %v5090
        %v5252 = vadd.f32 %v5044, %v5094
        %v5253 = vadd.f32 %v5045, %v5101
        %v5254 = vadd.f32 %v5046, %v5105
        %v5255 = vadd.f32 %v5047, %v5112
        %v5256 = vadd.f32 %v5048, %v5116
        %v5257 = vadd.f32 %v5049, %v5123
        %v5258 = vadd.f32 %v5050, %v5127
        %v5259 = vadd.f32 %v5051, %v5134
        %v5260 = vadd.f32 %v5052, %v5138
        %v5261 = vadd.f32 %v5053, %v5145
        %v5262 = vadd.f32 %v5054, %v5149
        %v5263 = vadd.f32 %v5055, %v5156
        %v5264 = vadd.f32 %v5056, %v5160
        %v5265 = vadd.f32 %v5057, %v5167
        %v5266 = vadd.f32 %v5058, %v5171
        %v5267 = vadd.f32 %v5059, %v5178
        %v5268 = vadd.f32 %v5060, %v5182
        %v5269 = vadd.f32 %v5061, %v5189
        %v5270 = vadd.f32 %v5062, %v5193
        %v5271 = vadd.f32 %v5063, %v5200
        %v5272 = vadd.f32 %v5064, %v5204
        %v5273 = vadd.f32 %v5065, %v5211
        %v5274 = vadd.f32 %v5066, %v5215
        %v5275 = vadd.f32 %v5067, %v5222
        %v5276 = vadd.f32 %v5068, %v5226
        %v5277 = vadd.f32 %v5069, %v5233
        %v5278 = vadd.f32 %v5070, %v5237
        %v5279 = vadd.f32 %v5071, %v5244
        %v5280 = vadd.f32 %v5072, %v5248
        %v5281 = vmul.f32 %v5249, 0.33333334
        %v5282 = vmul.f32 %v5250, 0.33333334
        %v5283 = vmul.f32 %v5251, 0.33333334
        %v5284 = vmul.f32 %v5252, 0.33333334
        %v5285 = vmul.f32 %v5253, 0.33333334
        %v5286 = vmul.f32 %v5254, 0.33333334
        %v5287 = vmul.f32 %v5255, 0.33333334
        %v5288 = vmul.f32 %v5256, 0.33333334
        %v5289 = vmul.f32 %v5257, 0.33333334
        %v5290 = vmul.f32 %v5258, 0.33333334
        %v5291 = vmul.f32 %v5259, 0.33333334
        %v5292 = vmul.f32 %v5260, 0.33333334
        %v5293 = vmul.f32 %v5261, 0.33333334
        %v5294 = vmul.f32 %v5262, 0.33333334
        %v5295 = vmul.f32 %v5263, 0.33333334
        %v5296 = vmul.f32 %v5264, 0.33333334
        %v5297 = vmul.f32 %v5265, 0.33333334
        %v5298 = vmul.f32 %v5266, 0.33333334
        %v5299 = vmul.f32 %v5267, 0.33333334
        %v5300 = vmul.f32 %v5268, 0.33333334
        %v5301 = vmul.f32 %v5269, 0.33333334
        %v5302 = vmul.f32 %v5270, 0.33333334
        %v5303 = vmul.f32 %v5271, 0.33333334
        %v5304 = vmul.f32 %v5272, 0.33333334
        %v5305 = vmul.f32 %v5273, 0.33333334
        %v5306 = vmul.f32 %v5274, 0.33333334
        %v5307 = vmul.f32 %v5275, 0.33333334
        %v5308 = vmul.f32 %v5276, 0.33333334
        %v5309 = vmul.f32 %v5277, 0.33333334
        %v5310 = vmul.f32 %v5278, 0.33333334
        %v5311 = vmul.f32 %v5279, 0.33333334
        %v5312 = vmul.f32 %v5280, 0.33333334
        %v5313 = vmul.f32 %v3341, %v5281
        %v5314 = vmul.f32 %v3342, %v5282
        %v5315 = vmul.f32 %v3343, %v5283
        %v5316 = vmul.f32 %v3344, %v5284
        %v5317 = vmul.f32 %v3345, %v5285
        %v5318 = vmul.f32 %v3346, %v5286
        %v5319 = vmul.f32 %v3347, %v5287
        %v5320 = vmul.f32 %v3348, %v5288
        %v5321 = vmul.f32 %v3349, %v5289
        %v5322 = vmul.f32 %v3350, %v5290
        %v5323 = vmul.f32 %v3351, %v5291
        %v5324 = vmul.f32 %v3352, %v5292
        %v5325 = vmul.f32 %v3353, %v5293
        %v5326 = vmul.f32 %v3354, %v5294
        %v5327 = vmul.f32 %v3355, %v5295
        %v5328 = vmul.f32 %v3356, %v5296
        %v5329 = vmul.f32 %v3357, %v5297
        %v5330 = vmul.f32 %v3358, %v5298
        %v5331 = vmul.f32 %v3359, %v5299
        %v5332 = vmul.f32 %v3360, %v5300
        %v5333 = vmul.f32 %v3361, %v5301
        %v5334 = vmul.f32 %v3362, %v5302
        %v5335 = vmul.f32 %v3363, %v5303
        %v5336 = vmul.f32 %v3364, %v5304
        %v5337 = vmul.f32 %v3365, %v5305
        %v5338 = vmul.f32 %v3366, %v5306
        %v5339 = vmul.f32 %v3367, %v5307
        %v5340 = vmul.f32 %v3368, %v5308
        %v5341 = vmul.f32 %v3369, %v5309
        %v5342 = vmul.f32 %v3370, %v5310
        %v5343 = vmul.f32 %v3371, %v5311
        %v5344 = vmul.f32 %v3372, %v5312
        %v5345 = vunpack.c.l.bf16 %v375
        %v5346 = vunpack.c.l.bf16 %v376
        %v5347 = vunpack.c.l.bf16 %v377
        %v5348 = vunpack.c.l.bf16 %v378
        %v5349 = vunpack.c.l.bf16 %v379
        %v5350 = vunpack.c.l.bf16 %v380
        %v5351 = vunpack.c.l.bf16 %v381
        %v5352 = vunpack.c.l.bf16 %v382
        %v5353 = vunpack.c.l.bf16 %v383
        %v5354 = vunpack.c.l.bf16 %v384
        %v5355 = vunpack.c.l.bf16 %v385
        %v5356 = vunpack.c.l.bf16 %v386
        %v5357 = vunpack.c.l.bf16 %v387
        %v5358 = vunpack.c.l.bf16 %v388
        %v5359 = vunpack.c.l.bf16 %v389
        %v5360 = vunpack.c.l.bf16 %v390
        %v5361 = vunpack.c.l.bf16 %v391
        %v5362 = vunpack.c.l.bf16 %v392
        %v5363 = vunpack.c.l.bf16 %v393
        %v5364 = vunpack.c.l.bf16 %v394
        %v5365 = vunpack.c.l.bf16 %v395
        %v5366 = vunpack.c.l.bf16 %v396
        %v5367 = vunpack.c.l.bf16 %v397
        %v5368 = vunpack.c.l.bf16 %v398
        %v5369 = vunpack.c.l.bf16 %v399
        %v5370 = vunpack.c.l.bf16 %v400
        %v5371 = vunpack.c.l.bf16 %v401
        %v5372 = vunpack.c.l.bf16 %v402
        %v5373 = vunpack.c.l.bf16 %v403
        %v5374 = vunpack.c.l.bf16 %v404
        %v5375 = vunpack.c.l.bf16 %v405
        %v5376 = vunpack.c.l.bf16 %v406
        %v5377 = vadd.f32 %v5313, %v5345
        %v5378 = vadd.f32 %v5314, %v5346
        %v5379 = vadd.f32 %v5315, %v5347
        %v5380 = vadd.f32 %v5316, %v5348
        %v5381 = vadd.f32 %v5317, %v5349
        %v5382 = vadd.f32 %v5318, %v5350
        %v5383 = vadd.f32 %v5319, %v5351
        %v5384 = vadd.f32 %v5320, %v5352
        %v5385 = vadd.f32 %v5321, %v5353
        %v5386 = vadd.f32 %v5322, %v5354
        %v5387 = vadd.f32 %v5323, %v5355
        %v5388 = vadd.f32 %v5324, %v5356
        %v5389 = vadd.f32 %v5325, %v5357
        %v5390 = vadd.f32 %v5326, %v5358
        %v5391 = vadd.f32 %v5327, %v5359
        %v5392 = vadd.f32 %v5328, %v5360
        %v5393 = vadd.f32 %v5329, %v5361
        %v5394 = vadd.f32 %v5330, %v5362
        %v5395 = vadd.f32 %v5331, %v5363
        %v5396 = vadd.f32 %v5332, %v5364
        %v5397 = vadd.f32 %v5333, %v5365
        %v5398 = vadd.f32 %v5334, %v5366
        %v5399 = vadd.f32 %v5335, %v5367
        %v5400 = vadd.f32 %v5336, %v5368
        %v5401 = vadd.f32 %v5337, %v5369
        %v5402 = vadd.f32 %v5338, %v5370
        %v5403 = vadd.f32 %v5339, %v5371
        %v5404 = vadd.f32 %v5340, %v5372
        %v5405 = vadd.f32 %v5341, %v5373
        %v5406 = vadd.f32 %v5342, %v5374
        %v5407 = vadd.f32 %v5343, %v5375
        %v5408 = vadd.f32 %v5344, %v5376
        %5409 = vst.msk [vmem:[%s373] sm:$0xff] %vm495, %v5377
        %5410 = vst.msk [vmem:[%s373 + $0x8] sm:$0xff] %vm495, %v5378
        %5411 = vst.msk [vmem:[%s373 + $0x10] sm:$0xff] %vm495, %v5379
        %5412 = vst.msk [vmem:[%s373 + $0x18] sm:$0xff] %vm495, %v5380
        %5413 = vst.msk [vmem:[%s373 + $0x20] sm:$0xff] %vm495, %v5381
        %5414 = vst.msk [vmem:[%s373 + $0x28] sm:$0xff] %vm495, %v5382
        %5415 = vst.msk [vmem:[%s373 + $0x30] sm:$0xff] %vm495, %v5383
        %5416 = vst.msk [vmem:[%s373 + $0x38] sm:$0xff] %vm495, %v5384
        %5417 = vst.msk [vmem:[%s373 + $0x40] sm:$0xff] %vm495, %v5385
        %5418 = vst.msk [vmem:[%s373 + $0x48] sm:$0xff] %vm495, %v5386
        %5419 = vst.msk [vmem:[%s373 + $0x50] sm:$0xff] %vm495, %v5387
        %5420 = vst.msk [vmem:[%s373 + $0x58] sm:$0xff] %vm495, %v5388
        %5421 = vst.msk [vmem:[%s373 + $0x60] sm:$0xff] %vm495, %v5389
        %5422 = vst.msk [vmem:[%s373 + $0x68] sm:$0xff] %vm495, %v5390
        %5423 = vst.msk [vmem:[%s373 + $0x70] sm:$0xff] %vm495, %v5391
        %5424 = vst.msk [vmem:[%s373 + $0x78] sm:$0xff] %vm495, %v5392
        %5425 = vst.msk [vmem:[%s373 + $0x80] sm:$0xff] %vm495, %v5393
        %5426 = vst.msk [vmem:[%s373 + $0x88] sm:$0xff] %vm495, %v5394
        %5427 = vst.msk [vmem:[%s373 + $0x90] sm:$0xff] %vm495, %v5395
        %5428 = vst.msk [vmem:[%s373 + $0x98] sm:$0xff] %vm495, %v5396
        %5429 = vst.msk [vmem:[%s373 + $0xa0] sm:$0xff] %vm495, %v5397
        %5430 = vst.msk [vmem:[%s373 + $0xa8] sm:$0xff] %vm495, %v5398
        %5431 = vst.msk [vmem:[%s373 + $0xb0] sm:$0xff] %vm495, %v5399
        %5432 = vst.msk [vmem:[%s373 + $0xb8] sm:$0xff] %vm495, %v5400
        %5433 = vst.msk [vmem:[%s373 + $0xc0] sm:$0xff] %vm495, %v5401
        %5434 = vst.msk [vmem:[%s373 + $0xc8] sm:$0xff] %vm495, %v5402
        %5435 = vst.msk [vmem:[%s373 + $0xd0] sm:$0xff] %vm495, %v5403
        %5436 = vst.msk [vmem:[%s373 + $0xd8] sm:$0xff] %vm495, %v5404
        %5437 = vst.msk [vmem:[%s373 + $0xe0] sm:$0xff] %vm495, %v5405
        %5438 = vst.msk [vmem:[%s373 + $0xe8] sm:$0xff] %vm495, %v5406
        %5439 = vst.msk [vmem:[%s373 + $0xf0] sm:$0xff] %vm495, %v5407
        %5440 = vst.msk [vmem:[%s373 + $0xf8] sm:$0xff] %vm495, %v5408
        %p5441 = scmp.lt.s32.totalorder %s22, 1
        %s5442 = scalar_select %p5441, %s22, 1
        %s5443 = smul.addr %s5442, 32
        %s5444 = smul.addr %s5443, 8
        %s5445 = scalar_lea.vmem %s10, %s5444
        // Predicated region
        $region65: #{tpu_custom_call.1} parent=59 // pred_check
          %p5446 = pneg %p255
        $region66: #{tpu_custom_call.1} parent=59 // pred_check_branch
          %5448 = sbr.rel (%p5446) target = $region68
        $region67: #{tpu_custom_call.1} parent=59 // pred_region
          _
        $region68: #{tpu_custom_call.1} parent=59 // pred_fallthru
          _
      $region60: #{tpu_custom_call.1} parent=5 // pred_fallthru
        _
      %p5449 = scmp.le.s32.totalorder 2, %s17
      // Predicated region
      $region69: #{tpu_custom_call.1} parent=5 // pred_check
        %p5450 = pneg %p5449
      $region70: #{tpu_custom_call.1} parent=5 // pred_check_branch
        %5452 = sbr.rel (%p5450) target = $region72
      $region71: #{tpu_custom_call.1} parent=5 // pred_region
        %s5453 = ssub.s32 %s17, 2
        // Predicated region
        $region73: #{tpu_custom_call.1} parent=71 // pred_check
          %p5454 = pneg %p261
        $region74: #{tpu_custom_call.1} parent=71 // pred_check_branch
          %5456 = sbr.rel (%p5454) target = $region76
        $region75: #{tpu_custom_call.1} parent=71 // pred_region
          %p5457 = scmp.lt.s32.totalorder %s23, 1
          %s5458 = scalar_select %p5457, %s23, 1
          %s5459 = smul.addr %s5458, 32
          %s5460 = smul.addr %s5459, 8
          %s5461 = scalar_lea.vmem %s10, %s5460
        $region76: #{tpu_custom_call.1} parent=71 // pred_fallthru
          _
      $region72: #{tpu_custom_call.1} parent=5 // pred_fallthru
        _
    $region6: #{tpu_custom_call.1} parent=1 // loop_footer
      %s21 = sadd.s32 1, %s17
    $region7: #{tpu_custom_call.1} parent=1 // loop_footer_branch
      %16 = sbr.rel target = $region3
    $region8: #{tpu_custom_call.1} parent=1 // loop_exit
      _
    %5462 = vsyncpa [#allocation3], 1
    %s5463 = scalar_lea.sflag [#allocation3], 1
    %5464 = vsyncpa %s5463, 1

</llo_original>
